<compile_context>
chip_gen: v7x
topology: tpu7x:2x2x1
jax: 0.10.0
libtpu: 0.0.40
codegen_flags: <defaults>
</compile_context>

<pallas_src>
import math
import functools

import jax
import jax.numpy as jnp
from jax import lax
from jax.experimental import pallas as pl
from jax.experimental.pallas import tpu as pltpu  # noqa: F401  (TPU backend)


# ----------------------------------------------------------------- helpers --
def _dot(a, b):
    return jnp.dot(a, b, preferred_element_type=jnp.float32)


def _relu(x):
    return jnp.maximum(x, 0.0)


# ------------------------------------------------- fused Preprocessor kernel --
def _preproc_kernel(treedef, n_w, rm_ref, rp_ref, st_ref, nd_ref, ra_ref, *rest):
    """Entire Preprocessor.forward in one kernel.

    rm = R        (m, n)   (the preprocessor receives R.T, so rm == R_pre.T)
    rp = R.T      (n, m)   (= R_pre)
    st = S.T      (m, n)
    nd = node_data (n, in_node),  ra = Ra_data (m, in_edge)
    Outputs: Hv3 (n, p), He3 (m, in_edge), He_logits3 (m, in_edge).
    """
    w_refs = rest[:n_w]
    hv3_ref, he3_ref, logits_ref = rest[n_w:]
    W = jax.tree_util.tree_unflatten(treedef, [r[...] for r in w_refs])

    Rm = rm_ref[...]
    Rp = rp_ref[...]
    St = st_ref[...]
    nd = nd_ref[...]
    ra = ra_ref[...]

    # Column blocks of B1.T (the concat is never materialized):
    c1 = _dot(Rm, nd)          # (m, in_node) == (node_data.T @ R_pre).T
    c2 = _dot(St, nd)          # (m, in_node) == (node_data.T @ S).T
    # c3 == ra

    # ---- stage 1, node branch: mlp_ve1(B1.T) -> R_pre @ . -> mlp_vv1 -------
    a, b, c, bias = W["ve1_l0"]
    h = _relu(_dot(c1, a) + _dot(c2, b) + _dot(ra, c) + bias)
    w_, bias = W["ve1_l1"]; h = _relu(_dot(h, w_) + bias)
    w_, bias = W["ve1_l2"]; he = _dot(h, w_) + bias               # (m, q)
    hv = _dot(Rp, he)                                             # (n, q)
    a, b, bias = W["vv1_l0"]
    h = _relu(_dot(hv, a) + _dot(nd, b) + bias)
    w_, bias = W["vv1_l1"]; hv2 = _relu(_dot(h, w_) + bias)       # (n, inter)

    # ---- stage 1, edge branch: relu(linear(B1.T, W1, b1)) -> ee1 -> ee2 ----
    wa, wb, wc, bias = W["lin1"]
    h = _relu(_dot(c1, wa) + _dot(c2, wb) + _dot(ra, wc) + bias)  # (m, 50)
    w_, bias = W["ee1_l0"]; h = _relu(_dot(h, w_) + bias)
    w_, bias = W["ee1_l1"]; er1 = _dot(h, w_) + bias              # (m, q)
    a, b, bias = W["ee2_l0"]
    h = _relu(_dot(er1, a) + _dot(ra, b) + bias)
    w_, bias = W["ee2_l1"]; he2 = _relu(_dot(h, w_) + bias)       # (m, inter)

    # Column blocks of B2.T:
    p1 = _dot(Rm, hv2)         # (m, inter) == (Hv2.T @ R_pre).T
    p2 = _dot(St, hv2)         # (m, inter) == (Hv2.T @ S).T
    # p3 == he2

    # ---- stage 2, node branch: mlp_ve2(B2.T) -> R_pre @ . -> mlp_vv2 -------
    a, b, c, bias = W["ve2_l0"]
    h = _relu(_dot(p1, a) + _dot(p2, b) + _dot(he2, c) + bias)
    w_, bias = W["ve2_l1"]; h = _relu(_dot(h, w_) + bias)
    w_, bias = W["ve2_l2"]; he = _dot(h, w_) + bias               # (m, q)
    hv = _dot(Rp, he)                                             # (n, q)
    a, b, bias = W["vv2_l0"]
    h = _relu(_dot(hv, a) + _dot(nd, b) + bias)
    w_, bias = W["vv2_l1"]; hv3 = _relu(_dot(h, w_) + bias)       # (n, p)

    # ---- stage 2, edge branch + fused row-softmax ---------------------------
    wa, wb, wc, bias = W["lin2"]
    h = _relu(_dot(p1, wa) + _dot(p2, wb) + _dot(he2, wc) + bias)  # (m, 50)
    w_, bias = W["ee3_l0"]; h = _relu(_dot(h, w_) + bias)
    w_, bias = W["ee3_l1"]; er2 = _dot(h, w_) + bias               # (m, q)
    a, b, bias = W["ee4_l0"]
    h = _relu(_dot(er2, a) + _dot(ra, b) + bias)
    w_, bias = W["ee4_l1"]; logits = _dot(h, w_) + bias            # (m, in_edge)

    mx = jnp.max(logits, axis=1, keepdims=True)
    e = jnp.exp(logits - mx)
    he3 = e * pl.reciprocal(jnp.sum(e, axis=1, keepdims=True), approx=True)

    hv3_ref[...] = hv3
    he3_ref[...] = he3
    logits_ref[...] = logits


def pl_preprocessor(pre_w, Rm, Rp, St, node_data, Ra_data):
    flat, treedef = jax.tree_util.tree_flatten(pre_w)
    n = node_data.shape[0]
    m, in_edge = Ra_data.shape
    p = pre_w["vv2_l1"][0].shape[1]
    kernel = functools.partial(_preproc_kernel, treedef, len(flat))
    out_shape = (
        jax.ShapeDtypeStruct((n, p), jnp.float32),
        jax.ShapeDtypeStruct((m, in_edge), jnp.float32),
        jax.ShapeDtypeStruct((m, in_edge), jnp.float32),
    )
    # Whole arrays are tiny -> single invocation, everything resident in VMEM.
    return pl.pallas_call(kernel, out_shape=out_shape)(
        Rm, Rp, St, node_data, Ra_data, *flat)


# -------------------------------------------- fused 50-step NEC_Cell kernel --
def _nec_kernel(x0_ref, h_ref, ht_ref, b_ref, wve_ref, wev_ref, out_ref, *,
                iters, unroll):
    H = h_ref[...]
    Ht = ht_ref[...]
    Bm = b_ref[...]
    Wve = wve_ref[...]
    Wev = wev_ref[...]

    def step(X):
        s1 = _relu(_dot(_dot(Wve, X), H))        # (q, m)
        # Reassociated: W_ev @ (s1 @ H.T) == (W_ev @ s1) @ H.T, fewer MACs.
        s2 = _dot(Wev, _dot(s1, Ht))             # (p, n)
        return _relu(s2 + Bm)

    X = x0_ref[...]
    n_outer, rem = divmod(iters, unroll)

    def outer(_, Xc):
        for _u in range(unroll):                 # static unroll inside the loop body
            Xc = step(Xc)
        return Xc

    X = lax.fori_loop(0, n_outer, outer, X)
    for _u in range(rem):
        X = step(X)

    out_ref[...] = Bm + X                        # fused: Hv_out = Hv.T + X_fixedpoint


def pl_nec_fixed_point(X0, H, Ht, B, W_ve, W_ev, *, iters=50, unroll=10):
    p, n = X0.shape
    kernel = functools.partial(_nec_kernel, iters=iters, unroll=unroll)
    return pl.pallas_call(
        kernel, out_shape=jax.ShapeDtypeStruct((p, n), jnp.float32),
    )(X0, H, Ht, B, W_ve, W_ev)


# ---------------------------------------------------------- params / glue ---
def init_linear(key, in_dim, out_dim):
    k1, k2 = jax.random.split(key)
    bound = 1.0 / math.sqrt(in_dim)
    W = jax.random.uniform(k1, (out_dim, in_dim), jnp.float32, -bound, bound)
    b = jax.random.uniform(k2, (out_dim,), jnp.float32, -bound, bound)
    return W, b


def init_mlp(key, dims):
    keys = jax.random.split(key, len(dims) - 1)
    return [init_linear(keys[i], dims[i], dims[i + 1]) for i in range(len(dims) - 1)]


def trunc_normal(key, shape, std=0.1):
    return jax.random.truncated_normal(key, -2.0, 2.0, shape, jnp.float32) * std


def init_params(key, in_node, in_edge, p, q, inter=5, hidden=50):
    ks = jax.random.split(key, 16)
    params = {
        "mlp_ve1": init_mlp(ks[0], [2 * in_node + in_edge, hidden, hidden, q]),
        "mlp_vv1": init_mlp(ks[1], [q + in_node, hidden, inter]),
        "mlp_ee1": init_mlp(ks[2], [hidden, hidden, q]),
        "mlp_ee2": init_mlp(ks[3], [q + in_edge, hidden, inter]),
        "mlp_ve2": init_mlp(ks[4], [3 * inter, hidden, hidden, q]),
        "mlp_vv2": init_mlp(ks[5], [q + in_node, hidden, p]),
        "mlp_ee3": init_mlp(ks[6], [hidden, hidden, q]),
        "mlp_ee4": init_mlp(ks[7], [q + in_edge, hidden, in_edge]),
        "w1_1": trunc_normal(ks[8], (hidden, in_node)),
        "w1_2": trunc_normal(ks[9], (hidden, in_edge)),
        "b1": jnp.zeros((hidden,), jnp.float32),
        "w2_1": trunc_normal(ks[10], (hidden, inter)),
        "w2_2": trunc_normal(ks[11], (hidden, inter)),
        "b2": jnp.zeros((hidden,), jnp.float32),
    }
    stdv = 1.0 / math.sqrt(p * q)
    params["W_ve"] = jax.random.uniform(ks[12], (q, p), jnp.float32, -stdv, stdv)
    params["W_ev"] = jax.random.uniform(ks[13], (p, q), jnp.float32, -stdv, stdv)
    return params


def prepare_params(params, in_node, in_edge, q, inter):
    """One-time conversion to kernel layout: weights transposed to (in, out)
    f32, biases reshaped to (1, out), and every first layer that consumes a
    torch.cat'ed input split into row blocks (exact, regardless of how the
    original blocks align), so the kernel never materializes a concat."""
    f32 = lambda x: jnp.asarray(x, jnp.float32)
    t = lambda Wm: f32(Wm).T
    rb = lambda bv: f32(bv).reshape(1, -1)

    def split_rows(Wt, sizes):
        out, off = [], 0
        for s in sizes:
            out.append(Wt[off:off + s])
            off += s
        return out

    def lin(layer):
        Wm, bv = layer
        return (t(Wm), rb(bv))

    def lin_split(layer, sizes):
        Wm, bv = layer
        return tuple(split_rows(t(Wm), sizes)) + (rb(bv),)

    ve1, vv1 = params["mlp_ve1"], params["mlp_vv1"]
    ee1, ee2 = params["mlp_ee1"], params["mlp_ee2"]
    ve2, vv2 = params["mlp_ve2"], params["mlp_vv2"]
    ee3, ee4 = params["mlp_ee3"], params["mlp_ee4"]

    w1t = t(jnp.concatenate([params["w1_1"], params["w1_2"], params["w1_1"]], axis=1))
    w2t = t(jnp.concatenate([params["w2_1"], params["w2_2"], params["w2_1"]], axis=1))

    pre = {
        "ve1_l0": lin_split(ve1[0], [in_node, in_node, in_edge]),
        "ve1_l1": lin(ve1[1]),
        "ve1_l2": lin(ve1[2]),
        "vv1_l0": lin_split(vv1[0], [q, in_node]),
        "vv1_l1": lin(vv1[1]),
        "lin1": tuple(split_rows(w1t, [in_node, in_node, in_edge])) + (rb(params["b1"]),),
        "ee1_l0": lin(ee1[0]),
        "ee1_l1": lin(ee1[1]),
        "ee2_l0": lin_split(ee2[0], [q, in_edge]),
        "ee2_l1": lin(ee2[1]),
        "ve2_l0": lin_split(ve2[0], [inter, inter, inter]),
        "ve2_l1": lin(ve2[1]),
        "ve2_l2": lin(ve2[2]),
        "vv2_l0": lin_split(vv2[0], [q, in_node]),
        "vv2_l1": lin(vv2[1]),
        "lin2": tuple(split_rows(w2t, [inter, inter, inter])) + (rb(params["b2"]),),
        "ee3_l0": lin(ee3[0]),
        "ee3_l1": lin(ee3[1]),
        "ee4_l0": lin_split(ee4[0], [q, in_edge]),
        "ee4_l1": lin(ee4[1]),
    }
    return {"pre": pre, "W_ve": f32(params["W_ve"]), "W_ev": f32(params["W_ev"])}


# ------------------------------------------------------------------ forward --
@jax.jit
def inecn_forward(prepped, X_0, R, S, H, E0, F0):
    # TODO(synk): the reference computes torch.linalg.eig(H @ H.T) into a dead
    # local `pf` that is never used; there is no Pallas eig, so it is omitted
    # (under jit it would be DCE'd anyway).

    # Preprocessor is called with R.T as its "R" argument (as in the module):
    #   R_pre = R.T  =>  Rm = R_pre.T = R,  Rp = R_pre = R.T,  St = S.T.
    Hv3, He3, He_logits3 = pl_preprocessor(prepped["pre"], R, R.T, S.T, F0, E0)

    # 50 NEC_Cell iterations + the final Hv.T + X add, fused in one kernel.
    Hv_out = pl_nec_fixed_point(X_0, H, H.T, Hv3.T,
                                prepped["W_ve"], prepped["W_ev"],
                                iters=50, unroll=10)
    return Hv_out, He3, He_logits3


# -------------------------------------------------------------------- main ---
if __name__ == "__main__":
    # small, shape-consistent problem
    in_node, in_edge = 4, 3
    p, q = 8, 6          # nhid_node, nhid_edge
    n, m = 10, 12        # num nodes, num edges
    inter = 5

    key = jax.random.PRNGKey(0)
    kp, kx, kr, ks_, kh, ke, kf = jax.random.split(key, 7)

    params = init_params(kp, in_node, in_edge, p, q, inter)
    prepped = prepare_params(params, in_node, in_edge, q, inter)

    X_0 = jax.random.normal(kx, (p, n), jnp.float32)      # initial equilibrium state
    R = jax.random.normal(kr, (m, n), jnp.float32)        # passed as R (used as R.T inside)
    S = jax.random.normal(ks_, (n, m), jnp.float32)
    H = jax.random.normal(kh, (n, m), jnp.float32) * 0.1  # incidence for NEC_Cell
    E0 = jax.random.normal(ke, (m, in_edge), jnp.float32)  # edge features
    F0 = jax.random.normal(kf, (n, in_node), jnp.float32)  # node features

    Hv_out, He3, He_logits3 = inecn_forward(prepped, X_0, R, S, H, E0, F0)
    jax.block_until_ready((Hv_out, He3, He_logits3))

    assert Hv_out.shape == (p, n)
    assert He3.shape == (m, in_edge)
    assert He_logits3.shape == (m, in_edge)
    assert bool(jnp.all(jnp.isfinite(Hv_out)))
    print("KERNEL_OK")
</pallas_src>

<mosaic_0001>
module attributes {stable_mosaic.version = 11 : i64} {
  func.func @_nec_kernel(%arg0: memref<8x10xf32, #tpu.memory_space<vmem>>, %arg1: memref<10x12xf32, #tpu.memory_space<vmem>>, %arg2: memref<12x10xf32, #tpu.memory_space<vmem>>, %arg3: memref<8x10xf32, #tpu.memory_space<vmem>>, %arg4: memref<6x8xf32, #tpu.memory_space<vmem>>, %arg5: memref<8x6xf32, #tpu.memory_space<vmem>>, %arg6: memref<8x10xf32, #tpu.memory_space<vmem>>) attributes {dimension_semantics = [], scalar_prefetch = 0 : i64, scratch_operands = 0 : i64, tpu.core_type = #tpu.core_type<tc>} {
    %c0 = arith.constant 0 : index
    %c0_0 = arith.constant 0 : index
    %0 = vector.load %arg1[%c0, %c0_0] : memref<10x12xf32, #tpu.memory_space<vmem>>, vector<10x12xf32>
    %c0_1 = arith.constant 0 : index
    %c0_2 = arith.constant 0 : index
    %1 = vector.load %arg2[%c0_1, %c0_2] : memref<12x10xf32, #tpu.memory_space<vmem>>, vector<12x10xf32>
    %c0_3 = arith.constant 0 : index
    %c0_4 = arith.constant 0 : index
    %2 = vector.load %arg3[%c0_3, %c0_4] : memref<8x10xf32, #tpu.memory_space<vmem>>, vector<8x10xf32>
    %c0_5 = arith.constant 0 : index
    %c0_6 = arith.constant 0 : index
    %3 = vector.load %arg4[%c0_5, %c0_6] : memref<6x8xf32, #tpu.memory_space<vmem>>, vector<6x8xf32>
    %c0_7 = arith.constant 0 : index
    %c0_8 = arith.constant 0 : index
    %4 = vector.load %arg5[%c0_7, %c0_8] : memref<8x6xf32, #tpu.memory_space<vmem>>, vector<8x6xf32>
    %c0_9 = arith.constant 0 : index
    %c0_10 = arith.constant 0 : index
    %5 = vector.load %arg0[%c0_9, %c0_10] : memref<8x10xf32, #tpu.memory_space<vmem>>, vector<8x10xf32>
    %c0_i32 = arith.constant 0 : i32
    %c5_i32 = arith.constant 5 : i32
    %6 = arith.addi %c0_i32, %c5_i32 : i32
    %c1_i32 = arith.constant 1 : i32
    %7 = scf.for %arg7 = %c0_i32 to %6 step %c1_i32 iter_args(%arg8 = %5) -> (vector<8x10xf32>)  : i32 {
      %cst = arith.constant dense<0.000000e+00> : vector<6x10xf32>
      %10 = tpu.matmul %3, %arg8, %cst {dimension_numbers = #tpu.dot_dimension_numbers<[1], [0], [0], [1], [0, 0, 1, 1], [], []>} : vector<6x8xf32>, vector<8x10xf32>, vector<6x10xf32> -> vector<6x10xf32>
      %cst_13 = arith.constant dense<0.000000e+00> : vector<6x12xf32>
      %11 = tpu.matmul %10, %0, %cst_13 {dimension_numbers = #tpu.dot_dimension_numbers<[1], [0], [0], [1], [0, 0, 1, 1], [], []>} : vector<6x10xf32>, vector<10x12xf32>, vector<6x12xf32> -> vector<6x12xf32>
      %cst_14 = arith.constant 0.000000e+00 : f32
      %12 = vector.broadcast %cst_14 : f32 to vector<6x12xf32>
      %13 = arith.maximumf %11, %12 : vector<6x12xf32>
      %cst_15 = arith.constant dense<0.000000e+00> : vector<6x10xf32>
      %14 = tpu.matmul %13, %1, %cst_15 {dimension_numbers = #tpu.dot_dimension_numbers<[1], [0], [0], [1], [0, 0, 1, 1], [], []>} : vector<6x12xf32>, vector<12x10xf32>, vector<6x10xf32> -> vector<6x10xf32>
      %cst_16 = arith.constant dense<0.000000e+00> : vector<8x10xf32>
      %15 = tpu.matmul %4, %14, %cst_16 {dimension_numbers = #tpu.dot_dimension_numbers<[1], [0], [0], [1], [0, 0, 1, 1], [], []>} : vector<8x6xf32>, vector<6x10xf32>, vector<8x10xf32> -> vector<8x10xf32>
      %16 = arith.addf %15, %2 : vector<8x10xf32>
      %cst_17 = arith.constant 0.000000e+00 : f32
      %17 = vector.broadcast %cst_17 : f32 to vector<8x10xf32>
      %18 = arith.maximumf %16, %17 : vector<8x10xf32>
      %cst_18 = arith.constant dense<0.000000e+00> : vector<6x10xf32>
      %19 = tpu.matmul %3, %18, %cst_18 {dimension_numbers = #tpu.dot_dimension_numbers<[1], [0], [0], [1], [0, 0, 1, 1], [], []>} : vector<6x8xf32>, vector<8x10xf32>, vector<6x10xf32> -> vector<6x10xf32>
      %cst_19 = arith.constant dense<0.000000e+00> : vector<6x12xf32>
      %20 = tpu.matmul %19, %0, %cst_19 {dimension_numbers = #tpu.dot_dimension_numbers<[1], [0], [0], [1], [0, 0, 1, 1], [], []>} : vector<6x10xf32>, vector<10x12xf32>, vector<6x12xf32> -> vector<6x12xf32>
      %cst_20 = arith.constant 0.000000e+00 : f32
      %21 = vector.broadcast %cst_20 : f32 to vector<6x12xf32>
      %22 = arith.maximumf %20, %21 : vector<6x12xf32>
      %cst_21 = arith.constant dense<0.000000e+00> : vector<6x10xf32>
      %23 = tpu.matmul %22, %1, %cst_21 {dimension_numbers = #tpu.dot_dimension_numbers<[1], [0], [0], [1], [0, 0, 1, 1], [], []>} : vector<6x12xf32>, vector<12x10xf32>, vector<6x10xf32> -> vector<6x10xf32>
      %cst_22 = arith.constant dense<0.000000e+00> : vector<8x10xf32>
      %24 = tpu.matmul %4, %23, %cst_22 {dimension_numbers = #tpu.dot_dimension_numbers<[1], [0], [0], [1], [0, 0, 1, 1], [], []>} : vector<8x6xf32>, vector<6x10xf32>, vector<8x10xf32> -> vector<8x10xf32>
      %25 = arith.addf %24, %2 : vector<8x10xf32>
      %cst_23 = arith.constant 0.000000e+00 : f32
      %26 = vector.broadcast %cst_23 : f32 to vector<8x10xf32>
      %27 = arith.maximumf %25, %26 : vector<8x10xf32>
      %cst_24 = arith.constant dense<0.000000e+00> : vector<6x10xf32>
      %28 = tpu.matmul %3, %27, %cst_24 {dimension_numbers = #tpu.dot_dimension_numbers<[1], [0], [0], [1], [0, 0, 1, 1], [], []>} : vector<6x8xf32>, vector<8x10xf32>, vector<6x10xf32> -> vector<6x10xf32>
      %cst_25 = arith.constant dense<0.000000e+00> : vector<6x12xf32>
      %29 = tpu.matmul %28, %0, %cst_25 {dimension_numbers = #tpu.dot_dimension_numbers<[1], [0], [0], [1], [0, 0, 1, 1], [], []>} : vector<6x10xf32>, vector<10x12xf32>, vector<6x12xf32> -> vector<6x12xf32>
      %cst_26 = arith.constant 0.000000e+00 : f32
      %30 = vector.broadcast %cst_26 : f32 to vector<6x12xf32>
      %31 = arith.maximumf %29, %30 : vector<6x12xf32>
      %cst_27 = arith.constant dense<0.000000e+00> : vector<6x10xf32>
      %32 = tpu.matmul %31, %1, %cst_27 {dimension_numbers = #tpu.dot_dimension_numbers<[1], [0], [0], [1], [0, 0, 1, 1], [], []>} : vector<6x12xf32>, vector<12x10xf32>, vector<6x10xf32> -> vector<6x10xf32>
      %cst_28 = arith.constant dense<0.000000e+00> : vector<8x10xf32>
      %33 = tpu.matmul %4, %32, %cst_28 {dimension_numbers = #tpu.dot_dimension_numbers<[1], [0], [0], [1], [0, 0, 1, 1], [], []>} : vector<8x6xf32>, vector<6x10xf32>, vector<8x10xf32> -> vector<8x10xf32>
      %34 = arith.addf %33, %2 : vector<8x10xf32>
      %cst_29 = arith.constant 0.000000e+00 : f32
      %35 = vector.broadcast %cst_29 : f32 to vector<8x10xf32>
      %36 = arith.maximumf %34, %35 : vector<8x10xf32>
      %cst_30 = arith.constant dense<0.000000e+00> : vector<6x10xf32>
      %37 = tpu.matmul %3, %36, %cst_30 {dimension_numbers = #tpu.dot_dimension_numbers<[1], [0], [0], [1], [0, 0, 1, 1], [], []>} : vector<6x8xf32>, vector<8x10xf32>, vector<6x10xf32> -> vector<6x10xf32>
      %cst_31 = arith.constant dense<0.000000e+00> : vector<6x12xf32>
      %38 = tpu.matmul %37, %0, %cst_31 {dimension_numbers = #tpu.dot_dimension_numbers<[1], [0], [0], [1], [0, 0, 1, 1], [], []>} : vector<6x10xf32>, vector<10x12xf32>, vector<6x12xf32> -> vector<6x12xf32>
      %cst_32 = arith.constant 0.000000e+00 : f32
      %39 = vector.broadcast %cst_32 : f32 to vector<6x12xf32>
      %40 = arith.maximumf %38, %39 : vector<6x12xf32>
      %cst_33 = arith.constant dense<0.000000e+00> : vector<6x10xf32>
      %41 = tpu.matmul %40, %1, %cst_33 {dimension_numbers = #tpu.dot_dimension_numbers<[1], [0], [0], [1], [0, 0, 1, 1], [], []>} : vector<6x12xf32>, vector<12x10xf32>, vector<6x10xf32> -> vector<6x10xf32>
      %cst_34 = arith.constant dense<0.000000e+00> : vector<8x10xf32>
      %42 = tpu.matmul %4, %41, %cst_34 {dimension_numbers = #tpu.dot_dimension_numbers<[1], [0], [0], [1], [0, 0, 1, 1], [], []>} : vector<8x6xf32>, vector<6x10xf32>, vector<8x10xf32> -> vector<8x10xf32>
      %43 = arith.addf %42, %2 : vector<8x10xf32>
      %cst_35 = arith.constant 0.000000e+00 : f32
      %44 = vector.broadcast %cst_35 : f32 to vector<8x10xf32>
      %45 = arith.maximumf %43, %44 : vector<8x10xf32>
      %cst_36 = arith.constant dense<0.000000e+00> : vector<6x10xf32>
      %46 = tpu.matmul %3, %45, %cst_36 {dimension_numbers = #tpu.dot_dimension_numbers<[1], [0], [0], [1], [0, 0, 1, 1], [], []>} : vector<6x8xf32>, vector<8x10xf32>, vector<6x10xf32> -> vector<6x10xf32>
      %cst_37 = arith.constant dense<0.000000e+00> : vector<6x12xf32>
      %47 = tpu.matmul %46, %0, %cst_37 {dimension_numbers = #tpu.dot_dimension_numbers<[1], [0], [0], [1], [0, 0, 1, 1], [], []>} : vector<6x10xf32>, vector<10x12xf32>, vector<6x12xf32> -> vector<6x12xf32>
      %cst_38 = arith.constant 0.000000e+00 : f32
      %48 = vector.broadcast %cst_38 : f32 to vector<6x12xf32>
      %49 = arith.maximumf %47, %48 : vector<6x12xf32>
      %cst_39 = arith.constant dense<0.000000e+00> : vector<6x10xf32>
      %50 = tpu.matmul %49, %1, %cst_39 {dimension_numbers = #tpu.dot_dimension_numbers<[1], [0], [0], [1], [0, 0, 1, 1], [], []>} : vector<6x12xf32>, vector<12x10xf32>, vector<6x10xf32> -> vector<6x10xf32>
      %cst_40 = arith.constant dense<0.000000e+00> : vector<8x10xf32>
      %51 = tpu.matmul %4, %50, %cst_40 {dimension_numbers = #tpu.dot_dimension_numbers<[1], [0], [0], [1], [0, 0, 1, 1], [], []>} : vector<8x6xf32>, vector<6x10xf32>, vector<8x10xf32> -> vector<8x10xf32>
      %52 = arith.addf %51, %2 : vector<8x10xf32>
      %cst_41 = arith.constant 0.000000e+00 : f32
      %53 = vector.broadcast %cst_41 : f32 to vector<8x10xf32>
      %54 = arith.maximumf %52, %53 : vector<8x10xf32>
      %cst_42 = arith.constant dense<0.000000e+00> : vector<6x10xf32>
      %55 = tpu.matmul %3, %54, %cst_42 {dimension_numbers = #tpu.dot_dimension_numbers<[1], [0], [0], [1], [0, 0, 1, 1], [], []>} : vector<6x8xf32>, vector<8x10xf32>, vector<6x10xf32> -> vector<6x10xf32>
      %cst_43 = arith.constant dense<0.000000e+00> : vector<6x12xf32>
      %56 = tpu.matmul %55, %0, %cst_43 {dimension_numbers = #tpu.dot_dimension_numbers<[1], [0], [0], [1], [0, 0, 1, 1], [], []>} : vector<6x10xf32>, vector<10x12xf32>, vector<6x12xf32> -> vector<6x12xf32>
      %cst_44 = arith.constant 0.000000e+00 : f32
      %57 = vector.broadcast %cst_44 : f32 to vector<6x12xf32>
      %58 = arith.maximumf %56, %57 : vector<6x12xf32>
      %cst_45 = arith.constant dense<0.000000e+00> : vector<6x10xf32>
      %59 = tpu.matmul %58, %1, %cst_45 {dimension_numbers = #tpu.dot_dimension_numbers<[1], [0], [0], [1], [0, 0, 1, 1], [], []>} : vector<6x12xf32>, vector<12x10xf32>, vector<6x10xf32> -> vector<6x10xf32>
      %cst_46 = arith.constant dense<0.000000e+00> : vector<8x10xf32>
      %60 = tpu.matmul %4, %59, %cst_46 {dimension_numbers = #tpu.dot_dimension_numbers<[1], [0], [0], [1], [0, 0, 1, 1], [], []>} : vector<8x6xf32>, vector<6x10xf32>, vector<8x10xf32> -> vector<8x10xf32>
      %61 = arith.addf %60, %2 : vector<8x10xf32>
      %cst_47 = arith.constant 0.000000e+00 : f32
      %62 = vector.broadcast %cst_47 : f32 to vector<8x10xf32>
      %63 = arith.maximumf %61, %62 : vector<8x10xf32>
      %cst_48 = arith.constant dense<0.000000e+00> : vector<6x10xf32>
      %64 = tpu.matmul %3, %63, %cst_48 {dimension_numbers = #tpu.dot_dimension_numbers<[1], [0], [0], [1], [0, 0, 1, 1], [], []>} : vector<6x8xf32>, vector<8x10xf32>, vector<6x10xf32> -> vector<6x10xf32>
      %cst_49 = arith.constant dense<0.000000e+00> : vector<6x12xf32>
      %65 = tpu.matmul %64, %0, %cst_49 {dimension_numbers = #tpu.dot_dimension_numbers<[1], [0], [0], [1], [0, 0, 1, 1], [], []>} : vector<6x10xf32>, vector<10x12xf32>, vector<6x12xf32> -> vector<6x12xf32>
      %cst_50 = arith.constant 0.000000e+00 : f32
      %66 = vector.broadcast %cst_50 : f32 to vector<6x12xf32>
      %67 = arith.maximumf %65, %66 : vector<6x12xf32>
      %cst_51 = arith.constant dense<0.000000e+00> : vector<6x10xf32>
      %68 = tpu.matmul %67, %1, %cst_51 {dimension_numbers = #tpu.dot_dimension_numbers<[1], [0], [0], [1], [0, 0, 1, 1], [], []>} : vector<6x12xf32>, vector<12x10xf32>, vector<6x10xf32> -> vector<6x10xf32>
      %cst_52 = arith.constant dense<0.000000e+00> : vector<8x10xf32>
      %69 = tpu.matmul %4, %68, %cst_52 {dimension_numbers = #tpu.dot_dimension_numbers<[1], [0], [0], [1], [0, 0, 1, 1], [], []>} : vector<8x6xf32>, vector<6x10xf32>, vector<8x10xf32> -> vector<8x10xf32>
      %70 = arith.addf %69, %2 : vector<8x10xf32>
      %cst_53 = arith.constant 0.000000e+00 : f32
      %71 = vector.broadcast %cst_53 : f32 to vector<8x10xf32>
      %72 = arith.maximumf %70, %71 : vector<8x10xf32>
      %cst_54 = arith.constant dense<0.000000e+00> : vector<6x10xf32>
      %73 = tpu.matmul %3, %72, %cst_54 {dimension_numbers = #tpu.dot_dimension_numbers<[1], [0], [0], [1], [0, 0, 1, 1], [], []>} : vector<6x8xf32>, vector<8x10xf32>, vector<6x10xf32> -> vector<6x10xf32>
      %cst_55 = arith.constant dense<0.000000e+00> : vector<6x12xf32>
      %74 = tpu.matmul %73, %0, %cst_55 {dimension_numbers = #tpu.dot_dimension_numbers<[1], [0], [0], [1], [0, 0, 1, 1], [], []>} : vector<6x10xf32>, vector<10x12xf32>, vector<6x12xf32> -> vector<6x12xf32>
      %cst_56 = arith.constant 0.000000e+00 : f32
      %75 = vector.broadcast %cst_56 : f32 to vector<6x12xf32>
      %76 = arith.maximumf %74, %75 : vector<6x12xf32>
      %cst_57 = arith.constant dense<0.000000e+00> : vector<6x10xf32>
      %77 = tpu.matmul %76, %1, %cst_57 {dimension_numbers = #tpu.dot_dimension_numbers<[1], [0], [0], [1], [0, 0, 1, 1], [], []>} : vector<6x12xf32>, vector<12x10xf32>, vector<6x10xf32> -> vector<6x10xf32>
      %cst_58 = arith.constant dense<0.000000e+00> : vector<8x10xf32>
      %78 = tpu.matmul %4, %77, %cst_58 {dimension_numbers = #tpu.dot_dimension_numbers<[1], [0], [0], [1], [0, 0, 1, 1], [], []>} : vector<8x6xf32>, vector<6x10xf32>, vector<8x10xf32> -> vector<8x10xf32>
      %79 = arith.addf %78, %2 : vector<8x10xf32>
      %cst_59 = arith.constant 0.000000e+00 : f32
      %80 = vector.broadcast %cst_59 : f32 to vector<8x10xf32>
      %81 = arith.maximumf %79, %80 : vector<8x10xf32>
      %cst_60 = arith.constant dense<0.000000e+00> : vector<6x10xf32>
      %82 = tpu.matmul %3, %81, %cst_60 {dimension_numbers = #tpu.dot_dimension_numbers<[1], [0], [0], [1], [0, 0, 1, 1], [], []>} : vector<6x8xf32>, vector<8x10xf32>, vector<6x10xf32> -> vector<6x10xf32>
      %cst_61 = arith.constant dense<0.000000e+00> : vector<6x12xf32>
      %83 = tpu.matmul %82, %0, %cst_61 {dimension_numbers = #tpu.dot_dimension_numbers<[1], [0], [0], [1], [0, 0, 1, 1], [], []>} : vector<6x10xf32>, vector<10x12xf32>, vector<6x12xf32> -> vector<6x12xf32>
      %cst_62 = arith.constant 0.000000e+00 : f32
      %84 = vector.broadcast %cst_62 : f32 to vector<6x12xf32>
      %85 = arith.maximumf %83, %84 : vector<6x12xf32>
      %cst_63 = arith.constant dense<0.000000e+00> : vector<6x10xf32>
      %86 = tpu.matmul %85, %1, %cst_63 {dimension_numbers = #tpu.dot_dimension_numbers<[1], [0], [0], [1], [0, 0, 1, 1], [], []>} : vector<6x12xf32>, vector<12x10xf32>, vector<6x10xf32> -> vector<6x10xf32>
      %cst_64 = arith.constant dense<0.000000e+00> : vector<8x10xf32>
      %87 = tpu.matmul %4, %86, %cst_64 {dimension_numbers = #tpu.dot_dimension_numbers<[1], [0], [0], [1], [0, 0, 1, 1], [], []>} : vector<8x6xf32>, vector<6x10xf32>, vector<8x10xf32> -> vector<8x10xf32>
      %88 = arith.addf %87, %2 : vector<8x10xf32>
      %cst_65 = arith.constant 0.000000e+00 : f32
      %89 = vector.broadcast %cst_65 : f32 to vector<8x10xf32>
      %90 = arith.maximumf %88, %89 : vector<8x10xf32>
      %cst_66 = arith.constant dense<0.000000e+00> : vector<6x10xf32>
      %91 = tpu.matmul %3, %90, %cst_66 {dimension_numbers = #tpu.dot_dimension_numbers<[1], [0], [0], [1], [0, 0, 1, 1], [], []>} : vector<6x8xf32>, vector<8x10xf32>, vector<6x10xf32> -> vector<6x10xf32>
      %cst_67 = arith.constant dense<0.000000e+00> : vector<6x12xf32>
      %92 = tpu.matmul %91, %0, %cst_67 {dimension_numbers = #tpu.dot_dimension_numbers<[1], [0], [0], [1], [0, 0, 1, 1], [], []>} : vector<6x10xf32>, vector<10x12xf32>, vector<6x12xf32> -> vector<6x12xf32>
      %cst_68 = arith.constant 0.000000e+00 : f32
      %93 = vector.broadcast %cst_68 : f32 to vector<6x12xf32>
      %94 = arith.maximumf %92, %93 : vector<6x12xf32>
      %cst_69 = arith.constant dense<0.000000e+00> : vector<6x10xf32>
      %95 = tpu.matmul %94, %1, %cst_69 {dimension_numbers = #tpu.dot_dimension_numbers<[1], [0], [0], [1], [0, 0, 1, 1], [], []>} : vector<6x12xf32>, vector<12x10xf32>, vector<6x10xf32> -> vector<6x10xf32>
      %cst_70 = arith.constant dense<0.000000e+00> : vector<8x10xf32>
      %96 = tpu.matmul %4, %95, %cst_70 {dimension_numbers = #tpu.dot_dimension_numbers<[1], [0], [0], [1], [0, 0, 1, 1], [], []>} : vector<8x6xf32>, vector<6x10xf32>, vector<8x10xf32> -> vector<8x10xf32>
      %97 = arith.addf %96, %2 : vector<8x10xf32>
      %cst_71 = arith.constant 0.000000e+00 : f32
      %98 = vector.broadcast %cst_71 : f32 to vector<8x10xf32>
      %99 = arith.maximumf %97, %98 : vector<8x10xf32>
      scf.yield %99 : vector<8x10xf32>
    }
    %8 = arith.addf %2, %7 : vector<8x10xf32>
    %c0_11 = arith.constant 0 : index
    %c0_12 = arith.constant 0 : index
    %9 = vector.load %arg6[%c0_11, %c0_12] : memref<8x10xf32, #tpu.memory_space<vmem>>, vector<8x10xf32>
    tpu.vector_store %arg6[%c0_11, %c0_12], %8 {strides = array<i32>} : memref<8x10xf32, #tpu.memory_space<vmem>>, vector<8x10xf32>,
    return
  }
}

module attributes {stable_mosaic.version = 11 : i64} {
  func.func @_preproc_kernel(%arg0: memref<12x10xf32, #tpu.memory_space<vmem>>, %arg1: memref<10x12xf32, #tpu.memory_space<vmem>>, %arg2: memref<12x10xf32, #tpu.memory_space<vmem>>, %arg3: memref<10x4xf32, #tpu.memory_space<vmem>>, %arg4: memref<12x3xf32, #tpu.memory_space<vmem>>, %arg5: memref<50x50xf32, #tpu.memory_space<vmem>>, %arg6: memref<1x50xf32, #tpu.memory_space<vmem>>, %arg7: memref<50x6xf32, #tpu.memory_space<vmem>>, %arg8: memref<1x6xf32, #tpu.memory_space<vmem>>, %arg9: memref<6x50xf32, #tpu.memory_space<vmem>>, %arg10: memref<3x50xf32, #tpu.memory_space<vmem>>, %arg11: memref<1x50xf32, #tpu.memory_space<vmem>>, %arg12: memref<50x5xf32, #tpu.memory_space<vmem>>, %arg13: memref<1x5xf32, #tpu.memory_space<vmem>>, %arg14: memref<50x50xf32, #tpu.memory_space<vmem>>, %arg15: memref<1x50xf32, #tpu.memory_space<vmem>>, %arg16: memref<50x6xf32, #tpu.memory_space<vmem>>, %arg17: memref<1x6xf32, #tpu.memory_space<vmem>>, %arg18: memref<6x50xf32, #tpu.memory_space<vmem>>, %arg19: memref<3x50xf32, #tpu.memory_space<vmem>>, %arg20: memref<1x50xf32, #tpu.memory_space<vmem>>, %arg21: memref<50x3xf32, #tpu.memory_space<vmem>>, %arg22: memref<1x3xf32, #tpu.memory_space<vmem>>, %arg23: memref<4x50xf32, #tpu.memory_space<vmem>>, %arg24: memref<4x50xf32, #tpu.memory_space<vmem>>, %arg25: memref<3x50xf32, #tpu.memory_space<vmem>>, %arg26: memref<1x50xf32, #tpu.memory_space<vmem>>, %arg27: memref<5x50xf32, #tpu.memory_space<vmem>>, %arg28: memref<5x50xf32, #tpu.memory_space<vmem>>, %arg29: memref<5x50xf32, #tpu.memory_space<vmem>>, %arg30: memref<1x50xf32, #tpu.memory_space<vmem>>, %arg31: memref<4x50xf32, #tpu.memory_space<vmem>>, %arg32: memref<4x50xf32, #tpu.memory_space<vmem>>, %arg33: memref<3x50xf32, #tpu.memory_space<vmem>>, %arg34: memref<1x50xf32, #tpu.memory_space<vmem>>, %arg35: memref<50x50xf32, #tpu.memory_space<vmem>>, %arg36: memref<1x50xf32, #tpu.memory_space<vmem>>, %arg37: memref<50x6xf32, #tpu.memory_space<vmem>>, %arg38: memref<1x6xf32, #tpu.memory_space<vmem>>, %arg39: memref<5x50xf32, #tpu.memory_space<vmem>>, %arg40: memref<5x50xf32, #tpu.memory_space<vmem>>, %arg41: memref<5x50xf32, #tpu.memory_space<vmem>>, %arg42: memref<1x50xf32, #tpu.memory_space<vmem>>, %arg43: memref<50x50xf32, #tpu.memory_space<vmem>>, %arg44: memref<1x50xf32, #tpu.memory_space<vmem>>, %arg45: memref<50x6xf32, #tpu.memory_space<vmem>>, %arg46: memref<1x6xf32, #tpu.memory_space<vmem>>, %arg47: memref<6x50xf32, #tpu.memory_space<vmem>>, %arg48: memref<4x50xf32, #tpu.memory_space<vmem>>, %arg49: memref<1x50xf32, #tpu.memory_space<vmem>>, %arg50: memref<50x5xf32, #tpu.memory_space<vmem>>, %arg51: memref<1x5xf32, #tpu.memory_space<vmem>>, %arg52: memref<6x50xf32, #tpu.memory_space<vmem>>, %arg53: memref<4x50xf32, #tpu.memory_space<vmem>>, %arg54: memref<1x50xf32, #tpu.memory_space<vmem>>, %arg55: memref<50x8xf32, #tpu.memory_space<vmem>>, %arg56: memref<1x8xf32, #tpu.memory_space<vmem>>, %arg57: memref<10x8xf32, #tpu.memory_space<vmem>>, %arg58: memref<12x3xf32, #tpu.memory_space<vmem>>, %arg59: memref<12x3xf32, #tpu.memory_space<vmem>>) attributes {dimension_semantics = [], scalar_prefetch = 0 : i64, scratch_operands = 0 : i64, tpu.core_type = #tpu.core_type<tc>} {
    %c0 = arith.constant 0 : index
    %c0_0 = arith.constant 0 : index
    %0 = vector.load %arg5[%c0, %c0_0] : memref<50x50xf32, #tpu.memory_space<vmem>>, vector<50x50xf32>
    %c0_1 = arith.constant 0 : index
    %c0_2 = arith.constant 0 : index
    %1 = vector.load %arg6[%c0_1, %c0_2] : memref<1x50xf32, #tpu.memory_space<vmem>>, vector<1x50xf32>
    %c0_3 = arith.constant 0 : index
    %c0_4 = arith.constant 0 : index
    %2 = vector.load %arg7[%c0_3, %c0_4] : memref<50x6xf32, #tpu.memory_space<vmem>>, vector<50x6xf32>
    %c0_5 = arith.constant 0 : index
    %c0_6 = arith.constant 0 : index
    %3 = vector.load %arg8[%c0_5, %c0_6] : memref<1x6xf32, #tpu.memory_space<vmem>>, vector<1x6xf32>
    %c0_7 = arith.constant 0 : index
    %c0_8 = arith.constant 0 : index
    %4 = vector.load %arg9[%c0_7, %c0_8] : memref<6x50xf32, #tpu.memory_space<vmem>>, vector<6x50xf32>
    %c0_9 = arith.constant 0 : index
    %c0_10 = arith.constant 0 : index
    %5 = vector.load %arg10[%c0_9, %c0_10] : memref<3x50xf32, #tpu.memory_space<vmem>>, vector<3x50xf32>
    %c0_11 = arith.constant 0 : index
    %c0_12 = arith.constant 0 : index
    %6 = vector.load %arg11[%c0_11, %c0_12] : memref<1x50xf32, #tpu.memory_space<vmem>>, vector<1x50xf32>
    %c0_13 = arith.constant 0 : index
    %c0_14 = arith.constant 0 : index
    %7 = vector.load %arg12[%c0_13, %c0_14] : memref<50x5xf32, #tpu.memory_space<vmem>>, vector<50x5xf32>
    %c0_15 = arith.constant 0 : index
    %c0_16 = arith.constant 0 : index
    %8 = vector.load %arg13[%c0_15, %c0_16] : memref<1x5xf32, #tpu.memory_space<vmem>>, vector<1x5xf32>
    %c0_17 = arith.constant 0 : index
    %c0_18 = arith.constant 0 : index
    %9 = vector.load %arg14[%c0_17, %c0_18] : memref<50x50xf32, #tpu.memory_space<vmem>>, vector<50x50xf32>
    %c0_19 = arith.constant 0 : index
    %c0_20 = arith.constant 0 : index
    %10 = vector.load %arg15[%c0_19, %c0_20] : memref<1x50xf32, #tpu.memory_space<vmem>>, vector<1x50xf32>
    %c0_21 = arith.constant 0 : index
    %c0_22 = arith.constant 0 : index
    %11 = vector.load %arg16[%c0_21, %c0_22] : memref<50x6xf32, #tpu.memory_space<vmem>>, vector<50x6xf32>
    %c0_23 = arith.constant 0 : index
    %c0_24 = arith.constant 0 : index
    %12 = vector.load %arg17[%c0_23, %c0_24] : memref<1x6xf32, #tpu.memory_space<vmem>>, vector<1x6xf32>
    %c0_25 = arith.constant 0 : index
    %c0_26 = arith.constant 0 : index
    %13 = vector.load %arg18[%c0_25, %c0_26] : memref<6x50xf32, #tpu.memory_space<vmem>>, vector<6x50xf32>
    %c0_27 = arith.constant 0 : index
    %c0_28 = arith.constant 0 : index
    %14 = vector.load %arg19[%c0_27, %c0_28] : memref<3x50xf32, #tpu.memory_space<vmem>>, vector<3x50xf32>
    %c0_29 = arith.constant 0 : index
    %c0_30 = arith.constant 0 : index
    %15 = vector.load %arg20[%c0_29, %c0_30] : memref<1x50xf32, #tpu.memory_space<vmem>>, vector<1x50xf32>
    %c0_31 = arith.constant 0 : index
    %c0_32 = arith.constant 0 : index
    %16 = vector.load %arg21[%c0_31, %c0_32] : memref<50x3xf32, #tpu.memory_space<vmem>>, vector<50x3xf32>
    %c0_33 = arith.constant 0 : index
    %c0_34 = arith.constant 0 : index
    %17 = vector.load %arg22[%c0_33, %c0_34] : memref<1x3xf32, #tpu.memory_space<vmem>>, vector<1x3xf32>
    %c0_35 = arith.constant 0 : index
    %c0_36 = arith.constant 0 : index
    %18 = vector.load %arg23[%c0_35, %c0_36] : memref<4x50xf32, #tpu.memory_space<vmem>>, vector<4x50xf32>
    %c0_37 = arith.constant 0 : index
    %c0_38 = arith.constant 0 : index
    %19 = vector.load %arg24[%c0_37, %c0_38] : memref<4x50xf32, #tpu.memory_space<vmem>>, vector<4x50xf32>
    %c0_39 = arith.constant 0 : index
    %c0_40 = arith.constant 0 : index
    %20 = vector.load %arg25[%c0_39, %c0_40] : memref<3x50xf32, #tpu.memory_space<vmem>>, vector<3x50xf32>
    %c0_41 = arith.constant 0 : index
    %c0_42 = arith.constant 0 : index
    %21 = vector.load %arg26[%c0_41, %c0_42] : memref<1x50xf32, #tpu.memory_space<vmem>>, vector<1x50xf32>
    %c0_43 = arith.constant 0 : index
    %c0_44 = arith.constant 0 : index
    %22 = vector.load %arg27[%c0_43, %c0_44] : memref<5x50xf32, #tpu.memory_space<vmem>>, vector<5x50xf32>
    %c0_45 = arith.constant 0 : index
    %c0_46 = arith.constant 0 : index
    %23 = vector.load %arg28[%c0_45, %c0_46] : memref<5x50xf32, #tpu.memory_space<vmem>>, vector<5x50xf32>
    %c0_47 = arith.constant 0 : index
    %c0_48 = arith.constant 0 : index
    %24 = vector.load %arg29[%c0_47, %c0_48] : memref<5x50xf32, #tpu.memory_space<vmem>>, vector<5x50xf32>
    %c0_49 = arith.constant 0 : index
    %c0_50 = arith.constant 0 : index
    %25 = vector.load %arg30[%c0_49, %c0_50] : memref<1x50xf32, #tpu.memory_space<vmem>>, vector<1x50xf32>
    %c0_51 = arith.constant 0 : index
    %c0_52 = arith.constant 0 : index
    %26 = vector.load %arg31[%c0_51, %c0_52] : memref<4x50xf32, #tpu.memory_space<vmem>>, vector<4x50xf32>
    %c0_53 = arith.constant 0 : index
    %c0_54 = arith.constant 0 : index
    %27 = vector.load %arg32[%c0_53, %c0_54] : memref<4x50xf32, #tpu.memory_space<vmem>>, vector<4x50xf32>
    %c0_55 = arith.constant 0 : index
    %c0_56 = arith.constant 0 : index
    %28 = vector.load %arg33[%c0_55, %c0_56] : memref<3x50xf32, #tpu.memory_space<vmem>>, vector<3x50xf32>
    %c0_57 = arith.constant 0 : index
    %c0_58 = arith.constant 0 : index
    %29 = vector.load %arg34[%c0_57, %c0_58] : memref<1x50xf32, #tpu.memory_space<vmem>>, vector<1x50xf32>
    %c0_59 = arith.constant 0 : index
    %c0_60 = arith.constant 0 : index
    %30 = vector.load %arg35[%c0_59, %c0_60] : memref<50x50xf32, #tpu.memory_space<vmem>>, vector<50x50xf32>
    %c0_61 = arith.constant 0 : index
    %c0_62 = arith.constant 0 : index
    %31 = vector.load %arg36[%c0_61, %c0_62] : memref<1x50xf32, #tpu.memory_space<vmem>>, vector<1x50xf32>
    %c0_63 = arith.constant 0 : index
    %c0_64 = arith.constant 0 : index
    %32 = vector.load %arg37[%c0_63, %c0_64] : memref<50x6xf32, #tpu.memory_space<vmem>>, vector<50x6xf32>
    %c0_65 = arith.constant 0 : index
    %c0_66 = arith.constant 0 : index
    %33 = vector.load %arg38[%c0_65, %c0_66] : memref<1x6xf32, #tpu.memory_space<vmem>>, vector<1x6xf32>
    %c0_67 = arith.constant 0 : index
    %c0_68 = arith.constant 0 : index
    %34 = vector.load %arg39[%c0_67, %c0_68] : memref<5x50xf32, #tpu.memory_space<vmem>>, vector<5x50xf32>
    %c0_69 = arith.constant 0 : index
    %c0_70 = arith.constant 0 : index
    %35 = vector.load %arg40[%c0_69, %c0_70] : memref<5x50xf32, #tpu.memory_space<vmem>>, vector<5x50xf32>
    %c0_71 = arith.constant 0 : index
    %c0_72 = arith.constant 0 : index
    %36 = vector.load %arg41[%c0_71, %c0_72] : memref<5x50xf32, #tpu.memory_space<vmem>>, vector<5x50xf32>
    %c0_73 = arith.constant 0 : index
    %c0_74 = arith.constant 0 : index
    %37 = vector.load %arg42[%c0_73, %c0_74] : memref<1x50xf32, #tpu.memory_space<vmem>>, vector<1x50xf32>
    %c0_75 = arith.constant 0 : index
    %c0_76 = arith.constant 0 : index
    %38 = vector.load %arg43[%c0_75, %c0_76] : memref<50x50xf32, #tpu.memory_space<vmem>>, vector<50x50xf32>
    %c0_77 = arith.constant 0 : index
    %c0_78 = arith.constant 0 : index
    %39 = vector.load %arg44[%c0_77, %c0_78] : memref<1x50xf32, #tpu.memory_space<vmem>>, vector<1x50xf32>
    %c0_79 = arith.constant 0 : index
    %c0_80 = arith.constant 0 : index
    %40 = vector.load %arg45[%c0_79, %c0_80] : memref<50x6xf32, #tpu.memory_space<vmem>>, vector<50x6xf32>
    %c0_81 = arith.constant 0 : index
    %c0_82 = arith.constant 0 : index
    %41 = vector.load %arg46[%c0_81, %c0_82] : memref<1x6xf32, #tpu.memory_space<vmem>>, vector<1x6xf32>
    %c0_83 = arith.constant 0 : index
    %c0_84 = arith.constant 0 : index
    %42 = vector.load %arg47[%c0_83, %c0_84] : memref<6x50xf32, #tpu.memory_space<vmem>>, vector<6x50xf32>
    %c0_85 = arith.constant 0 : index
    %c0_86 = arith.constant 0 : index
    %43 = vector.load %arg48[%c0_85, %c0_86] : memref<4x50xf32, #tpu.memory_space<vmem>>, vector<4x50xf32>
    %c0_87 = arith.constant 0 : index
    %c0_88 = arith.constant 0 : index
    %44 = vector.load %arg49[%c0_87, %c0_88] : memref<1x50xf32, #tpu.memory_space<vmem>>, vector<1x50xf32>
    %c0_89 = arith.constant 0 : index
    %c0_90 = arith.constant 0 : index
    %45 = vector.load %arg50[%c0_89, %c0_90] : memref<50x5xf32, #tpu.memory_space<vmem>>, vector<50x5xf32>
    %c0_91 = arith.constant 0 : index
    %c0_92 = arith.constant 0 : index
    %46 = vector.load %arg51[%c0_91, %c0_92] : memref<1x5xf32, #tpu.memory_space<vmem>>, vector<1x5xf32>
    %c0_93 = arith.constant 0 : index
    %c0_94 = arith.constant 0 : index
    %47 = vector.load %arg52[%c0_93, %c0_94] : memref<6x50xf32, #tpu.memory_space<vmem>>, vector<6x50xf32>
    %c0_95 = arith.constant 0 : index
    %c0_96 = arith.constant 0 : index
    %48 = vector.load %arg53[%c0_95, %c0_96] : memref<4x50xf32, #tpu.memory_space<vmem>>, vector<4x50xf32>
    %c0_97 = arith.constant 0 : index
    %c0_98 = arith.constant 0 : index
    %49 = vector.load %arg54[%c0_97, %c0_98] : memref<1x50xf32, #tpu.memory_space<vmem>>, vector<1x50xf32>
    %c0_99 = arith.constant 0 : index
    %c0_100 = arith.constant 0 : index
    %50 = vector.load %arg55[%c0_99, %c0_100] : memref<50x8xf32, #tpu.memory_space<vmem>>, vector<50x8xf32>
    %c0_101 = arith.constant 0 : index
    %c0_102 = arith.constant 0 : index
    %51 = vector.load %arg56[%c0_101, %c0_102] : memref<1x8xf32, #tpu.memory_space<vmem>>, vector<1x8xf32>
    %c0_103 = arith.constant 0 : index
    %c0_104 = arith.constant 0 : index
    %52 = vector.load %arg0[%c0_103, %c0_104] : memref<12x10xf32, #tpu.memory_space<vmem>>, vector<12x10xf32>
    %c0_105 = arith.constant 0 : index
    %c0_106 = arith.constant 0 : index
    %53 = vector.load %arg1[%c0_105, %c0_106] : memref<10x12xf32, #tpu.memory_space<vmem>>, vector<10x12xf32>
    %c0_107 = arith.constant 0 : index
    %c0_108 = arith.constant 0 : index
    %54 = vector.load %arg2[%c0_107, %c0_108] : memref<12x10xf32, #tpu.memory_space<vmem>>, vector<12x10xf32>
    %c0_109 = arith.constant 0 : index
    %c0_110 = arith.constant 0 : index
    %55 = vector.load %arg3[%c0_109, %c0_110] : memref<10x4xf32, #tpu.memory_space<vmem>>, vector<10x4xf32>
    %c0_111 = arith.constant 0 : index
    %c0_112 = arith.constant 0 : index
    %56 = vector.load %arg4[%c0_111, %c0_112] : memref<12x3xf32, #tpu.memory_space<vmem>>, vector<12x3xf32>
    %cst = arith.constant dense<0.000000e+00> : vector<12x4xf32>
    %57 = tpu.matmul %52, %55, %cst {dimension_numbers = #tpu.dot_dimension_numbers<[1], [0], [0], [1], [0, 0, 1, 1], [], []>} : vector<12x10xf32>, vector<10x4xf32>, vector<12x4xf32> -> vector<12x4xf32>
    %cst_113 = arith.constant dense<0.000000e+00> : vector<12x4xf32>
    %58 = tpu.matmul %54, %55, %cst_113 {dimension_numbers = #tpu.dot_dimension_numbers<[1], [0], [0], [1], [0, 0, 1, 1], [], []>} : vector<12x10xf32>, vector<10x4xf32>, vector<12x4xf32> -> vector<12x4xf32>
    %cst_114 = arith.constant dense<0.000000e+00> : vector<12x50xf32>
    %59 = tpu.matmul %57, %26, %cst_114 {dimension_numbers = #tpu.dot_dimension_numbers<[1], [0], [0], [1], [0, 0, 1, 1], [], []>} : vector<12x4xf32>, vector<4x50xf32>, vector<12x50xf32> -> vector<12x50xf32>
    %cst_115 = arith.constant dense<0.000000e+00> : vector<12x50xf32>
    %60 = tpu.matmul %58, %27, %cst_115 {dimension_numbers = #tpu.dot_dimension_numbers<[1], [0], [0], [1], [0, 0, 1, 1], [], []>} : vector<12x4xf32>, vector<4x50xf32>, vector<12x50xf32> -> vector<12x50xf32>
    %61 = arith.addf %59, %60 : vector<12x50xf32>
    %cst_116 = arith.constant dense<0.000000e+00> : vector<12x50xf32>
    %62 = tpu.matmul %56, %28, %cst_116 {dimension_numbers = #tpu.dot_dimension_numbers<[1], [0], [0], [1], [0, 0, 1, 1], [], []>} : vector<12x3xf32>, vector<3x50xf32>, vector<12x50xf32> -> vector<12x50xf32>
    %63 = arith.addf %61, %62 : vector<12x50xf32>
    %64 = vector.broadcast %29 : vector<1x50xf32> to vector<12x50xf32>
    %65 = arith.addf %63, %64 : vector<12x50xf32>
    %cst_117 = arith.constant 0.000000e+00 : f32
    %66 = vector.broadcast %cst_117 : f32 to vector<12x50xf32>
    %67 = arith.maximumf %65, %66 : vector<12x50xf32>
    %cst_118 = arith.constant dense<0.000000e+00> : vector<12x50xf32>
    %68 = tpu.matmul %67, %30, %cst_118 {dimension_numbers = #tpu.dot_dimension_numbers<[1], [0], [0], [1], [0, 0, 1, 1], [], []>} : vector<12x50xf32>, vector<50x50xf32>, vector<12x50xf32> -> vector<12x50xf32>
    %69 = vector.broadcast %31 : vector<1x50xf32> to vector<12x50xf32>
    %70 = arith.addf %68, %69 : vector<12x50xf32>
    %cst_119 = arith.constant 0.000000e+00 : f32
    %71 = vector.broadcast %cst_119 : f32 to vector<12x50xf32>
    %72 = arith.maximumf %70, %71 : vector<12x50xf32>
    %cst_120 = arith.constant dense<0.000000e+00> : vector<12x6xf32>
    %73 = tpu.matmul %72, %32, %cst_120 {dimension_numbers = #tpu.dot_dimension_numbers<[1], [0], [0], [1], [0, 0, 1, 1], [], []>} : vector<12x50xf32>, vector<50x6xf32>, vector<12x6xf32> -> vector<12x6xf32>
    %74 = vector.broadcast %33 : vector<1x6xf32> to vector<12x6xf32>
    %75 = arith.addf %73, %74 : vector<12x6xf32>
    %cst_121 = arith.constant dense<0.000000e+00> : vector<10x6xf32>
    %76 = tpu.matmul %53, %75, %cst_121 {dimension_numbers = #tpu.dot_dimension_numbers<[1], [0], [0], [1], [0, 0, 1, 1], [], []>} : vector<10x12xf32>, vector<12x6xf32>, vector<10x6xf32> -> vector<10x6xf32>
    %cst_122 = arith.constant dense<0.000000e+00> : vector<10x50xf32>
    %77 = tpu.matmul %76, %42, %cst_122 {dimension_numbers = #tpu.dot_dimension_numbers<[1], [0], [0], [1], [0, 0, 1, 1], [], []>} : vector<10x6xf32>, vector<6x50xf32>, vector<10x50xf32> -> vector<10x50xf32>
    %cst_123 = arith.constant dense<0.000000e+00> : vector<10x50xf32>
    %78 = tpu.matmul %55, %43, %cst_123 {dimension_numbers = #tpu.dot_dimension_numbers<[1], [0], [0], [1], [0, 0, 1, 1], [], []>} : vector<10x4xf32>, vector<4x50xf32>, vector<10x50xf32> -> vector<10x50xf32>
    %79 = arith.addf %77, %78 : vector<10x50xf32>
    %80 = vector.broadcast %44 : vector<1x50xf32> to vector<10x50xf32>
    %81 = arith.addf %79, %80 : vector<10x50xf32>
    %cst_124 = arith.constant 0.000000e+00 : f32
    %82 = vector.broadcast %cst_124 : f32 to vector<10x50xf32>
    %83 = arith.maximumf %81, %82 : vector<10x50xf32>
    %cst_125 = arith.constant dense<0.000000e+00> : vector<10x5xf32>
    %84 = tpu.matmul %83, %45, %cst_125 {dimension_numbers = #tpu.dot_dimension_numbers<[1], [0], [0], [1], [0, 0, 1, 1], [], []>} : vector<10x50xf32>, vector<50x5xf32>, vector<10x5xf32> -> vector<10x5xf32>
    %85 = vector.broadcast %46 : vector<1x5xf32> to vector<10x5xf32>
    %86 = arith.addf %84, %85 : vector<10x5xf32>
    %cst_126 = arith.constant 0.000000e+00 : f32
    %87 = vector.broadcast %cst_126 : f32 to vector<10x5xf32>
    %88 = arith.maximumf %86, %87 : vector<10x5xf32>
    %cst_127 = arith.constant dense<0.000000e+00> : vector<12x50xf32>
    %89 = tpu.matmul %57, %18, %cst_127 {dimension_numbers = #tpu.dot_dimension_numbers<[1], [0], [0], [1], [0, 0, 1, 1], [], []>} : vector<12x4xf32>, vector<4x50xf32>, vector<12x50xf32> -> vector<12x50xf32>
    %cst_128 = arith.constant dense<0.000000e+00> : vector<12x50xf32>
    %90 = tpu.matmul %58, %19, %cst_128 {dimension_numbers = #tpu.dot_dimension_numbers<[1], [0], [0], [1], [0, 0, 1, 1], [], []>} : vector<12x4xf32>, vector<4x50xf32>, vector<12x50xf32> -> vector<12x50xf32>
    %91 = arith.addf %89, %90 : vector<12x50xf32>
    %cst_129 = arith.constant dense<0.000000e+00> : vector<12x50xf32>
    %92 = tpu.matmul %56, %20, %cst_129 {dimension_numbers = #tpu.dot_dimension_numbers<[1], [0], [0], [1], [0, 0, 1, 1], [], []>} : vector<12x3xf32>, vector<3x50xf32>, vector<12x50xf32> -> vector<12x50xf32>
    %93 = arith.addf %91, %92 : vector<12x50xf32>
    %94 = vector.broadcast %21 : vector<1x50xf32> to vector<12x50xf32>
    %95 = arith.addf %93, %94 : vector<12x50xf32>
    %cst_130 = arith.constant 0.000000e+00 : f32
    %96 = vector.broadcast %cst_130 : f32 to vector<12x50xf32>
    %97 = arith.maximumf %95, %96 : vector<12x50xf32>
    %cst_131 = arith.constant dense<0.000000e+00> : vector<12x50xf32>
    %98 = tpu.matmul %97, %0, %cst_131 {dimension_numbers = #tpu.dot_dimension_numbers<[1], [0], [0], [1], [0, 0, 1, 1], [], []>} : vector<12x50xf32>, vector<50x50xf32>, vector<12x50xf32> -> vector<12x50xf32>
    %99 = vector.broadcast %1 : vector<1x50xf32> to vector<12x50xf32>
    %100 = arith.addf %98, %99 : vector<12x50xf32>
    %cst_132 = arith.constant 0.000000e+00 : f32
    %101 = vector.broadcast %cst_132 : f32 to vector<12x50xf32>
    %102 = arith.maximumf %100, %101 : vector<12x50xf32>
    %cst_133 = arith.constant dense<0.000000e+00> : vector<12x6xf32>
    %103 = tpu.matmul %102, %2, %cst_133 {dimension_numbers = #tpu.dot_dimension_numbers<[1], [0], [0], [1], [0, 0, 1, 1], [], []>} : vector<12x50xf32>, vector<50x6xf32>, vector<12x6xf32> -> vector<12x6xf32>
    %104 = vector.broadcast %3 : vector<1x6xf32> to vector<12x6xf32>
    %105 = arith.addf %103, %104 : vector<12x6xf32>
    %cst_134 = arith.constant dense<0.000000e+00> : vector<12x50xf32>
    %106 = tpu.matmul %105, %4, %cst_134 {dimension_numbers = #tpu.dot_dimension_numbers<[1], [0], [0], [1], [0, 0, 1, 1], [], []>} : vector<12x6xf32>, vector<6x50xf32>, vector<12x50xf32> -> vector<12x50xf32>
    %cst_135 = arith.constant dense<0.000000e+00> : vector<12x50xf32>
    %107 = tpu.matmul %56, %5, %cst_135 {dimension_numbers = #tpu.dot_dimension_numbers<[1], [0], [0], [1], [0, 0, 1, 1], [], []>} : vector<12x3xf32>, vector<3x50xf32>, vector<12x50xf32> -> vector<12x50xf32>
    %108 = arith.addf %106, %107 : vector<12x50xf32>
    %109 = vector.broadcast %6 : vector<1x50xf32> to vector<12x50xf32>
    %110 = arith.addf %108, %109 : vector<12x50xf32>
    %cst_136 = arith.constant 0.000000e+00 : f32
    %111 = vector.broadcast %cst_136 : f32 to vector<12x50xf32>
    %112 = arith.maximumf %110, %111 : vector<12x50xf32>
    %cst_137 = arith.constant dense<0.000000e+00> : vector<12x5xf32>
    %113 = tpu.matmul %112, %7, %cst_137 {dimension_numbers = #tpu.dot_dimension_numbers<[1], [0], [0], [1], [0, 0, 1, 1], [], []>} : vector<12x50xf32>, vector<50x5xf32>, vector<12x5xf32> -> vector<12x5xf32>
    %114 = vector.broadcast %8 : vector<1x5xf32> to vector<12x5xf32>
    %115 = arith.addf %113, %114 : vector<12x5xf32>
    %cst_138 = arith.constant 0.000000e+00 : f32
    %116 = vector.broadcast %cst_138 : f32 to vector<12x5xf32>
    %117 = arith.maximumf %115, %116 : vector<12x5xf32>
    %cst_139 = arith.constant dense<0.000000e+00> : vector<12x5xf32>
    %118 = tpu.matmul %52, %88, %cst_139 {dimension_numbers = #tpu.dot_dimension_numbers<[1], [0], [0], [1], [0, 0, 1, 1], [], []>} : vector<12x10xf32>, vector<10x5xf32>, vector<12x5xf32> -> vector<12x5xf32>
    %cst_140 = arith.constant dense<0.000000e+00> : vector<12x5xf32>
    %119 = tpu.matmul %54, %88, %cst_140 {dimension_numbers = #tpu.dot_dimension_numbers<[1], [0], [0], [1], [0, 0, 1, 1], [], []>} : vector<12x10xf32>, vector<10x5xf32>, vector<12x5xf32> -> vector<12x5xf32>
    %cst_141 = arith.constant dense<0.000000e+00> : vector<12x50xf32>
    %120 = tpu.matmul %118, %34, %cst_141 {dimension_numbers = #tpu.dot_dimension_numbers<[1], [0], [0], [1], [0, 0, 1, 1], [], []>} : vector<12x5xf32>, vector<5x50xf32>, vector<12x50xf32> -> vector<12x50xf32>
    %cst_142 = arith.constant dense<0.000000e+00> : vector<12x50xf32>
    %121 = tpu.matmul %119, %35, %cst_142 {dimension_numbers = #tpu.dot_dimension_numbers<[1], [0], [0], [1], [0, 0, 1, 1], [], []>} : vector<12x5xf32>, vector<5x50xf32>, vector<12x50xf32> -> vector<12x50xf32>
    %122 = arith.addf %120, %121 : vector<12x50xf32>
    %cst_143 = arith.constant dense<0.000000e+00> : vector<12x50xf32>
    %123 = tpu.matmul %117, %36, %cst_143 {dimension_numbers = #tpu.dot_dimension_numbers<[1], [0], [0], [1], [0, 0, 1, 1], [], []>} : vector<12x5xf32>, vector<5x50xf32>, vector<12x50xf32> -> vector<12x50xf32>
    %124 = arith.addf %122, %123 : vector<12x50xf32>
    %125 = vector.broadcast %37 : vector<1x50xf32> to vector<12x50xf32>
    %126 = arith.addf %124, %125 : vector<12x50xf32>
    %cst_144 = arith.constant 0.000000e+00 : f32
    %127 = vector.broadcast %cst_144 : f32 to vector<12x50xf32>
    %128 = arith.maximumf %126, %127 : vector<12x50xf32>
    %cst_145 = arith.constant dense<0.000000e+00> : vector<12x50xf32>
    %129 = tpu.matmul %128, %38, %cst_145 {dimension_numbers = #tpu.dot_dimension_numbers<[1], [0], [0], [1], [0, 0, 1, 1], [], []>} : vector<12x50xf32>, vector<50x50xf32>, vector<12x50xf32> -> vector<12x50xf32>
    %130 = vector.broadcast %39 : vector<1x50xf32> to vector<12x50xf32>
    %131 = arith.addf %129, %130 : vector<12x50xf32>
    %cst_146 = arith.constant 0.000000e+00 : f32
    %132 = vector.broadcast %cst_146 : f32 to vector<12x50xf32>
    %133 = arith.maximumf %131, %132 : vector<12x50xf32>
    %cst_147 = arith.constant dense<0.000000e+00> : vector<12x6xf32>
    %134 = tpu.matmul %133, %40, %cst_147 {dimension_numbers = #tpu.dot_dimension_numbers<[1], [0], [0], [1], [0, 0, 1, 1], [], []>} : vector<12x50xf32>, vector<50x6xf32>, vector<12x6xf32> -> vector<12x6xf32>
    %135 = vector.broadcast %41 : vector<1x6xf32> to vector<12x6xf32>
    %136 = arith.addf %134, %135 : vector<12x6xf32>
    %cst_148 = arith.constant dense<0.000000e+00> : vector<10x6xf32>
    %137 = tpu.matmul %53, %136, %cst_148 {dimension_numbers = #tpu.dot_dimension_numbers<[1], [0], [0], [1], [0, 0, 1, 1], [], []>} : vector<10x12xf32>, vector<12x6xf32>, vector<10x6xf32> -> vector<10x6xf32>
    %cst_149 = arith.constant dense<0.000000e+00> : vector<10x50xf32>
    %138 = tpu.matmul %137, %47, %cst_149 {dimension_numbers = #tpu.dot_dimension_numbers<[1], [0], [0], [1], [0, 0, 1, 1], [], []>} : vector<10x6xf32>, vector<6x50xf32>, vector<10x50xf32> -> vector<10x50xf32>
    %cst_150 = arith.constant dense<0.000000e+00> : vector<10x50xf32>
    %139 = tpu.matmul %55, %48, %cst_150 {dimension_numbers = #tpu.dot_dimension_numbers<[1], [0], [0], [1], [0, 0, 1, 1], [], []>} : vector<10x4xf32>, vector<4x50xf32>, vector<10x50xf32> -> vector<10x50xf32>
    %140 = arith.addf %138, %139 : vector<10x50xf32>
    %141 = vector.broadcast %49 : vector<1x50xf32> to vector<10x50xf32>
    %142 = arith.addf %140, %141 : vector<10x50xf32>
    %cst_151 = arith.constant 0.000000e+00 : f32
    %143 = vector.broadcast %cst_151 : f32 to vector<10x50xf32>
    %144 = arith.maximumf %142, %143 : vector<10x50xf32>
    %cst_152 = arith.constant dense<0.000000e+00> : vector<10x8xf32>
    %145 = tpu.matmul %144, %50, %cst_152 {dimension_numbers = #tpu.dot_dimension_numbers<[1], [0], [0], [1], [0, 0, 1, 1], [], []>} : vector<10x50xf32>, vector<50x8xf32>, vector<10x8xf32> -> vector<10x8xf32>
    %146 = vector.broadcast %51 : vector<1x8xf32> to vector<10x8xf32>
    %147 = arith.addf %145, %146 : vector<10x8xf32>
    %cst_153 = arith.constant 0.000000e+00 : f32
    %148 = vector.broadcast %cst_153 : f32 to vector<10x8xf32>
    %149 = arith.maximumf %147, %148 : vector<10x8xf32>
    %cst_154 = arith.constant dense<0.000000e+00> : vector<12x50xf32>
    %150 = tpu.matmul %118, %22, %cst_154 {dimension_numbers = #tpu.dot_dimension_numbers<[1], [0], [0], [1], [0, 0, 1, 1], [], []>} : vector<12x5xf32>, vector<5x50xf32>, vector<12x50xf32> -> vector<12x50xf32>
    %cst_155 = arith.constant dense<0.000000e+00> : vector<12x50xf32>
    %151 = tpu.matmul %119, %23, %cst_155 {dimension_numbers = #tpu.dot_dimension_numbers<[1], [0], [0], [1], [0, 0, 1, 1], [], []>} : vector<12x5xf32>, vector<5x50xf32>, vector<12x50xf32> -> vector<12x50xf32>
    %152 = arith.addf %150, %151 : vector<12x50xf32>
    %cst_156 = arith.constant dense<0.000000e+00> : vector<12x50xf32>
    %153 = tpu.matmul %117, %24, %cst_156 {dimension_numbers = #tpu.dot_dimension_numbers<[1], [0], [0], [1], [0, 0, 1, 1], [], []>} : vector<12x5xf32>, vector<5x50xf32>, vector<12x50xf32> -> vector<12x50xf32>
    %154 = arith.addf %152, %153 : vector<12x50xf32>
    %155 = vector.broadcast %25 : vector<1x50xf32> to vector<12x50xf32>
    %156 = arith.addf %154, %155 : vector<12x50xf32>
    %cst_157 = arith.constant 0.000000e+00 : f32
    %157 = vector.broadcast %cst_157 : f32 to vector<12x50xf32>
    %158 = arith.maximumf %156, %157 : vector<12x50xf32>
    %cst_158 = arith.constant dense<0.000000e+00> : vector<12x50xf32>
    %159 = tpu.matmul %158, %9, %cst_158 {dimension_numbers = #tpu.dot_dimension_numbers<[1], [0], [0], [1], [0, 0, 1, 1], [], []>} : vector<12x50xf32>, vector<50x50xf32>, vector<12x50xf32> -> vector<12x50xf32>
    %160 = vector.broadcast %10 : vector<1x50xf32> to vector<12x50xf32>
    %161 = arith.addf %159, %160 : vector<12x50xf32>
    %cst_159 = arith.constant 0.000000e+00 : f32
    %162 = vector.broadcast %cst_159 : f32 to vector<12x50xf32>
    %163 = arith.maximumf %161, %162 : vector<12x50xf32>
    %cst_160 = arith.constant dense<0.000000e+00> : vector<12x6xf32>
    %164 = tpu.matmul %163, %11, %cst_160 {dimension_numbers = #tpu.dot_dimension_numbers<[1], [0], [0], [1], [0, 0, 1, 1], [], []>} : vector<12x50xf32>, vector<50x6xf32>, vector<12x6xf32> -> vector<12x6xf32>
    %165 = vector.broadcast %12 : vector<1x6xf32> to vector<12x6xf32>
    %166 = arith.addf %164, %165 : vector<12x6xf32>
    %cst_161 = arith.constant dense<0.000000e+00> : vector<12x50xf32>
    %167 = tpu.matmul %166, %13, %cst_161 {dimension_numbers = #tpu.dot_dimension_numbers<[1], [0], [0], [1], [0, 0, 1, 1], [], []>} : vector<12x6xf32>, vector<6x50xf32>, vector<12x50xf32> -> vector<12x50xf32>
    %cst_162 = arith.constant dense<0.000000e+00> : vector<12x50xf32>
    %168 = tpu.matmul %56, %14, %cst_162 {dimension_numbers = #tpu.dot_dimension_numbers<[1], [0], [0], [1], [0, 0, 1, 1], [], []>} : vector<12x3xf32>, vector<3x50xf32>, vector<12x50xf32> -> vector<12x50xf32>
    %169 = arith.addf %167, %168 : vector<12x50xf32>
    %170 = vector.broadcast %15 : vector<1x50xf32> to vector<12x50xf32>
    %171 = arith.addf %169, %170 : vector<12x50xf32>
    %cst_163 = arith.constant 0.000000e+00 : f32
    %172 = vector.broadcast %cst_163 : f32 to vector<12x50xf32>
    %173 = arith.maximumf %171, %172 : vector<12x50xf32>
    %cst_164 = arith.constant dense<0.000000e+00> : vector<12x3xf32>
    %174 = tpu.matmul %173, %16, %cst_164 {dimension_numbers = #tpu.dot_dimension_numbers<[1], [0], [0], [1], [0, 0, 1, 1], [], []>} : vector<12x50xf32>, vector<50x3xf32>, vector<12x3xf32> -> vector<12x3xf32>
    %175 = vector.broadcast %17 : vector<1x3xf32> to vector<12x3xf32>
    %176 = arith.addf %174, %175 : vector<12x3xf32>
    %cst_165 = arith.constant dense<0xFF800000> : vector<12xf32>
    %177 = vector.multi_reduction <maximumf>, %176, %cst_165 [1] : vector<12x3xf32> to vector<12xf32>
    %178 = vector.shape_cast %177 : vector<12xf32> to vector<12x1xf32>
    %179 = vector.broadcast %178 : vector<12x1xf32> to vector<12x3xf32>
    %180 = arith.subf %176, %179 : vector<12x3xf32>
    %181 = math.exp %180 : vector<12x3xf32>
    %cst_166 = arith.constant dense<0.000000e+00> : vector<12xf32>
    %182 = vector.multi_reduction <add>, %181, %cst_166 [1] : vector<12x3xf32> to vector<12xf32>
    %183 = vector.shape_cast %182 : vector<12xf32> to vector<12x1xf32>
    %184 = tpu.reciprocal %183 {approx = true} : vector<12x1xf32> -> vector<12x1xf32>
    %185 = vector.broadcast %184 : vector<12x1xf32> to vector<12x3xf32>
    %186 = arith.mulf %181, %185 : vector<12x3xf32>
    %c0_167 = arith.constant 0 : index
    %c0_168 = arith.constant 0 : index
    %187 = vector.load %arg57[%c0_167, %c0_168] : memref<10x8xf32, #tpu.memory_space<vmem>>, vector<10x8xf32>
    tpu.vector_store %arg57[%c0_167, %c0_168], %149 {strides = array<i32>} : memref<10x8xf32, #tpu.memory_space<vmem>>, vector<10x8xf32>,
    %c0_169 = arith.constant 0 : index
    %c0_170 = arith.constant 0 : index
    %188 = vector.load %arg58[%c0_169, %c0_170] : memref<12x3xf32, #tpu.memory_space<vmem>>, vector<12x3xf32>
    tpu.vector_store %arg58[%c0_169, %c0_170], %186 {strides = array<i32>} : memref<12x3xf32, #tpu.memory_space<vmem>>, vector<12x3xf32>,
    %c0_171 = arith.constant 0 : index
    %c0_172 = arith.constant 0 : index
    %189 = vector.load %arg59[%c0_171, %c0_172] : memref<12x3xf32, #tpu.memory_space<vmem>>, vector<12x3xf32>
    tpu.vector_store %arg59[%c0_171, %c0_172], %176 {strides = array<i32>} : memref<12x3xf32, #tpu.memory_space<vmem>>, vector<12x3xf32>,
    return
  }
}

</mosaic_0001>

<llo_original>
// kernel: inecn_forward.3
$region0: #{inecn_forward.3}
  #allocation0 [shape = 'u32[]', space=smem, size = 0x4, offset = 0x4, fixed_abs, tag = 'smem constant byte address 0x4 - core index']
  #allocation1 [shape = 'u32[144,128]{1,0:T(1,128)}', space=vmem, size = 0x12000, scoped, tag = 'internal scratch']
  %s0 = inlined_call_operand.vmem [shape: f32[8,10], index: 0, kind: input, shape index: {}]
  %s1 = inlined_call_operand.vmem [shape: f32[10,12], index: 1, kind: input, shape index: {}]
  %s2 = inlined_call_operand.vmem [shape: f32[12,10], index: 2, kind: input, shape index: {}]
  %s3 = inlined_call_operand.vmem [shape: f32[8,10], index: 3, kind: input, shape index: {}]
  %s4 = inlined_call_operand.vmem [shape: f32[6,8], index: 4, kind: input, shape index: {}]
  %s5 = inlined_call_operand.vmem [shape: f32[8,6], index: 5, kind: input, shape index: {}]
  %s6 = inlined_call_operand.hbm [shape: f32[8,10], index: 6, kind: output, shape index: {}]
  %s7 = sld [smem:[#allocation0]]
  $region41: #{inecn_forward.3} parent=0
    _
  %s9 = ssub.s32 1, %s7
  %s10 = scalar_select 0, %s9, %s7
  $region1: #{inecn_forward.3} parent=0
    #allocation2 [shape = 'u8[4096]{0}', space=vmem, size = 0x1000, scoped, tag = 'output window, operand 0, single buffered']
    #allocation3 [shape = 's32[1]{0}', space=sflag, size = 0x4, scoped, tag = 'scoped memory for inecn_forward.3']
    %11 = vsyncpa [#allocation3], 0
    // Predicated region
    $region2: #{inecn_forward.3} parent=1 // pred_check
      _
    $region3: #{inecn_forward.3} parent=1 // pred_check_branch
      %13 = sbr.rel (0) target = $region5
    $region4: #{inecn_forward.3} parent=1 // pred_region
      _
    $region5: #{inecn_forward.3} parent=1 // pred_fallthru
      _
    // Predicated region
    $region6: #{inecn_forward.3} parent=1 // pred_check
      _
    $region7: #{inecn_forward.3} parent=1 // pred_check_branch
      %15 = sbr.rel (0) target = $region9
    $region8: #{inecn_forward.3} parent=1 // pred_region
      _
    $region9: #{inecn_forward.3} parent=1 // pred_fallthru
      _
    // Predicated region
    $region10: #{inecn_forward.3} parent=1 // pred_check
      _
    $region11: #{inecn_forward.3} parent=1 // pred_check_branch
      %17 = sbr.rel (0) target = $region13
    $region12: #{inecn_forward.3} parent=1 // pred_region
      _
    $region13: #{inecn_forward.3} parent=1 // pred_fallthru
      _
    // Predicated region
    $region14: #{inecn_forward.3} parent=1 // pred_check
      _
    $region15: #{inecn_forward.3} parent=1 // pred_check_branch
      %19 = sbr.rel (0) target = $region17
    $region16: #{inecn_forward.3} parent=1 // pred_region
      _
    $region17: #{inecn_forward.3} parent=1 // pred_fallthru
      _
    // Predicated region
    $region18: #{inecn_forward.3} parent=1 // pred_check
      _
    $region19: #{inecn_forward.3} parent=1 // pred_check_branch
      %21 = sbr.rel (0) target = $region21
    $region20: #{inecn_forward.3} parent=1 // pred_region
      _
    $region21: #{inecn_forward.3} parent=1 // pred_fallthru
      _
    // Predicated region
    $region22: #{inecn_forward.3} parent=1 // pred_check
      _
    $region23: #{inecn_forward.3} parent=1 // pred_check_branch
      %23 = sbr.rel (0) target = $region25
    $region24: #{inecn_forward.3} parent=1 // pred_region
      _
    $region25: #{inecn_forward.3} parent=1 // pred_fallthru
      _
    %v24 = vld [vmem:[%s1] sm:$0xff]
    %v25 = vld [vmem:[%s1 + $0x8] sm:$0x3]
    %v26 = vld [vmem:[%s2] sm:$0xff]
    %v27 = vld [vmem:[%s2 + $0x8] sm:$0xf]
    %v28 = vld [vmem:[%s3] sm:$0xff]
    %v29 = vld [vmem:[%s4] sm:$0x3f]
    %v30 = vld [vmem:[%s5] sm:$0xff]
    %v31 = vld [vmem:[%s0] sm:$0xff]
    loop: start=0, step=1, limit=5
    $region26: #{inecn_forward.3} parent=1 // loop_pre_header
      _
    $region27: #{inecn_forward.3} parent=1 // loop_header
      %s33 = sphi 0, %s37
      %p34 = scmp.ge.s32.totalorder %s33, 5
      %v38 = vphi %v31, %v2967
    $region28: #{inecn_forward.3} parent=1 // loop_header_branch
      %36 = sbr.rel (%p34) target = $region32
    $region29: #{inecn_forward.3} parent=1 // loop_body
      %vm39 = vcmask 64512
      %v41 = vsel %vm39, %v29, 0
      %43 = vmatprep.subr.mxu0 0.0
      %44 = vmatpush1.msra.mxu0 %v38
      %45 = vmatprep.subr.mxu0 0.0
      %46 = vmatpush1.msra.mxu0 0.0
      %47 = vmatprep.subr.mxu0 0.0
      %48 = vmatpush1.msra.mxu0 0.0
      %49 = vmatprep.subr.mxu0 0.0
      %50 = vmatpush1.msra.mxu0 0.0
      %51 = vmatprep.subr.mxu0 0.0
      %52 = vmatpush1.msra.mxu0 0.0
      %53 = vmatprep.subr.mxu0 0.0
      %54 = vmatpush1.msra.mxu0 0.0
      %55 = vmatprep.subr.mxu0 0.0
      %56 = vmatpush1.msra.mxu0 0.0
      %57 = vmatprep.subr.mxu0 0.0
      %58 = vmatpush1.msra.mxu0 0.0
      %59 = vmatprep.subr.mxu0 0.0
      %60 = vmatpush1.msra.mxu0 0.0
      %61 = vmatprep.subr.mxu0 0.0
      %62 = vmatpush1.msra.mxu0 0.0
      %63 = vmatprep.subr.mxu0 0.0
      %64 = vmatpush1.msra.mxu0 0.0
      %65 = vmatprep.subr.mxu0 0.0
      %66 = vmatpush1.msra.mxu0 0.0
      %67 = vmatprep.subr.mxu0 0.0
      %68 = vmatpush1.msra.mxu0 0.0
      %69 = vmatprep.subr.mxu0 0.0
      %70 = vmatpush1.msra.mxu0 0.0
      %71 = vmatprep.subr.mxu0 0.0
      %72 = vmatpush1.msra.mxu0 0.0
      %73 = vmatprep.subr.mxu0 0.0
      %74 = vmatpush1.msra.mxu0 0.0
      %75 = vmatprep.subr.mxu0 0.0
      %76 = vmatpush1.msra.mxu0 0.0
      %77 = vmatprep.subr.mxu0 0.0
      %78 = vmatpush1.msra.mxu0 0.0
      %79 = vmatprep.subr.mxu0 0.0
      %80 = vmatpush1.msra.mxu0 0.0
      %81 = vmatprep.subr.mxu0 0.0
      %82 = vmatpush1.msra.mxu0 0.0
      %83 = vmatprep.subr.mxu0 0.0
      %84 = vmatpush1.msra.mxu0 0.0
      %85 = vmatprep.subr.mxu0 0.0
      %86 = vmatpush1.msra.mxu0 0.0
      %87 = vmatprep.subr.mxu0 0.0
      %88 = vmatpush1.msra.mxu0 0.0
      %89 = vmatprep.subr.mxu0 0.0
      %90 = vmatpush1.msra.mxu0 0.0
      %91 = vmatprep.subr.mxu0 0.0
      %92 = vmatpush1.msra.mxu0 0.0
      %93 = vmatprep.subr.mxu0 0.0
      %94 = vmatpush1.msra.mxu0 0.0
      %95 = vmatprep.subr.mxu0 0.0
      %96 = vmatpush1.msra.mxu0 0.0
      %97 = vmatprep.subr.mxu0 0.0
      %98 = vmatpush1.msra.mxu0 0.0
      %99 = vmatprep.subr.mxu0 0.0
      %100 = vmatpush1.msra.mxu0 0.0
      %101 = vmatprep.subr.mxu0 0.0
      %102 = vmatpush1.msra.mxu0 0.0
      %103 = vmatprep.subr.mxu0 0.0
      %104 = vmatpush1.msra.mxu0 0.0
      %105 = vmatprep.subr.mxu0 0.0
      %106 = vmatpush1.msra.mxu0 0.0
      %107 = vmatprep.mubr.f32.mxu0 0.0
      %108 = vmatmul.mubr.f32.gmra.mrb[0].mxu0 %v41
      %v109 = vpop.f32.mrb[0].mxu0
      %v110 = vadd.f32 0.0, %v109
      %v111 = vpop.f32.mrb[0].mxu0
      %112 = vdwg.mxu0
      %vm113 = vcmask 80896
      %v115 = vsel %vm113, %v110, 0
      %vm117 = vcmask 1041408
      %v119 = vsel %vm117, %v25, 0
      %121 = vmatprep.subr.mxu0 0.0
      %122 = vmatpush1.msra.mxu0 %v24
      %123 = vmatprep.subr.mxu0 0.0
      %124 = vmatpush1.msra.mxu0 %v119
      %125 = vmatprep.subr.mxu0 0.0
      %126 = vmatpush1.msra.mxu0 0.0
      %127 = vmatprep.subr.mxu0 0.0
      %128 = vmatpush1.msra.mxu0 0.0
      %129 = vmatprep.subr.mxu0 0.0
      %130 = vmatpush1.msra.mxu0 0.0
      %131 = vmatprep.subr.mxu0 0.0
      %132 = vmatpush1.msra.mxu0 0.0
      %133 = vmatprep.subr.mxu0 0.0
      %134 = vmatpush1.msra.mxu0 0.0
      %135 = vmatprep.subr.mxu0 0.0
      %136 = vmatpush1.msra.mxu0 0.0
      %137 = vmatprep.subr.mxu0 0.0
      %138 = vmatpush1.msra.mxu0 0.0
      %139 = vmatprep.subr.mxu0 0.0
      %140 = vmatpush1.msra.mxu0 0.0
      %141 = vmatprep.subr.mxu0 0.0
      %142 = vmatpush1.msra.mxu0 0.0
      %143 = vmatprep.subr.mxu0 0.0
      %144 = vmatpush1.msra.mxu0 0.0
      %145 = vmatprep.subr.mxu0 0.0
      %146 = vmatpush1.msra.mxu0 0.0
      %147 = vmatprep.subr.mxu0 0.0
      %148 = vmatpush1.msra.mxu0 0.0
      %149 = vmatprep.subr.mxu0 0.0
      %150 = vmatpush1.msra.mxu0 0.0
      %151 = vmatprep.subr.mxu0 0.0
      %152 = vmatpush1.msra.mxu0 0.0
      %153 = vmatprep.subr.mxu0 0.0
      %154 = vmatpush1.msra.mxu0 0.0
      %155 = vmatprep.subr.mxu0 0.0
      %156 = vmatpush1.msra.mxu0 0.0
      %157 = vmatprep.subr.mxu0 0.0
      %158 = vmatpush1.msra.mxu0 0.0
      %159 = vmatprep.subr.mxu0 0.0
      %160 = vmatpush1.msra.mxu0 0.0
      %161 = vmatprep.subr.mxu0 0.0
      %162 = vmatpush1.msra.mxu0 0.0
      %163 = vmatprep.subr.mxu0 0.0
      %164 = vmatpush1.msra.mxu0 0.0
      %165 = vmatprep.subr.mxu0 0.0
      %166 = vmatpush1.msra.mxu0 0.0
      %167 = vmatprep.subr.mxu0 0.0
      %168 = vmatpush1.msra.mxu0 0.0
      %169 = vmatprep.subr.mxu0 0.0
      %170 = vmatpush1.msra.mxu0 0.0
      %171 = vmatprep.subr.mxu0 0.0
      %172 = vmatpush1.msra.mxu0 0.0
      %173 = vmatprep.subr.mxu0 0.0
      %174 = vmatpush1.msra.mxu0 0.0
      %175 = vmatprep.subr.mxu0 0.0
      %176 = vmatpush1.msra.mxu0 0.0
      %177 = vmatprep.subr.mxu0 0.0
      %178 = vmatpush1.msra.mxu0 0.0
      %179 = vmatprep.subr.mxu0 0.0
      %180 = vmatpush1.msra.mxu0 0.0
      %181 = vmatprep.subr.mxu0 0.0
      %182 = vmatpush1.msra.mxu0 0.0
      %183 = vmatprep.subr.mxu0 0.0
      %184 = vmatpush1.msra.mxu0 0.0
      %185 = vmatprep.mubr.f32.mxu0 0.0
      %186 = vmatmul.mubr.f32.gmra.mrb[0].mxu0 %v115
      %v187 = vpop.f32.mrb[0].mxu0
      %v188 = vadd.f32 0.0, %v187
      %v189 = vpop.f32.mrb[0].mxu0
      %190 = vdwg.mxu0
      %v191 = vmax.f32 %v188, 0.0
      %vm192 = vcmask 97280
      %v194 = vsel %vm192, %v191, 0
      %vm196 = vcmask 1043456
      %v198 = vsel %vm196, %v27, 0
      %200 = vmatprep.subr.mxu0 0.0
      %201 = vmatpush1.msra.mxu0 %v26
      %202 = vmatprep.subr.mxu0 0.0
      %203 = vmatpush1.msra.mxu0 %v198
      %204 = vmatprep.subr.mxu0 0.0
      %205 = vmatpush1.msra.mxu0 0.0
      %206 = vmatprep.subr.mxu0 0.0
      %207 = vmatpush1.msra.mxu0 0.0
      %208 = vmatprep.subr.mxu0 0.0
      %209 = vmatpush1.msra.mxu0 0.0
      %210 = vmatprep.subr.mxu0 0.0
      %211 = vmatpush1.msra.mxu0 0.0
      %212 = vmatprep.subr.mxu0 0.0
      %213 = vmatpush1.msra.mxu0 0.0
      %214 = vmatprep.subr.mxu0 0.0
      %215 = vmatpush1.msra.mxu0 0.0
      %216 = vmatprep.subr.mxu0 0.0
      %217 = vmatpush1.msra.mxu0 0.0
      %218 = vmatprep.subr.mxu0 0.0
      %219 = vmatpush1.msra.mxu0 0.0
      %220 = vmatprep.subr.mxu0 0.0
      %221 = vmatpush1.msra.mxu0 0.0
      %222 = vmatprep.subr.mxu0 0.0
      %223 = vmatpush1.msra.mxu0 0.0
      %224 = vmatprep.subr.mxu0 0.0
      %225 = vmatpush1.msra.mxu0 0.0
      %226 = vmatprep.subr.mxu0 0.0
      %227 = vmatpush1.msra.mxu0 0.0
      %228 = vmatprep.subr.mxu0 0.0
      %229 = vmatpush1.msra.mxu0 0.0
      %230 = vmatprep.subr.mxu0 0.0
      %231 = vmatpush1.msra.mxu0 0.0
      %232 = vmatprep.subr.mxu0 0.0
      %233 = vmatpush1.msra.mxu0 0.0
      %234 = vmatprep.subr.mxu0 0.0
      %235 = vmatpush1.msra.mxu0 0.0
      %236 = vmatprep.subr.mxu0 0.0
      %237 = vmatpush1.msra.mxu0 0.0
      %238 = vmatprep.subr.mxu0 0.0
      %239 = vmatpush1.msra.mxu0 0.0
      %240 = vmatprep.subr.mxu0 0.0
      %241 = vmatpush1.msra.mxu0 0.0
      %242 = vmatprep.subr.mxu0 0.0
      %243 = vmatpush1.msra.mxu0 0.0
      %244 = vmatprep.subr.mxu0 0.0
      %245 = vmatpush1.msra.mxu0 0.0
      %246 = vmatprep.subr.mxu0 0.0
      %247 = vmatpush1.msra.mxu0 0.0
      %248 = vmatprep.subr.mxu0 0.0
      %249 = vmatpush1.msra.mxu0 0.0
      %250 = vmatprep.subr.mxu0 0.0
      %251 = vmatpush1.msra.mxu0 0.0
      %252 = vmatprep.subr.mxu0 0.0
      %253 = vmatpush1.msra.mxu0 0.0
      %254 = vmatprep.subr.mxu0 0.0
      %255 = vmatpush1.msra.mxu0 0.0
      %256 = vmatprep.subr.mxu0 0.0
      %257 = vmatpush1.msra.mxu0 0.0
      %258 = vmatprep.subr.mxu0 0.0
      %259 = vmatpush1.msra.mxu0 0.0
      %260 = vmatprep.subr.mxu0 0.0
      %261 = vmatpush1.msra.mxu0 0.0
      %262 = vmatprep.subr.mxu0 0.0
      %263 = vmatpush1.msra.mxu0 0.0
      %264 = vmatprep.mubr.f32.mxu0 0.0
      %265 = vmatmul.mubr.f32.gmra.mrb[0].mxu0 %v194
      %v266 = vpop.f32.mrb[0].mxu0
      %v267 = vadd.f32 0.0, %v266
      %v268 = vpop.f32.mrb[0].mxu0
      %269 = vdwg.mxu0
      %vm270 = vcmask 48128
      %v272 = vsel %vm270, %v30, 0
      %vm274 = vcmask 1045504
      %v276 = vsel %vm274, %v267, 0
      %278 = vmatprep.subr.mxu0 0.0
      %279 = vmatpush1.msra.mxu0 %v276
      %280 = vmatprep.subr.mxu0 0.0
      %281 = vmatpush1.msra.mxu0 0.0
      %282 = vmatprep.subr.mxu0 0.0
      %283 = vmatpush1.msra.mxu0 0.0
      %284 = vmatprep.subr.mxu0 0.0
      %285 = vmatpush1.msra.mxu0 0.0
      %286 = vmatprep.subr.mxu0 0.0
      %287 = vmatpush1.msra.mxu0 0.0
      %288 = vmatprep.subr.mxu0 0.0
      %289 = vmatpush1.msra.mxu0 0.0
      %290 = vmatprep.subr.mxu0 0.0
      %291 = vmatpush1.msra.mxu0 0.0
      %292 = vmatprep.subr.mxu0 0.0
      %293 = vmatpush1.msra.mxu0 0.0
      %294 = vmatprep.subr.mxu0 0.0
      %295 = vmatpush1.msra.mxu0 0.0
      %296 = vmatprep.subr.mxu0 0.0
      %297 = vmatpush1.msra.mxu0 0.0
      %298 = vmatprep.subr.mxu0 0.0
      %299 = vmatpush1.msra.mxu0 0.0
      %300 = vmatprep.subr.mxu0 0.0
      %301 = vmatpush1.msra.mxu0 0.0
      %302 = vmatprep.subr.mxu0 0.0
      %303 = vmatpush1.msra.mxu0 0.0
      %304 = vmatprep.subr.mxu0 0.0
      %305 = vmatpush1.msra.mxu0 0.0
      %306 = vmatprep.subr.mxu0 0.0
      %307 = vmatpush1.msra.mxu0 0.0
      %308 = vmatprep.subr.mxu0 0.0
      %309 = vmatpush1.msra.mxu0 0.0
      %310 = vmatprep.subr.mxu0 0.0
      %311 = vmatpush1.msra.mxu0 0.0
      %312 = vmatprep.subr.mxu0 0.0
      %313 = vmatpush1.msra.mxu0 0.0
      %314 = vmatprep.subr.mxu0 0.0
      %315 = vmatpush1.msra.mxu0 0.0
      %316 = vmatprep.subr.mxu0 0.0
      %317 = vmatpush1.msra.mxu0 0.0
      %318 = vmatprep.subr.mxu0 0.0
      %319 = vmatpush1.msra.mxu0 0.0
      %320 = vmatprep.subr.mxu0 0.0
      %321 = vmatpush1.msra.mxu0 0.0
      %322 = vmatprep.subr.mxu0 0.0
      %323 = vmatpush1.msra.mxu0 0.0
      %324 = vmatprep.subr.mxu0 0.0
      %325 = vmatpush1.msra.mxu0 0.0
      %326 = vmatprep.subr.mxu0 0.0
      %327 = vmatpush1.msra.mxu0 0.0
      %328 = vmatprep.subr.mxu0 0.0
      %329 = vmatpush1.msra.mxu0 0.0
      %330 = vmatprep.subr.mxu0 0.0
      %331 = vmatpush1.msra.mxu0 0.0
      %332 = vmatprep.subr.mxu0 0.0
      %333 = vmatpush1.msra.mxu0 0.0
      %334 = vmatprep.subr.mxu0 0.0
      %335 = vmatpush1.msra.mxu0 0.0
      %336 = vmatprep.subr.mxu0 0.0
      %337 = vmatpush1.msra.mxu0 0.0
      %338 = vmatprep.subr.mxu0 0.0
      %339 = vmatpush1.msra.mxu0 0.0
      %340 = vmatprep.subr.mxu0 0.0
      %341 = vmatpush1.msra.mxu0 0.0
      %342 = vmatprep.mubr.f32.mxu0 0.0
      %343 = vmatmul.mubr.f32.gmra.mrb[0].mxu0 %v272
      %v344 = vpop.f32.mrb[0].mxu0
      %v345 = vadd.f32 %v28, %v344
      %v346 = vpop.f32.mrb[0].mxu0
      %347 = vdwg.mxu0
      %v348 = vmax.f32 %v345, 0.0
      %349 = vmatprep.subr.mxu0 0.0
      %350 = vmatpush1.msra.mxu0 %v348
      %351 = vmatprep.subr.mxu0 0.0
      %352 = vmatpush1.msra.mxu0 0.0
      %353 = vmatprep.subr.mxu0 0.0
      %354 = vmatpush1.msra.mxu0 0.0
      %355 = vmatprep.subr.mxu0 0.0
      %356 = vmatpush1.msra.mxu0 0.0
      %357 = vmatprep.subr.mxu0 0.0
      %358 = vmatpush1.msra.mxu0 0.0
      %359 = vmatprep.subr.mxu0 0.0
      %360 = vmatpush1.msra.mxu0 0.0
      %361 = vmatprep.subr.mxu0 0.0
      %362 = vmatpush1.msra.mxu0 0.0
      %363 = vmatprep.subr.mxu0 0.0
      %364 = vmatpush1.msra.mxu0 0.0
      %365 = vmatprep.subr.mxu0 0.0
      %366 = vmatpush1.msra.mxu0 0.0
      %367 = vmatprep.subr.mxu0 0.0
      %368 = vmatpush1.msra.mxu0 0.0
      %369 = vmatprep.subr.mxu0 0.0
      %370 = vmatpush1.msra.mxu0 0.0
      %371 = vmatprep.subr.mxu0 0.0
      %372 = vmatpush1.msra.mxu0 0.0
      %373 = vmatprep.subr.mxu0 0.0
      %374 = vmatpush1.msra.mxu0 0.0
      %375 = vmatprep.subr.mxu0 0.0
      %376 = vmatpush1.msra.mxu0 0.0
      %377 = vmatprep.subr.mxu0 0.0
      %378 = vmatpush1.msra.mxu0 0.0
      %379 = vmatprep.subr.mxu0 0.0
      %380 = vmatpush1.msra.mxu0 0.0
      %381 = vmatprep.subr.mxu0 0.0
      %382 = vmatpush1.msra.mxu0 0.0
      %383 = vmatprep.subr.mxu0 0.0
      %384 = vmatpush1.msra.mxu0 0.0
      %385 = vmatprep.subr.mxu0 0.0
      %386 = vmatpush1.msra.mxu0 0.0
      %387 = vmatprep.subr.mxu0 0.0
      %388 = vmatpush1.msra.mxu0 0.0
      %389 = vmatprep.subr.mxu0 0.0
      %390 = vmatpush1.msra.mxu0 0.0
      %391 = vmatprep.subr.mxu0 0.0
      %392 = vmatpush1.msra.mxu0 0.0
      %393 = vmatprep.subr.mxu0 0.0
      %394 = vmatpush1.msra.mxu0 0.0
      %395 = vmatprep.subr.mxu0 0.0
      %396 = vmatpush1.msra.mxu0 0.0
      %397 = vmatprep.subr.mxu0 0.0
      %398 = vmatpush1.msra.mxu0 0.0
      %399 = vmatprep.subr.mxu0 0.0
      %400 = vmatpush1.msra.mxu0 0.0
      %401 = vmatprep.subr.mxu0 0.0
      %402 = vmatpush1.msra.mxu0 0.0
      %403 = vmatprep.subr.mxu0 0.0
      %404 = vmatpush1.msra.mxu0 0.0
      %405 = vmatprep.subr.mxu0 0.0
      %406 = vmatpush1.msra.mxu0 0.0
      %407 = vmatprep.subr.mxu0 0.0
      %408 = vmatpush1.msra.mxu0 0.0
      %409 = vmatprep.subr.mxu0 0.0
      %410 = vmatpush1.msra.mxu0 0.0
      %411 = vmatprep.subr.mxu0 0.0
      %412 = vmatpush1.msra.mxu0 0.0
      %413 = vmatprep.mubr.f32.mxu0 0.0
      %414 = vmatmul.mubr.f32.gmra.mrb[0].mxu0 %v41
      %v415 = vpop.f32.mrb[0].mxu0
      %v416 = vadd.f32 0.0, %v415
      %v417 = vpop.f32.mrb[0].mxu0
      %418 = vdwg.mxu0
      %v420 = vsel %vm113, %v416, 0
      %422 = vmatprep.subr.mxu0 0.0
      %423 = vmatpush1.msra.mxu0 %v24
      %424 = vmatprep.subr.mxu0 0.0
      %425 = vmatpush1.msra.mxu0 %v119
      %426 = vmatprep.subr.mxu0 0.0
      %427 = vmatpush1.msra.mxu0 0.0
      %428 = vmatprep.subr.mxu0 0.0
      %429 = vmatpush1.msra.mxu0 0.0
      %430 = vmatprep.subr.mxu0 0.0
      %431 = vmatpush1.msra.mxu0 0.0
      %432 = vmatprep.subr.mxu0 0.0
      %433 = vmatpush1.msra.mxu0 0.0
      %434 = vmatprep.subr.mxu0 0.0
      %435 = vmatpush1.msra.mxu0 0.0
      %436 = vmatprep.subr.mxu0 0.0
      %437 = vmatpush1.msra.mxu0 0.0
      %438 = vmatprep.subr.mxu0 0.0
      %439 = vmatpush1.msra.mxu0 0.0
      %440 = vmatprep.subr.mxu0 0.0
      %441 = vmatpush1.msra.mxu0 0.0
      %442 = vmatprep.subr.mxu0 0.0
      %443 = vmatpush1.msra.mxu0 0.0
      %444 = vmatprep.subr.mxu0 0.0
      %445 = vmatpush1.msra.mxu0 0.0
      %446 = vmatprep.subr.mxu0 0.0
      %447 = vmatpush1.msra.mxu0 0.0
      %448 = vmatprep.subr.mxu0 0.0
      %449 = vmatpush1.msra.mxu0 0.0
      %450 = vmatprep.subr.mxu0 0.0
      %451 = vmatpush1.msra.mxu0 0.0
      %452 = vmatprep.subr.mxu0 0.0
      %453 = vmatpush1.msra.mxu0 0.0
      %454 = vmatprep.subr.mxu0 0.0
      %455 = vmatpush1.msra.mxu0 0.0
      %456 = vmatprep.subr.mxu0 0.0
      %457 = vmatpush1.msra.mxu0 0.0
      %458 = vmatprep.subr.mxu0 0.0
      %459 = vmatpush1.msra.mxu0 0.0
      %460 = vmatprep.subr.mxu0 0.0
      %461 = vmatpush1.msra.mxu0 0.0
      %462 = vmatprep.subr.mxu0 0.0
      %463 = vmatpush1.msra.mxu0 0.0
      %464 = vmatprep.subr.mxu0 0.0
      %465 = vmatpush1.msra.mxu0 0.0
      %466 = vmatprep.subr.mxu0 0.0
      %467 = vmatpush1.msra.mxu0 0.0
      %468 = vmatprep.subr.mxu0 0.0
      %469 = vmatpush1.msra.mxu0 0.0
      %470 = vmatprep.subr.mxu0 0.0
      %471 = vmatpush1.msra.mxu0 0.0
      %472 = vmatprep.subr.mxu0 0.0
      %473 = vmatpush1.msra.mxu0 0.0
      %474 = vmatprep.subr.mxu0 0.0
      %475 = vmatpush1.msra.mxu0 0.0
      %476 = vmatprep.subr.mxu0 0.0
      %477 = vmatpush1.msra.mxu0 0.0
      %478 = vmatprep.subr.mxu0 0.0
      %479 = vmatpush1.msra.mxu0 0.0
      %480 = vmatprep.subr.mxu0 0.0
      %481 = vmatpush1.msra.mxu0 0.0
      %482 = vmatprep.subr.mxu0 0.0
      %483 = vmatpush1.msra.mxu0 0.0
      %484 = vmatprep.subr.mxu0 0.0
      %485 = vmatpush1.msra.mxu0 0.0
      %486 = vmatprep.mubr.f32.mxu0 0.0
      %487 = vmatmul.mubr.f32.gmra.mrb[0].mxu0 %v420
      %v488 = vpop.f32.mrb[0].mxu0
      %v489 = vadd.f32 0.0, %v488
      %v490 = vpop.f32.mrb[0].mxu0
      %491 = vdwg.mxu0
      %v492 = vmax.f32 %v489, 0.0
      %v494 = vsel %vm192, %v492, 0
      %496 = vmatprep.subr.mxu0 0.0
      %497 = vmatpush1.msra.mxu0 %v26
      %498 = vmatprep.subr.mxu0 0.0
      %499 = vmatpush1.msra.mxu0 %v198
      %500 = vmatprep.subr.mxu0 0.0
      %501 = vmatpush1.msra.mxu0 0.0
      %502 = vmatprep.subr.mxu0 0.0
      %503 = vmatpush1.msra.mxu0 0.0
      %504 = vmatprep.subr.mxu0 0.0
      %505 = vmatpush1.msra.mxu0 0.0
      %506 = vmatprep.subr.mxu0 0.0
      %507 = vmatpush1.msra.mxu0 0.0
      %508 = vmatprep.subr.mxu0 0.0
      %509 = vmatpush1.msra.mxu0 0.0
      %510 = vmatprep.subr.mxu0 0.0
      %511 = vmatpush1.msra.mxu0 0.0
      %512 = vmatprep.subr.mxu0 0.0
      %513 = vmatpush1.msra.mxu0 0.0
      %514 = vmatprep.subr.mxu0 0.0
      %515 = vmatpush1.msra.mxu0 0.0
      %516 = vmatprep.subr.mxu0 0.0
      %517 = vmatpush1.msra.mxu0 0.0
      %518 = vmatprep.subr.mxu0 0.0
      %519 = vmatpush1.msra.mxu0 0.0
      %520 = vmatprep.subr.mxu0 0.0
      %521 = vmatpush1.msra.mxu0 0.0
      %522 = vmatprep.subr.mxu0 0.0
      %523 = vmatpush1.msra.mxu0 0.0
      %524 = vmatprep.subr.mxu0 0.0
      %525 = vmatpush1.msra.mxu0 0.0
      %526 = vmatprep.subr.mxu0 0.0
      %527 = vmatpush1.msra.mxu0 0.0
      %528 = vmatprep.subr.mxu0 0.0
      %529 = vmatpush1.msra.mxu0 0.0
      %530 = vmatprep.subr.mxu0 0.0
      %531 = vmatpush1.msra.mxu0 0.0
      %532 = vmatprep.subr.mxu0 0.0
      %533 = vmatpush1.msra.mxu0 0.0
      %534 = vmatprep.subr.mxu0 0.0
      %535 = vmatpush1.msra.mxu0 0.0
      %536 = vmatprep.subr.mxu0 0.0
      %537 = vmatpush1.msra.mxu0 0.0
      %538 = vmatprep.subr.mxu0 0.0
      %539 = vmatpush1.msra.mxu0 0.0
      %540 = vmatprep.subr.mxu0 0.0
      %541 = vmatpush1.msra.mxu0 0.0
      %542 = vmatprep.subr.mxu0 0.0
      %543 = vmatpush1.msra.mxu0 0.0
      %544 = vmatprep.subr.mxu0 0.0
      %545 = vmatpush1.msra.mxu0 0.0
      %546 = vmatprep.subr.mxu0 0.0
      %547 = vmatpush1.msra.mxu0 0.0
      %548 = vmatprep.subr.mxu0 0.0
      %549 = vmatpush1.msra.mxu0 0.0
      %550 = vmatprep.subr.mxu0 0.0
      %551 = vmatpush1.msra.mxu0 0.0
      %552 = vmatprep.subr.mxu0 0.0
      %553 = vmatpush1.msra.mxu0 0.0
      %554 = vmatprep.subr.mxu0 0.0
      %555 = vmatpush1.msra.mxu0 0.0
      %556 = vmatprep.subr.mxu0 0.0
      %557 = vmatpush1.msra.mxu0 0.0
      %558 = vmatprep.subr.mxu0 0.0
      %559 = vmatpush1.msra.mxu0 0.0
      %560 = vmatprep.mubr.f32.mxu0 0.0
      %561 = vmatmul.mubr.f32.gmra.mrb[0].mxu0 %v494
      %v562 = vpop.f32.mrb[0].mxu0
      %v563 = vadd.f32 0.0, %v562
      %v564 = vpop.f32.mrb[0].mxu0
      %565 = vdwg.mxu0
      %v567 = vsel %vm274, %v563, 0
      %569 = vmatprep.subr.mxu0 0.0
      %570 = vmatpush1.msra.mxu0 %v567
      %571 = vmatprep.subr.mxu0 0.0
      %572 = vmatpush1.msra.mxu0 0.0
      %573 = vmatprep.subr.mxu0 0.0
      %574 = vmatpush1.msra.mxu0 0.0
      %575 = vmatprep.subr.mxu0 0.0
      %576 = vmatpush1.msra.mxu0 0.0
      %577 = vmatprep.subr.mxu0 0.0
      %578 = vmatpush1.msra.mxu0 0.0
      %579 = vmatprep.subr.mxu0 0.0
      %580 = vmatpush1.msra.mxu0 0.0
      %581 = vmatprep.subr.mxu0 0.0
      %582 = vmatpush1.msra.mxu0 0.0
      %583 = vmatprep.subr.mxu0 0.0
      %584 = vmatpush1.msra.mxu0 0.0
      %585 = vmatprep.subr.mxu0 0.0
      %586 = vmatpush1.msra.mxu0 0.0
      %587 = vmatprep.subr.mxu0 0.0
      %588 = vmatpush1.msra.mxu0 0.0
      %589 = vmatprep.subr.mxu0 0.0
      %590 = vmatpush1.msra.mxu0 0.0
      %591 = vmatprep.subr.mxu0 0.0
      %592 = vmatpush1.msra.mxu0 0.0
      %593 = vmatprep.subr.mxu0 0.0
      %594 = vmatpush1.msra.mxu0 0.0
      %595 = vmatprep.subr.mxu0 0.0
      %596 = vmatpush1.msra.mxu0 0.0
      %597 = vmatprep.subr.mxu0 0.0
      %598 = vmatpush1.msra.mxu0 0.0
      %599 = vmatprep.subr.mxu0 0.0
      %600 = vmatpush1.msra.mxu0 0.0
      %601 = vmatprep.subr.mxu0 0.0
      %602 = vmatpush1.msra.mxu0 0.0
      %603 = vmatprep.subr.mxu0 0.0
      %604 = vmatpush1.msra.mxu0 0.0
      %605 = vmatprep.subr.mxu0 0.0
      %606 = vmatpush1.msra.mxu0 0.0
      %607 = vmatprep.subr.mxu0 0.0
      %608 = vmatpush1.msra.mxu0 0.0
      %609 = vmatprep.subr.mxu0 0.0
      %610 = vmatpush1.msra.mxu0 0.0
      %611 = vmatprep.subr.mxu0 0.0
      %612 = vmatpush1.msra.mxu0 0.0
      %613 = vmatprep.subr.mxu0 0.0
      %614 = vmatpush1.msra.mxu0 0.0
      %615 = vmatprep.subr.mxu0 0.0
      %616 = vmatpush1.msra.mxu0 0.0
      %617 = vmatprep.subr.mxu0 0.0
      %618 = vmatpush1.msra.mxu0 0.0
      %619 = vmatprep.subr.mxu0 0.0
      %620 = vmatpush1.msra.mxu0 0.0
      %621 = vmatprep.subr.mxu0 0.0
      %622 = vmatpush1.msra.mxu0 0.0
      %623 = vmatprep.subr.mxu0 0.0
      %624 = vmatpush1.msra.mxu0 0.0
      %625 = vmatprep.subr.mxu0 0.0
      %626 = vmatpush1.msra.mxu0 0.0
      %627 = vmatprep.subr.mxu0 0.0
      %628 = vmatpush1.msra.mxu0 0.0
      %629 = vmatprep.subr.mxu0 0.0
      %630 = vmatpush1.msra.mxu0 0.0
      %631 = vmatprep.subr.mxu0 0.0
      %632 = vmatpush1.msra.mxu0 0.0
      %633 = vmatprep.mubr.f32.mxu0 0.0
      %634 = vmatmul.mubr.f32.gmra.mrb[0].mxu0 %v272
      %v635 = vpop.f32.mrb[0].mxu0
      %v636 = vadd.f32 %v28, %v635
      %v637 = vpop.f32.mrb[0].mxu0
      %638 = vdwg.mxu0
      %v639 = vmax.f32 %v636, 0.0
      %640 = vmatprep.subr.mxu0 0.0
      %641 = vmatpush1.msra.mxu0 %v639
      %642 = vmatprep.subr.mxu0 0.0
      %643 = vmatpush1.msra.mxu0 0.0
      %644 = vmatprep.subr.mxu0 0.0
      %645 = vmatpush1.msra.mxu0 0.0
      %646 = vmatprep.subr.mxu0 0.0
      %647 = vmatpush1.msra.mxu0 0.0
      %648 = vmatprep.subr.mxu0 0.0
      %649 = vmatpush1.msra.mxu0 0.0
      %650 = vmatprep.subr.mxu0 0.0
      %651 = vmatpush1.msra.mxu0 0.0
      %652 = vmatprep.subr.mxu0 0.0
      %653 = vmatpush1.msra.mxu0 0.0
      %654 = vmatprep.subr.mxu0 0.0
      %655 = vmatpush1.msra.mxu0 0.0
      %656 = vmatprep.subr.mxu0 0.0
      %657 = vmatpush1.msra.mxu0 0.0
      %658 = vmatprep.subr.mxu0 0.0
      %659 = vmatpush1.msra.mxu0 0.0
      %660 = vmatprep.subr.mxu0 0.0
      %661 = vmatpush1.msra.mxu0 0.0
      %662 = vmatprep.subr.mxu0 0.0
      %663 = vmatpush1.msra.mxu0 0.0
      %664 = vmatprep.subr.mxu0 0.0
      %665 = vmatpush1.msra.mxu0 0.0
      %666 = vmatprep.subr.mxu0 0.0
      %667 = vmatpush1.msra.mxu0 0.0
      %668 = vmatprep.subr.mxu0 0.0
      %669 = vmatpush1.msra.mxu0 0.0
      %670 = vmatprep.subr.mxu0 0.0
      %671 = vmatpush1.msra.mxu0 0.0
      %672 = vmatprep.subr.mxu0 0.0
      %673 = vmatpush1.msra.mxu0 0.0
      %674 = vmatprep.subr.mxu0 0.0
      %675 = vmatpush1.msra.mxu0 0.0
      %676 = vmatprep.subr.mxu0 0.0
      %677 = vmatpush1.msra.mxu0 0.0
      %678 = vmatprep.subr.mxu0 0.0
      %679 = vmatpush1.msra.mxu0 0.0
      %680 = vmatprep.subr.mxu0 0.0
      %681 = vmatpush1.msra.mxu0 0.0
      %682 = vmatprep.subr.mxu0 0.0
      %683 = vmatpush1.msra.mxu0 0.0
      %684 = vmatprep.subr.mxu0 0.0
      %685 = vmatpush1.msra.mxu0 0.0
      %686 = vmatprep.subr.mxu0 0.0
      %687 = vmatpush1.msra.mxu0 0.0
      %688 = vmatprep.subr.mxu0 0.0
      %689 = vmatpush1.msra.mxu0 0.0
      %690 = vmatprep.subr.mxu0 0.0
      %691 = vmatpush1.msra.mxu0 0.0
      %692 = vmatprep.subr.mxu0 0.0
      %693 = vmatpush1.msra.mxu0 0.0
      %694 = vmatprep.subr.mxu0 0.0
      %695 = vmatpush1.msra.mxu0 0.0
      %696 = vmatprep.subr.mxu0 0.0
      %697 = vmatpush1.msra.mxu0 0.0
      %698 = vmatprep.subr.mxu0 0.0
      %699 = vmatpush1.msra.mxu0 0.0
      %700 = vmatprep.subr.mxu0 0.0
      %701 = vmatpush1.msra.mxu0 0.0
      %702 = vmatprep.subr.mxu0 0.0
      %703 = vmatpush1.msra.mxu0 0.0
      %704 = vmatprep.mubr.f32.mxu0 0.0
      %705 = vmatmul.mubr.f32.gmra.mrb[0].mxu0 %v41
      %v706 = vpop.f32.mrb[0].mxu0
      %v707 = vadd.f32 0.0, %v706
      %v708 = vpop.f32.mrb[0].mxu0
      %709 = vdwg.mxu0
      %v711 = vsel %vm113, %v707, 0
      %713 = vmatprep.subr.mxu0 0.0
      %714 = vmatpush1.msra.mxu0 %v24
      %715 = vmatprep.subr.mxu0 0.0
      %716 = vmatpush1.msra.mxu0 %v119
      %717 = vmatprep.subr.mxu0 0.0
      %718 = vmatpush1.msra.mxu0 0.0
      %719 = vmatprep.subr.mxu0 0.0
      %720 = vmatpush1.msra.mxu0 0.0
      %721 = vmatprep.subr.mxu0 0.0
      %722 = vmatpush1.msra.mxu0 0.0
      %723 = vmatprep.subr.mxu0 0.0
      %724 = vmatpush1.msra.mxu0 0.0
      %725 = vmatprep.subr.mxu0 0.0
      %726 = vmatpush1.msra.mxu0 0.0
      %727 = vmatprep.subr.mxu0 0.0
      %728 = vmatpush1.msra.mxu0 0.0
      %729 = vmatprep.subr.mxu0 0.0
      %730 = vmatpush1.msra.mxu0 0.0
      %731 = vmatprep.subr.mxu0 0.0
      %732 = vmatpush1.msra.mxu0 0.0
      %733 = vmatprep.subr.mxu0 0.0
      %734 = vmatpush1.msra.mxu0 0.0
      %735 = vmatprep.subr.mxu0 0.0
      %736 = vmatpush1.msra.mxu0 0.0
      %737 = vmatprep.subr.mxu0 0.0
      %738 = vmatpush1.msra.mxu0 0.0
      %739 = vmatprep.subr.mxu0 0.0
      %740 = vmatpush1.msra.mxu0 0.0
      %741 = vmatprep.subr.mxu0 0.0
      %742 = vmatpush1.msra.mxu0 0.0
      %743 = vmatprep.subr.mxu0 0.0
      %744 = vmatpush1.msra.mxu0 0.0
      %745 = vmatprep.subr.mxu0 0.0
      %746 = vmatpush1.msra.mxu0 0.0
      %747 = vmatprep.subr.mxu0 0.0
      %748 = vmatpush1.msra.mxu0 0.0
      %749 = vmatprep.subr.mxu0 0.0
      %750 = vmatpush1.msra.mxu0 0.0
      %751 = vmatprep.subr.mxu0 0.0
      %752 = vmatpush1.msra.mxu0 0.0
      %753 = vmatprep.subr.mxu0 0.0
      %754 = vmatpush1.msra.mxu0 0.0
      %755 = vmatprep.subr.mxu0 0.0
      %756 = vmatpush1.msra.mxu0 0.0
      %757 = vmatprep.subr.mxu0 0.0
      %758 = vmatpush1.msra.mxu0 0.0
      %759 = vmatprep.subr.mxu0 0.0
      %760 = vmatpush1.msra.mxu0 0.0
      %761 = vmatprep.subr.mxu0 0.0
      %762 = vmatpush1.msra.mxu0 0.0
      %763 = vmatprep.subr.mxu0 0.0
      %764 = vmatpush1.msra.mxu0 0.0
      %765 = vmatprep.subr.mxu0 0.0
      %766 = vmatpush1.msra.mxu0 0.0
      %767 = vmatprep.subr.mxu0 0.0
      %768 = vmatpush1.msra.mxu0 0.0
      %769 = vmatprep.subr.mxu0 0.0
      %770 = vmatpush1.msra.mxu0 0.0
      %771 = vmatprep.subr.mxu0 0.0
      %772 = vmatpush1.msra.mxu0 0.0
      %773 = vmatprep.subr.mxu0 0.0
      %774 = vmatpush1.msra.mxu0 0.0
      %775 = vmatprep.subr.mxu0 0.0
      %776 = vmatpush1.msra.mxu0 0.0
      %777 = vmatprep.mubr.f32.mxu0 0.0
      %778 = vmatmul.mubr.f32.gmra.mrb[0].mxu0 %v711
      %v779 = vpop.f32.mrb[0].mxu0
      %v780 = vadd.f32 0.0, %v779
      %v781 = vpop.f32.mrb[0].mxu0
      %782 = vdwg.mxu0
      %v783 = vmax.f32 %v780, 0.0
      %v785 = vsel %vm192, %v783, 0
      %787 = vmatprep.subr.mxu0 0.0
      %788 = vmatpush1.msra.mxu0 %v26
      %789 = vmatprep.subr.mxu0 0.0
      %790 = vmatpush1.msra.mxu0 %v198
      %791 = vmatprep.subr.mxu0 0.0
      %792 = vmatpush1.msra.mxu0 0.0
      %793 = vmatprep.subr.mxu0 0.0
      %794 = vmatpush1.msra.mxu0 0.0
      %795 = vmatprep.subr.mxu0 0.0
      %796 = vmatpush1.msra.mxu0 0.0
      %797 = vmatprep.subr.mxu0 0.0
      %798 = vmatpush1.msra.mxu0 0.0
      %799 = vmatprep.subr.mxu0 0.0
      %800 = vmatpush1.msra.mxu0 0.0
      %801 = vmatprep.subr.mxu0 0.0
      %802 = vmatpush1.msra.mxu0 0.0
      %803 = vmatprep.subr.mxu0 0.0
      %804 = vmatpush1.msra.mxu0 0.0
      %805 = vmatprep.subr.mxu0 0.0
      %806 = vmatpush1.msra.mxu0 0.0
      %807 = vmatprep.subr.mxu0 0.0
      %808 = vmatpush1.msra.mxu0 0.0
      %809 = vmatprep.subr.mxu0 0.0
      %810 = vmatpush1.msra.mxu0 0.0
      %811 = vmatprep.subr.mxu0 0.0
      %812 = vmatpush1.msra.mxu0 0.0
      %813 = vmatprep.subr.mxu0 0.0
      %814 = vmatpush1.msra.mxu0 0.0
      %815 = vmatprep.subr.mxu0 0.0
      %816 = vmatpush1.msra.mxu0 0.0
      %817 = vmatprep.subr.mxu0 0.0
      %818 = vmatpush1.msra.mxu0 0.0
      %819 = vmatprep.subr.mxu0 0.0
      %820 = vmatpush1.msra.mxu0 0.0
      %821 = vmatprep.subr.mxu0 0.0
      %822 = vmatpush1.msra.mxu0 0.0
      %823 = vmatprep.subr.mxu0 0.0
      %824 = vmatpush1.msra.mxu0 0.0
      %825 = vmatprep.subr.mxu0 0.0
      %826 = vmatpush1.msra.mxu0 0.0
      %827 = vmatprep.subr.mxu0 0.0
      %828 = vmatpush1.msra.mxu0 0.0
      %829 = vmatprep.subr.mxu0 0.0
      %830 = vmatpush1.msra.mxu0 0.0
      %831 = vmatprep.subr.mxu0 0.0
      %832 = vmatpush1.msra.mxu0 0.0
      %833 = vmatprep.subr.mxu0 0.0
      %834 = vmatpush1.msra.mxu0 0.0
      %835 = vmatprep.subr.mxu0 0.0
      %836 = vmatpush1.msra.mxu0 0.0
      %837 = vmatprep.subr.mxu0 0.0
      %838 = vmatpush1.msra.mxu0 0.0
      %839 = vmatprep.subr.mxu0 0.0
      %840 = vmatpush1.msra.mxu0 0.0
      %841 = vmatprep.subr.mxu0 0.0
      %842 = vmatpush1.msra.mxu0 0.0
      %843 = vmatprep.subr.mxu0 0.0
      %844 = vmatpush1.msra.mxu0 0.0
      %845 = vmatprep.subr.mxu0 0.0
      %846 = vmatpush1.msra.mxu0 0.0
      %847 = vmatprep.subr.mxu0 0.0
      %848 = vmatpush1.msra.mxu0 0.0
      %849 = vmatprep.subr.mxu0 0.0
      %850 = vmatpush1.msra.mxu0 0.0
      %851 = vmatprep.mubr.f32.mxu0 0.0
      %852 = vmatmul.mubr.f32.gmra.mrb[0].mxu0 %v785
      %v853 = vpop.f32.mrb[0].mxu0
      %v854 = vadd.f32 0.0, %v853
      %v855 = vpop.f32.mrb[0].mxu0
      %856 = vdwg.mxu0
      %v858 = vsel %vm274, %v854, 0
      %860 = vmatprep.subr.mxu0 0.0
      %861 = vmatpush1.msra.mxu0 %v858
      %862 = vmatprep.subr.mxu0 0.0
      %863 = vmatpush1.msra.mxu0 0.0
      %864 = vmatprep.subr.mxu0 0.0
      %865 = vmatpush1.msra.mxu0 0.0
      %866 = vmatprep.subr.mxu0 0.0
      %867 = vmatpush1.msra.mxu0 0.0
      %868 = vmatprep.subr.mxu0 0.0
      %869 = vmatpush1.msra.mxu0 0.0
      %870 = vmatprep.subr.mxu0 0.0
      %871 = vmatpush1.msra.mxu0 0.0
      %872 = vmatprep.subr.mxu0 0.0
      %873 = vmatpush1.msra.mxu0 0.0
      %874 = vmatprep.subr.mxu0 0.0
      %875 = vmatpush1.msra.mxu0 0.0
      %876 = vmatprep.subr.mxu0 0.0
      %877 = vmatpush1.msra.mxu0 0.0
      %878 = vmatprep.subr.mxu0 0.0
      %879 = vmatpush1.msra.mxu0 0.0
      %880 = vmatprep.subr.mxu0 0.0
      %881 = vmatpush1.msra.mxu0 0.0
      %882 = vmatprep.subr.mxu0 0.0
      %883 = vmatpush1.msra.mxu0 0.0
      %884 = vmatprep.subr.mxu0 0.0
      %885 = vmatpush1.msra.mxu0 0.0
      %886 = vmatprep.subr.mxu0 0.0
      %887 = vmatpush1.msra.mxu0 0.0
      %888 = vmatprep.subr.mxu0 0.0
      %889 = vmatpush1.msra.mxu0 0.0
      %890 = vmatprep.subr.mxu0 0.0
      %891 = vmatpush1.msra.mxu0 0.0
      %892 = vmatprep.subr.mxu0 0.0
      %893 = vmatpush1.msra.mxu0 0.0
      %894 = vmatprep.subr.mxu0 0.0
      %895 = vmatpush1.msra.mxu0 0.0
      %896 = vmatprep.subr.mxu0 0.0
      %897 = vmatpush1.msra.mxu0 0.0
      %898 = vmatprep.subr.mxu0 0.0
      %899 = vmatpush1.msra.mxu0 0.0
      %900 = vmatprep.subr.mxu0 0.0
      %901 = vmatpush1.msra.mxu0 0.0
      %902 = vmatprep.subr.mxu0 0.0
      %903 = vmatpush1.msra.mxu0 0.0
      %904 = vmatprep.subr.mxu0 0.0
      %905 = vmatpush1.msra.mxu0 0.0
      %906 = vmatprep.subr.mxu0 0.0
      %907 = vmatpush1.msra.mxu0 0.0
      %908 = vmatprep.subr.mxu0 0.0
      %909 = vmatpush1.msra.mxu0 0.0
      %910 = vmatprep.subr.mxu0 0.0
      %911 = vmatpush1.msra.mxu0 0.0
      %912 = vmatprep.subr.mxu0 0.0
      %913 = vmatpush1.msra.mxu0 0.0
      %914 = vmatprep.subr.mxu0 0.0
      %915 = vmatpush1.msra.mxu0 0.0
      %916 = vmatprep.subr.mxu0 0.0
      %917 = vmatpush1.msra.mxu0 0.0
      %918 = vmatprep.subr.mxu0 0.0
      %919 = vmatpush1.msra.mxu0 0.0
      %920 = vmatprep.subr.mxu0 0.0
      %921 = vmatpush1.msra.mxu0 0.0
      %922 = vmatprep.subr.mxu0 0.0
      %923 = vmatpush1.msra.mxu0 0.0
      %924 = vmatprep.mubr.f32.mxu0 0.0
      %925 = vmatmul.mubr.f32.gmra.mrb[0].mxu0 %v272
      %v926 = vpop.f32.mrb[0].mxu0
      %v927 = vadd.f32 %v28, %v926
      %v928 = vpop.f32.mrb[0].mxu0
      %929 = vdwg.mxu0
      %v930 = vmax.f32 %v927, 0.0
      %931 = vmatprep.subr.mxu0 0.0
      %932 = vmatpush1.msra.mxu0 %v930
      %933 = vmatprep.subr.mxu0 0.0
      %934 = vmatpush1.msra.mxu0 0.0
      %935 = vmatprep.subr.mxu0 0.0
      %936 = vmatpush1.msra.mxu0 0.0
      %937 = vmatprep.subr.mxu0 0.0
      %938 = vmatpush1.msra.mxu0 0.0
      %939 = vmatprep.subr.mxu0 0.0
      %940 = vmatpush1.msra.mxu0 0.0
      %941 = vmatprep.subr.mxu0 0.0
      %942 = vmatpush1.msra.mxu0 0.0
      %943 = vmatprep.subr.mxu0 0.0
      %944 = vmatpush1.msra.mxu0 0.0
      %945 = vmatprep.subr.mxu0 0.0
      %946 = vmatpush1.msra.mxu0 0.0
      %947 = vmatprep.subr.mxu0 0.0
      %948 = vmatpush1.msra.mxu0 0.0
      %949 = vmatprep.subr.mxu0 0.0
      %950 = vmatpush1.msra.mxu0 0.0
      %951 = vmatprep.subr.mxu0 0.0
      %952 = vmatpush1.msra.mxu0 0.0
      %953 = vmatprep.subr.mxu0 0.0
      %954 = vmatpush1.msra.mxu0 0.0
      %955 = vmatprep.subr.mxu0 0.0
      %956 = vmatpush1.msra.mxu0 0.0
      %957 = vmatprep.subr.mxu0 0.0
      %958 = vmatpush1.msra.mxu0 0.0
      %959 = vmatprep.subr.mxu0 0.0
      %960 = vmatpush1.msra.mxu0 0.0
      %961 = vmatprep.subr.mxu0 0.0
      %962 = vmatpush1.msra.mxu0 0.0
      %963 = vmatprep.subr.mxu0 0.0
      %964 = vmatpush1.msra.mxu0 0.0
      %965 = vmatprep.subr.mxu0 0.0
      %966 = vmatpush1.msra.mxu0 0.0
      %967 = vmatprep.subr.mxu0 0.0
      %968 = vmatpush1.msra.mxu0 0.0
      %969 = vmatprep.subr.mxu0 0.0
      %970 = vmatpush1.msra.mxu0 0.0
      %971 = vmatprep.subr.mxu0 0.0
      %972 = vmatpush1.msra.mxu0 0.0
      %973 = vmatprep.subr.mxu0 0.0
      %974 = vmatpush1.msra.mxu0 0.0
      %975 = vmatprep.subr.mxu0 0.0
      %976 = vmatpush1.msra.mxu0 0.0
      %977 = vmatprep.subr.mxu0 0.0
      %978 = vmatpush1.msra.mxu0 0.0
      %979 = vmatprep.subr.mxu0 0.0
      %980 = vmatpush1.msra.mxu0 0.0
      %981 = vmatprep.subr.mxu0 0.0
      %982 = vmatpush1.msra.mxu0 0.0
      %983 = vmatprep.subr.mxu0 0.0
      %984 = vmatpush1.msra.mxu0 0.0
      %985 = vmatprep.subr.mxu0 0.0
      %986 = vmatpush1.msra.mxu0 0.0
      %987 = vmatprep.subr.mxu0 0.0
      %988 = vmatpush1.msra.mxu0 0.0
      %989 = vmatprep.subr.mxu0 0.0
      %990 = vmatpush1.msra.mxu0 0.0
      %991 = vmatprep.subr.mxu0 0.0
      %992 = vmatpush1.msra.mxu0 0.0
      %993 = vmatprep.subr.mxu0 0.0
      %994 = vmatpush1.msra.mxu0 0.0
      %995 = vmatprep.mubr.f32.mxu0 0.0
      %996 = vmatmul.mubr.f32.gmra.mrb[0].mxu0 %v41
      %v997 = vpop.f32.mrb[0].mxu0
      %v998 = vadd.f32 0.0, %v997
      %v999 = vpop.f32.mrb[0].mxu0
      %1000 = vdwg.mxu0
      %v1002 = vsel %vm113, %v998, 0
      %1004 = vmatprep.subr.mxu0 0.0
      %1005 = vmatpush1.msra.mxu0 %v24
      %1006 = vmatprep.subr.mxu0 0.0
      %1007 = vmatpush1.msra.mxu0 %v119
      %1008 = vmatprep.subr.mxu0 0.0
      %1009 = vmatpush1.msra.mxu0 0.0
      %1010 = vmatprep.subr.mxu0 0.0
      %1011 = vmatpush1.msra.mxu0 0.0
      %1012 = vmatprep.subr.mxu0 0.0
      %1013 = vmatpush1.msra.mxu0 0.0
      %1014 = vmatprep.subr.mxu0 0.0
      %1015 = vmatpush1.msra.mxu0 0.0
      %1016 = vmatprep.subr.mxu0 0.0
      %1017 = vmatpush1.msra.mxu0 0.0
      %1018 = vmatprep.subr.mxu0 0.0
      %1019 = vmatpush1.msra.mxu0 0.0
      %1020 = vmatprep.subr.mxu0 0.0
      %1021 = vmatpush1.msra.mxu0 0.0
      %1022 = vmatprep.subr.mxu0 0.0
      %1023 = vmatpush1.msra.mxu0 0.0
      %1024 = vmatprep.subr.mxu0 0.0
      %1025 = vmatpush1.msra.mxu0 0.0
      %1026 = vmatprep.subr.mxu0 0.0
      %1027 = vmatpush1.msra.mxu0 0.0
      %1028 = vmatprep.subr.mxu0 0.0
      %1029 = vmatpush1.msra.mxu0 0.0
      %1030 = vmatprep.subr.mxu0 0.0
      %1031 = vmatpush1.msra.mxu0 0.0
      %1032 = vmatprep.subr.mxu0 0.0
      %1033 = vmatpush1.msra.mxu0 0.0
      %1034 = vmatprep.subr.mxu0 0.0
      %1035 = vmatpush1.msra.mxu0 0.0
      %1036 = vmatprep.subr.mxu0 0.0
      %1037 = vmatpush1.msra.mxu0 0.0
      %1038 = vmatprep.subr.mxu0 0.0
      %1039 = vmatpush1.msra.mxu0 0.0
      %1040 = vmatprep.subr.mxu0 0.0
      %1041 = vmatpush1.msra.mxu0 0.0
      %1042 = vmatprep.subr.mxu0 0.0
      %1043 = vmatpush1.msra.mxu0 0.0
      %1044 = vmatprep.subr.mxu0 0.0
      %1045 = vmatpush1.msra.mxu0 0.0
      %1046 = vmatprep.subr.mxu0 0.0
      %1047 = vmatpush1.msra.mxu0 0.0
      %1048 = vmatprep.subr.mxu0 0.0
      %1049 = vmatpush1.msra.mxu0 0.0
      %1050 = vmatprep.subr.mxu0 0.0
      %1051 = vmatpush1.msra.mxu0 0.0
      %1052 = vmatprep.subr.mxu0 0.0
      %1053 = vmatpush1.msra.mxu0 0.0
      %1054 = vmatprep.subr.mxu0 0.0
      %1055 = vmatpush1.msra.mxu0 0.0
      %1056 = vmatprep.subr.mxu0 0.0
      %1057 = vmatpush1.msra.mxu0 0.0
      %1058 = vmatprep.subr.mxu0 0.0
      %1059 = vmatpush1.msra.mxu0 0.0
      %1060 = vmatprep.subr.mxu0 0.0
      %1061 = vmatpush1.msra.mxu0 0.0
      %1062 = vmatprep.subr.mxu0 0.0
      %1063 = vmatpush1.msra.mxu0 0.0
      %1064 = vmatprep.subr.mxu0 0.0
      %1065 = vmatpush1.msra.mxu0 0.0
      %1066 = vmatprep.subr.mxu0 0.0
      %1067 = vmatpush1.msra.mxu0 0.0
      %1068 = vmatprep.mubr.f32.mxu0 0.0
      %1069 = vmatmul.mubr.f32.gmra.mrb[0].mxu0 %v1002
      %v1070 = vpop.f32.mrb[0].mxu0
      %v1071 = vadd.f32 0.0, %v1070
      %v1072 = vpop.f32.mrb[0].mxu0
      %1073 = vdwg.mxu0
      %v1074 = vmax.f32 %v1071, 0.0
      %v1076 = vsel %vm192, %v1074, 0
      %1078 = vmatprep.subr.mxu0 0.0
      %1079 = vmatpush1.msra.mxu0 %v26
      %1080 = vmatprep.subr.mxu0 0.0
      %1081 = vmatpush1.msra.mxu0 %v198
      %1082 = vmatprep.subr.mxu0 0.0
      %1083 = vmatpush1.msra.mxu0 0.0
      %1084 = vmatprep.subr.mxu0 0.0
      %1085 = vmatpush1.msra.mxu0 0.0
      %1086 = vmatprep.subr.mxu0 0.0
      %1087 = vmatpush1.msra.mxu0 0.0
      %1088 = vmatprep.subr.mxu0 0.0
      %1089 = vmatpush1.msra.mxu0 0.0
      %1090 = vmatprep.subr.mxu0 0.0
      %1091 = vmatpush1.msra.mxu0 0.0
      %1092 = vmatprep.subr.mxu0 0.0
      %1093 = vmatpush1.msra.mxu0 0.0
      %1094 = vmatprep.subr.mxu0 0.0
      %1095 = vmatpush1.msra.mxu0 0.0
      %1096 = vmatprep.subr.mxu0 0.0
      %1097 = vmatpush1.msra.mxu0 0.0
      %1098 = vmatprep.subr.mxu0 0.0
      %1099 = vmatpush1.msra.mxu0 0.0
      %1100 = vmatprep.subr.mxu0 0.0
      %1101 = vmatpush1.msra.mxu0 0.0
      %1102 = vmatprep.subr.mxu0 0.0
      %1103 = vmatpush1.msra.mxu0 0.0
      %1104 = vmatprep.subr.mxu0 0.0
      %1105 = vmatpush1.msra.mxu0 0.0
      %1106 = vmatprep.subr.mxu0 0.0
      %1107 = vmatpush1.msra.mxu0 0.0
      %1108 = vmatprep.subr.mxu0 0.0
      %1109 = vmatpush1.msra.mxu0 0.0
      %1110 = vmatprep.subr.mxu0 0.0
      %1111 = vmatpush1.msra.mxu0 0.0
      %1112 = vmatprep.subr.mxu0 0.0
      %1113 = vmatpush1.msra.mxu0 0.0
      %1114 = vmatprep.subr.mxu0 0.0
      %1115 = vmatpush1.msra.mxu0 0.0
      %1116 = vmatprep.subr.mxu0 0.0
      %1117 = vmatpush1.msra.mxu0 0.0
      %1118 = vmatprep.subr.mxu0 0.0
      %1119 = vmatpush1.msra.mxu0 0.0
      %1120 = vmatprep.subr.mxu0 0.0
      %1121 = vmatpush1.msra.mxu0 0.0
      %1122 = vmatprep.subr.mxu0 0.0
      %1123 = vmatpush1.msra.mxu0 0.0
      %1124 = vmatprep.subr.mxu0 0.0
      %1125 = vmatpush1.msra.mxu0 0.0
      %1126 = vmatprep.subr.mxu0 0.0
      %1127 = vmatpush1.msra.mxu0 0.0
      %1128 = vmatprep.subr.mxu0 0.0
      %1129 = vmatpush1.msra.mxu0 0.0
      %1130 = vmatprep.subr.mxu0 0.0
      %1131 = vmatpush1.msra.mxu0 0.0
      %1132 = vmatprep.subr.mxu0 0.0
      %1133 = vmatpush1.msra.mxu0 0.0
      %1134 = vmatprep.subr.mxu0 0.0
      %1135 = vmatpush1.msra.mxu0 0.0
      %1136 = vmatprep.subr.mxu0 0.0
      %1137 = vmatpush1.msra.mxu0 0.0
      %1138 = vmatprep.subr.mxu0 0.0
      %1139 = vmatpush1.msra.mxu0 0.0
      %1140 = vmatprep.subr.mxu0 0.0
      %1141 = vmatpush1.msra.mxu0 0.0
      %1142 = vmatprep.mubr.f32.mxu0 0.0
      %1143 = vmatmul.mubr.f32.gmra.mrb[0].mxu0 %v1076
      %v1144 = vpop.f32.mrb[0].mxu0
      %v1145 = vadd.f32 0.0, %v1144
      %v1146 = vpop.f32.mrb[0].mxu0
      %1147 = vdwg.mxu0
      %v1149 = vsel %vm274, %v1145, 0
      %1151 = vmatprep.subr.mxu0 0.0
      %1152 = vmatpush1.msra.mxu0 %v1149
      %1153 = vmatprep.subr.mxu0 0.0
      %1154 = vmatpush1.msra.mxu0 0.0
      %1155 = vmatprep.subr.mxu0 0.0
      %1156 = vmatpush1.msra.mxu0 0.0
      %1157 = vmatprep.subr.mxu0 0.0
      %1158 = vmatpush1.msra.mxu0 0.0
      %1159 = vmatprep.subr.mxu0 0.0
      %1160 = vmatpush1.msra.mxu0 0.0
      %1161 = vmatprep.subr.mxu0 0.0
      %1162 = vmatpush1.msra.mxu0 0.0
      %1163 = vmatprep.subr.mxu0 0.0
      %1164 = vmatpush1.msra.mxu0 0.0
      %1165 = vmatprep.subr.mxu0 0.0
      %1166 = vmatpush1.msra.mxu0 0.0
      %1167 = vmatprep.subr.mxu0 0.0
      %1168 = vmatpush1.msra.mxu0 0.0
      %1169 = vmatprep.subr.mxu0 0.0
      %1170 = vmatpush1.msra.mxu0 0.0
      %1171 = vmatprep.subr.mxu0 0.0
      %1172 = vmatpush1.msra.mxu0 0.0
      %1173 = vmatprep.subr.mxu0 0.0
      %1174 = vmatpush1.msra.mxu0 0.0
      %1175 = vmatprep.subr.mxu0 0.0
      %1176 = vmatpush1.msra.mxu0 0.0
      %1177 = vmatprep.subr.mxu0 0.0
      %1178 = vmatpush1.msra.mxu0 0.0
      %1179 = vmatprep.subr.mxu0 0.0
      %1180 = vmatpush1.msra.mxu0 0.0
      %1181 = vmatprep.subr.mxu0 0.0
      %1182 = vmatpush1.msra.mxu0 0.0
      %1183 = vmatprep.subr.mxu0 0.0
      %1184 = vmatpush1.msra.mxu0 0.0
      %1185 = vmatprep.subr.mxu0 0.0
      %1186 = vmatpush1.msra.mxu0 0.0
      %1187 = vmatprep.subr.mxu0 0.0
      %1188 = vmatpush1.msra.mxu0 0.0
      %1189 = vmatprep.subr.mxu0 0.0
      %1190 = vmatpush1.msra.mxu0 0.0
      %1191 = vmatprep.subr.mxu0 0.0
      %1192 = vmatpush1.msra.mxu0 0.0
      %1193 = vmatprep.subr.mxu0 0.0
      %1194 = vmatpush1.msra.mxu0 0.0
      %1195 = vmatprep.subr.mxu0 0.0
      %1196 = vmatpush1.msra.mxu0 0.0
      %1197 = vmatprep.subr.mxu0 0.0
      %1198 = vmatpush1.msra.mxu0 0.0
      %1199 = vmatprep.subr.mxu0 0.0
      %1200 = vmatpush1.msra.mxu0 0.0
      %1201 = vmatprep.subr.mxu0 0.0
      %1202 = vmatpush1.msra.mxu0 0.0
      %1203 = vmatprep.subr.mxu0 0.0
      %1204 = vmatpush1.msra.mxu0 0.0
      %1205 = vmatprep.subr.mxu0 0.0
      %1206 = vmatpush1.msra.mxu0 0.0
      %1207 = vmatprep.subr.mxu0 0.0
      %1208 = vmatpush1.msra.mxu0 0.0
      %1209 = vmatprep.subr.mxu0 0.0
      %1210 = vmatpush1.msra.mxu0 0.0
      %1211 = vmatprep.subr.mxu0 0.0
      %1212 = vmatpush1.msra.mxu0 0.0
      %1213 = vmatprep.subr.mxu0 0.0
      %1214 = vmatpush1.msra.mxu0 0.0
      %1215 = vmatprep.mubr.f32.mxu0 0.0
      %1216 = vmatmul.mubr.f32.gmra.mrb[0].mxu0 %v272
      %v1217 = vpop.f32.mrb[0].mxu0
      %v1218 = vadd.f32 %v28, %v1217
      %v1219 = vpop.f32.mrb[0].mxu0
      %1220 = vdwg.mxu0
      %v1221 = vmax.f32 %v1218, 0.0
      %1222 = vmatprep.subr.mxu0 0.0
      %1223 = vmatpush1.msra.mxu0 %v1221
      %1224 = vmatprep.subr.mxu0 0.0
      %1225 = vmatpush1.msra.mxu0 0.0
      %1226 = vmatprep.subr.mxu0 0.0
      %1227 = vmatpush1.msra.mxu0 0.0
      %1228 = vmatprep.subr.mxu0 0.0
      %1229 = vmatpush1.msra.mxu0 0.0
      %1230 = vmatprep.subr.mxu0 0.0
      %1231 = vmatpush1.msra.mxu0 0.0
      %1232 = vmatprep.subr.mxu0 0.0
      %1233 = vmatpush1.msra.mxu0 0.0
      %1234 = vmatprep.subr.mxu0 0.0
      %1235 = vmatpush1.msra.mxu0 0.0
      %1236 = vmatprep.subr.mxu0 0.0
      %1237 = vmatpush1.msra.mxu0 0.0
      %1238 = vmatprep.subr.mxu0 0.0
      %1239 = vmatpush1.msra.mxu0 0.0
      %1240 = vmatprep.subr.mxu0 0.0
      %1241 = vmatpush1.msra.mxu0 0.0
      %1242 = vmatprep.subr.mxu0 0.0
      %1243 = vmatpush1.msra.mxu0 0.0
      %1244 = vmatprep.subr.mxu0 0.0
      %1245 = vmatpush1.msra.mxu0 0.0
      %1246 = vmatprep.subr.mxu0 0.0
      %1247 = vmatpush1.msra.mxu0 0.0
      %1248 = vmatprep.subr.mxu0 0.0
      %1249 = vmatpush1.msra.mxu0 0.0
      %1250 = vmatprep.subr.mxu0 0.0
      %1251 = vmatpush1.msra.mxu0 0.0
      %1252 = vmatprep.subr.mxu0 0.0
      %1253 = vmatpush1.msra.mxu0 0.0
      %1254 = vmatprep.subr.mxu0 0.0
      %1255 = vmatpush1.msra.mxu0 0.0
      %1256 = vmatprep.subr.mxu0 0.0
      %1257 = vmatpush1.msra.mxu0 0.0
      %1258 = vmatprep.subr.mxu0 0.0
      %1259 = vmatpush1.msra.mxu0 0.0
      %1260 = vmatprep.subr.mxu0 0.0
      %1261 = vmatpush1.msra.mxu0 0.0
      %1262 = vmatprep.subr.mxu0 0.0
      %1263 = vmatpush1.msra.mxu0 0.0
      %1264 = vmatprep.subr.mxu0 0.0
      %1265 = vmatpush1.msra.mxu0 0.0
      %1266 = vmatprep.subr.mxu0 0.0
      %1267 = vmatpush1.msra.mxu0 0.0
      %1268 = vmatprep.subr.mxu0 0.0
      %1269 = vmatpush1.msra.mxu0 0.0
      %1270 = vmatprep.subr.mxu0 0.0
      %1271 = vmatpush1.msra.mxu0 0.0
      %1272 = vmatprep.subr.mxu0 0.0
      %1273 = vmatpush1.msra.mxu0 0.0
      %1274 = vmatprep.subr.mxu0 0.0
      %1275 = vmatpush1.msra.mxu0 0.0
      %1276 = vmatprep.subr.mxu0 0.0
      %1277 = vmatpush1.msra.mxu0 0.0
      %1278 = vmatprep.subr.mxu0 0.0
      %1279 = vmatpush1.msra.mxu0 0.0
      %1280 = vmatprep.subr.mxu0 0.0
      %1281 = vmatpush1.msra.mxu0 0.0
      %1282 = vmatprep.subr.mxu0 0.0
      %1283 = vmatpush1.msra.mxu0 0.0
      %1284 = vmatprep.subr.mxu0 0.0
      %1285 = vmatpush1.msra.mxu0 0.0
      %1286 = vmatprep.mubr.f32.mxu0 0.0
      %1287 = vmatmul.mubr.f32.gmra.mrb[0].mxu0 %v41
      %v1288 = vpop.f32.mrb[0].mxu0
      %v1289 = vadd.f32 0.0, %v1288
      %v1290 = vpop.f32.mrb[0].mxu0
      %1291 = vdwg.mxu0
      %v1293 = vsel %vm113, %v1289, 0
      %1295 = vmatprep.subr.mxu0 0.0
      %1296 = vmatpush1.msra.mxu0 %v24
      %1297 = vmatprep.subr.mxu0 0.0
      %1298 = vmatpush1.msra.mxu0 %v119
      %1299 = vmatprep.subr.mxu0 0.0
      %1300 = vmatpush1.msra.mxu0 0.0
      %1301 = vmatprep.subr.mxu0 0.0
      %1302 = vmatpush1.msra.mxu0 0.0
      %1303 = vmatprep.subr.mxu0 0.0
      %1304 = vmatpush1.msra.mxu0 0.0
      %1305 = vmatprep.subr.mxu0 0.0
      %1306 = vmatpush1.msra.mxu0 0.0
      %1307 = vmatprep.subr.mxu0 0.0
      %1308 = vmatpush1.msra.mxu0 0.0
      %1309 = vmatprep.subr.mxu0 0.0
      %1310 = vmatpush1.msra.mxu0 0.0
      %1311 = vmatprep.subr.mxu0 0.0
      %1312 = vmatpush1.msra.mxu0 0.0
      %1313 = vmatprep.subr.mxu0 0.0
      %1314 = vmatpush1.msra.mxu0 0.0
      %1315 = vmatprep.subr.mxu0 0.0
      %1316 = vmatpush1.msra.mxu0 0.0
      %1317 = vmatprep.subr.mxu0 0.0
      %1318 = vmatpush1.msra.mxu0 0.0
      %1319 = vmatprep.subr.mxu0 0.0
      %1320 = vmatpush1.msra.mxu0 0.0
      %1321 = vmatprep.subr.mxu0 0.0
      %1322 = vmatpush1.msra.mxu0 0.0
      %1323 = vmatprep.subr.mxu0 0.0
      %1324 = vmatpush1.msra.mxu0 0.0
      %1325 = vmatprep.subr.mxu0 0.0
      %1326 = vmatpush1.msra.mxu0 0.0
      %1327 = vmatprep.subr.mxu0 0.0
      %1328 = vmatpush1.msra.mxu0 0.0
      %1329 = vmatprep.subr.mxu0 0.0
      %1330 = vmatpush1.msra.mxu0 0.0
      %1331 = vmatprep.subr.mxu0 0.0
      %1332 = vmatpush1.msra.mxu0 0.0
      %1333 = vmatprep.subr.mxu0 0.0
      %1334 = vmatpush1.msra.mxu0 0.0
      %1335 = vmatprep.subr.mxu0 0.0
      %1336 = vmatpush1.msra.mxu0 0.0
      %1337 = vmatprep.subr.mxu0 0.0
      %1338 = vmatpush1.msra.mxu0 0.0
      %1339 = vmatprep.subr.mxu0 0.0
      %1340 = vmatpush1.msra.mxu0 0.0
      %1341 = vmatprep.subr.mxu0 0.0
      %1342 = vmatpush1.msra.mxu0 0.0
      %1343 = vmatprep.subr.mxu0 0.0
      %1344 = vmatpush1.msra.mxu0 0.0
      %1345 = vmatprep.subr.mxu0 0.0
      %1346 = vmatpush1.msra.mxu0 0.0
      %1347 = vmatprep.subr.mxu0 0.0
      %1348 = vmatpush1.msra.mxu0 0.0
      %1349 = vmatprep.subr.mxu0 0.0
      %1350 = vmatpush1.msra.mxu0 0.0
      %1351 = vmatprep.subr.mxu0 0.0
      %1352 = vmatpush1.msra.mxu0 0.0
      %1353 = vmatprep.subr.mxu0 0.0
      %1354 = vmatpush1.msra.mxu0 0.0
      %1355 = vmatprep.subr.mxu0 0.0
      %1356 = vmatpush1.msra.mxu0 0.0
      %1357 = vmatprep.subr.mxu0 0.0
      %1358 = vmatpush1.msra.mxu0 0.0
      %1359 = vmatprep.mubr.f32.mxu0 0.0
      %1360 = vmatmul.mubr.f32.gmra.mrb[0].mxu0 %v1293
      %v1361 = vpop.f32.mrb[0].mxu0
      %v1362 = vadd.f32 0.0, %v1361
      %v1363 = vpop.f32.mrb[0].mxu0
      %1364 = vdwg.mxu0
      %v1365 = vmax.f32 %v1362, 0.0
      %v1367 = vsel %vm192, %v1365, 0
      %1369 = vmatprep.subr.mxu0 0.0
      %1370 = vmatpush1.msra.mxu0 %v26
      %1371 = vmatprep.subr.mxu0 0.0
      %1372 = vmatpush1.msra.mxu0 %v198
      %1373 = vmatprep.subr.mxu0 0.0
      %1374 = vmatpush1.msra.mxu0 0.0
      %1375 = vmatprep.subr.mxu0 0.0
      %1376 = vmatpush1.msra.mxu0 0.0
      %1377 = vmatprep.subr.mxu0 0.0
      %1378 = vmatpush1.msra.mxu0 0.0
      %1379 = vmatprep.subr.mxu0 0.0
      %1380 = vmatpush1.msra.mxu0 0.0
      %1381 = vmatprep.subr.mxu0 0.0
      %1382 = vmatpush1.msra.mxu0 0.0
      %1383 = vmatprep.subr.mxu0 0.0
      %1384 = vmatpush1.msra.mxu0 0.0
      %1385 = vmatprep.subr.mxu0 0.0
      %1386 = vmatpush1.msra.mxu0 0.0
      %1387 = vmatprep.subr.mxu0 0.0
      %1388 = vmatpush1.msra.mxu0 0.0
      %1389 = vmatprep.subr.mxu0 0.0
      %1390 = vmatpush1.msra.mxu0 0.0
      %1391 = vmatprep.subr.mxu0 0.0
      %1392 = vmatpush1.msra.mxu0 0.0
      %1393 = vmatprep.subr.mxu0 0.0
      %1394 = vmatpush1.msra.mxu0 0.0
      %1395 = vmatprep.subr.mxu0 0.0
      %1396 = vmatpush1.msra.mxu0 0.0
      %1397 = vmatprep.subr.mxu0 0.0
      %1398 = vmatpush1.msra.mxu0 0.0
      %1399 = vmatprep.subr.mxu0 0.0
      %1400 = vmatpush1.msra.mxu0 0.0
      %1401 = vmatprep.subr.mxu0 0.0
      %1402 = vmatpush1.msra.mxu0 0.0
      %1403 = vmatprep.subr.mxu0 0.0
      %1404 = vmatpush1.msra.mxu0 0.0
      %1405 = vmatprep.subr.mxu0 0.0
      %1406 = vmatpush1.msra.mxu0 0.0
      %1407 = vmatprep.subr.mxu0 0.0
      %1408 = vmatpush1.msra.mxu0 0.0
      %1409 = vmatprep.subr.mxu0 0.0
      %1410 = vmatpush1.msra.mxu0 0.0
      %1411 = vmatprep.subr.mxu0 0.0
      %1412 = vmatpush1.msra.mxu0 0.0
      %1413 = vmatprep.subr.mxu0 0.0
      %1414 = vmatpush1.msra.mxu0 0.0
      %1415 = vmatprep.subr.mxu0 0.0
      %1416 = vmatpush1.msra.mxu0 0.0
      %1417 = vmatprep.subr.mxu0 0.0
      %1418 = vmatpush1.msra.mxu0 0.0
      %1419 = vmatprep.subr.mxu0 0.0
      %1420 = vmatpush1.msra.mxu0 0.0
      %1421 = vmatprep.subr.mxu0 0.0
      %1422 = vmatpush1.msra.mxu0 0.0
      %1423 = vmatprep.subr.mxu0 0.0
      %1424 = vmatpush1.msra.mxu0 0.0
      %1425 = vmatprep.subr.mxu0 0.0
      %1426 = vmatpush1.msra.mxu0 0.0
      %1427 = vmatprep.subr.mxu0 0.0
      %1428 = vmatpush1.msra.mxu0 0.0
      %1429 = vmatprep.subr.mxu0 0.0
      %1430 = vmatpush1.msra.mxu0 0.0
      %1431 = vmatprep.subr.mxu0 0.0
      %1432 = vmatpush1.msra.mxu0 0.0
      %1433 = vmatprep.mubr.f32.mxu0 0.0
      %1434 = vmatmul.mubr.f32.gmra.mrb[0].mxu0 %v1367
      %v1435 = vpop.f32.mrb[0].mxu0
      %v1436 = vadd.f32 0.0, %v1435
      %v1437 = vpop.f32.mrb[0].mxu0
      %1438 = vdwg.mxu0
      %v1440 = vsel %vm274, %v1436, 0
      %1442 = vmatprep.subr.mxu0 0.0
      %1443 = vmatpush1.msra.mxu0 %v1440
      %1444 = vmatprep.subr.mxu0 0.0
      %1445 = vmatpush1.msra.mxu0 0.0
      %1446 = vmatprep.subr.mxu0 0.0
      %1447 = vmatpush1.msra.mxu0 0.0
      %1448 = vmatprep.subr.mxu0 0.0
      %1449 = vmatpush1.msra.mxu0 0.0
      %1450 = vmatprep.subr.mxu0 0.0
      %1451 = vmatpush1.msra.mxu0 0.0
      %1452 = vmatprep.subr.mxu0 0.0
      %1453 = vmatpush1.msra.mxu0 0.0
      %1454 = vmatprep.subr.mxu0 0.0
      %1455 = vmatpush1.msra.mxu0 0.0
      %1456 = vmatprep.subr.mxu0 0.0
      %1457 = vmatpush1.msra.mxu0 0.0
      %1458 = vmatprep.subr.mxu0 0.0
      %1459 = vmatpush1.msra.mxu0 0.0
      %1460 = vmatprep.subr.mxu0 0.0
      %1461 = vmatpush1.msra.mxu0 0.0
      %1462 = vmatprep.subr.mxu0 0.0
      %1463 = vmatpush1.msra.mxu0 0.0
      %1464 = vmatprep.subr.mxu0 0.0
      %1465 = vmatpush1.msra.mxu0 0.0
      %1466 = vmatprep.subr.mxu0 0.0
      %1467 = vmatpush1.msra.mxu0 0.0
      %1468 = vmatprep.subr.mxu0 0.0
      %1469 = vmatpush1.msra.mxu0 0.0
      %1470 = vmatprep.subr.mxu0 0.0
      %1471 = vmatpush1.msra.mxu0 0.0
      %1472 = vmatprep.subr.mxu0 0.0
      %1473 = vmatpush1.msra.mxu0 0.0
      %1474 = vmatprep.subr.mxu0 0.0
      %1475 = vmatpush1.msra.mxu0 0.0
      %1476 = vmatprep.subr.mxu0 0.0
      %1477 = vmatpush1.msra.mxu0 0.0
      %1478 = vmatprep.subr.mxu0 0.0
      %1479 = vmatpush1.msra.mxu0 0.0
      %1480 = vmatprep.subr.mxu0 0.0
      %1481 = vmatpush1.msra.mxu0 0.0
      %1482 = vmatprep.subr.mxu0 0.0
      %1483 = vmatpush1.msra.mxu0 0.0
      %1484 = vmatprep.subr.mxu0 0.0
      %1485 = vmatpush1.msra.mxu0 0.0
      %1486 = vmatprep.subr.mxu0 0.0
      %1487 = vmatpush1.msra.mxu0 0.0
      %1488 = vmatprep.subr.mxu0 0.0
      %1489 = vmatpush1.msra.mxu0 0.0
      %1490 = vmatprep.subr.mxu0 0.0
      %1491 = vmatpush1.msra.mxu0 0.0
      %1492 = vmatprep.subr.mxu0 0.0
      %1493 = vmatpush1.msra.mxu0 0.0
      %1494 = vmatprep.subr.mxu0 0.0
      %1495 = vmatpush1.msra.mxu0 0.0
      %1496 = vmatprep.subr.mxu0 0.0
      %1497 = vmatpush1.msra.mxu0 0.0
      %1498 = vmatprep.subr.mxu0 0.0
      %1499 = vmatpush1.msra.mxu0 0.0
      %1500 = vmatprep.subr.mxu0 0.0
      %1501 = vmatpush1.msra.mxu0 0.0
      %1502 = vmatprep.subr.mxu0 0.0
      %1503 = vmatpush1.msra.mxu0 0.0
      %1504 = vmatprep.subr.mxu0 0.0
      %1505 = vmatpush1.msra.mxu0 0.0
      %1506 = vmatprep.mubr.f32.mxu0 0.0
      %1507 = vmatmul.mubr.f32.gmra.mrb[0].mxu0 %v272
      %v1508 = vpop.f32.mrb[0].mxu0
      %v1509 = vadd.f32 %v28, %v1508
      %v1510 = vpop.f32.mrb[0].mxu0
      %1511 = vdwg.mxu0
      %v1512 = vmax.f32 %v1509, 0.0
      %1513 = vmatprep.subr.mxu0 0.0
      %1514 = vmatpush1.msra.mxu0 %v1512
      %1515 = vmatprep.subr.mxu0 0.0
      %1516 = vmatpush1.msra.mxu0 0.0
      %1517 = vmatprep.subr.mxu0 0.0
      %1518 = vmatpush1.msra.mxu0 0.0
      %1519 = vmatprep.subr.mxu0 0.0
      %1520 = vmatpush1.msra.mxu0 0.0
      %1521 = vmatprep.subr.mxu0 0.0
      %1522 = vmatpush1.msra.mxu0 0.0
      %1523 = vmatprep.subr.mxu0 0.0
      %1524 = vmatpush1.msra.mxu0 0.0
      %1525 = vmatprep.subr.mxu0 0.0
      %1526 = vmatpush1.msra.mxu0 0.0
      %1527 = vmatprep.subr.mxu0 0.0
      %1528 = vmatpush1.msra.mxu0 0.0
      %1529 = vmatprep.subr.mxu0 0.0
      %1530 = vmatpush1.msra.mxu0 0.0
      %1531 = vmatprep.subr.mxu0 0.0
      %1532 = vmatpush1.msra.mxu0 0.0
      %1533 = vmatprep.subr.mxu0 0.0
      %1534 = vmatpush1.msra.mxu0 0.0
      %1535 = vmatprep.subr.mxu0 0.0
      %1536 = vmatpush1.msra.mxu0 0.0
      %1537 = vmatprep.subr.mxu0 0.0
      %1538 = vmatpush1.msra.mxu0 0.0
      %1539 = vmatprep.subr.mxu0 0.0
      %1540 = vmatpush1.msra.mxu0 0.0
      %1541 = vmatprep.subr.mxu0 0.0
      %1542 = vmatpush1.msra.mxu0 0.0
      %1543 = vmatprep.subr.mxu0 0.0
      %1544 = vmatpush1.msra.mxu0 0.0
      %1545 = vmatprep.subr.mxu0 0.0
      %1546 = vmatpush1.msra.mxu0 0.0
      %1547 = vmatprep.subr.mxu0 0.0
      %1548 = vmatpush1.msra.mxu0 0.0
      %1549 = vmatprep.subr.mxu0 0.0
      %1550 = vmatpush1.msra.mxu0 0.0
      %1551 = vmatprep.subr.mxu0 0.0
      %1552 = vmatpush1.msra.mxu0 0.0
      %1553 = vmatprep.subr.mxu0 0.0
      %1554 = vmatpush1.msra.mxu0 0.0
      %1555 = vmatprep.subr.mxu0 0.0
      %1556 = vmatpush1.msra.mxu0 0.0
      %1557 = vmatprep.subr.mxu0 0.0
      %1558 = vmatpush1.msra.mxu0 0.0
      %1559 = vmatprep.subr.mxu0 0.0
      %1560 = vmatpush1.msra.mxu0 0.0
      %1561 = vmatprep.subr.mxu0 0.0
      %1562 = vmatpush1.msra.mxu0 0.0
      %1563 = vmatprep.subr.mxu0 0.0
      %1564 = vmatpush1.msra.mxu0 0.0
      %1565 = vmatprep.subr.mxu0 0.0
      %1566 = vmatpush1.msra.mxu0 0.0
      %1567 = vmatprep.subr.mxu0 0.0
      %1568 = vmatpush1.msra.mxu0 0.0
      %1569 = vmatprep.subr.mxu0 0.0
      %1570 = vmatpush1.msra.mxu0 0.0
      %1571 = vmatprep.subr.mxu0 0.0
      %1572 = vmatpush1.msra.mxu0 0.0
      %1573 = vmatprep.subr.mxu0 0.0
      %1574 = vmatpush1.msra.mxu0 0.0
      %1575 = vmatprep.subr.mxu0 0.0
      %1576 = vmatpush1.msra.mxu0 0.0
      %1577 = vmatprep.mubr.f32.mxu0 0.0
      %1578 = vmatmul.mubr.f32.gmra.mrb[0].mxu0 %v41
      %v1579 = vpop.f32.mrb[0].mxu0
      %v1580 = vadd.f32 0.0, %v1579
      %v1581 = vpop.f32.mrb[0].mxu0
      %1582 = vdwg.mxu0
      %v1584 = vsel %vm113, %v1580, 0
      %1586 = vmatprep.subr.mxu0 0.0
      %1587 = vmatpush1.msra.mxu0 %v24
      %1588 = vmatprep.subr.mxu0 0.0
      %1589 = vmatpush1.msra.mxu0 %v119
      %1590 = vmatprep.subr.mxu0 0.0
      %1591 = vmatpush1.msra.mxu0 0.0
      %1592 = vmatprep.subr.mxu0 0.0
      %1593 = vmatpush1.msra.mxu0 0.0
      %1594 = vmatprep.subr.mxu0 0.0
      %1595 = vmatpush1.msra.mxu0 0.0
      %1596 = vmatprep.subr.mxu0 0.0
      %1597 = vmatpush1.msra.mxu0 0.0
      %1598 = vmatprep.subr.mxu0 0.0
      %1599 = vmatpush1.msra.mxu0 0.0
      %1600 = vmatprep.subr.mxu0 0.0
      %1601 = vmatpush1.msra.mxu0 0.0
      %1602 = vmatprep.subr.mxu0 0.0
      %1603 = vmatpush1.msra.mxu0 0.0
      %1604 = vmatprep.subr.mxu0 0.0
      %1605 = vmatpush1.msra.mxu0 0.0
      %1606 = vmatprep.subr.mxu0 0.0
      %1607 = vmatpush1.msra.mxu0 0.0
      %1608 = vmatprep.subr.mxu0 0.0
      %1609 = vmatpush1.msra.mxu0 0.0
      %1610 = vmatprep.subr.mxu0 0.0
      %1611 = vmatpush1.msra.mxu0 0.0
      %1612 = vmatprep.subr.mxu0 0.0
      %1613 = vmatpush1.msra.mxu0 0.0
      %1614 = vmatprep.subr.mxu0 0.0
      %1615 = vmatpush1.msra.mxu0 0.0
      %1616 = vmatprep.subr.mxu0 0.0
      %1617 = vmatpush1.msra.mxu0 0.0
      %1618 = vmatprep.subr.mxu0 0.0
      %1619 = vmatpush1.msra.mxu0 0.0
      %1620 = vmatprep.subr.mxu0 0.0
      %1621 = vmatpush1.msra.mxu0 0.0
      %1622 = vmatprep.subr.mxu0 0.0
      %1623 = vmatpush1.msra.mxu0 0.0
      %1624 = vmatprep.subr.mxu0 0.0
      %1625 = vmatpush1.msra.mxu0 0.0
      %1626 = vmatprep.subr.mxu0 0.0
      %1627 = vmatpush1.msra.mxu0 0.0
      %1628 = vmatprep.subr.mxu0 0.0
      %1629 = vmatpush1.msra.mxu0 0.0
      %1630 = vmatprep.subr.mxu0 0.0
      %1631 = vmatpush1.msra.mxu0 0.0
      %1632 = vmatprep.subr.mxu0 0.0
      %1633 = vmatpush1.msra.mxu0 0.0
      %1634 = vmatprep.subr.mxu0 0.0
      %1635 = vmatpush1.msra.mxu0 0.0
      %1636 = vmatprep.subr.mxu0 0.0
      %1637 = vmatpush1.msra.mxu0 0.0
      %1638 = vmatprep.subr.mxu0 0.0
      %1639 = vmatpush1.msra.mxu0 0.0
      %1640 = vmatprep.subr.mxu0 0.0
      %1641 = vmatpush1.msra.mxu0 0.0
      %1642 = vmatprep.subr.mxu0 0.0
      %1643 = vmatpush1.msra.mxu0 0.0
      %1644 = vmatprep.subr.mxu0 0.0
      %1645 = vmatpush1.msra.mxu0 0.0
      %1646 = vmatprep.subr.mxu0 0.0
      %1647 = vmatpush1.msra.mxu0 0.0
      %1648 = vmatprep.subr.mxu0 0.0
      %1649 = vmatpush1.msra.mxu0 0.0
      %1650 = vmatprep.mubr.f32.mxu0 0.0
      %1651 = vmatmul.mubr.f32.gmra.mrb[0].mxu0 %v1584
      %v1652 = vpop.f32.mrb[0].mxu0
      %v1653 = vadd.f32 0.0, %v1652
      %v1654 = vpop.f32.mrb[0].mxu0
      %1655 = vdwg.mxu0
      %v1656 = vmax.f32 %v1653, 0.0
      %v1658 = vsel %vm192, %v1656, 0
      %1660 = vmatprep.subr.mxu0 0.0
      %1661 = vmatpush1.msra.mxu0 %v26
      %1662 = vmatprep.subr.mxu0 0.0
      %1663 = vmatpush1.msra.mxu0 %v198
      %1664 = vmatprep.subr.mxu0 0.0
      %1665 = vmatpush1.msra.mxu0 0.0
      %1666 = vmatprep.subr.mxu0 0.0
      %1667 = vmatpush1.msra.mxu0 0.0
      %1668 = vmatprep.subr.mxu0 0.0
      %1669 = vmatpush1.msra.mxu0 0.0
      %1670 = vmatprep.subr.mxu0 0.0
      %1671 = vmatpush1.msra.mxu0 0.0
      %1672 = vmatprep.subr.mxu0 0.0
      %1673 = vmatpush1.msra.mxu0 0.0
      %1674 = vmatprep.subr.mxu0 0.0
      %1675 = vmatpush1.msra.mxu0 0.0
      %1676 = vmatprep.subr.mxu0 0.0
      %1677 = vmatpush1.msra.mxu0 0.0
      %1678 = vmatprep.subr.mxu0 0.0
      %1679 = vmatpush1.msra.mxu0 0.0
      %1680 = vmatprep.subr.mxu0 0.0
      %1681 = vmatpush1.msra.mxu0 0.0
      %1682 = vmatprep.subr.mxu0 0.0
      %1683 = vmatpush1.msra.mxu0 0.0
      %1684 = vmatprep.subr.mxu0 0.0
      %1685 = vmatpush1.msra.mxu0 0.0
      %1686 = vmatprep.subr.mxu0 0.0
      %1687 = vmatpush1.msra.mxu0 0.0
      %1688 = vmatprep.subr.mxu0 0.0
      %1689 = vmatpush1.msra.mxu0 0.0
      %1690 = vmatprep.subr.mxu0 0.0
      %1691 = vmatpush1.msra.mxu0 0.0
      %1692 = vmatprep.subr.mxu0 0.0
      %1693 = vmatpush1.msra.mxu0 0.0
      %1694 = vmatprep.subr.mxu0 0.0
      %1695 = vmatpush1.msra.mxu0 0.0
      %1696 = vmatprep.subr.mxu0 0.0
      %1697 = vmatpush1.msra.mxu0 0.0
      %1698 = vmatprep.subr.mxu0 0.0
      %1699 = vmatpush1.msra.mxu0 0.0
      %1700 = vmatprep.subr.mxu0 0.0
      %1701 = vmatpush1.msra.mxu0 0.0
      %1702 = vmatprep.subr.mxu0 0.0
      %1703 = vmatpush1.msra.mxu0 0.0
      %1704 = vmatprep.subr.mxu0 0.0
      %1705 = vmatpush1.msra.mxu0 0.0
      %1706 = vmatprep.subr.mxu0 0.0
      %1707 = vmatpush1.msra.mxu0 0.0
      %1708 = vmatprep.subr.mxu0 0.0
      %1709 = vmatpush1.msra.mxu0 0.0
      %1710 = vmatprep.subr.mxu0 0.0
      %1711 = vmatpush1.msra.mxu0 0.0
      %1712 = vmatprep.subr.mxu0 0.0
      %1713 = vmatpush1.msra.mxu0 0.0
      %1714 = vmatprep.subr.mxu0 0.0
      %1715 = vmatpush1.msra.mxu0 0.0
      %1716 = vmatprep.subr.mxu0 0.0
      %1717 = vmatpush1.msra.mxu0 0.0
      %1718 = vmatprep.subr.mxu0 0.0
      %1719 = vmatpush1.msra.mxu0 0.0
      %1720 = vmatprep.subr.mxu0 0.0
      %1721 = vmatpush1.msra.mxu0 0.0
      %1722 = vmatprep.subr.mxu0 0.0
      %1723 = vmatpush1.msra.mxu0 0.0
      %1724 = vmatprep.mubr.f32.mxu0 0.0
      %1725 = vmatmul.mubr.f32.gmra.mrb[0].mxu0 %v1658
      %v1726 = vpop.f32.mrb[0].mxu0
      %v1727 = vadd.f32 0.0, %v1726
      %v1728 = vpop.f32.mrb[0].mxu0
      %1729 = vdwg.mxu0
      %v1731 = vsel %vm274, %v1727, 0
      %1733 = vmatprep.subr.mxu0 0.0
      %1734 = vmatpush1.msra.mxu0 %v1731
      %1735 = vmatprep.subr.mxu0 0.0
      %1736 = vmatpush1.msra.mxu0 0.0
      %1737 = vmatprep.subr.mxu0 0.0
      %1738 = vmatpush1.msra.mxu0 0.0
      %1739 = vmatprep.subr.mxu0 0.0
      %1740 = vmatpush1.msra.mxu0 0.0
      %1741 = vmatprep.subr.mxu0 0.0
      %1742 = vmatpush1.msra.mxu0 0.0
      %1743 = vmatprep.subr.mxu0 0.0
      %1744 = vmatpush1.msra.mxu0 0.0
      %1745 = vmatprep.subr.mxu0 0.0
      %1746 = vmatpush1.msra.mxu0 0.0
      %1747 = vmatprep.subr.mxu0 0.0
      %1748 = vmatpush1.msra.mxu0 0.0
      %1749 = vmatprep.subr.mxu0 0.0
      %1750 = vmatpush1.msra.mxu0 0.0
      %1751 = vmatprep.subr.mxu0 0.0
      %1752 = vmatpush1.msra.mxu0 0.0
      %1753 = vmatprep.subr.mxu0 0.0
      %1754 = vmatpush1.msra.mxu0 0.0
      %1755 = vmatprep.subr.mxu0 0.0
      %1756 = vmatpush1.msra.mxu0 0.0
      %1757 = vmatprep.subr.mxu0 0.0
      %1758 = vmatpush1.msra.mxu0 0.0
      %1759 = vmatprep.subr.mxu0 0.0
      %1760 = vmatpush1.msra.mxu0 0.0
      %1761 = vmatprep.subr.mxu0 0.0
      %1762 = vmatpush1.msra.mxu0 0.0
      %1763 = vmatprep.subr.mxu0 0.0
      %1764 = vmatpush1.msra.mxu0 0.0
      %1765 = vmatprep.subr.mxu0 0.0
      %1766 = vmatpush1.msra.mxu0 0.0
      %1767 = vmatprep.subr.mxu0 0.0
      %1768 = vmatpush1.msra.mxu0 0.0
      %1769 = vmatprep.subr.mxu0 0.0
      %1770 = vmatpush1.msra.mxu0 0.0
      %1771 = vmatprep.subr.mxu0 0.0
      %1772 = vmatpush1.msra.mxu0 0.0
      %1773 = vmatprep.subr.mxu0 0.0
      %1774 = vmatpush1.msra.mxu0 0.0
      %1775 = vmatprep.subr.mxu0 0.0
      %1776 = vmatpush1.msra.mxu0 0.0
      %1777 = vmatprep.subr.mxu0 0.0
      %1778 = vmatpush1.msra.mxu0 0.0
      %1779 = vmatprep.subr.mxu0 0.0
      %1780 = vmatpush1.msra.mxu0 0.0
      %1781 = vmatprep.subr.mxu0 0.0
      %1782 = vmatpush1.msra.mxu0 0.0
      %1783 = vmatprep.subr.mxu0 0.0
      %1784 = vmatpush1.msra.mxu0 0.0
      %1785 = vmatprep.subr.mxu0 0.0
      %1786 = vmatpush1.msra.mxu0 0.0
      %1787 = vmatprep.subr.mxu0 0.0
      %1788 = vmatpush1.msra.mxu0 0.0
      %1789 = vmatprep.subr.mxu0 0.0
      %1790 = vmatpush1.msra.mxu0 0.0
      %1791 = vmatprep.subr.mxu0 0.0
      %1792 = vmatpush1.msra.mxu0 0.0
      %1793 = vmatprep.subr.mxu0 0.0
      %1794 = vmatpush1.msra.mxu0 0.0
      %1795 = vmatprep.subr.mxu0 0.0
      %1796 = vmatpush1.msra.mxu0 0.0
      %1797 = vmatprep.mubr.f32.mxu0 0.0
      %1798 = vmatmul.mubr.f32.gmra.mrb[0].mxu0 %v272
      %v1799 = vpop.f32.mrb[0].mxu0
      %v1800 = vadd.f32 %v28, %v1799
      %v1801 = vpop.f32.mrb[0].mxu0
      %1802 = vdwg.mxu0
      %v1803 = vmax.f32 %v1800, 0.0
      %1804 = vmatprep.subr.mxu0 0.0
      %1805 = vmatpush1.msra.mxu0 %v1803
      %1806 = vmatprep.subr.mxu0 0.0
      %1807 = vmatpush1.msra.mxu0 0.0
      %1808 = vmatprep.subr.mxu0 0.0
      %1809 = vmatpush1.msra.mxu0 0.0
      %1810 = vmatprep.subr.mxu0 0.0
      %1811 = vmatpush1.msra.mxu0 0.0
      %1812 = vmatprep.subr.mxu0 0.0
      %1813 = vmatpush1.msra.mxu0 0.0
      %1814 = vmatprep.subr.mxu0 0.0
      %1815 = vmatpush1.msra.mxu0 0.0
      %1816 = vmatprep.subr.mxu0 0.0
      %1817 = vmatpush1.msra.mxu0 0.0
      %1818 = vmatprep.subr.mxu0 0.0
      %1819 = vmatpush1.msra.mxu0 0.0
      %1820 = vmatprep.subr.mxu0 0.0
      %1821 = vmatpush1.msra.mxu0 0.0
      %1822 = vmatprep.subr.mxu0 0.0
      %1823 = vmatpush1.msra.mxu0 0.0
      %1824 = vmatprep.subr.mxu0 0.0
      %1825 = vmatpush1.msra.mxu0 0.0
      %1826 = vmatprep.subr.mxu0 0.0
      %1827 = vmatpush1.msra.mxu0 0.0
      %1828 = vmatprep.subr.mxu0 0.0
      %1829 = vmatpush1.msra.mxu0 0.0
      %1830 = vmatprep.subr.mxu0 0.0
      %1831 = vmatpush1.msra.mxu0 0.0
      %1832 = vmatprep.subr.mxu0 0.0
      %1833 = vmatpush1.msra.mxu0 0.0
      %1834 = vmatprep.subr.mxu0 0.0
      %1835 = vmatpush1.msra.mxu0 0.0
      %1836 = vmatprep.subr.mxu0 0.0
      %1837 = vmatpush1.msra.mxu0 0.0
      %1838 = vmatprep.subr.mxu0 0.0
      %1839 = vmatpush1.msra.mxu0 0.0
      %1840 = vmatprep.subr.mxu0 0.0
      %1841 = vmatpush1.msra.mxu0 0.0
      %1842 = vmatprep.subr.mxu0 0.0
      %1843 = vmatpush1.msra.mxu0 0.0
      %1844 = vmatprep.subr.mxu0 0.0
      %1845 = vmatpush1.msra.mxu0 0.0
      %1846 = vmatprep.subr.mxu0 0.0
      %1847 = vmatpush1.msra.mxu0 0.0
      %1848 = vmatprep.subr.mxu0 0.0
      %1849 = vmatpush1.msra.mxu0 0.0
      %1850 = vmatprep.subr.mxu0 0.0
      %1851 = vmatpush1.msra.mxu0 0.0
      %1852 = vmatprep.subr.mxu0 0.0
      %1853 = vmatpush1.msra.mxu0 0.0
      %1854 = vmatprep.subr.mxu0 0.0
      %1855 = vmatpush1.msra.mxu0 0.0
      %1856 = vmatprep.subr.mxu0 0.0
      %1857 = vmatpush1.msra.mxu0 0.0
      %1858 = vmatprep.subr.mxu0 0.0
      %1859 = vmatpush1.msra.mxu0 0.0
      %1860 = vmatprep.subr.mxu0 0.0
      %1861 = vmatpush1.msra.mxu0 0.0
      %1862 = vmatprep.subr.mxu0 0.0
      %1863 = vmatpush1.msra.mxu0 0.0
      %1864 = vmatprep.subr.mxu0 0.0
      %1865 = vmatpush1.msra.mxu0 0.0
      %1866 = vmatprep.subr.mxu0 0.0
      %1867 = vmatpush1.msra.mxu0 0.0
      %1868 = vmatprep.mubr.f32.mxu0 0.0
      %1869 = vmatmul.mubr.f32.gmra.mrb[0].mxu0 %v41
      %v1870 = vpop.f32.mrb[0].mxu0
      %v1871 = vadd.f32 0.0, %v1870
      %v1872 = vpop.f32.mrb[0].mxu0
      %1873 = vdwg.mxu0
      %v1875 = vsel %vm113, %v1871, 0
      %1877 = vmatprep.subr.mxu0 0.0
      %1878 = vmatpush1.msra.mxu0 %v24
      %1879 = vmatprep.subr.mxu0 0.0
      %1880 = vmatpush1.msra.mxu0 %v119
      %1881 = vmatprep.subr.mxu0 0.0
      %1882 = vmatpush1.msra.mxu0 0.0
      %1883 = vmatprep.subr.mxu0 0.0
      %1884 = vmatpush1.msra.mxu0 0.0
      %1885 = vmatprep.subr.mxu0 0.0
      %1886 = vmatpush1.msra.mxu0 0.0
      %1887 = vmatprep.subr.mxu0 0.0
      %1888 = vmatpush1.msra.mxu0 0.0
      %1889 = vmatprep.subr.mxu0 0.0
      %1890 = vmatpush1.msra.mxu0 0.0
      %1891 = vmatprep.subr.mxu0 0.0
      %1892 = vmatpush1.msra.mxu0 0.0
      %1893 = vmatprep.subr.mxu0 0.0
      %1894 = vmatpush1.msra.mxu0 0.0
      %1895 = vmatprep.subr.mxu0 0.0
      %1896 = vmatpush1.msra.mxu0 0.0
      %1897 = vmatprep.subr.mxu0 0.0
      %1898 = vmatpush1.msra.mxu0 0.0
      %1899 = vmatprep.subr.mxu0 0.0
      %1900 = vmatpush1.msra.mxu0 0.0
      %1901 = vmatprep.subr.mxu0 0.0
      %1902 = vmatpush1.msra.mxu0 0.0
      %1903 = vmatprep.subr.mxu0 0.0
      %1904 = vmatpush1.msra.mxu0 0.0
      %1905 = vmatprep.subr.mxu0 0.0
      %1906 = vmatpush1.msra.mxu0 0.0
      %1907 = vmatprep.subr.mxu0 0.0
      %1908 = vmatpush1.msra.mxu0 0.0
      %1909 = vmatprep.subr.mxu0 0.0
      %1910 = vmatpush1.msra.mxu0 0.0
      %1911 = vmatprep.subr.mxu0 0.0
      %1912 = vmatpush1.msra.mxu0 0.0
      %1913 = vmatprep.subr.mxu0 0.0
      %1914 = vmatpush1.msra.mxu0 0.0
      %1915 = vmatprep.subr.mxu0 0.0
      %1916 = vmatpush1.msra.mxu0 0.0
      %1917 = vmatprep.subr.mxu0 0.0
      %1918 = vmatpush1.msra.mxu0 0.0
      %1919 = vmatprep.subr.mxu0 0.0
      %1920 = vmatpush1.msra.mxu0 0.0
      %1921 = vmatprep.subr.mxu0 0.0
      %1922 = vmatpush1.msra.mxu0 0.0
      %1923 = vmatprep.subr.mxu0 0.0
      %1924 = vmatpush1.msra.mxu0 0.0
      %1925 = vmatprep.subr.mxu0 0.0
      %1926 = vmatpush1.msra.mxu0 0.0
      %1927 = vmatprep.subr.mxu0 0.0
      %1928 = vmatpush1.msra.mxu0 0.0
      %1929 = vmatprep.subr.mxu0 0.0
      %1930 = vmatpush1.msra.mxu0 0.0
      %1931 = vmatprep.subr.mxu0 0.0
      %1932 = vmatpush1.msra.mxu0 0.0
      %1933 = vmatprep.subr.mxu0 0.0
      %1934 = vmatpush1.msra.mxu0 0.0
      %1935 = vmatprep.subr.mxu0 0.0
      %1936 = vmatpush1.msra.mxu0 0.0
      %1937 = vmatprep.subr.mxu0 0.0
      %1938 = vmatpush1.msra.mxu0 0.0
      %1939 = vmatprep.subr.mxu0 0.0
      %1940 = vmatpush1.msra.mxu0 0.0
      %1941 = vmatprep.mubr.f32.mxu0 0.0
      %1942 = vmatmul.mubr.f32.gmra.mrb[0].mxu0 %v1875
      %v1943 = vpop.f32.mrb[0].mxu0
      %v1944 = vadd.f32 0.0, %v1943
      %v1945 = vpop.f32.mrb[0].mxu0
      %1946 = vdwg.mxu0
      %v1947 = vmax.f32 %v1944, 0.0
      %v1949 = vsel %vm192, %v1947, 0
      %1951 = vmatprep.subr.mxu0 0.0
      %1952 = vmatpush1.msra.mxu0 %v26
      %1953 = vmatprep.subr.mxu0 0.0
      %1954 = vmatpush1.msra.mxu0 %v198
      %1955 = vmatprep.subr.mxu0 0.0
      %1956 = vmatpush1.msra.mxu0 0.0
      %1957 = vmatprep.subr.mxu0 0.0
      %1958 = vmatpush1.msra.mxu0 0.0
      %1959 = vmatprep.subr.mxu0 0.0
      %1960 = vmatpush1.msra.mxu0 0.0
      %1961 = vmatprep.subr.mxu0 0.0
      %1962 = vmatpush1.msra.mxu0 0.0
      %1963 = vmatprep.subr.mxu0 0.0
      %1964 = vmatpush1.msra.mxu0 0.0
      %1965 = vmatprep.subr.mxu0 0.0
      %1966 = vmatpush1.msra.mxu0 0.0
      %1967 = vmatprep.subr.mxu0 0.0
      %1968 = vmatpush1.msra.mxu0 0.0
      %1969 = vmatprep.subr.mxu0 0.0
      %1970 = vmatpush1.msra.mxu0 0.0
      %1971 = vmatprep.subr.mxu0 0.0
      %1972 = vmatpush1.msra.mxu0 0.0
      %1973 = vmatprep.subr.mxu0 0.0
      %1974 = vmatpush1.msra.mxu0 0.0
      %1975 = vmatprep.subr.mxu0 0.0
      %1976 = vmatpush1.msra.mxu0 0.0
      %1977 = vmatprep.subr.mxu0 0.0
      %1978 = vmatpush1.msra.mxu0 0.0
      %1979 = vmatprep.subr.mxu0 0.0
      %1980 = vmatpush1.msra.mxu0 0.0
      %1981 = vmatprep.subr.mxu0 0.0
      %1982 = vmatpush1.msra.mxu0 0.0
      %1983 = vmatprep.subr.mxu0 0.0
      %1984 = vmatpush1.msra.mxu0 0.0
      %1985 = vmatprep.subr.mxu0 0.0
      %1986 = vmatpush1.msra.mxu0 0.0
      %1987 = vmatprep.subr.mxu0 0.0
      %1988 = vmatpush1.msra.mxu0 0.0
      %1989 = vmatprep.subr.mxu0 0.0
      %1990 = vmatpush1.msra.mxu0 0.0
      %1991 = vmatprep.subr.mxu0 0.0
      %1992 = vmatpush1.msra.mxu0 0.0
      %1993 = vmatprep.subr.mxu0 0.0
      %1994 = vmatpush1.msra.mxu0 0.0
      %1995 = vmatprep.subr.mxu0 0.0
      %1996 = vmatpush1.msra.mxu0 0.0
      %1997 = vmatprep.subr.mxu0 0.0
      %1998 = vmatpush1.msra.mxu0 0.0
      %1999 = vmatprep.subr.mxu0 0.0
      %2000 = vmatpush1.msra.mxu0 0.0
      %2001 = vmatprep.subr.mxu0 0.0
      %2002 = vmatpush1.msra.mxu0 0.0
      %2003 = vmatprep.subr.mxu0 0.0
      %2004 = vmatpush1.msra.mxu0 0.0
      %2005 = vmatprep.subr.mxu0 0.0
      %2006 = vmatpush1.msra.mxu0 0.0
      %2007 = vmatprep.subr.mxu0 0.0
      %2008 = vmatpush1.msra.mxu0 0.0
      %2009 = vmatprep.subr.mxu0 0.0
      %2010 = vmatpush1.msra.mxu0 0.0
      %2011 = vmatprep.subr.mxu0 0.0
      %2012 = vmatpush1.msra.mxu0 0.0
      %2013 = vmatprep.subr.mxu0 0.0
      %2014 = vmatpush1.msra.mxu0 0.0
      %2015 = vmatprep.mubr.f32.mxu0 0.0
      %2016 = vmatmul.mubr.f32.gmra.mrb[0].mxu0 %v1949
      %v2017 = vpop.f32.mrb[0].mxu0
      %v2018 = vadd.f32 0.0, %v2017
      %v2019 = vpop.f32.mrb[0].mxu0
      %2020 = vdwg.mxu0
      %v2022 = vsel %vm274, %v2018, 0
      %2024 = vmatprep.subr.mxu0 0.0
      %2025 = vmatpush1.msra.mxu0 %v2022
      %2026 = vmatprep.subr.mxu0 0.0
      %2027 = vmatpush1.msra.mxu0 0.0
      %2028 = vmatprep.subr.mxu0 0.0
      %2029 = vmatpush1.msra.mxu0 0.0
      %2030 = vmatprep.subr.mxu0 0.0
      %2031 = vmatpush1.msra.mxu0 0.0
      %2032 = vmatprep.subr.mxu0 0.0
      %2033 = vmatpush1.msra.mxu0 0.0
      %2034 = vmatprep.subr.mxu0 0.0
      %2035 = vmatpush1.msra.mxu0 0.0
      %2036 = vmatprep.subr.mxu0 0.0
      %2037 = vmatpush1.msra.mxu0 0.0
      %2038 = vmatprep.subr.mxu0 0.0
      %2039 = vmatpush1.msra.mxu0 0.0
      %2040 = vmatprep.subr.mxu0 0.0
      %2041 = vmatpush1.msra.mxu0 0.0
      %2042 = vmatprep.subr.mxu0 0.0
      %2043 = vmatpush1.msra.mxu0 0.0
      %2044 = vmatprep.subr.mxu0 0.0
      %2045 = vmatpush1.msra.mxu0 0.0
      %2046 = vmatprep.subr.mxu0 0.0
      %2047 = vmatpush1.msra.mxu0 0.0
      %2048 = vmatprep.subr.mxu0 0.0
      %2049 = vmatpush1.msra.mxu0 0.0
      %2050 = vmatprep.subr.mxu0 0.0
      %2051 = vmatpush1.msra.mxu0 0.0
      %2052 = vmatprep.subr.mxu0 0.0
      %2053 = vmatpush1.msra.mxu0 0.0
      %2054 = vmatprep.subr.mxu0 0.0
      %2055 = vmatpush1.msra.mxu0 0.0
      %2056 = vmatprep.subr.mxu0 0.0
      %2057 = vmatpush1.msra.mxu0 0.0
      %2058 = vmatprep.subr.mxu0 0.0
      %2059 = vmatpush1.msra.mxu0 0.0
      %2060 = vmatprep.subr.mxu0 0.0
      %2061 = vmatpush1.msra.mxu0 0.0
      %2062 = vmatprep.subr.mxu0 0.0
      %2063 = vmatpush1.msra.mxu0 0.0
      %2064 = vmatprep.subr.mxu0 0.0
      %2065 = vmatpush1.msra.mxu0 0.0
      %2066 = vmatprep.subr.mxu0 0.0
      %2067 = vmatpush1.msra.mxu0 0.0
      %2068 = vmatprep.subr.mxu0 0.0
      %2069 = vmatpush1.msra.mxu0 0.0
      %2070 = vmatprep.subr.mxu0 0.0
      %2071 = vmatpush1.msra.mxu0 0.0
      %2072 = vmatprep.subr.mxu0 0.0
      %2073 = vmatpush1.msra.mxu0 0.0
      %2074 = vmatprep.subr.mxu0 0.0
      %2075 = vmatpush1.msra.mxu0 0.0
      %2076 = vmatprep.subr.mxu0 0.0
      %2077 = vmatpush1.msra.mxu0 0.0
      %2078 = vmatprep.subr.mxu0 0.0
      %2079 = vmatpush1.msra.mxu0 0.0
      %2080 = vmatprep.subr.mxu0 0.0
      %2081 = vmatpush1.msra.mxu0 0.0
      %2082 = vmatprep.subr.mxu0 0.0
      %2083 = vmatpush1.msra.mxu0 0.0
      %2084 = vmatprep.subr.mxu0 0.0
      %2085 = vmatpush1.msra.mxu0 0.0
      %2086 = vmatprep.subr.mxu0 0.0
      %2087 = vmatpush1.msra.mxu0 0.0
      %2088 = vmatprep.mubr.f32.mxu0 0.0
      %2089 = vmatmul.mubr.f32.gmra.mrb[0].mxu0 %v272
      %v2090 = vpop.f32.mrb[0].mxu0
      %v2091 = vadd.f32 %v28, %v2090
      %v2092 = vpop.f32.mrb[0].mxu0
      %2093 = vdwg.mxu0
      %v2094 = vmax.f32 %v2091, 0.0
      %2095 = vmatprep.subr.mxu0 0.0
      %2096 = vmatpush1.msra.mxu0 %v2094
      %2097 = vmatprep.subr.mxu0 0.0
      %2098 = vmatpush1.msra.mxu0 0.0
      %2099 = vmatprep.subr.mxu0 0.0
      %2100 = vmatpush1.msra.mxu0 0.0
      %2101 = vmatprep.subr.mxu0 0.0
      %2102 = vmatpush1.msra.mxu0 0.0
      %2103 = vmatprep.subr.mxu0 0.0
      %2104 = vmatpush1.msra.mxu0 0.0
      %2105 = vmatprep.subr.mxu0 0.0
      %2106 = vmatpush1.msra.mxu0 0.0
      %2107 = vmatprep.subr.mxu0 0.0
      %2108 = vmatpush1.msra.mxu0 0.0
      %2109 = vmatprep.subr.mxu0 0.0
      %2110 = vmatpush1.msra.mxu0 0.0
      %2111 = vmatprep.subr.mxu0 0.0
      %2112 = vmatpush1.msra.mxu0 0.0
      %2113 = vmatprep.subr.mxu0 0.0
      %2114 = vmatpush1.msra.mxu0 0.0
      %2115 = vmatprep.subr.mxu0 0.0
      %2116 = vmatpush1.msra.mxu0 0.0
      %2117 = vmatprep.subr.mxu0 0.0
      %2118 = vmatpush1.msra.mxu0 0.0
      %2119 = vmatprep.subr.mxu0 0.0
      %2120 = vmatpush1.msra.mxu0 0.0
      %2121 = vmatprep.subr.mxu0 0.0
      %2122 = vmatpush1.msra.mxu0 0.0
      %2123 = vmatprep.subr.mxu0 0.0
      %2124 = vmatpush1.msra.mxu0 0.0
      %2125 = vmatprep.subr.mxu0 0.0
      %2126 = vmatpush1.msra.mxu0 0.0
      %2127 = vmatprep.subr.mxu0 0.0
      %2128 = vmatpush1.msra.mxu0 0.0
      %2129 = vmatprep.subr.mxu0 0.0
      %2130 = vmatpush1.msra.mxu0 0.0
      %2131 = vmatprep.subr.mxu0 0.0
      %2132 = vmatpush1.msra.mxu0 0.0
      %2133 = vmatprep.subr.mxu0 0.0
      %2134 = vmatpush1.msra.mxu0 0.0
      %2135 = vmatprep.subr.mxu0 0.0
      %2136 = vmatpush1.msra.mxu0 0.0
      %2137 = vmatprep.subr.mxu0 0.0
      %2138 = vmatpush1.msra.mxu0 0.0
      %2139 = vmatprep.subr.mxu0 0.0
      %2140 = vmatpush1.msra.mxu0 0.0
      %2141 = vmatprep.subr.mxu0 0.0
      %2142 = vmatpush1.msra.mxu0 0.0
      %2143 = vmatprep.subr.mxu0 0.0
      %2144 = vmatpush1.msra.mxu0 0.0
      %2145 = vmatprep.subr.mxu0 0.0
      %2146 = vmatpush1.msra.mxu0 0.0
      %2147 = vmatprep.subr.mxu0 0.0
      %2148 = vmatpush1.msra.mxu0 0.0
      %2149 = vmatprep.subr.mxu0 0.0
      %2150 = vmatpush1.msra.mxu0 0.0
      %2151 = vmatprep.subr.mxu0 0.0
      %2152 = vmatpush1.msra.mxu0 0.0
      %2153 = vmatprep.subr.mxu0 0.0
      %2154 = vmatpush1.msra.mxu0 0.0
      %2155 = vmatprep.subr.mxu0 0.0
      %2156 = vmatpush1.msra.mxu0 0.0
      %2157 = vmatprep.subr.mxu0 0.0
      %2158 = vmatpush1.msra.mxu0 0.0
      %2159 = vmatprep.mubr.f32.mxu0 0.0
      %2160 = vmatmul.mubr.f32.gmra.mrb[0].mxu0 %v41
      %v2161 = vpop.f32.mrb[0].mxu0
      %v2162 = vadd.f32 0.0, %v2161
      %v2163 = vpop.f32.mrb[0].mxu0
      %2164 = vdwg.mxu0
      %v2166 = vsel %vm113, %v2162, 0
      %2168 = vmatprep.subr.mxu0 0.0
      %2169 = vmatpush1.msra.mxu0 %v24
      %2170 = vmatprep.subr.mxu0 0.0
      %2171 = vmatpush1.msra.mxu0 %v119
      %2172 = vmatprep.subr.mxu0 0.0
      %2173 = vmatpush1.msra.mxu0 0.0
      %2174 = vmatprep.subr.mxu0 0.0
      %2175 = vmatpush1.msra.mxu0 0.0
      %2176 = vmatprep.subr.mxu0 0.0
      %2177 = vmatpush1.msra.mxu0 0.0
      %2178 = vmatprep.subr.mxu0 0.0
      %2179 = vmatpush1.msra.mxu0 0.0
      %2180 = vmatprep.subr.mxu0 0.0
      %2181 = vmatpush1.msra.mxu0 0.0
      %2182 = vmatprep.subr.mxu0 0.0
      %2183 = vmatpush1.msra.mxu0 0.0
      %2184 = vmatprep.subr.mxu0 0.0
      %2185 = vmatpush1.msra.mxu0 0.0
      %2186 = vmatprep.subr.mxu0 0.0
      %2187 = vmatpush1.msra.mxu0 0.0
      %2188 = vmatprep.subr.mxu0 0.0
      %2189 = vmatpush1.msra.mxu0 0.0
      %2190 = vmatprep.subr.mxu0 0.0
      %2191 = vmatpush1.msra.mxu0 0.0
      %2192 = vmatprep.subr.mxu0 0.0
      %2193 = vmatpush1.msra.mxu0 0.0
      %2194 = vmatprep.subr.mxu0 0.0
      %2195 = vmatpush1.msra.mxu0 0.0
      %2196 = vmatprep.subr.mxu0 0.0
      %2197 = vmatpush1.msra.mxu0 0.0
      %2198 = vmatprep.subr.mxu0 0.0
      %2199 = vmatpush1.msra.mxu0 0.0
      %2200 = vmatprep.subr.mxu0 0.0
      %2201 = vmatpush1.msra.mxu0 0.0
      %2202 = vmatprep.subr.mxu0 0.0
      %2203 = vmatpush1.msra.mxu0 0.0
      %2204 = vmatprep.subr.mxu0 0.0
      %2205 = vmatpush1.msra.mxu0 0.0
      %2206 = vmatprep.subr.mxu0 0.0
      %2207 = vmatpush1.msra.mxu0 0.0
      %2208 = vmatprep.subr.mxu0 0.0
      %2209 = vmatpush1.msra.mxu0 0.0
      %2210 = vmatprep.subr.mxu0 0.0
      %2211 = vmatpush1.msra.mxu0 0.0
      %2212 = vmatprep.subr.mxu0 0.0
      %2213 = vmatpush1.msra.mxu0 0.0
      %2214 = vmatprep.subr.mxu0 0.0
      %2215 = vmatpush1.msra.mxu0 0.0
      %2216 = vmatprep.subr.mxu0 0.0
      %2217 = vmatpush1.msra.mxu0 0.0
      %2218 = vmatprep.subr.mxu0 0.0
      %2219 = vmatpush1.msra.mxu0 0.0
      %2220 = vmatprep.subr.mxu0 0.0
      %2221 = vmatpush1.msra.mxu0 0.0
      %2222 = vmatprep.subr.mxu0 0.0
      %2223 = vmatpush1.msra.mxu0 0.0
      %2224 = vmatprep.subr.mxu0 0.0
      %2225 = vmatpush1.msra.mxu0 0.0
      %2226 = vmatprep.subr.mxu0 0.0
      %2227 = vmatpush1.msra.mxu0 0.0
      %2228 = vmatprep.subr.mxu0 0.0
      %2229 = vmatpush1.msra.mxu0 0.0
      %2230 = vmatprep.subr.mxu0 0.0
      %2231 = vmatpush1.msra.mxu0 0.0
      %2232 = vmatprep.mubr.f32.mxu0 0.0
      %2233 = vmatmul.mubr.f32.gmra.mrb[0].mxu0 %v2166
      %v2234 = vpop.f32.mrb[0].mxu0
      %v2235 = vadd.f32 0.0, %v2234
      %v2236 = vpop.f32.mrb[0].mxu0
      %2237 = vdwg.mxu0
      %v2238 = vmax.f32 %v2235, 0.0
      %v2240 = vsel %vm192, %v2238, 0
      %2242 = vmatprep.subr.mxu0 0.0
      %2243 = vmatpush1.msra.mxu0 %v26
      %2244 = vmatprep.subr.mxu0 0.0
      %2245 = vmatpush1.msra.mxu0 %v198
      %2246 = vmatprep.subr.mxu0 0.0
      %2247 = vmatpush1.msra.mxu0 0.0
      %2248 = vmatprep.subr.mxu0 0.0
      %2249 = vmatpush1.msra.mxu0 0.0
      %2250 = vmatprep.subr.mxu0 0.0
      %2251 = vmatpush1.msra.mxu0 0.0
      %2252 = vmatprep.subr.mxu0 0.0
      %2253 = vmatpush1.msra.mxu0 0.0
      %2254 = vmatprep.subr.mxu0 0.0
      %2255 = vmatpush1.msra.mxu0 0.0
      %2256 = vmatprep.subr.mxu0 0.0
      %2257 = vmatpush1.msra.mxu0 0.0
      %2258 = vmatprep.subr.mxu0 0.0
      %2259 = vmatpush1.msra.mxu0 0.0
      %2260 = vmatprep.subr.mxu0 0.0
      %2261 = vmatpush1.msra.mxu0 0.0
      %2262 = vmatprep.subr.mxu0 0.0
      %2263 = vmatpush1.msra.mxu0 0.0
      %2264 = vmatprep.subr.mxu0 0.0
      %2265 = vmatpush1.msra.mxu0 0.0
      %2266 = vmatprep.subr.mxu0 0.0
      %2267 = vmatpush1.msra.mxu0 0.0
      %2268 = vmatprep.subr.mxu0 0.0
      %2269 = vmatpush1.msra.mxu0 0.0
      %2270 = vmatprep.subr.mxu0 0.0
      %2271 = vmatpush1.msra.mxu0 0.0
      %2272 = vmatprep.subr.mxu0 0.0
      %2273 = vmatpush1.msra.mxu0 0.0
      %2274 = vmatprep.subr.mxu0 0.0
      %2275 = vmatpush1.msra.mxu0 0.0
      %2276 = vmatprep.subr.mxu0 0.0
      %2277 = vmatpush1.msra.mxu0 0.0
      %2278 = vmatprep.subr.mxu0 0.0
      %2279 = vmatpush1.msra.mxu0 0.0
      %2280 = vmatprep.subr.mxu0 0.0
      %2281 = vmatpush1.msra.mxu0 0.0
      %2282 = vmatprep.subr.mxu0 0.0
      %2283 = vmatpush1.msra.mxu0 0.0
      %2284 = vmatprep.subr.mxu0 0.0
      %2285 = vmatpush1.msra.mxu0 0.0
      %2286 = vmatprep.subr.mxu0 0.0
      %2287 = vmatpush1.msra.mxu0 0.0
      %2288 = vmatprep.subr.mxu0 0.0
      %2289 = vmatpush1.msra.mxu0 0.0
      %2290 = vmatprep.subr.mxu0 0.0
      %2291 = vmatpush1.msra.mxu0 0.0
      %2292 = vmatprep.subr.mxu0 0.0
      %2293 = vmatpush1.msra.mxu0 0.0
      %2294 = vmatprep.subr.mxu0 0.0
      %2295 = vmatpush1.msra.mxu0 0.0
      %2296 = vmatprep.subr.mxu0 0.0
      %2297 = vmatpush1.msra.mxu0 0.0
      %2298 = vmatprep.subr.mxu0 0.0
      %2299 = vmatpush1.msra.mxu0 0.0
      %2300 = vmatprep.subr.mxu0 0.0
      %2301 = vmatpush1.msra.mxu0 0.0
      %2302 = vmatprep.subr.mxu0 0.0
      %2303 = vmatpush1.msra.mxu0 0.0
      %2304 = vmatprep.subr.mxu0 0.0
      %2305 = vmatpush1.msra.mxu0 0.0
      %2306 = vmatprep.mubr.f32.mxu0 0.0
      %2307 = vmatmul.mubr.f32.gmra.mrb[0].mxu0 %v2240
      %v2308 = vpop.f32.mrb[0].mxu0
      %v2309 = vadd.f32 0.0, %v2308
      %v2310 = vpop.f32.mrb[0].mxu0
      %2311 = vdwg.mxu0
      %v2313 = vsel %vm274, %v2309, 0
      %2315 = vmatprep.subr.mxu0 0.0
      %2316 = vmatpush1.msra.mxu0 %v2313
      %2317 = vmatprep.subr.mxu0 0.0
      %2318 = vmatpush1.msra.mxu0 0.0
      %2319 = vmatprep.subr.mxu0 0.0
      %2320 = vmatpush1.msra.mxu0 0.0
      %2321 = vmatprep.subr.mxu0 0.0
      %2322 = vmatpush1.msra.mxu0 0.0
      %2323 = vmatprep.subr.mxu0 0.0
      %2324 = vmatpush1.msra.mxu0 0.0
      %2325 = vmatprep.subr.mxu0 0.0
      %2326 = vmatpush1.msra.mxu0 0.0
      %2327 = vmatprep.subr.mxu0 0.0
      %2328 = vmatpush1.msra.mxu0 0.0
      %2329 = vmatprep.subr.mxu0 0.0
      %2330 = vmatpush1.msra.mxu0 0.0
      %2331 = vmatprep.subr.mxu0 0.0
      %2332 = vmatpush1.msra.mxu0 0.0
      %2333 = vmatprep.subr.mxu0 0.0
      %2334 = vmatpush1.msra.mxu0 0.0
      %2335 = vmatprep.subr.mxu0 0.0
      %2336 = vmatpush1.msra.mxu0 0.0
      %2337 = vmatprep.subr.mxu0 0.0
      %2338 = vmatpush1.msra.mxu0 0.0
      %2339 = vmatprep.subr.mxu0 0.0
      %2340 = vmatpush1.msra.mxu0 0.0
      %2341 = vmatprep.subr.mxu0 0.0
      %2342 = vmatpush1.msra.mxu0 0.0
      %2343 = vmatprep.subr.mxu0 0.0
      %2344 = vmatpush1.msra.mxu0 0.0
      %2345 = vmatprep.subr.mxu0 0.0
      %2346 = vmatpush1.msra.mxu0 0.0
      %2347 = vmatprep.subr.mxu0 0.0
      %2348 = vmatpush1.msra.mxu0 0.0
      %2349 = vmatprep.subr.mxu0 0.0
      %2350 = vmatpush1.msra.mxu0 0.0
      %2351 = vmatprep.subr.mxu0 0.0
      %2352 = vmatpush1.msra.mxu0 0.0
      %2353 = vmatprep.subr.mxu0 0.0
      %2354 = vmatpush1.msra.mxu0 0.0
      %2355 = vmatprep.subr.mxu0 0.0
      %2356 = vmatpush1.msra.mxu0 0.0
      %2357 = vmatprep.subr.mxu0 0.0
      %2358 = vmatpush1.msra.mxu0 0.0
      %2359 = vmatprep.subr.mxu0 0.0
      %2360 = vmatpush1.msra.mxu0 0.0
      %2361 = vmatprep.subr.mxu0 0.0
      %2362 = vmatpush1.msra.mxu0 0.0
      %2363 = vmatprep.subr.mxu0 0.0
      %2364 = vmatpush1.msra.mxu0 0.0
      %2365 = vmatprep.subr.mxu0 0.0
      %2366 = vmatpush1.msra.mxu0 0.0
      %2367 = vmatprep.subr.mxu0 0.0
      %2368 = vmatpush1.msra.mxu0 0.0
      %2369 = vmatprep.subr.mxu0 0.0
      %2370 = vmatpush1.msra.mxu0 0.0
      %2371 = vmatprep.subr.mxu0 0.0
      %2372 = vmatpush1.msra.mxu0 0.0
      %2373 = vmatprep.subr.mxu0 0.0
      %2374 = vmatpush1.msra.mxu0 0.0
      %2375 = vmatprep.subr.mxu0 0.0
      %2376 = vmatpush1.msra.mxu0 0.0
      %2377 = vmatprep.subr.mxu0 0.0
      %2378 = vmatpush1.msra.mxu0 0.0
      %2379 = vmatprep.mubr.f32.mxu0 0.0
      %2380 = vmatmul.mubr.f32.gmra.mrb[0].mxu0 %v272
      %v2381 = vpop.f32.mrb[0].mxu0
      %v2382 = vadd.f32 %v28, %v2381
      %v2383 = vpop.f32.mrb[0].mxu0
      %2384 = vdwg.mxu0
      %v2385 = vmax.f32 %v2382, 0.0
      %2386 = vmatprep.subr.mxu0 0.0
      %2387 = vmatpush1.msra.mxu0 %v2385
      %2388 = vmatprep.subr.mxu0 0.0
      %2389 = vmatpush1.msra.mxu0 0.0
      %2390 = vmatprep.subr.mxu0 0.0
      %2391 = vmatpush1.msra.mxu0 0.0
      %2392 = vmatprep.subr.mxu0 0.0
      %2393 = vmatpush1.msra.mxu0 0.0
      %2394 = vmatprep.subr.mxu0 0.0
      %2395 = vmatpush1.msra.mxu0 0.0
      %2396 = vmatprep.subr.mxu0 0.0
      %2397 = vmatpush1.msra.mxu0 0.0
      %2398 = vmatprep.subr.mxu0 0.0
      %2399 = vmatpush1.msra.mxu0 0.0
      %2400 = vmatprep.subr.mxu0 0.0
      %2401 = vmatpush1.msra.mxu0 0.0
      %2402 = vmatprep.subr.mxu0 0.0
      %2403 = vmatpush1.msra.mxu0 0.0
      %2404 = vmatprep.subr.mxu0 0.0
      %2405 = vmatpush1.msra.mxu0 0.0
      %2406 = vmatprep.subr.mxu0 0.0
      %2407 = vmatpush1.msra.mxu0 0.0
      %2408 = vmatprep.subr.mxu0 0.0
      %2409 = vmatpush1.msra.mxu0 0.0
      %2410 = vmatprep.subr.mxu0 0.0
      %2411 = vmatpush1.msra.mxu0 0.0
      %2412 = vmatprep.subr.mxu0 0.0
      %2413 = vmatpush1.msra.mxu0 0.0
      %2414 = vmatprep.subr.mxu0 0.0
      %2415 = vmatpush1.msra.mxu0 0.0
      %2416 = vmatprep.subr.mxu0 0.0
      %2417 = vmatpush1.msra.mxu0 0.0
      %2418 = vmatprep.subr.mxu0 0.0
      %2419 = vmatpush1.msra.mxu0 0.0
      %2420 = vmatprep.subr.mxu0 0.0
      %2421 = vmatpush1.msra.mxu0 0.0
      %2422 = vmatprep.subr.mxu0 0.0
      %2423 = vmatpush1.msra.mxu0 0.0
      %2424 = vmatprep.subr.mxu0 0.0
      %2425 = vmatpush1.msra.mxu0 0.0
      %2426 = vmatprep.subr.mxu0 0.0
      %2427 = vmatpush1.msra.mxu0 0.0
      %2428 = vmatprep.subr.mxu0 0.0
      %2429 = vmatpush1.msra.mxu0 0.0
      %2430 = vmatprep.subr.mxu0 0.0
      %2431 = vmatpush1.msra.mxu0 0.0
      %2432 = vmatprep.subr.mxu0 0.0
      %2433 = vmatpush1.msra.mxu0 0.0
      %2434 = vmatprep.subr.mxu0 0.0
      %2435 = vmatpush1.msra.mxu0 0.0
      %2436 = vmatprep.subr.mxu0 0.0
      %2437 = vmatpush1.msra.mxu0 0.0
      %2438 = vmatprep.subr.mxu0 0.0
      %2439 = vmatpush1.msra.mxu0 0.0
      %2440 = vmatprep.subr.mxu0 0.0
      %2441 = vmatpush1.msra.mxu0 0.0
      %2442 = vmatprep.subr.mxu0 0.0
      %2443 = vmatpush1.msra.mxu0 0.0
      %2444 = vmatprep.subr.mxu0 0.0
      %2445 = vmatpush1.msra.mxu0 0.0
      %2446 = vmatprep.subr.mxu0 0.0
      %2447 = vmatpush1.msra.mxu0 0.0
      %2448 = vmatprep.subr.mxu0 0.0
      %2449 = vmatpush1.msra.mxu0 0.0
      %2450 = vmatprep.mubr.f32.mxu0 0.0
      %2451 = vmatmul.mubr.f32.gmra.mrb[0].mxu0 %v41
      %v2452 = vpop.f32.mrb[0].mxu0
      %v2453 = vadd.f32 0.0, %v2452
      %v2454 = vpop.f32.mrb[0].mxu0
      %2455 = vdwg.mxu0
      %v2457 = vsel %vm113, %v2453, 0
      %2459 = vmatprep.subr.mxu0 0.0
      %2460 = vmatpush1.msra.mxu0 %v24
      %2461 = vmatprep.subr.mxu0 0.0
      %2462 = vmatpush1.msra.mxu0 %v119
      %2463 = vmatprep.subr.mxu0 0.0
      %2464 = vmatpush1.msra.mxu0 0.0
      %2465 = vmatprep.subr.mxu0 0.0
      %2466 = vmatpush1.msra.mxu0 0.0
      %2467 = vmatprep.subr.mxu0 0.0
      %2468 = vmatpush1.msra.mxu0 0.0
      %2469 = vmatprep.subr.mxu0 0.0
      %2470 = vmatpush1.msra.mxu0 0.0
      %2471 = vmatprep.subr.mxu0 0.0
      %2472 = vmatpush1.msra.mxu0 0.0
      %2473 = vmatprep.subr.mxu0 0.0
      %2474 = vmatpush1.msra.mxu0 0.0
      %2475 = vmatprep.subr.mxu0 0.0
      %2476 = vmatpush1.msra.mxu0 0.0
      %2477 = vmatprep.subr.mxu0 0.0
      %2478 = vmatpush1.msra.mxu0 0.0
      %2479 = vmatprep.subr.mxu0 0.0
      %2480 = vmatpush1.msra.mxu0 0.0
      %2481 = vmatprep.subr.mxu0 0.0
      %2482 = vmatpush1.msra.mxu0 0.0
      %2483 = vmatprep.subr.mxu0 0.0
      %2484 = vmatpush1.msra.mxu0 0.0
      %2485 = vmatprep.subr.mxu0 0.0
      %2486 = vmatpush1.msra.mxu0 0.0
      %2487 = vmatprep.subr.mxu0 0.0
      %2488 = vmatpush1.msra.mxu0 0.0
      %2489 = vmatprep.subr.mxu0 0.0
      %2490 = vmatpush1.msra.mxu0 0.0
      %2491 = vmatprep.subr.mxu0 0.0
      %2492 = vmatpush1.msra.mxu0 0.0
      %2493 = vmatprep.subr.mxu0 0.0
      %2494 = vmatpush1.msra.mxu0 0.0
      %2495 = vmatprep.subr.mxu0 0.0
      %2496 = vmatpush1.msra.mxu0 0.0
      %2497 = vmatprep.subr.mxu0 0.0
      %2498 = vmatpush1.msra.mxu0 0.0
      %2499 = vmatprep.subr.mxu0 0.0
      %2500 = vmatpush1.msra.mxu0 0.0
      %2501 = vmatprep.subr.mxu0 0.0
      %2502 = vmatpush1.msra.mxu0 0.0
      %2503 = vmatprep.subr.mxu0 0.0
      %2504 = vmatpush1.msra.mxu0 0.0
      %2505 = vmatprep.subr.mxu0 0.0
      %2506 = vmatpush1.msra.mxu0 0.0
      %2507 = vmatprep.subr.mxu0 0.0
      %2508 = vmatpush1.msra.mxu0 0.0
      %2509 = vmatprep.subr.mxu0 0.0
      %2510 = vmatpush1.msra.mxu0 0.0
      %2511 = vmatprep.subr.mxu0 0.0
      %2512 = vmatpush1.msra.mxu0 0.0
      %2513 = vmatprep.subr.mxu0 0.0
      %2514 = vmatpush1.msra.mxu0 0.0
      %2515 = vmatprep.subr.mxu0 0.0
      %2516 = vmatpush1.msra.mxu0 0.0
      %2517 = vmatprep.subr.mxu0 0.0
      %2518 = vmatpush1.msra.mxu0 0.0
      %2519 = vmatprep.subr.mxu0 0.0
      %2520 = vmatpush1.msra.mxu0 0.0
      %2521 = vmatprep.subr.mxu0 0.0
      %2522 = vmatpush1.msra.mxu0 0.0
      %2523 = vmatprep.mubr.f32.mxu0 0.0
      %2524 = vmatmul.mubr.f32.gmra.mrb[0].mxu0 %v2457
      %v2525 = vpop.f32.mrb[0].mxu0
      %v2526 = vadd.f32 0.0, %v2525
      %v2527 = vpop.f32.mrb[0].mxu0
      %2528 = vdwg.mxu0
      %v2529 = vmax.f32 %v2526, 0.0
      %v2531 = vsel %vm192, %v2529, 0
      %2533 = vmatprep.subr.mxu0 0.0
      %2534 = vmatpush1.msra.mxu0 %v26
      %2535 = vmatprep.subr.mxu0 0.0
      %2536 = vmatpush1.msra.mxu0 %v198
      %2537 = vmatprep.subr.mxu0 0.0
      %2538 = vmatpush1.msra.mxu0 0.0
      %2539 = vmatprep.subr.mxu0 0.0
      %2540 = vmatpush1.msra.mxu0 0.0
      %2541 = vmatprep.subr.mxu0 0.0
      %2542 = vmatpush1.msra.mxu0 0.0
      %2543 = vmatprep.subr.mxu0 0.0
      %2544 = vmatpush1.msra.mxu0 0.0
      %2545 = vmatprep.subr.mxu0 0.0
      %2546 = vmatpush1.msra.mxu0 0.0
      %2547 = vmatprep.subr.mxu0 0.0
      %2548 = vmatpush1.msra.mxu0 0.0
      %2549 = vmatprep.subr.mxu0 0.0
      %2550 = vmatpush1.msra.mxu0 0.0
      %2551 = vmatprep.subr.mxu0 0.0
      %2552 = vmatpush1.msra.mxu0 0.0
      %2553 = vmatprep.subr.mxu0 0.0
      %2554 = vmatpush1.msra.mxu0 0.0
      %2555 = vmatprep.subr.mxu0 0.0
      %2556 = vmatpush1.msra.mxu0 0.0
      %2557 = vmatprep.subr.mxu0 0.0
      %2558 = vmatpush1.msra.mxu0 0.0
      %2559 = vmatprep.subr.mxu0 0.0
      %2560 = vmatpush1.msra.mxu0 0.0
      %2561 = vmatprep.subr.mxu0 0.0
      %2562 = vmatpush1.msra.mxu0 0.0
      %2563 = vmatprep.subr.mxu0 0.0
      %2564 = vmatpush1.msra.mxu0 0.0
      %2565 = vmatprep.subr.mxu0 0.0
      %2566 = vmatpush1.msra.mxu0 0.0
      %2567 = vmatprep.subr.mxu0 0.0
      %2568 = vmatpush1.msra.mxu0 0.0
      %2569 = vmatprep.subr.mxu0 0.0
      %2570 = vmatpush1.msra.mxu0 0.0
      %2571 = vmatprep.subr.mxu0 0.0
      %2572 = vmatpush1.msra.mxu0 0.0
      %2573 = vmatprep.subr.mxu0 0.0
      %2574 = vmatpush1.msra.mxu0 0.0
      %2575 = vmatprep.subr.mxu0 0.0
      %2576 = vmatpush1.msra.mxu0 0.0
      %2577 = vmatprep.subr.mxu0 0.0
      %2578 = vmatpush1.msra.mxu0 0.0
      %2579 = vmatprep.subr.mxu0 0.0
      %2580 = vmatpush1.msra.mxu0 0.0
      %2581 = vmatprep.subr.mxu0 0.0
      %2582 = vmatpush1.msra.mxu0 0.0
      %2583 = vmatprep.subr.mxu0 0.0
      %2584 = vmatpush1.msra.mxu0 0.0
      %2585 = vmatprep.subr.mxu0 0.0
      %2586 = vmatpush1.msra.mxu0 0.0
      %2587 = vmatprep.subr.mxu0 0.0
      %2588 = vmatpush1.msra.mxu0 0.0
      %2589 = vmatprep.subr.mxu0 0.0
      %2590 = vmatpush1.msra.mxu0 0.0
      %2591 = vmatprep.subr.mxu0 0.0
      %2592 = vmatpush1.msra.mxu0 0.0
      %2593 = vmatprep.subr.mxu0 0.0
      %2594 = vmatpush1.msra.mxu0 0.0
      %2595 = vmatprep.subr.mxu0 0.0
      %2596 = vmatpush1.msra.mxu0 0.0
      %2597 = vmatprep.mubr.f32.mxu0 0.0
      %2598 = vmatmul.mubr.f32.gmra.mrb[0].mxu0 %v2531
      %v2599 = vpop.f32.mrb[0].mxu0
      %v2600 = vadd.f32 0.0, %v2599
      %v2601 = vpop.f32.mrb[0].mxu0
      %2602 = vdwg.mxu0
      %v2604 = vsel %vm274, %v2600, 0
      %2606 = vmatprep.subr.mxu0 0.0
      %2607 = vmatpush1.msra.mxu0 %v2604
      %2608 = vmatprep.subr.mxu0 0.0
      %2609 = vmatpush1.msra.mxu0 0.0
      %2610 = vmatprep.subr.mxu0 0.0
      %2611 = vmatpush1.msra.mxu0 0.0
      %2612 = vmatprep.subr.mxu0 0.0
      %2613 = vmatpush1.msra.mxu0 0.0
      %2614 = vmatprep.subr.mxu0 0.0
      %2615 = vmatpush1.msra.mxu0 0.0
      %2616 = vmatprep.subr.mxu0 0.0
      %2617 = vmatpush1.msra.mxu0 0.0
      %2618 = vmatprep.subr.mxu0 0.0
      %2619 = vmatpush1.msra.mxu0 0.0
      %2620 = vmatprep.subr.mxu0 0.0
      %2621 = vmatpush1.msra.mxu0 0.0
      %2622 = vmatprep.subr.mxu0 0.0
      %2623 = vmatpush1.msra.mxu0 0.0
      %2624 = vmatprep.subr.mxu0 0.0
      %2625 = vmatpush1.msra.mxu0 0.0
      %2626 = vmatprep.subr.mxu0 0.0
      %2627 = vmatpush1.msra.mxu0 0.0
      %2628 = vmatprep.subr.mxu0 0.0
      %2629 = vmatpush1.msra.mxu0 0.0
      %2630 = vmatprep.subr.mxu0 0.0
      %2631 = vmatpush1.msra.mxu0 0.0
      %2632 = vmatprep.subr.mxu0 0.0
      %2633 = vmatpush1.msra.mxu0 0.0
      %2634 = vmatprep.subr.mxu0 0.0
      %2635 = vmatpush1.msra.mxu0 0.0
      %2636 = vmatprep.subr.mxu0 0.0
      %2637 = vmatpush1.msra.mxu0 0.0
      %2638 = vmatprep.subr.mxu0 0.0
      %2639 = vmatpush1.msra.mxu0 0.0
      %2640 = vmatprep.subr.mxu0 0.0
      %2641 = vmatpush1.msra.mxu0 0.0
      %2642 = vmatprep.subr.mxu0 0.0
      %2643 = vmatpush1.msra.mxu0 0.0
      %2644 = vmatprep.subr.mxu0 0.0
      %2645 = vmatpush1.msra.mxu0 0.0
      %2646 = vmatprep.subr.mxu0 0.0
      %2647 = vmatpush1.msra.mxu0 0.0
      %2648 = vmatprep.subr.mxu0 0.0
      %2649 = vmatpush1.msra.mxu0 0.0
      %2650 = vmatprep.subr.mxu0 0.0
      %2651 = vmatpush1.msra.mxu0 0.0
      %2652 = vmatprep.subr.mxu0 0.0
      %2653 = vmatpush1.msra.mxu0 0.0
      %2654 = vmatprep.subr.mxu0 0.0
      %2655 = vmatpush1.msra.mxu0 0.0
      %2656 = vmatprep.subr.mxu0 0.0
      %2657 = vmatpush1.msra.mxu0 0.0
      %2658 = vmatprep.subr.mxu0 0.0
      %2659 = vmatpush1.msra.mxu0 0.0
      %2660 = vmatprep.subr.mxu0 0.0
      %2661 = vmatpush1.msra.mxu0 0.0
      %2662 = vmatprep.subr.mxu0 0.0
      %2663 = vmatpush1.msra.mxu0 0.0
      %2664 = vmatprep.subr.mxu0 0.0
      %2665 = vmatpush1.msra.mxu0 0.0
      %2666 = vmatprep.subr.mxu0 0.0
      %2667 = vmatpush1.msra.mxu0 0.0
      %2668 = vmatprep.subr.mxu0 0.0
      %2669 = vmatpush1.msra.mxu0 0.0
      %2670 = vmatprep.mubr.f32.mxu0 0.0
      %2671 = vmatmul.mubr.f32.gmra.mrb[0].mxu0 %v272
      %v2672 = vpop.f32.mrb[0].mxu0
      %v2673 = vadd.f32 %v28, %v2672
      %v2674 = vpop.f32.mrb[0].mxu0
      %2675 = vdwg.mxu0
      %v2676 = vmax.f32 %v2673, 0.0
      %2677 = vmatprep.subr.mxu0 0.0
      %2678 = vmatpush1.msra.mxu0 %v2676
      %2679 = vmatprep.subr.mxu0 0.0
      %2680 = vmatpush1.msra.mxu0 0.0
      %2681 = vmatprep.subr.mxu0 0.0
      %2682 = vmatpush1.msra.mxu0 0.0
      %2683 = vmatprep.subr.mxu0 0.0
      %2684 = vmatpush1.msra.mxu0 0.0
      %2685 = vmatprep.subr.mxu0 0.0
      %2686 = vmatpush1.msra.mxu0 0.0
      %2687 = vmatprep.subr.mxu0 0.0
      %2688 = vmatpush1.msra.mxu0 0.0
      %2689 = vmatprep.subr.mxu0 0.0
      %2690 = vmatpush1.msra.mxu0 0.0
      %2691 = vmatprep.subr.mxu0 0.0
      %2692 = vmatpush1.msra.mxu0 0.0
      %2693 = vmatprep.subr.mxu0 0.0
      %2694 = vmatpush1.msra.mxu0 0.0
      %2695 = vmatprep.subr.mxu0 0.0
      %2696 = vmatpush1.msra.mxu0 0.0
      %2697 = vmatprep.subr.mxu0 0.0
      %2698 = vmatpush1.msra.mxu0 0.0
      %2699 = vmatprep.subr.mxu0 0.0
      %2700 = vmatpush1.msra.mxu0 0.0
      %2701 = vmatprep.subr.mxu0 0.0
      %2702 = vmatpush1.msra.mxu0 0.0
      %2703 = vmatprep.subr.mxu0 0.0
      %2704 = vmatpush1.msra.mxu0 0.0
      %2705 = vmatprep.subr.mxu0 0.0
      %2706 = vmatpush1.msra.mxu0 0.0
      %2707 = vmatprep.subr.mxu0 0.0
      %2708 = vmatpush1.msra.mxu0 0.0
      %2709 = vmatprep.subr.mxu0 0.0
      %2710 = vmatpush1.msra.mxu0 0.0
      %2711 = vmatprep.subr.mxu0 0.0
      %2712 = vmatpush1.msra.mxu0 0.0
      %2713 = vmatprep.subr.mxu0 0.0
      %2714 = vmatpush1.msra.mxu0 0.0
      %2715 = vmatprep.subr.mxu0 0.0
      %2716 = vmatpush1.msra.mxu0 0.0
      %2717 = vmatprep.subr.mxu0 0.0
      %2718 = vmatpush1.msra.mxu0 0.0
      %2719 = vmatprep.subr.mxu0 0.0
      %2720 = vmatpush1.msra.mxu0 0.0
      %2721 = vmatprep.subr.mxu0 0.0
      %2722 = vmatpush1.msra.mxu0 0.0
      %2723 = vmatprep.subr.mxu0 0.0
      %2724 = vmatpush1.msra.mxu0 0.0
      %2725 = vmatprep.subr.mxu0 0.0
      %2726 = vmatpush1.msra.mxu0 0.0
      %2727 = vmatprep.subr.mxu0 0.0
      %2728 = vmatpush1.msra.mxu0 0.0
      %2729 = vmatprep.subr.mxu0 0.0
      %2730 = vmatpush1.msra.mxu0 0.0
      %2731 = vmatprep.subr.mxu0 0.0
      %2732 = vmatpush1.msra.mxu0 0.0
      %2733 = vmatprep.subr.mxu0 0.0
      %2734 = vmatpush1.msra.mxu0 0.0
      %2735 = vmatprep.subr.mxu0 0.0
      %2736 = vmatpush1.msra.mxu0 0.0
      %2737 = vmatprep.subr.mxu0 0.0
      %2738 = vmatpush1.msra.mxu0 0.0
      %2739 = vmatprep.subr.mxu0 0.0
      %2740 = vmatpush1.msra.mxu0 0.0
      %2741 = vmatprep.mubr.f32.mxu0 0.0
      %2742 = vmatmul.mubr.f32.gmra.mrb[0].mxu0 %v41
      %v2743 = vpop.f32.mrb[0].mxu0
      %v2744 = vadd.f32 0.0, %v2743
      %v2745 = vpop.f32.mrb[0].mxu0
      %2746 = vdwg.mxu0
      %v2748 = vsel %vm113, %v2744, 0
      %2750 = vmatprep.subr.mxu0 0.0
      %2751 = vmatpush1.msra.mxu0 %v24
      %2752 = vmatprep.subr.mxu0 0.0
      %2753 = vmatpush1.msra.mxu0 %v119
      %2754 = vmatprep.subr.mxu0 0.0
      %2755 = vmatpush1.msra.mxu0 0.0
      %2756 = vmatprep.subr.mxu0 0.0
      %2757 = vmatpush1.msra.mxu0 0.0
      %2758 = vmatprep.subr.mxu0 0.0
      %2759 = vmatpush1.msra.mxu0 0.0
      %2760 = vmatprep.subr.mxu0 0.0
      %2761 = vmatpush1.msra.mxu0 0.0
      %2762 = vmatprep.subr.mxu0 0.0
      %2763 = vmatpush1.msra.mxu0 0.0
      %2764 = vmatprep.subr.mxu0 0.0
      %2765 = vmatpush1.msra.mxu0 0.0
      %2766 = vmatprep.subr.mxu0 0.0
      %2767 = vmatpush1.msra.mxu0 0.0
      %2768 = vmatprep.subr.mxu0 0.0
      %2769 = vmatpush1.msra.mxu0 0.0
      %2770 = vmatprep.subr.mxu0 0.0
      %2771 = vmatpush1.msra.mxu0 0.0
      %2772 = vmatprep.subr.mxu0 0.0
      %2773 = vmatpush1.msra.mxu0 0.0
      %2774 = vmatprep.subr.mxu0 0.0
      %2775 = vmatpush1.msra.mxu0 0.0
      %2776 = vmatprep.subr.mxu0 0.0
      %2777 = vmatpush1.msra.mxu0 0.0
      %2778 = vmatprep.subr.mxu0 0.0
      %2779 = vmatpush1.msra.mxu0 0.0
      %2780 = vmatprep.subr.mxu0 0.0
      %2781 = vmatpush1.msra.mxu0 0.0
      %2782 = vmatprep.subr.mxu0 0.0
      %2783 = vmatpush1.msra.mxu0 0.0
      %2784 = vmatprep.subr.mxu0 0.0
      %2785 = vmatpush1.msra.mxu0 0.0
      %2786 = vmatprep.subr.mxu0 0.0
      %2787 = vmatpush1.msra.mxu0 0.0
      %2788 = vmatprep.subr.mxu0 0.0
      %2789 = vmatpush1.msra.mxu0 0.0
      %2790 = vmatprep.subr.mxu0 0.0
      %2791 = vmatpush1.msra.mxu0 0.0
      %2792 = vmatprep.subr.mxu0 0.0
      %2793 = vmatpush1.msra.mxu0 0.0
      %2794 = vmatprep.subr.mxu0 0.0
      %2795 = vmatpush1.msra.mxu0 0.0
      %2796 = vmatprep.subr.mxu0 0.0
      %2797 = vmatpush1.msra.mxu0 0.0
      %2798 = vmatprep.subr.mxu0 0.0
      %2799 = vmatpush1.msra.mxu0 0.0
      %2800 = vmatprep.subr.mxu0 0.0
      %2801 = vmatpush1.msra.mxu0 0.0
      %2802 = vmatprep.subr.mxu0 0.0
      %2803 = vmatpush1.msra.mxu0 0.0
      %2804 = vmatprep.subr.mxu0 0.0
      %2805 = vmatpush1.msra.mxu0 0.0
      %2806 = vmatprep.subr.mxu0 0.0
      %2807 = vmatpush1.msra.mxu0 0.0
      %2808 = vmatprep.subr.mxu0 0.0
      %2809 = vmatpush1.msra.mxu0 0.0
      %2810 = vmatprep.subr.mxu0 0.0
      %2811 = vmatpush1.msra.mxu0 0.0
      %2812 = vmatprep.subr.mxu0 0.0
      %2813 = vmatpush1.msra.mxu0 0.0
      %2814 = vmatprep.mubr.f32.mxu0 0.0
      %2815 = vmatmul.mubr.f32.gmra.mrb[0].mxu0 %v2748
      %v2816 = vpop.f32.mrb[0].mxu0
      %v2817 = vadd.f32 0.0, %v2816
      %v2818 = vpop.f32.mrb[0].mxu0
      %2819 = vdwg.mxu0
      %v2820 = vmax.f32 %v2817, 0.0
      %v2822 = vsel %vm192, %v2820, 0
      %2824 = vmatprep.subr.mxu0 0.0
      %2825 = vmatpush1.msra.mxu0 %v26
      %2826 = vmatprep.subr.mxu0 0.0
      %2827 = vmatpush1.msra.mxu0 %v198
      %2828 = vmatprep.subr.mxu0 0.0
      %2829 = vmatpush1.msra.mxu0 0.0
      %2830 = vmatprep.subr.mxu0 0.0
      %2831 = vmatpush1.msra.mxu0 0.0
      %2832 = vmatprep.subr.mxu0 0.0
      %2833 = vmatpush1.msra.mxu0 0.0
      %2834 = vmatprep.subr.mxu0 0.0
      %2835 = vmatpush1.msra.mxu0 0.0
      %2836 = vmatprep.subr.mxu0 0.0
      %2837 = vmatpush1.msra.mxu0 0.0
      %2838 = vmatprep.subr.mxu0 0.0
      %2839 = vmatpush1.msra.mxu0 0.0
      %2840 = vmatprep.subr.mxu0 0.0
      %2841 = vmatpush1.msra.mxu0 0.0
      %2842 = vmatprep.subr.mxu0 0.0
      %2843 = vmatpush1.msra.mxu0 0.0
      %2844 = vmatprep.subr.mxu0 0.0
      %2845 = vmatpush1.msra.mxu0 0.0
      %2846 = vmatprep.subr.mxu0 0.0
      %2847 = vmatpush1.msra.mxu0 0.0
      %2848 = vmatprep.subr.mxu0 0.0
      %2849 = vmatpush1.msra.mxu0 0.0
      %2850 = vmatprep.subr.mxu0 0.0
      %2851 = vmatpush1.msra.mxu0 0.0
      %2852 = vmatprep.subr.mxu0 0.0
      %2853 = vmatpush1.msra.mxu0 0.0
      %2854 = vmatprep.subr.mxu0 0.0
      %2855 = vmatpush1.msra.mxu0 0.0
      %2856 = vmatprep.subr.mxu0 0.0
      %2857 = vmatpush1.msra.mxu0 0.0
      %2858 = vmatprep.subr.mxu0 0.0
      %2859 = vmatpush1.msra.mxu0 0.0
      %2860 = vmatprep.subr.mxu0 0.0
      %2861 = vmatpush1.msra.mxu0 0.0
      %2862 = vmatprep.subr.mxu0 0.0
      %2863 = vmatpush1.msra.mxu0 0.0
      %2864 = vmatprep.subr.mxu0 0.0
      %2865 = vmatpush1.msra.mxu0 0.0
      %2866 = vmatprep.subr.mxu0 0.0
      %2867 = vmatpush1.msra.mxu0 0.0
      %2868 = vmatprep.subr.mxu0 0.0
      %2869 = vmatpush1.msra.mxu0 0.0
      %2870 = vmatprep.subr.mxu0 0.0
      %2871 = vmatpush1.msra.mxu0 0.0
      %2872 = vmatprep.subr.mxu0 0.0
      %2873 = vmatpush1.msra.mxu0 0.0
      %2874 = vmatprep.subr.mxu0 0.0
      %2875 = vmatpush1.msra.mxu0 0.0
      %2876 = vmatprep.subr.mxu0 0.0
      %2877 = vmatpush1.msra.mxu0 0.0
      %2878 = vmatprep.subr.mxu0 0.0
      %2879 = vmatpush1.msra.mxu0 0.0
      %2880 = vmatprep.subr.mxu0 0.0
      %2881 = vmatpush1.msra.mxu0 0.0
      %2882 = vmatprep.subr.mxu0 0.0
      %2883 = vmatpush1.msra.mxu0 0.0
      %2884 = vmatprep.subr.mxu0 0.0
      %2885 = vmatpush1.msra.mxu0 0.0
      %2886 = vmatprep.subr.mxu0 0.0
      %2887 = vmatpush1.msra.mxu0 0.0
      %2888 = vmatprep.mubr.f32.mxu0 0.0
      %2889 = vmatmul.mubr.f32.gmra.mrb[0].mxu0 %v2822
      %v2890 = vpop.f32.mrb[0].mxu0
      %v2891 = vadd.f32 0.0, %v2890
      %v2892 = vpop.f32.mrb[0].mxu0
      %2893 = vdwg.mxu0
      %v2895 = vsel %vm274, %v2891, 0
      %2897 = vmatprep.subr.mxu0 0.0
      %2898 = vmatpush1.msra.mxu0 %v2895
      %2899 = vmatprep.subr.mxu0 0.0
      %2900 = vmatpush1.msra.mxu0 0.0
      %2901 = vmatprep.subr.mxu0 0.0
      %2902 = vmatpush1.msra.mxu0 0.0
      %2903 = vmatprep.subr.mxu0 0.0
      %2904 = vmatpush1.msra.mxu0 0.0
      %2905 = vmatprep.subr.mxu0 0.0
      %2906 = vmatpush1.msra.mxu0 0.0
      %2907 = vmatprep.subr.mxu0 0.0
      %2908 = vmatpush1.msra.mxu0 0.0
      %2909 = vmatprep.subr.mxu0 0.0
      %2910 = vmatpush1.msra.mxu0 0.0
      %2911 = vmatprep.subr.mxu0 0.0
      %2912 = vmatpush1.msra.mxu0 0.0
      %2913 = vmatprep.subr.mxu0 0.0
      %2914 = vmatpush1.msra.mxu0 0.0
      %2915 = vmatprep.subr.mxu0 0.0
      %2916 = vmatpush1.msra.mxu0 0.0
      %2917 = vmatprep.subr.mxu0 0.0
      %2918 = vmatpush1.msra.mxu0 0.0
      %2919 = vmatprep.subr.mxu0 0.0
      %2920 = vmatpush1.msra.mxu0 0.0
      %2921 = vmatprep.subr.mxu0 0.0
      %2922 = vmatpush1.msra.mxu0 0.0
      %2923 = vmatprep.subr.mxu0 0.0
      %2924 = vmatpush1.msra.mxu0 0.0
      %2925 = vmatprep.subr.mxu0 0.0
      %2926 = vmatpush1.msra.mxu0 0.0
      %2927 = vmatprep.subr.mxu0 0.0
      %2928 = vmatpush1.msra.mxu0 0.0
      %2929 = vmatprep.subr.mxu0 0.0
      %2930 = vmatpush1.msra.mxu0 0.0
      %2931 = vmatprep.subr.mxu0 0.0
      %2932 = vmatpush1.msra.mxu0 0.0
      %2933 = vmatprep.subr.mxu0 0.0
      %2934 = vmatpush1.msra.mxu0 0.0
      %2935 = vmatprep.subr.mxu0 0.0
      %2936 = vmatpush1.msra.mxu0 0.0
      %2937 = vmatprep.subr.mxu0 0.0
      %2938 = vmatpush1.msra.mxu0 0.0
      %2939 = vmatprep.subr.mxu0 0.0
      %2940 = vmatpush1.msra.mxu0 0.0
      %2941 = vmatprep.subr.mxu0 0.0
      %2942 = vmatpush1.msra.mxu0 0.0
      %2943 = vmatprep.subr.mxu0 0.0
      %2944 = vmatpush1.msra.mxu0 0.0
      %2945 = vmatprep.subr.mxu0 0.0
      %2946 = vmatpush1.msra.mxu0 0.0
      %2947 = vmatprep.subr.mxu0 0.0
      %2948 = vmatpush1.msra.mxu0 0.0
      %2949 = vmatprep.subr.mxu0 0.0
      %2950 = vmatpush1.msra.mxu0 0.0
      %2951 = vmatprep.subr.mxu0 0.0
      %2952 = vmatpush1.msra.mxu0 0.0
      %2953 = vmatprep.subr.mxu0 0.0
      %2954 = vmatpush1.msra.mxu0 0.0
      %2955 = vmatprep.subr.mxu0 0.0
      %2956 = vmatpush1.msra.mxu0 0.0
      %2957 = vmatprep.subr.mxu0 0.0
      %2958 = vmatpush1.msra.mxu0 0.0
      %2959 = vmatprep.subr.mxu0 0.0
      %2960 = vmatpush1.msra.mxu0 0.0
      %2961 = vmatprep.mubr.f32.mxu0 0.0
      %2962 = vmatmul.mubr.f32.gmra.mrb[0].mxu0 %v272
      %v2963 = vpop.f32.mrb[0].mxu0
      %v2964 = vadd.f32 %v28, %v2963
      %v2965 = vpop.f32.mrb[0].mxu0
      %2966 = vdwg.mxu0
      %v2967 = vmax.f32 %v2964, 0.0
    $region30: #{inecn_forward.3} parent=1 // loop_footer
      %s37 = sadd.s32 1, %s33
    $region31: #{inecn_forward.3} parent=1 // loop_footer_branch
      %32 = sbr.rel target = $region27
    $region32: #{inecn_forward.3} parent=1 // loop_exit
      _
    %v2968 = vadd.f32 %v28, %v38
    %vm2969 = vcmask 80896
    %2970 = vst.msk [vmem:[#allocation2] sm:$0xff] %vm2969, %v2968
    // Predicated region
    $region33: #{inecn_forward.3} parent=1 // pred_check
      _
    $region34: #{inecn_forward.3} parent=1 // pred_check_branch
      %2972 = sbr.rel (0) target = $region36
    $region35: #{inecn_forward.3} parent=1 // pred_region
      %s2974 = ssub.s32 128, 128
      %2975 = vsyncadd [#allocation3], %s2974
      %s2977 = sshll.u32 [#allocation2], 4
      %s2978 = int_to_ptr.vmem [resolvable:$true] %s2977
      %2980 = dma.vmem_to_hbm [thread:$0]  %s2978, 128, %s6, [#allocation3]
    $region36: #{inecn_forward.3} parent=1 // pred_fallthru
      _
    // Predicated region
    $region37: #{inecn_forward.3} parent=1 // pred_check
      _
    $region38: #{inecn_forward.3} parent=1 // pred_check_branch
      %2982 = sbr.rel (0) target = $region40
    $region39: #{inecn_forward.3} parent=1 // pred_region
      %2983 = dma.done [#allocation3], 128
    $region40: #{inecn_forward.3} parent=1 // pred_fallthru
      _
    %2984 = vsyncpa [#allocation3], 1

// kernel: inecn_forward.2
$region0: #{inecn_forward.2}
  #allocation0 [shape = 'u32[]', space=smem, size = 0x4, offset = 0x4, fixed_abs, tag = 'smem constant byte address 0x4 - core index']
  #allocation1 [shape = 'u32[144,128]{1,0:T(1,128)}', space=vmem, size = 0x12000, scoped, tag = 'internal scratch']
  %s0 = inlined_call_operand.smem [shape: u32[60], index: -1, kind: input, shape index: {}]
  %s1 = sld [smem:[%s0]]
  %s2 = scalar_lea.smem %s0, 1
  %s3 = sld [smem:[%s2]]
  %s4 = scalar_lea.smem %s0, 2
  %s5 = sld [smem:[%s4]]
  %s6 = scalar_lea.smem %s0, 3
  %s7 = sld [smem:[%s6]]
  %s8 = scalar_lea.smem %s0, 4
  %s9 = sld [smem:[%s8]]
  %s10 = scalar_lea.smem %s0, 5
  %s11 = sld [smem:[%s10]]
  %s12 = scalar_lea.smem %s0, 6
  %s13 = sld [smem:[%s12]]
  %s14 = scalar_lea.smem %s0, 7
  %s15 = sld [smem:[%s14]]
  %s16 = scalar_lea.smem %s0, 8
  %s17 = sld [smem:[%s16]]
  %s18 = scalar_lea.smem %s0, 9
  %s19 = sld [smem:[%s18]]
  %s20 = scalar_lea.smem %s0, 10
  %s21 = sld [smem:[%s20]]
  %s22 = scalar_lea.smem %s0, 11
  %s23 = sld [smem:[%s22]]
  %s24 = scalar_lea.smem %s0, 12
  %s25 = sld [smem:[%s24]]
  %s26 = scalar_lea.smem %s0, 13
  %s27 = sld [smem:[%s26]]
  %s28 = scalar_lea.smem %s0, 14
  %s29 = sld [smem:[%s28]]
  %s30 = scalar_lea.smem %s0, 15
  %s31 = sld [smem:[%s30]]
  %s32 = scalar_lea.smem %s0, 16
  %s33 = sld [smem:[%s32]]
  %s34 = scalar_lea.smem %s0, 17
  %s35 = sld [smem:[%s34]]
  %s36 = scalar_lea.smem %s0, 18
  %s37 = sld [smem:[%s36]]
  %s38 = scalar_lea.smem %s0, 19
  %s39 = sld [smem:[%s38]]
  %s40 = scalar_lea.smem %s0, 20
  %s41 = sld [smem:[%s40]]
  %s42 = scalar_lea.smem %s0, 21
  %s43 = sld [smem:[%s42]]
  %s44 = scalar_lea.smem %s0, 22
  %s45 = sld [smem:[%s44]]
  %s46 = scalar_lea.smem %s0, 23
  %s47 = sld [smem:[%s46]]
  %s48 = scalar_lea.smem %s0, 24
  %s49 = sld [smem:[%s48]]
  %s50 = scalar_lea.smem %s0, 25
  %s51 = sld [smem:[%s50]]
  %s52 = scalar_lea.smem %s0, 26
  %s53 = sld [smem:[%s52]]
  %s54 = scalar_lea.smem %s0, 27
  %s55 = sld [smem:[%s54]]
  %s56 = scalar_lea.smem %s0, 28
  %s57 = sld [smem:[%s56]]
  %s58 = scalar_lea.smem %s0, 29
  %s59 = sld [smem:[%s58]]
  %s60 = scalar_lea.smem %s0, 30
  %s61 = sld [smem:[%s60]]
  %s62 = scalar_lea.smem %s0, 31
  %s63 = sld [smem:[%s62]]
  %s64 = scalar_lea.smem %s0, 32
  %s65 = sld [smem:[%s64]]
  %s66 = scalar_lea.smem %s0, 33
  %s67 = sld [smem:[%s66]]
  %s68 = scalar_lea.smem %s0, 34
  %s69 = sld [smem:[%s68]]
  %s70 = scalar_lea.smem %s0, 35
  %s71 = sld [smem:[%s70]]
  %s72 = scalar_lea.smem %s0, 36
  %s73 = sld [smem:[%s72]]
  %s74 = scalar_lea.smem %s0, 37
  %s75 = sld [smem:[%s74]]
  %s76 = scalar_lea.smem %s0, 38
  %s77 = sld [smem:[%s76]]
  %s78 = scalar_lea.smem %s0, 39
  %s79 = sld [smem:[%s78]]
  %s80 = scalar_lea.smem %s0, 40
  %s81 = sld [smem:[%s80]]
  %s82 = scalar_lea.smem %s0, 41
  %s83 = sld [smem:[%s82]]
  %s84 = scalar_lea.smem %s0, 42
  %s85 = sld [smem:[%s84]]
  %s86 = scalar_lea.smem %s0, 43
  %s87 = sld [smem:[%s86]]
  %s88 = scalar_lea.smem %s0, 44
  %s89 = sld [smem:[%s88]]
  %s90 = scalar_lea.smem %s0, 45
  %s91 = sld [smem:[%s90]]
  %s92 = scalar_lea.smem %s0, 46
  %s93 = sld [smem:[%s92]]
  %s94 = scalar_lea.smem %s0, 47
  %s95 = sld [smem:[%s94]]
  %s96 = scalar_lea.smem %s0, 48
  %s97 = sld [smem:[%s96]]
  %s98 = scalar_lea.smem %s0, 49
  %s99 = sld [smem:[%s98]]
  %s100 = scalar_lea.smem %s0, 50
  %s101 = sld [smem:[%s100]]
  %s102 = scalar_lea.smem %s0, 51
  %s103 = sld [smem:[%s102]]
  %s104 = scalar_lea.smem %s0, 52
  %s105 = sld [smem:[%s104]]
  %s106 = scalar_lea.smem %s0, 53
  %s107 = sld [smem:[%s106]]
  %s108 = scalar_lea.smem %s0, 54
  %s109 = sld [smem:[%s108]]
  %s110 = scalar_lea.smem %s0, 55
  %s111 = sld [smem:[%s110]]
  %s112 = scalar_lea.smem %s0, 56
  %s113 = sld [smem:[%s112]]
  %s114 = scalar_lea.smem %s0, 57
  %s115 = sld [smem:[%s114]]
  %s116 = scalar_lea.smem %s0, 58
  %s117 = sld [smem:[%s116]]
  %s118 = scalar_lea.smem %s0, 59
  %s119 = sld [smem:[%s118]]
  %120 = xla_tuple %s115, %s117, %s119
  %s121 = sld [smem:[#allocation0]]
  $region310: #{inecn_forward.2} parent=0
    _
  %s123 = ssub.s32 1, %s121
  %s124 = scalar_select 0, %s123, %s121
  $region1: #{inecn_forward.2} parent=0
    #allocation2 [shape = 'u8[512]{0}', space=vmem, size = 0x400, scoped, tag = 'input window, operand 20, single buffered']
    #allocation3 [shape = 's32[1]{0}', space=sflag, size = 0x4, scoped, tag = 'scoped memory for inecn_forward.2']
    #allocation4 [shape = 'u8[512]{0}', space=vmem, size = 0x400, scoped, tag = 'input window, operand 22, single buffered']
    #allocation5 [shape = 's32[1]{0}', space=sflag, size = 0x4, scoped, tag = 'scoped memory for inecn_forward.2']
    #allocation6 [shape = 'u8[512]{0}', space=vmem, size = 0x400, scoped, tag = 'input window, operand 26, single buffered']
    #allocation7 [shape = 'u8[512]{0}', space=vmem, size = 0x400, scoped, tag = 'input window, operand 30, single buffered']
    #allocation8 [shape = 's32[1]{0}', space=sflag, size = 0x4, scoped, tag = 'scoped memory for inecn_forward.2']
    #allocation9 [shape = 'u8[512]{0}', space=vmem, size = 0x400, scoped, tag = 'input window, operand 34, single buffered']
    #allocation10 [shape = 'u8[512]{0}', space=vmem, size = 0x400, scoped, tag = 'input window, operand 36, single buffered']
    #allocation11 [shape = 's32[1]{0}', space=sflag, size = 0x4, scoped, tag = 'scoped memory for inecn_forward.2']
    #allocation12 [shape = 'u8[512]{0}', space=vmem, size = 0x400, scoped, tag = 'input window, operand 38, single buffered']
    #allocation13 [shape = 'u8[512]{0}', space=vmem, size = 0x400, scoped, tag = 'input window, operand 42, single buffered']
    #allocation14 [shape = 's32[1]{0}', space=sflag, size = 0x4, scoped, tag = 'scoped memory for inecn_forward.2']
    #allocation15 [shape = 'u8[512]{0}', space=vmem, size = 0x400, scoped, tag = 'input window, operand 44, single buffered']
    #allocation16 [shape = 'u8[512]{0}', space=vmem, size = 0x400, scoped, tag = 'input window, operand 46, single buffered']
    #allocation17 [shape = 's32[1]{0}', space=sflag, size = 0x4, scoped, tag = 'scoped memory for inecn_forward.2']
    #allocation18 [shape = 'u8[512]{0}', space=vmem, size = 0x400, scoped, tag = 'input window, operand 49, single buffered']
    #allocation19 [shape = 'u8[512]{0}', space=vmem, size = 0x400, scoped, tag = 'input window, operand 51, single buffered']
    #allocation20 [shape = 's32[1]{0}', space=sflag, size = 0x4, scoped, tag = 'scoped memory for inecn_forward.2']
    #allocation21 [shape = 'u8[512]{0}', space=vmem, size = 0x400, scoped, tag = 'input window, operand 54, single buffered']
    #allocation22 [shape = 'u8[512]{0}', space=vmem, size = 0x400, scoped, tag = 'input window, operand 56, single buffered']
    #allocation23 [shape = 's32[1]{0}', space=sflag, size = 0x4, scoped, tag = 'scoped memory for inecn_forward.2']
    %125 = vsyncpa [#allocation3], 0
    %126 = vsyncpa [#allocation5], 0
    %127 = vsyncpa [#allocation8], 0
    %128 = vsyncpa [#allocation11], 0
    %129 = vsyncpa [#allocation14], 0
    %130 = vsyncpa [#allocation17], 0
    %131 = vsyncpa [#allocation20], 0
    %132 = vsyncpa [#allocation23], 0
    // Predicated region
    $region2: #{inecn_forward.2} parent=1 // pred_check
      _
    $region3: #{inecn_forward.2} parent=1 // pred_check_branch
      %134 = sbr.rel (0) target = $region5
    $region4: #{inecn_forward.2} parent=1 // pred_region
      _
    $region5: #{inecn_forward.2} parent=1 // pred_fallthru
      _
    // Predicated region
    $region6: #{inecn_forward.2} parent=1 // pred_check
      _
    $region7: #{inecn_forward.2} parent=1 // pred_check_branch
      %136 = sbr.rel (0) target = $region9
    $region8: #{inecn_forward.2} parent=1 // pred_region
      _
    $region9: #{inecn_forward.2} parent=1 // pred_fallthru
      _
    // Predicated region
    $region10: #{inecn_forward.2} parent=1 // pred_check
      _
    $region11: #{inecn_forward.2} parent=1 // pred_check_branch
      %138 = sbr.rel (0) target = $region13
    $region12: #{inecn_forward.2} parent=1 // pred_region
      _
    $region13: #{inecn_forward.2} parent=1 // pred_fallthru
      _
    // Predicated region
    $region14: #{inecn_forward.2} parent=1 // pred_check
      _
    $region15: #{inecn_forward.2} parent=1 // pred_check_branch
      %140 = sbr.rel (0) target = $region17
    $region16: #{inecn_forward.2} parent=1 // pred_region
      _
    $region17: #{inecn_forward.2} parent=1 // pred_fallthru
      _
    // Predicated region
    $region18: #{inecn_forward.2} parent=1 // pred_check
      _
    $region19: #{inecn_forward.2} parent=1 // pred_check_branch
      %142 = sbr.rel (0) target = $region21
    $region20: #{inecn_forward.2} parent=1 // pred_region
      _
    $region21: #{inecn_forward.2} parent=1 // pred_fallthru
      _
    // Predicated region
    $region22: #{inecn_forward.2} parent=1 // pred_check
      _
    $region23: #{inecn_forward.2} parent=1 // pred_check_branch
      %144 = sbr.rel (0) target = $region25
    $region24: #{inecn_forward.2} parent=1 // pred_region
      _
    $region25: #{inecn_forward.2} parent=1 // pred_fallthru
      _
    // Predicated region
    $region26: #{inecn_forward.2} parent=1 // pred_check
      _
    $region27: #{inecn_forward.2} parent=1 // pred_check_branch
      %146 = sbr.rel (0) target = $region29
    $region28: #{inecn_forward.2} parent=1 // pred_region
      _
    $region29: #{inecn_forward.2} parent=1 // pred_fallthru
      _
    // Predicated region
    $region30: #{inecn_forward.2} parent=1 // pred_check
      _
    $region31: #{inecn_forward.2} parent=1 // pred_check_branch
      %148 = sbr.rel (0) target = $region33
    $region32: #{inecn_forward.2} parent=1 // pred_region
      _
    $region33: #{inecn_forward.2} parent=1 // pred_fallthru
      _
    // Predicated region
    $region34: #{inecn_forward.2} parent=1 // pred_check
      _
    $region35: #{inecn_forward.2} parent=1 // pred_check_branch
      %150 = sbr.rel (0) target = $region37
    $region36: #{inecn_forward.2} parent=1 // pred_region
      _
    $region37: #{inecn_forward.2} parent=1 // pred_fallthru
      _
    // Predicated region
    $region38: #{inecn_forward.2} parent=1 // pred_check
      _
    $region39: #{inecn_forward.2} parent=1 // pred_check_branch
      %152 = sbr.rel (0) target = $region41
    $region40: #{inecn_forward.2} parent=1 // pred_region
      _
    $region41: #{inecn_forward.2} parent=1 // pred_fallthru
      _
    // Predicated region
    $region42: #{inecn_forward.2} parent=1 // pred_check
      _
    $region43: #{inecn_forward.2} parent=1 // pred_check_branch
      %154 = sbr.rel (0) target = $region45
    $region44: #{inecn_forward.2} parent=1 // pred_region
      _
    $region45: #{inecn_forward.2} parent=1 // pred_fallthru
      _
    // Predicated region
    $region46: #{inecn_forward.2} parent=1 // pred_check
      _
    $region47: #{inecn_forward.2} parent=1 // pred_check_branch
      %156 = sbr.rel (0) target = $region49
    $region48: #{inecn_forward.2} parent=1 // pred_region
      _
    $region49: #{inecn_forward.2} parent=1 // pred_fallthru
      _
    // Predicated region
    $region50: #{inecn_forward.2} parent=1 // pred_check
      _
    $region51: #{inecn_forward.2} parent=1 // pred_check_branch
      %158 = sbr.rel (0) target = $region53
    $region52: #{inecn_forward.2} parent=1 // pred_region
      _
    $region53: #{inecn_forward.2} parent=1 // pred_fallthru
      _
    // Predicated region
    $region54: #{inecn_forward.2} parent=1 // pred_check
      _
    $region55: #{inecn_forward.2} parent=1 // pred_check_branch
      %160 = sbr.rel (0) target = $region57
    $region56: #{inecn_forward.2} parent=1 // pred_region
      _
    $region57: #{inecn_forward.2} parent=1 // pred_fallthru
      _
    // Predicated region
    $region58: #{inecn_forward.2} parent=1 // pred_check
      _
    $region59: #{inecn_forward.2} parent=1 // pred_check_branch
      %162 = sbr.rel (0) target = $region61
    $region60: #{inecn_forward.2} parent=1 // pred_region
      _
    $region61: #{inecn_forward.2} parent=1 // pred_fallthru
      _
    // Predicated region
    $region62: #{inecn_forward.2} parent=1 // pred_check
      _
    $region63: #{inecn_forward.2} parent=1 // pred_check_branch
      %164 = sbr.rel (0) target = $region65
    $region64: #{inecn_forward.2} parent=1 // pred_region
      _
    $region65: #{inecn_forward.2} parent=1 // pred_fallthru
      _
    // Predicated region
    $region66: #{inecn_forward.2} parent=1 // pred_check
      _
    $region67: #{inecn_forward.2} parent=1 // pred_check_branch
      %166 = sbr.rel (0) target = $region69
    $region68: #{inecn_forward.2} parent=1 // pred_region
      _
    $region69: #{inecn_forward.2} parent=1 // pred_fallthru
      _
    // Predicated region
    $region70: #{inecn_forward.2} parent=1 // pred_check
      _
    $region71: #{inecn_forward.2} parent=1 // pred_check_branch
      %168 = sbr.rel (0) target = $region73
    $region72: #{inecn_forward.2} parent=1 // pred_region
      _
    $region73: #{inecn_forward.2} parent=1 // pred_fallthru
      _
    // Predicated region
    $region74: #{inecn_forward.2} parent=1 // pred_check
      _
    $region75: #{inecn_forward.2} parent=1 // pred_check_branch
      %170 = sbr.rel (0) target = $region77
    $region76: #{inecn_forward.2} parent=1 // pred_region
      _
    $region77: #{inecn_forward.2} parent=1 // pred_fallthru
      _
    // Predicated region
    $region78: #{inecn_forward.2} parent=1 // pred_check
      _
    $region79: #{inecn_forward.2} parent=1 // pred_check_branch
      %172 = sbr.rel (0) target = $region81
    $region80: #{inecn_forward.2} parent=1 // pred_region
      _
    $region81: #{inecn_forward.2} parent=1 // pred_fallthru
      _
    // Predicated region
    $region82: #{inecn_forward.2} parent=1 // pred_check
      _
    $region83: #{inecn_forward.2} parent=1 // pred_check_branch
      %174 = sbr.rel (0) target = $region85
    $region84: #{inecn_forward.2} parent=1 // pred_region
      %s176 = ssub.s32 16, 16
      %177 = vsyncadd [#allocation3], %s176
      %s179 = sshll.u32 [#allocation2], 4
      %s180 = int_to_ptr.vmem [resolvable:$true] %s179
      %182 = dma.hbm_to_vmem [thread:$0]  %s41, 16, %s180, [#allocation3]
    $region85: #{inecn_forward.2} parent=1 // pred_fallthru
      _
    // Predicated region
    $region86: #{inecn_forward.2} parent=1 // pred_check
      _
    $region87: #{inecn_forward.2} parent=1 // pred_check_branch
      %184 = sbr.rel (0) target = $region89
    $region88: #{inecn_forward.2} parent=1 // pred_region
      _
    $region89: #{inecn_forward.2} parent=1 // pred_fallthru
      _
    // Predicated region
    $region90: #{inecn_forward.2} parent=1 // pred_check
      _
    $region91: #{inecn_forward.2} parent=1 // pred_check_branch
      %186 = sbr.rel (0) target = $region93
    $region92: #{inecn_forward.2} parent=1 // pred_region
      %s188 = ssub.s32 16, 16
      %189 = vsyncadd [#allocation5], %s188
      %s191 = sshll.u32 [#allocation4], 4
      %s192 = int_to_ptr.vmem [resolvable:$true] %s191
      %194 = dma.hbm_to_vmem [thread:$0]  %s45, 16, %s192, [#allocation5]
    $region93: #{inecn_forward.2} parent=1 // pred_fallthru
      _
    // Predicated region
    $region94: #{inecn_forward.2} parent=1 // pred_check
      _
    $region95: #{inecn_forward.2} parent=1 // pred_check_branch
      %196 = sbr.rel (0) target = $region97
    $region96: #{inecn_forward.2} parent=1 // pred_region
      _
    $region97: #{inecn_forward.2} parent=1 // pred_fallthru
      _
    // Predicated region
    $region98: #{inecn_forward.2} parent=1 // pred_check
      _
    $region99: #{inecn_forward.2} parent=1 // pred_check_branch
      %198 = sbr.rel (0) target = $region101
    $region100: #{inecn_forward.2} parent=1 // pred_region
      _
    $region101: #{inecn_forward.2} parent=1 // pred_fallthru
      _
    // Predicated region
    $region102: #{inecn_forward.2} parent=1 // pred_check
      _
    $region103: #{inecn_forward.2} parent=1 // pred_check_branch
      %200 = sbr.rel (0) target = $region105
    $region104: #{inecn_forward.2} parent=1 // pred_region
      _
    $region105: #{inecn_forward.2} parent=1 // pred_fallthru
      _
    // Predicated region
    $region106: #{inecn_forward.2} parent=1 // pred_check
      _
    $region107: #{inecn_forward.2} parent=1 // pred_check_branch
      %202 = sbr.rel (0) target = $region109
    $region108: #{inecn_forward.2} parent=1 // pred_region
      %s204 = ssub.s32 16, 16
      %205 = vsyncadd [#allocation5], %s204
      %s207 = sshll.u32 [#allocation6], 4
      %s208 = int_to_ptr.vmem [resolvable:$true] %s207
      %210 = dma.hbm_to_vmem [thread:$0]  %s53, 16, %s208, [#allocation5]
    $region109: #{inecn_forward.2} parent=1 // pred_fallthru
      _
    // Predicated region
    $region110: #{inecn_forward.2} parent=1 // pred_check
      _
    $region111: #{inecn_forward.2} parent=1 // pred_check_branch
      %212 = sbr.rel (0) target = $region113
    $region112: #{inecn_forward.2} parent=1 // pred_region
      _
    $region113: #{inecn_forward.2} parent=1 // pred_fallthru
      _
    // Predicated region
    $region114: #{inecn_forward.2} parent=1 // pred_check
      _
    $region115: #{inecn_forward.2} parent=1 // pred_check_branch
      %214 = sbr.rel (0) target = $region117
    $region116: #{inecn_forward.2} parent=1 // pred_region
      _
    $region117: #{inecn_forward.2} parent=1 // pred_fallthru
      _
    // Predicated region
    $region118: #{inecn_forward.2} parent=1 // pred_check
      _
    $region119: #{inecn_forward.2} parent=1 // pred_check_branch
      %216 = sbr.rel (0) target = $region121
    $region120: #{inecn_forward.2} parent=1 // pred_region
      _
    $region121: #{inecn_forward.2} parent=1 // pred_fallthru
      _
    // Predicated region
    $region122: #{inecn_forward.2} parent=1 // pred_check
      _
    $region123: #{inecn_forward.2} parent=1 // pred_check_branch
      %218 = sbr.rel (0) target = $region125
    $region124: #{inecn_forward.2} parent=1 // pred_region
      %s220 = ssub.s32 16, 16
      %221 = vsyncadd [#allocation8], %s220
      %s223 = sshll.u32 [#allocation7], 4
      %s224 = int_to_ptr.vmem [resolvable:$true] %s223
      %226 = dma.hbm_to_vmem [thread:$0]  %s61, 16, %s224, [#allocation8]
    $region125: #{inecn_forward.2} parent=1 // pred_fallthru
      _
    // Predicated region
    $region126: #{inecn_forward.2} parent=1 // pred_check
      _
    $region127: #{inecn_forward.2} parent=1 // pred_check_branch
      %228 = sbr.rel (0) target = $region129
    $region128: #{inecn_forward.2} parent=1 // pred_region
      _
    $region129: #{inecn_forward.2} parent=1 // pred_fallthru
      _
    // Predicated region
    $region130: #{inecn_forward.2} parent=1 // pred_check
      _
    $region131: #{inecn_forward.2} parent=1 // pred_check_branch
      %230 = sbr.rel (0) target = $region133
    $region132: #{inecn_forward.2} parent=1 // pred_region
      _
    $region133: #{inecn_forward.2} parent=1 // pred_fallthru
      _
    // Predicated region
    $region134: #{inecn_forward.2} parent=1 // pred_check
      _
    $region135: #{inecn_forward.2} parent=1 // pred_check_branch
      %232 = sbr.rel (0) target = $region137
    $region136: #{inecn_forward.2} parent=1 // pred_region
      _
    $region137: #{inecn_forward.2} parent=1 // pred_fallthru
      _
    // Predicated region
    $region138: #{inecn_forward.2} parent=1 // pred_check
      _
    $region139: #{inecn_forward.2} parent=1 // pred_check_branch
      %234 = sbr.rel (0) target = $region141
    $region140: #{inecn_forward.2} parent=1 // pred_region
      %s236 = ssub.s32 16, 16
      %237 = vsyncadd [#allocation8], %s236
      %s239 = sshll.u32 [#allocation9], 4
      %s240 = int_to_ptr.vmem [resolvable:$true] %s239
      %242 = dma.hbm_to_vmem [thread:$0]  %s69, 16, %s240, [#allocation8]
    $region141: #{inecn_forward.2} parent=1 // pred_fallthru
      _
    // Predicated region
    $region142: #{inecn_forward.2} parent=1 // pred_check
      _
    $region143: #{inecn_forward.2} parent=1 // pred_check_branch
      %244 = sbr.rel (0) target = $region145
    $region144: #{inecn_forward.2} parent=1 // pred_region
      _
    $region145: #{inecn_forward.2} parent=1 // pred_fallthru
      _
    // Predicated region
    $region146: #{inecn_forward.2} parent=1 // pred_check
      _
    $region147: #{inecn_forward.2} parent=1 // pred_check_branch
      %246 = sbr.rel (0) target = $region149
    $region148: #{inecn_forward.2} parent=1 // pred_region
      %s248 = ssub.s32 16, 16
      %249 = vsyncadd [#allocation11], %s248
      %s251 = sshll.u32 [#allocation10], 4
      %s252 = int_to_ptr.vmem [resolvable:$true] %s251
      %254 = dma.hbm_to_vmem [thread:$0]  %s73, 16, %s252, [#allocation11]
    $region149: #{inecn_forward.2} parent=1 // pred_fallthru
      _
    // Predicated region
    $region150: #{inecn_forward.2} parent=1 // pred_check
      _
    $region151: #{inecn_forward.2} parent=1 // pred_check_branch
      %256 = sbr.rel (0) target = $region153
    $region152: #{inecn_forward.2} parent=1 // pred_region
      _
    $region153: #{inecn_forward.2} parent=1 // pred_fallthru
      _
    // Predicated region
    $region154: #{inecn_forward.2} parent=1 // pred_check
      _
    $region155: #{inecn_forward.2} parent=1 // pred_check_branch
      %258 = sbr.rel (0) target = $region157
    $region156: #{inecn_forward.2} parent=1 // pred_region
      %s260 = ssub.s32 16, 16
      %261 = vsyncadd [#allocation11], %s260
      %s263 = sshll.u32 [#allocation12], 4
      %s264 = int_to_ptr.vmem [resolvable:$true] %s263
      %266 = dma.hbm_to_vmem [thread:$0]  %s77, 16, %s264, [#allocation11]
    $region157: #{inecn_forward.2} parent=1 // pred_fallthru
      _
    // Predicated region
    $region158: #{inecn_forward.2} parent=1 // pred_check
      _
    $region159: #{inecn_forward.2} parent=1 // pred_check_branch
      %268 = sbr.rel (0) target = $region161
    $region160: #{inecn_forward.2} parent=1 // pred_region
      _
    $region161: #{inecn_forward.2} parent=1 // pred_fallthru
      _
    // Predicated region
    $region162: #{inecn_forward.2} parent=1 // pred_check
      _
    $region163: #{inecn_forward.2} parent=1 // pred_check_branch
      %270 = sbr.rel (0) target = $region165
    $region164: #{inecn_forward.2} parent=1 // pred_region
      _
    $region165: #{inecn_forward.2} parent=1 // pred_fallthru
      _
    // Predicated region
    $region166: #{inecn_forward.2} parent=1 // pred_check
      _
    $region167: #{inecn_forward.2} parent=1 // pred_check_branch
      %272 = sbr.rel (0) target = $region169
    $region168: #{inecn_forward.2} parent=1 // pred_region
      _
    $region169: #{inecn_forward.2} parent=1 // pred_fallthru
      _
    // Predicated region
    $region170: #{inecn_forward.2} parent=1 // pred_check
      _
    $region171: #{inecn_forward.2} parent=1 // pred_check_branch
      %274 = sbr.rel (0) target = $region173
    $region172: #{inecn_forward.2} parent=1 // pred_region
      %s276 = ssub.s32 16, 16
      %277 = vsyncadd [#allocation14], %s276
      %s279 = sshll.u32 [#allocation13], 4
      %s280 = int_to_ptr.vmem [resolvable:$true] %s279
      %282 = dma.hbm_to_vmem [thread:$0]  %s85, 16, %s280, [#allocation14]
    $region173: #{inecn_forward.2} parent=1 // pred_fallthru
      _
    // Predicated region
    $region174: #{inecn_forward.2} parent=1 // pred_check
      _
    $region175: #{inecn_forward.2} parent=1 // pred_check_branch
      %284 = sbr.rel (0) target = $region177
    $region176: #{inecn_forward.2} parent=1 // pred_region
      _
    $region177: #{inecn_forward.2} parent=1 // pred_fallthru
      _
    // Predicated region
    $region178: #{inecn_forward.2} parent=1 // pred_check
      _
    $region179: #{inecn_forward.2} parent=1 // pred_check_branch
      %286 = sbr.rel (0) target = $region181
    $region180: #{inecn_forward.2} parent=1 // pred_region
      %s288 = ssub.s32 16, 16
      %289 = vsyncadd [#allocation14], %s288
      %s291 = sshll.u32 [#allocation15], 4
      %s292 = int_to_ptr.vmem [resolvable:$true] %s291
      %294 = dma.hbm_to_vmem [thread:$0]  %s89, 16, %s292, [#allocation14]
    $region181: #{inecn_forward.2} parent=1 // pred_fallthru
      _
    // Predicated region
    $region182: #{inecn_forward.2} parent=1 // pred_check
      _
    $region183: #{inecn_forward.2} parent=1 // pred_check_branch
      %296 = sbr.rel (0) target = $region185
    $region184: #{inecn_forward.2} parent=1 // pred_region
      _
    $region185: #{inecn_forward.2} parent=1 // pred_fallthru
      _
    // Predicated region
    $region186: #{inecn_forward.2} parent=1 // pred_check
      _
    $region187: #{inecn_forward.2} parent=1 // pred_check_branch
      %298 = sbr.rel (0) target = $region189
    $region188: #{inecn_forward.2} parent=1 // pred_region
      %s300 = ssub.s32 16, 16
      %301 = vsyncadd [#allocation17], %s300
      %s303 = sshll.u32 [#allocation16], 4
      %s304 = int_to_ptr.vmem [resolvable:$true] %s303
      %306 = dma.hbm_to_vmem [thread:$0]  %s93, 16, %s304, [#allocation17]
    $region189: #{inecn_forward.2} parent=1 // pred_fallthru
      _
    // Predicated region
    $region190: #{inecn_forward.2} parent=1 // pred_check
      _
    $region191: #{inecn_forward.2} parent=1 // pred_check_branch
      %308 = sbr.rel (0) target = $region193
    $region192: #{inecn_forward.2} parent=1 // pred_region
      _
    $region193: #{inecn_forward.2} parent=1 // pred_fallthru
      _
    // Predicated region
    $region194: #{inecn_forward.2} parent=1 // pred_check
      _
    $region195: #{inecn_forward.2} parent=1 // pred_check_branch
      %310 = sbr.rel (0) target = $region197
    $region196: #{inecn_forward.2} parent=1 // pred_region
      _
    $region197: #{inecn_forward.2} parent=1 // pred_fallthru
      _
    // Predicated region
    $region198: #{inecn_forward.2} parent=1 // pred_check
      _
    $region199: #{inecn_forward.2} parent=1 // pred_check_branch
      %312 = sbr.rel (0) target = $region201
    $region200: #{inecn_forward.2} parent=1 // pred_region
      %s314 = ssub.s32 16, 16
      %315 = vsyncadd [#allocation17], %s314
      %s317 = sshll.u32 [#allocation18], 4
      %s318 = int_to_ptr.vmem [resolvable:$true] %s317
      %320 = dma.hbm_to_vmem [thread:$0]  %s99, 16, %s318, [#allocation17]
    $region201: #{inecn_forward.2} parent=1 // pred_fallthru
      _
    // Predicated region
    $region202: #{inecn_forward.2} parent=1 // pred_check
      _
    $region203: #{inecn_forward.2} parent=1 // pred_check_branch
      %322 = sbr.rel (0) target = $region205
    $region204: #{inecn_forward.2} parent=1 // pred_region
      _
    $region205: #{inecn_forward.2} parent=1 // pred_fallthru
      _
    // Predicated region
    $region206: #{inecn_forward.2} parent=1 // pred_check
      _
    $region207: #{inecn_forward.2} parent=1 // pred_check_branch
      %324 = sbr.rel (0) target = $region209
    $region208: #{inecn_forward.2} parent=1 // pred_region
      %s326 = ssub.s32 16, 16
      %327 = vsyncadd [#allocation20], %s326
      %s329 = sshll.u32 [#allocation19], 4
      %s330 = int_to_ptr.vmem [resolvable:$true] %s329
      %332 = dma.hbm_to_vmem [thread:$0]  %s103, 16, %s330, [#allocation20]
    $region209: #{inecn_forward.2} parent=1 // pred_fallthru
      _
    // Predicated region
    $region210: #{inecn_forward.2} parent=1 // pred_check
      _
    $region211: #{inecn_forward.2} parent=1 // pred_check_branch
      %334 = sbr.rel (0) target = $region213
    $region212: #{inecn_forward.2} parent=1 // pred_region
      _
    $region213: #{inecn_forward.2} parent=1 // pred_fallthru
      _
    // Predicated region
    $region214: #{inecn_forward.2} parent=1 // pred_check
      _
    $region215: #{inecn_forward.2} parent=1 // pred_check_branch
      %336 = sbr.rel (0) target = $region217
    $region216: #{inecn_forward.2} parent=1 // pred_region
      _
    $region217: #{inecn_forward.2} parent=1 // pred_fallthru
      _
    // Predicated region
    $region218: #{inecn_forward.2} parent=1 // pred_check
      _
    $region219: #{inecn_forward.2} parent=1 // pred_check_branch
      %338 = sbr.rel (0) target = $region221
    $region220: #{inecn_forward.2} parent=1 // pred_region
      %s340 = ssub.s32 16, 16
      %341 = vsyncadd [#allocation20], %s340
      %s343 = sshll.u32 [#allocation21], 4
      %s344 = int_to_ptr.vmem [resolvable:$true] %s343
      %346 = dma.hbm_to_vmem [thread:$0]  %s109, 16, %s344, [#allocation20]
    $region221: #{inecn_forward.2} parent=1 // pred_fallthru
      _
    // Predicated region
    $region222: #{inecn_forward.2} parent=1 // pred_check
      _
    $region223: #{inecn_forward.2} parent=1 // pred_check_branch
      %348 = sbr.rel (0) target = $region225
    $region224: #{inecn_forward.2} parent=1 // pred_region
      _
    $region225: #{inecn_forward.2} parent=1 // pred_fallthru
      _
    // Predicated region
    $region226: #{inecn_forward.2} parent=1 // pred_check
      _
    $region227: #{inecn_forward.2} parent=1 // pred_check_branch
      %350 = sbr.rel (0) target = $region229
    $region228: #{inecn_forward.2} parent=1 // pred_region
      %s352 = ssub.s32 16, 16
      %353 = vsyncadd [#allocation23], %s352
      %s355 = sshll.u32 [#allocation22], 4
      %s356 = int_to_ptr.vmem [resolvable:$true] %s355
      %358 = dma.hbm_to_vmem [thread:$0]  %s113, 16, %s356, [#allocation23]
    $region229: #{inecn_forward.2} parent=1 // pred_fallthru
      _
    // Predicated region
    $region230: #{inecn_forward.2} parent=1 // pred_check
      _
    $region231: #{inecn_forward.2} parent=1 // pred_check_branch
      %360 = sbr.rel (0) target = $region233
    $region232: #{inecn_forward.2} parent=1 // pred_region
      %361 = dma.done [#allocation3], 16
    $region233: #{inecn_forward.2} parent=1 // pred_fallthru
      _
    // Predicated region
    $region234: #{inecn_forward.2} parent=1 // pred_check
      _
    $region235: #{inecn_forward.2} parent=1 // pred_check_branch
      %363 = sbr.rel (0) target = $region237
    $region236: #{inecn_forward.2} parent=1 // pred_region
      %364 = dma.done [#allocation5], 16
    $region237: #{inecn_forward.2} parent=1 // pred_fallthru
      _
    // Predicated region
    $region238: #{inecn_forward.2} parent=1 // pred_check
      _
    $region239: #{inecn_forward.2} parent=1 // pred_check_branch
      %366 = sbr.rel (0) target = $region241
    $region240: #{inecn_forward.2} parent=1 // pred_region
      %367 = dma.done [#allocation5], 16
    $region241: #{inecn_forward.2} parent=1 // pred_fallthru
      _
    // Predicated region
    $region242: #{inecn_forward.2} parent=1 // pred_check
      _
    $region243: #{inecn_forward.2} parent=1 // pred_check_branch
      %369 = sbr.rel (0) target = $region245
    $region244: #{inecn_forward.2} parent=1 // pred_region
      %370 = dma.done [#allocation8], 16
    $region245: #{inecn_forward.2} parent=1 // pred_fallthru
      _
    // Predicated region
    $region246: #{inecn_forward.2} parent=1 // pred_check
      _
    $region247: #{inecn_forward.2} parent=1 // pred_check_branch
      %372 = sbr.rel (0) target = $region249
    $region248: #{inecn_forward.2} parent=1 // pred_region
      %373 = dma.done [#allocation8], 16
    $region249: #{inecn_forward.2} parent=1 // pred_fallthru
      _
    // Predicated region
    $region250: #{inecn_forward.2} parent=1 // pred_check
      _
    $region251: #{inecn_forward.2} parent=1 // pred_check_branch
      %375 = sbr.rel (0) target = $region253
    $region252: #{inecn_forward.2} parent=1 // pred_region
      %376 = dma.done [#allocation11], 16
    $region253: #{inecn_forward.2} parent=1 // pred_fallthru
      _
    // Predicated region
    $region254: #{inecn_forward.2} parent=1 // pred_check
      _
    $region255: #{inecn_forward.2} parent=1 // pred_check_branch
      %378 = sbr.rel (0) target = $region257
    $region256: #{inecn_forward.2} parent=1 // pred_region
      %379 = dma.done [#allocation11], 16
    $region257: #{inecn_forward.2} parent=1 // pred_fallthru
      _
    // Predicated region
    $region258: #{inecn_forward.2} parent=1 // pred_check
      _
    $region259: #{inecn_forward.2} parent=1 // pred_check_branch
      %381 = sbr.rel (0) target = $region261
    $region260: #{inecn_forward.2} parent=1 // pred_region
      %382 = dma.done [#allocation14], 16
    $region261: #{inecn_forward.2} parent=1 // pred_fallthru
      _
    // Predicated region
    $region262: #{inecn_forward.2} parent=1 // pred_check
      _
    $region263: #{inecn_forward.2} parent=1 // pred_check_branch
      %384 = sbr.rel (0) target = $region265
    $region264: #{inecn_forward.2} parent=1 // pred_region
      %385 = dma.done [#allocation14], 16
    $region265: #{inecn_forward.2} parent=1 // pred_fallthru
      _
    // Predicated region
    $region266: #{inecn_forward.2} parent=1 // pred_check
      _
    $region267: #{inecn_forward.2} parent=1 // pred_check_branch
      %387 = sbr.rel (0) target = $region269
    $region268: #{inecn_forward.2} parent=1 // pred_region
      %388 = dma.done [#allocation17], 16
    $region269: #{inecn_forward.2} parent=1 // pred_fallthru
      _
    // Predicated region
    $region270: #{inecn_forward.2} parent=1 // pred_check
      _
    $region271: #{inecn_forward.2} parent=1 // pred_check_branch
      %390 = sbr.rel (0) target = $region273
    $region272: #{inecn_forward.2} parent=1 // pred_region
      %391 = dma.done [#allocation17], 16
    $region273: #{inecn_forward.2} parent=1 // pred_fallthru
      _
    // Predicated region
    $region274: #{inecn_forward.2} parent=1 // pred_check
      _
    $region275: #{inecn_forward.2} parent=1 // pred_check_branch
      %393 = sbr.rel (0) target = $region277
    $region276: #{inecn_forward.2} parent=1 // pred_region
      %394 = dma.done [#allocation20], 16
    $region277: #{inecn_forward.2} parent=1 // pred_fallthru
      _
    // Predicated region
    $region278: #{inecn_forward.2} parent=1 // pred_check
      _
    $region279: #{inecn_forward.2} parent=1 // pred_check_branch
      %396 = sbr.rel (0) target = $region281
    $region280: #{inecn_forward.2} parent=1 // pred_region
      %397 = dma.done [#allocation20], 16
    $region281: #{inecn_forward.2} parent=1 // pred_fallthru
      _
    // Predicated region
    $region282: #{inecn_forward.2} parent=1 // pred_check
      _
    $region283: #{inecn_forward.2} parent=1 // pred_check_branch
      %399 = sbr.rel (0) target = $region285
    $region284: #{inecn_forward.2} parent=1 // pred_region
      %400 = dma.done [#allocation23], 16
    $region285: #{inecn_forward.2} parent=1 // pred_fallthru
      _
    %v401 = vld [vmem:[%s11] sm:$0xff]
    %v402 = vld [vmem:[%s11 + $0x8] sm:$0xff]
    %v403 = vld [vmem:[%s11 + $0x10] sm:$0xff]
    %v404 = vld [vmem:[%s11 + $0x18] sm:$0xff]
    %v405 = vld [vmem:[%s11 + $0x20] sm:$0xff]
    %v406 = vld [vmem:[%s11 + $0x28] sm:$0xff]
    %v407 = vld [vmem:[%s11 + $0x30] sm:$0x3]
    %v408 = vld [vmem:[%s13] sm:$0x1]
    %v409 = vld [vmem:[%s15] sm:$0xff]
    %v410 = vld [vmem:[%s15 + $0x8] sm:$0xff]
    %v411 = vld [vmem:[%s15 + $0x10] sm:$0xff]
    %v412 = vld [vmem:[%s15 + $0x18] sm:$0xff]
    %v413 = vld [vmem:[%s15 + $0x20] sm:$0xff]
    %v414 = vld [vmem:[%s15 + $0x28] sm:$0xff]
    %v415 = vld [vmem:[%s15 + $0x30] sm:$0x3]
    %v416 = vld [vmem:[%s17] sm:$0x1]
    %v417 = vld [vmem:[%s19] sm:$0x3f]
    %v418 = vld [vmem:[%s21] sm:$0x7]
    %v419 = vld [vmem:[%s23] sm:$0x1]
    %v420 = vld [vmem:[%s25] sm:$0xff]
    %v421 = vld [vmem:[%s25 + $0x8] sm:$0xff]
    %v422 = vld [vmem:[%s25 + $0x10] sm:$0xff]
    %v423 = vld [vmem:[%s25 + $0x18] sm:$0xff]
    %v424 = vld [vmem:[%s25 + $0x20] sm:$0xff]
    %v425 = vld [vmem:[%s25 + $0x28] sm:$0xff]
    %v426 = vld [vmem:[%s25 + $0x30] sm:$0x3]
    %v427 = vld [vmem:[%s27] sm:$0x1]
    %v428 = vld [vmem:[%s29] sm:$0xff]
    %v429 = vld [vmem:[%s29 + $0x8] sm:$0xff]
    %v430 = vld [vmem:[%s29 + $0x10] sm:$0xff]
    %v431 = vld [vmem:[%s29 + $0x18] sm:$0xff]
    %v432 = vld [vmem:[%s29 + $0x20] sm:$0xff]
    %v433 = vld [vmem:[%s29 + $0x28] sm:$0xff]
    %v434 = vld [vmem:[%s29 + $0x30] sm:$0x3]
    %v435 = vld [vmem:[%s31] sm:$0x1]
    %v436 = vld [vmem:[%s33] sm:$0xff]
    %v437 = vld [vmem:[%s33 + $0x8] sm:$0xff]
    %v438 = vld [vmem:[%s33 + $0x10] sm:$0xff]
    %v439 = vld [vmem:[%s33 + $0x18] sm:$0xff]
    %v440 = vld [vmem:[%s33 + $0x20] sm:$0xff]
    %v441 = vld [vmem:[%s33 + $0x28] sm:$0xff]
    %v442 = vld [vmem:[%s33 + $0x30] sm:$0x3]
    %v443 = vld [vmem:[%s35] sm:$0x1]
    %v444 = vld [vmem:[%s37] sm:$0x3f]
    %v445 = vld [vmem:[%s39] sm:$0x7]
    %v446 = vld [vmem:[#allocation2] sm:$0x1]
    %v447 = vld [vmem:[%s43] sm:$0xff]
    %v448 = vld [vmem:[%s43 + $0x8] sm:$0xff]
    %v449 = vld [vmem:[%s43 + $0x10] sm:$0xff]
    %v450 = vld [vmem:[%s43 + $0x18] sm:$0xff]
    %v451 = vld [vmem:[%s43 + $0x20] sm:$0xff]
    %v452 = vld [vmem:[%s43 + $0x28] sm:$0xff]
    %v453 = vld [vmem:[%s43 + $0x30] sm:$0x3]
    %v454 = vld [vmem:[#allocation4] sm:$0x1]
    %v455 = vld [vmem:[%s47] sm:$0xf]
    %v456 = vld [vmem:[%s49] sm:$0xf]
    %v457 = vld [vmem:[%s51] sm:$0x7]
    %v458 = vld [vmem:[#allocation6] sm:$0x1]
    %v459 = vld [vmem:[%s55] sm:$0x1f]
    %v460 = vld [vmem:[%s57] sm:$0x1f]
    %v461 = vld [vmem:[%s59] sm:$0x1f]
    %v462 = vld [vmem:[#allocation7] sm:$0x1]
    %v463 = vld [vmem:[%s63] sm:$0xf]
    %v464 = vld [vmem:[%s65] sm:$0xf]
    %v465 = vld [vmem:[%s67] sm:$0x7]
    %v466 = vld [vmem:[#allocation9] sm:$0x1]
    %v467 = vld [vmem:[%s71] sm:$0xff]
    %v468 = vld [vmem:[%s71 + $0x8] sm:$0xff]
    %v469 = vld [vmem:[%s71 + $0x10] sm:$0xff]
    %v470 = vld [vmem:[%s71 + $0x18] sm:$0xff]
    %v471 = vld [vmem:[%s71 + $0x20] sm:$0xff]
    %v472 = vld [vmem:[%s71 + $0x28] sm:$0xff]
    %v473 = vld [vmem:[%s71 + $0x30] sm:$0x3]
    %v474 = vld [vmem:[#allocation10] sm:$0x1]
    %v475 = vld [vmem:[%s75] sm:$0xff]
    %v476 = vld [vmem:[%s75 + $0x8] sm:$0xff]
    %v477 = vld [vmem:[%s75 + $0x10] sm:$0xff]
    %v478 = vld [vmem:[%s75 + $0x18] sm:$0xff]
    %v479 = vld [vmem:[%s75 + $0x20] sm:$0xff]
    %v480 = vld [vmem:[%s75 + $0x28] sm:$0xff]
    %v481 = vld [vmem:[%s75 + $0x30] sm:$0x3]
    %v482 = vld [vmem:[#allocation12] sm:$0x1]
    %v483 = vld [vmem:[%s79] sm:$0x1f]
    %v484 = vld [vmem:[%s81] sm:$0x1f]
    %v485 = vld [vmem:[%s83] sm:$0x1f]
    %v486 = vld [vmem:[#allocation13] sm:$0x1]
    %v487 = vld [vmem:[%s87] sm:$0xff]
    %v488 = vld [vmem:[%s87 + $0x8] sm:$0xff]
    %v489 = vld [vmem:[%s87 + $0x10] sm:$0xff]
    %v490 = vld [vmem:[%s87 + $0x18] sm:$0xff]
    %v491 = vld [vmem:[%s87 + $0x20] sm:$0xff]
    %v492 = vld [vmem:[%s87 + $0x28] sm:$0xff]
    %v493 = vld [vmem:[%s87 + $0x30] sm:$0x3]
    %v494 = vld [vmem:[#allocation15] sm:$0x1]
    %v495 = vld [vmem:[%s91] sm:$0xff]
    %v496 = vld [vmem:[%s91 + $0x8] sm:$0xff]
    %v497 = vld [vmem:[%s91 + $0x10] sm:$0xff]
    %v498 = vld [vmem:[%s91 + $0x18] sm:$0xff]
    %v499 = vld [vmem:[%s91 + $0x20] sm:$0xff]
    %v500 = vld [vmem:[%s91 + $0x28] sm:$0xff]
    %v501 = vld [vmem:[%s91 + $0x30] sm:$0x3]
    %v502 = vld [vmem:[#allocation16] sm:$0x1]
    %v503 = vld [vmem:[%s95] sm:$0x3f]
    %v504 = vld [vmem:[%s97] sm:$0xf]
    %v505 = vld [vmem:[#allocation18] sm:$0x1]
    %v506 = vld [vmem:[%s101] sm:$0xff]
    %v507 = vld [vmem:[%s101 + $0x8] sm:$0xff]
    %v508 = vld [vmem:[%s101 + $0x10] sm:$0xff]
    %v509 = vld [vmem:[%s101 + $0x18] sm:$0xff]
    %v510 = vld [vmem:[%s101 + $0x20] sm:$0xff]
    %v511 = vld [vmem:[%s101 + $0x28] sm:$0xff]
    %v512 = vld [vmem:[%s101 + $0x30] sm:$0x3]
    %v513 = vld [vmem:[#allocation19] sm:$0x1]
    %v514 = vld [vmem:[%s105] sm:$0x3f]
    %v515 = vld [vmem:[%s107] sm:$0xf]
    %v516 = vld [vmem:[#allocation21] sm:$0x1]
    %v517 = vld [vmem:[%s111] sm:$0xff]
    %v518 = vld [vmem:[%s111 + $0x8] sm:$0xff]
    %v519 = vld [vmem:[%s111 + $0x10] sm:$0xff]
    %v520 = vld [vmem:[%s111 + $0x18] sm:$0xff]
    %v521 = vld [vmem:[%s111 + $0x20] sm:$0xff]
    %v522 = vld [vmem:[%s111 + $0x28] sm:$0xff]
    %v523 = vld [vmem:[%s111 + $0x30] sm:$0x3]
    %v524 = vld [vmem:[#allocation22] sm:$0x1]
    %v525 = vld [vmem:[%s1] sm:$0xff]
    %v526 = vld [vmem:[%s1 + $0x8] sm:$0xf]
    %v527 = vld [vmem:[%s3] sm:$0xff]
    %v528 = vld [vmem:[%s3 + $0x8] sm:$0x3]
    %v529 = vld [vmem:[%s5] sm:$0xff]
    %v530 = vld [vmem:[%s5 + $0x8] sm:$0xf]
    %v531 = vld [vmem:[%s7] sm:$0xff]
    %v532 = vld [vmem:[%s7 + $0x8] sm:$0x3]
    %v533 = vld [vmem:[%s9] sm:$0xff]
    %v534 = vld [vmem:[%s9 + $0x8] sm:$0xf]
    %vm535 = vcmask 80896
    %v537 = vsel %vm535, %v525, 0
    %v540 = vsel %vm535, %v526, 0
    %vm542 = vcmask 1041408
    %v544 = vsel %vm542, %v532, 0
    %546 = vmatprep.subr.mxu0 0.0
    %547 = vmatpush1.msra.mxu0 %v531
    %548 = vmatprep.subr.mxu0 0.0
    %549 = vmatpush1.msra.mxu0 %v544
    %550 = vmatprep.subr.mxu0 0.0
    %551 = vmatpush1.msra.mxu0 0.0
    %552 = vmatprep.subr.mxu0 0.0
    %553 = vmatpush1.msra.mxu0 0.0
    %554 = vmatprep.subr.mxu0 0.0
    %555 = vmatpush1.msra.mxu0 0.0
    %556 = vmatprep.subr.mxu0 0.0
    %557 = vmatpush1.msra.mxu0 0.0
    %558 = vmatprep.subr.mxu0 0.0
    %559 = vmatpush1.msra.mxu0 0.0
    %560 = vmatprep.subr.mxu0 0.0
    %561 = vmatpush1.msra.mxu0 0.0
    %562 = vmatprep.subr.mxu0 0.0
    %563 = vmatpush1.msra.mxu0 0.0
    %564 = vmatprep.subr.mxu0 0.0
    %565 = vmatpush1.msra.mxu0 0.0
    %566 = vmatprep.subr.mxu0 0.0
    %567 = vmatpush1.msra.mxu0 0.0
    %568 = vmatprep.subr.mxu0 0.0
    %569 = vmatpush1.msra.mxu0 0.0
    %570 = vmatprep.subr.mxu0 0.0
    %571 = vmatpush1.msra.mxu0 0.0
    %572 = vmatprep.subr.mxu0 0.0
    %573 = vmatpush1.msra.mxu0 0.0
    %574 = vmatprep.subr.mxu0 0.0
    %575 = vmatpush1.msra.mxu0 0.0
    %576 = vmatprep.subr.mxu0 0.0
    %577 = vmatpush1.msra.mxu0 0.0
    %578 = vmatprep.subr.mxu0 0.0
    %579 = vmatpush1.msra.mxu0 0.0
    %580 = vmatprep.subr.mxu0 0.0
    %581 = vmatpush1.msra.mxu0 0.0
    %582 = vmatprep.subr.mxu0 0.0
    %583 = vmatpush1.msra.mxu0 0.0
    %584 = vmatprep.subr.mxu0 0.0
    %585 = vmatpush1.msra.mxu0 0.0
    %586 = vmatprep.subr.mxu0 0.0
    %587 = vmatpush1.msra.mxu0 0.0
    %588 = vmatprep.subr.mxu0 0.0
    %589 = vmatpush1.msra.mxu0 0.0
    %590 = vmatprep.subr.mxu0 0.0
    %591 = vmatpush1.msra.mxu0 0.0
    %592 = vmatprep.subr.mxu0 0.0
    %593 = vmatpush1.msra.mxu0 0.0
    %594 = vmatprep.subr.mxu0 0.0
    %595 = vmatpush1.msra.mxu0 0.0
    %596 = vmatprep.subr.mxu0 0.0
    %597 = vmatpush1.msra.mxu0 0.0
    %598 = vmatprep.subr.mxu0 0.0
    %599 = vmatpush1.msra.mxu0 0.0
    %600 = vmatprep.subr.mxu0 0.0
    %601 = vmatpush1.msra.mxu0 0.0
    %602 = vmatprep.subr.mxu0 0.0
    %603 = vmatpush1.msra.mxu0 0.0
    %604 = vmatprep.subr.mxu0 0.0
    %605 = vmatpush1.msra.mxu0 0.0
    %606 = vmatprep.subr.mxu0 0.0
    %607 = vmatpush1.msra.mxu0 0.0
    %608 = vmatprep.subr.mxu0 0.0
    %609 = vmatpush1.msra.mxu0 0.0
    %610 = vmatprep.mubr.f32.mxu0 0.0
    %611 = vmatmul.mubr.f32.gmra.mrb[0].mxu0 %v537
    %v612 = vpop.f32.mrb[0].mxu0
    %v613 = vadd.f32 0.0, %v612
    %v614 = vpop.f32.mrb[0].mxu0
    %615 = vmatprep.mubr.f32.mxu0 0.0
    %616 = vmatmul.mubr.f32.gmra.mrb[0].mxu0 %v540
    %v617 = vpop.f32.mrb[0].mxu0
    %v618 = vadd.f32 0.0, %v617
    %v619 = vpop.f32.mrb[0].mxu0
    %620 = vdwg.mxu0
    %v622 = vsel %vm535, %v529, 0
    %v625 = vsel %vm535, %v530, 0
    %627 = vmatprep.subr.mxu0 0.0
    %628 = vmatpush1.msra.mxu0 %v531
    %629 = vmatprep.subr.mxu0 0.0
    %630 = vmatpush1.msra.mxu0 %v544
    %631 = vmatprep.subr.mxu0 0.0
    %632 = vmatpush1.msra.mxu0 0.0
    %633 = vmatprep.subr.mxu0 0.0
    %634 = vmatpush1.msra.mxu0 0.0
    %635 = vmatprep.subr.mxu0 0.0
    %636 = vmatpush1.msra.mxu0 0.0
    %637 = vmatprep.subr.mxu0 0.0
    %638 = vmatpush1.msra.mxu0 0.0
    %639 = vmatprep.subr.mxu0 0.0
    %640 = vmatpush1.msra.mxu0 0.0
    %641 = vmatprep.subr.mxu0 0.0
    %642 = vmatpush1.msra.mxu0 0.0
    %643 = vmatprep.subr.mxu0 0.0
    %644 = vmatpush1.msra.mxu0 0.0
    %645 = vmatprep.subr.mxu0 0.0
    %646 = vmatpush1.msra.mxu0 0.0
    %647 = vmatprep.subr.mxu0 0.0
    %648 = vmatpush1.msra.mxu0 0.0
    %649 = vmatprep.subr.mxu0 0.0
    %650 = vmatpush1.msra.mxu0 0.0
    %651 = vmatprep.subr.mxu0 0.0
    %652 = vmatpush1.msra.mxu0 0.0
    %653 = vmatprep.subr.mxu0 0.0
    %654 = vmatpush1.msra.mxu0 0.0
    %655 = vmatprep.subr.mxu0 0.0
    %656 = vmatpush1.msra.mxu0 0.0
    %657 = vmatprep.subr.mxu0 0.0
    %658 = vmatpush1.msra.mxu0 0.0
    %659 = vmatprep.subr.mxu0 0.0
    %660 = vmatpush1.msra.mxu0 0.0
    %661 = vmatprep.subr.mxu0 0.0
    %662 = vmatpush1.msra.mxu0 0.0
    %663 = vmatprep.subr.mxu0 0.0
    %664 = vmatpush1.msra.mxu0 0.0
    %665 = vmatprep.subr.mxu0 0.0
    %666 = vmatpush1.msra.mxu0 0.0
    %667 = vmatprep.subr.mxu0 0.0
    %668 = vmatpush1.msra.mxu0 0.0
    %669 = vmatprep.subr.mxu0 0.0
    %670 = vmatpush1.msra.mxu0 0.0
    %671 = vmatprep.subr.mxu0 0.0
    %672 = vmatpush1.msra.mxu0 0.0
    %673 = vmatprep.subr.mxu0 0.0
    %674 = vmatpush1.msra.mxu0 0.0
    %675 = vmatprep.subr.mxu0 0.0
    %676 = vmatpush1.msra.mxu0 0.0
    %677 = vmatprep.subr.mxu0 0.0
    %678 = vmatpush1.msra.mxu0 0.0
    %679 = vmatprep.subr.mxu0 0.0
    %680 = vmatpush1.msra.mxu0 0.0
    %681 = vmatprep.subr.mxu0 0.0
    %682 = vmatpush1.msra.mxu0 0.0
    %683 = vmatprep.subr.mxu0 0.0
    %684 = vmatpush1.msra.mxu0 0.0
    %685 = vmatprep.subr.mxu0 0.0
    %686 = vmatpush1.msra.mxu0 0.0
    %687 = vmatprep.subr.mxu0 0.0
    %688 = vmatpush1.msra.mxu0 0.0
    %689 = vmatprep.subr.mxu0 0.0
    %690 = vmatpush1.msra.mxu0 0.0
    %691 = vmatprep.mubr.f32.mxu0 0.0
    %692 = vmatmul.mubr.f32.gmra.mrb[0].mxu0 %v622
    %v693 = vpop.f32.mrb[0].mxu0
    %v694 = vadd.f32 0.0, %v693
    %v695 = vpop.f32.mrb[0].mxu0
    %696 = vmatprep.mubr.f32.mxu0 0.0
    %697 = vmatmul.mubr.f32.gmra.mrb[0].mxu0 %v625
    %v698 = vpop.f32.mrb[0].mxu0
    %v699 = vadd.f32 0.0, %v698
    %v700 = vpop.f32.mrb[0].mxu0
    %701 = vdwg.mxu0
    %vm702 = vcmask 31744
    %v704 = vsel %vm702, %v694, 0
    %v707 = vsel %vm702, %v699, 0
    %vm709 = vcmask 1043456
    %v711 = vsel %vm709, %v464, 0
    %713 = vmatprep.subr.mxu0 0.0
    %714 = vmatpush1.msra.mxu0 %v711
    %715 = vmatprep.subr.mxu0 0.0
    %716 = vmatpush1.msra.mxu0 0.0
    %717 = vmatprep.subr.mxu0 0.0
    %718 = vmatpush1.msra.mxu0 0.0
    %719 = vmatprep.subr.mxu0 0.0
    %720 = vmatpush1.msra.mxu0 0.0
    %721 = vmatprep.subr.mxu0 0.0
    %722 = vmatpush1.msra.mxu0 0.0
    %723 = vmatprep.subr.mxu0 0.0
    %724 = vmatpush1.msra.mxu0 0.0
    %725 = vmatprep.subr.mxu0 0.0
    %726 = vmatpush1.msra.mxu0 0.0
    %727 = vmatprep.subr.mxu0 0.0
    %728 = vmatpush1.msra.mxu0 0.0
    %729 = vmatprep.subr.mxu0 0.0
    %730 = vmatpush1.msra.mxu0 0.0
    %731 = vmatprep.subr.mxu0 0.0
    %732 = vmatpush1.msra.mxu0 0.0
    %733 = vmatprep.subr.mxu0 0.0
    %734 = vmatpush1.msra.mxu0 0.0
    %735 = vmatprep.subr.mxu0 0.0
    %736 = vmatpush1.msra.mxu0 0.0
    %737 = vmatprep.subr.mxu0 0.0
    %738 = vmatpush1.msra.mxu0 0.0
    %739 = vmatprep.subr.mxu0 0.0
    %740 = vmatpush1.msra.mxu0 0.0
    %741 = vmatprep.subr.mxu0 0.0
    %742 = vmatpush1.msra.mxu0 0.0
    %743 = vmatprep.subr.mxu0 0.0
    %744 = vmatpush1.msra.mxu0 0.0
    %745 = vmatprep.subr.mxu0 0.0
    %746 = vmatpush1.msra.mxu0 0.0
    %747 = vmatprep.subr.mxu0 0.0
    %748 = vmatpush1.msra.mxu0 0.0
    %749 = vmatprep.subr.mxu0 0.0
    %750 = vmatpush1.msra.mxu0 0.0
    %751 = vmatprep.subr.mxu0 0.0
    %752 = vmatpush1.msra.mxu0 0.0
    %753 = vmatprep.subr.mxu0 0.0
    %754 = vmatpush1.msra.mxu0 0.0
    %755 = vmatprep.subr.mxu0 0.0
    %756 = vmatpush1.msra.mxu0 0.0
    %757 = vmatprep.subr.mxu0 0.0
    %758 = vmatpush1.msra.mxu0 0.0
    %759 = vmatprep.subr.mxu0 0.0
    %760 = vmatpush1.msra.mxu0 0.0
    %761 = vmatprep.subr.mxu0 0.0
    %762 = vmatpush1.msra.mxu0 0.0
    %763 = vmatprep.subr.mxu0 0.0
    %764 = vmatpush1.msra.mxu0 0.0
    %765 = vmatprep.subr.mxu0 0.0
    %766 = vmatpush1.msra.mxu0 0.0
    %767 = vmatprep.subr.mxu0 0.0
    %768 = vmatpush1.msra.mxu0 0.0
    %769 = vmatprep.subr.mxu0 0.0
    %770 = vmatpush1.msra.mxu0 0.0
    %771 = vmatprep.subr.mxu0 0.0
    %772 = vmatpush1.msra.mxu0 0.0
    %773 = vmatprep.subr.mxu0 0.0
    %774 = vmatpush1.msra.mxu0 0.0
    %775 = vmatprep.subr.mxu0 0.0
    %776 = vmatpush1.msra.mxu0 0.0
    %777 = vmatprep.mubr.f32.mxu0 0.0
    %778 = vmatmul.mubr.f32.gmra.mrb[0].mxu0 %v704
    %v779 = vpop.f32.mrb[0].mxu0
    %v780 = vadd.f32 0.0, %v779
    %v781 = vpop.f32.mrb[0].mxu0
    %782 = vmatprep.mubr.f32.mxu0 0.0
    %783 = vmatmul.mubr.f32.gmra.mrb[0].mxu0 %v707
    %v784 = vpop.f32.mrb[0].mxu0
    %v785 = vadd.f32 0.0, %v784
    %v786 = vpop.f32.mrb[0].mxu0
    %787 = vdwg.mxu0
    %v789 = vsel %vm702, %v613, 0
    %v792 = vsel %vm702, %v618, 0
    %v795 = vsel %vm709, %v463, 0
    %797 = vmatprep.subr.mxu0 0.0
    %798 = vmatpush1.msra.mxu0 %v795
    %799 = vmatprep.subr.mxu0 0.0
    %800 = vmatpush1.msra.mxu0 0.0
    %801 = vmatprep.subr.mxu0 0.0
    %802 = vmatpush1.msra.mxu0 0.0
    %803 = vmatprep.subr.mxu0 0.0
    %804 = vmatpush1.msra.mxu0 0.0
    %805 = vmatprep.subr.mxu0 0.0
    %806 = vmatpush1.msra.mxu0 0.0
    %807 = vmatprep.subr.mxu0 0.0
    %808 = vmatpush1.msra.mxu0 0.0
    %809 = vmatprep.subr.mxu0 0.0
    %810 = vmatpush1.msra.mxu0 0.0
    %811 = vmatprep.subr.mxu0 0.0
    %812 = vmatpush1.msra.mxu0 0.0
    %813 = vmatprep.subr.mxu0 0.0
    %814 = vmatpush1.msra.mxu0 0.0
    %815 = vmatprep.subr.mxu0 0.0
    %816 = vmatpush1.msra.mxu0 0.0
    %817 = vmatprep.subr.mxu0 0.0
    %818 = vmatpush1.msra.mxu0 0.0
    %819 = vmatprep.subr.mxu0 0.0
    %820 = vmatpush1.msra.mxu0 0.0
    %821 = vmatprep.subr.mxu0 0.0
    %822 = vmatpush1.msra.mxu0 0.0
    %823 = vmatprep.subr.mxu0 0.0
    %824 = vmatpush1.msra.mxu0 0.0
    %825 = vmatprep.subr.mxu0 0.0
    %826 = vmatpush1.msra.mxu0 0.0
    %827 = vmatprep.subr.mxu0 0.0
    %828 = vmatpush1.msra.mxu0 0.0
    %829 = vmatprep.subr.mxu0 0.0
    %830 = vmatpush1.msra.mxu0 0.0
    %831 = vmatprep.subr.mxu0 0.0
    %832 = vmatpush1.msra.mxu0 0.0
    %833 = vmatprep.subr.mxu0 0.0
    %834 = vmatpush1.msra.mxu0 0.0
    %835 = vmatprep.subr.mxu0 0.0
    %836 = vmatpush1.msra.mxu0 0.0
    %837 = vmatprep.subr.mxu0 0.0
    %838 = vmatpush1.msra.mxu0 0.0
    %839 = vmatprep.subr.mxu0 0.0
    %840 = vmatpush1.msra.mxu0 0.0
    %841 = vmatprep.subr.mxu0 0.0
    %842 = vmatpush1.msra.mxu0 0.0
    %843 = vmatprep.subr.mxu0 0.0
    %844 = vmatpush1.msra.mxu0 0.0
    %845 = vmatprep.subr.mxu0 0.0
    %846 = vmatpush1.msra.mxu0 0.0
    %847 = vmatprep.subr.mxu0 0.0
    %848 = vmatpush1.msra.mxu0 0.0
    %849 = vmatprep.subr.mxu0 0.0
    %850 = vmatpush1.msra.mxu0 0.0
    %851 = vmatprep.subr.mxu0 0.0
    %852 = vmatpush1.msra.mxu0 0.0
    %853 = vmatprep.subr.mxu0 0.0
    %854 = vmatpush1.msra.mxu0 0.0
    %855 = vmatprep.subr.mxu0 0.0
    %856 = vmatpush1.msra.mxu0 0.0
    %857 = vmatprep.subr.mxu0 0.0
    %858 = vmatpush1.msra.mxu0 0.0
    %859 = vmatprep.subr.mxu0 0.0
    %860 = vmatpush1.msra.mxu0 0.0
    %861 = vmatprep.mubr.f32.mxu0 0.0
    %862 = vmatmul.mubr.f32.gmra.mrb[0].mxu0 %v789
    %v863 = vpop.f32.mrb[0].mxu0
    %v864 = vadd.f32 %v780, %v863
    %v865 = vpop.f32.mrb[0].mxu0
    %866 = vmatprep.mubr.f32.mxu0 0.0
    %867 = vmatmul.mubr.f32.gmra.mrb[0].mxu0 %v792
    %v868 = vpop.f32.mrb[0].mxu0
    %v869 = vadd.f32 %v785, %v868
    %v870 = vpop.f32.mrb[0].mxu0
    %871 = vdwg.mxu0
    %vm872 = vcmask 23552
    %v874 = vsel %vm872, %v533, 0
    %v877 = vsel %vm872, %v534, 0
    %vm879 = vcmask 1042432
    %v881 = vsel %vm879, %v465, 0
    %883 = vmatprep.subr.mxu0 0.0
    %884 = vmatpush1.msra.mxu0 %v881
    %885 = vmatprep.subr.mxu0 0.0
    %886 = vmatpush1.msra.mxu0 0.0
    %887 = vmatprep.subr.mxu0 0.0
    %888 = vmatpush1.msra.mxu0 0.0
    %889 = vmatprep.subr.mxu0 0.0
    %890 = vmatpush1.msra.mxu0 0.0
    %891 = vmatprep.subr.mxu0 0.0
    %892 = vmatpush1.msra.mxu0 0.0
    %893 = vmatprep.subr.mxu0 0.0
    %894 = vmatpush1.msra.mxu0 0.0
    %895 = vmatprep.subr.mxu0 0.0
    %896 = vmatpush1.msra.mxu0 0.0
    %897 = vmatprep.subr.mxu0 0.0
    %898 = vmatpush1.msra.mxu0 0.0
    %899 = vmatprep.subr.mxu0 0.0
    %900 = vmatpush1.msra.mxu0 0.0
    %901 = vmatprep.subr.mxu0 0.0
    %902 = vmatpush1.msra.mxu0 0.0
    %903 = vmatprep.subr.mxu0 0.0
    %904 = vmatpush1.msra.mxu0 0.0
    %905 = vmatprep.subr.mxu0 0.0
    %906 = vmatpush1.msra.mxu0 0.0
    %907 = vmatprep.subr.mxu0 0.0
    %908 = vmatpush1.msra.mxu0 0.0
    %909 = vmatprep.subr.mxu0 0.0
    %910 = vmatpush1.msra.mxu0 0.0
    %911 = vmatprep.subr.mxu0 0.0
    %912 = vmatpush1.msra.mxu0 0.0
    %913 = vmatprep.subr.mxu0 0.0
    %914 = vmatpush1.msra.mxu0 0.0
    %915 = vmatprep.subr.mxu0 0.0
    %916 = vmatpush1.msra.mxu0 0.0
    %917 = vmatprep.subr.mxu0 0.0
    %918 = vmatpush1.msra.mxu0 0.0
    %919 = vmatprep.subr.mxu0 0.0
    %920 = vmatpush1.msra.mxu0 0.0
    %921 = vmatprep.subr.mxu0 0.0
    %922 = vmatpush1.msra.mxu0 0.0
    %923 = vmatprep.subr.mxu0 0.0
    %924 = vmatpush1.msra.mxu0 0.0
    %925 = vmatprep.subr.mxu0 0.0
    %926 = vmatpush1.msra.mxu0 0.0
    %927 = vmatprep.subr.mxu0 0.0
    %928 = vmatpush1.msra.mxu0 0.0
    %929 = vmatprep.subr.mxu0 0.0
    %930 = vmatpush1.msra.mxu0 0.0
    %931 = vmatprep.subr.mxu0 0.0
    %932 = vmatpush1.msra.mxu0 0.0
    %933 = vmatprep.subr.mxu0 0.0
    %934 = vmatpush1.msra.mxu0 0.0
    %935 = vmatprep.subr.mxu0 0.0
    %936 = vmatpush1.msra.mxu0 0.0
    %937 = vmatprep.subr.mxu0 0.0
    %938 = vmatpush1.msra.mxu0 0.0
    %939 = vmatprep.subr.mxu0 0.0
    %940 = vmatpush1.msra.mxu0 0.0
    %941 = vmatprep.subr.mxu0 0.0
    %942 = vmatpush1.msra.mxu0 0.0
    %943 = vmatprep.subr.mxu0 0.0
    %944 = vmatpush1.msra.mxu0 0.0
    %945 = vmatprep.subr.mxu0 0.0
    %946 = vmatpush1.msra.mxu0 0.0
    %947 = vmatprep.mubr.f32.mxu0 0.0
    %948 = vmatmul.mubr.f32.gmra.mrb[0].mxu0 %v874
    %v949 = vpop.f32.mrb[0].mxu0
    %v950 = vadd.f32 0.0, %v949
    %v951 = vpop.f32.mrb[0].mxu0
    %952 = vmatprep.mubr.f32.mxu0 0.0
    %953 = vmatmul.mubr.f32.gmra.mrb[0].mxu0 %v877
    %v954 = vpop.f32.mrb[0].mxu0
    %v955 = vadd.f32 0.0, %v954
    %v956 = vpop.f32.mrb[0].mxu0
    %957 = vdwg.mxu0
    %v958 = vadd.f32 %v864, %v950
    %v959 = vadd.f32 %v869, %v955
    %v961 = vlaneseq
    %v962 = vshrl.u32 %v961, 7
    %v963 = vsub.s32 0, %v962
    %v964 = vrot.slane %v466, %v963
    %v966 = vadd.f32 %v958, %v964
    %v967 = vadd.f32 %v959, %v964
    %v968 = vmax.f32 %v966, 0.0
    %v969 = vmax.f32 %v967, 0.0
    %v971 = vlaneseq
    %v972 = vshrl.u32 %v971, 7
    %v973 = vsub.s32 0, %v972
    %v974 = vrot.slane %v474, %v973
    %vm976 = vcmask 408576
    %v978 = vsel %vm976, %v968, 0
    %v981 = vsel %vm976, %v969, 0
    %v984 = vsel %vm542, %v473, 0
    %986 = vmatprep.subr.mxu0 0.0
    %987 = vmatpush1.msra.mxu0 %v467
    %988 = vmatprep.subr.mxu0 0.0
    %989 = vmatpush1.msra.mxu0 %v468
    %990 = vmatprep.subr.mxu0 0.0
    %991 = vmatpush1.msra.mxu0 %v469
    %992 = vmatprep.subr.mxu0 0.0
    %993 = vmatpush1.msra.mxu0 %v470
    %994 = vmatprep.subr.mxu0 0.0
    %995 = vmatpush1.msra.mxu0 %v471
    %996 = vmatprep.subr.mxu0 0.0
    %997 = vmatpush1.msra.mxu0 %v472
    %998 = vmatprep.subr.mxu0 0.0
    %999 = vmatpush1.msra.mxu0 %v984
    %1000 = vmatprep.subr.mxu0 0.0
    %1001 = vmatpush1.msra.mxu0 0.0
    %1002 = vmatprep.subr.mxu0 0.0
    %1003 = vmatpush1.msra.mxu0 0.0
    %1004 = vmatprep.subr.mxu0 0.0
    %1005 = vmatpush1.msra.mxu0 0.0
    %1006 = vmatprep.subr.mxu0 0.0
    %1007 = vmatpush1.msra.mxu0 0.0
    %1008 = vmatprep.subr.mxu0 0.0
    %1009 = vmatpush1.msra.mxu0 0.0
    %1010 = vmatprep.subr.mxu0 0.0
    %1011 = vmatpush1.msra.mxu0 0.0
    %1012 = vmatprep.subr.mxu0 0.0
    %1013 = vmatpush1.msra.mxu0 0.0
    %1014 = vmatprep.subr.mxu0 0.0
    %1015 = vmatpush1.msra.mxu0 0.0
    %1016 = vmatprep.subr.mxu0 0.0
    %1017 = vmatpush1.msra.mxu0 0.0
    %1018 = vmatprep.subr.mxu0 0.0
    %1019 = vmatpush1.msra.mxu0 0.0
    %1020 = vmatprep.subr.mxu0 0.0
    %1021 = vmatpush1.msra.mxu0 0.0
    %1022 = vmatprep.subr.mxu0 0.0
    %1023 = vmatpush1.msra.mxu0 0.0
    %1024 = vmatprep.subr.mxu0 0.0
    %1025 = vmatpush1.msra.mxu0 0.0
    %1026 = vmatprep.subr.mxu0 0.0
    %1027 = vmatpush1.msra.mxu0 0.0
    %1028 = vmatprep.subr.mxu0 0.0
    %1029 = vmatpush1.msra.mxu0 0.0
    %1030 = vmatprep.subr.mxu0 0.0
    %1031 = vmatpush1.msra.mxu0 0.0
    %1032 = vmatprep.subr.mxu0 0.0
    %1033 = vmatpush1.msra.mxu0 0.0
    %1034 = vmatprep.subr.mxu0 0.0
    %1035 = vmatpush1.msra.mxu0 0.0
    %1036 = vmatprep.subr.mxu0 0.0
    %1037 = vmatpush1.msra.mxu0 0.0
    %1038 = vmatprep.subr.mxu0 0.0
    %1039 = vmatpush1.msra.mxu0 0.0
    %1040 = vmatprep.subr.mxu0 0.0
    %1041 = vmatpush1.msra.mxu0 0.0
    %1042 = vmatprep.subr.mxu0 0.0
    %1043 = vmatpush1.msra.mxu0 0.0
    %1044 = vmatprep.subr.mxu0 0.0
    %1045 = vmatpush1.msra.mxu0 0.0
    %1046 = vmatprep.subr.mxu0 0.0
    %1047 = vmatpush1.msra.mxu0 0.0
    %1048 = vmatprep.subr.mxu0 0.0
    %1049 = vmatpush1.msra.mxu0 0.0
    %1050 = vmatprep.mubr.f32.mxu0 0.0
    %1051 = vmatmul.mubr.f32.gmra.mrb[0].mxu0 %v978
    %v1052 = vpop.f32.mrb[0].mxu0
    %v1053 = vadd.f32 %v974, %v1052
    %v1054 = vpop.f32.mrb[0].mxu0
    %1055 = vmatprep.mubr.f32.mxu0 0.0
    %1056 = vmatmul.mubr.f32.gmra.mrb[0].mxu0 %v981
    %v1057 = vpop.f32.mrb[0].mxu0
    %v1058 = vadd.f32 %v974, %v1057
    %v1059 = vpop.f32.mrb[0].mxu0
    %1060 = vdwg.mxu0
    %v1061 = vmax.f32 %v1053, 0.0
    %v1062 = vmax.f32 %v1058, 0.0
    %v1064 = vlaneseq
    %v1065 = vshrl.u32 %v1064, 7
    %v1066 = vsub.s32 0, %v1065
    %v1067 = vrot.slane %v482, %v1066
    %v1070 = vsel %vm976, %v1061, 0
    %v1073 = vsel %vm976, %v1062, 0
    %v1076 = vsel %vm542, %v481, 0
    %1078 = vmatprep.subr.mxu0 0.0
    %1079 = vmatpush1.msra.mxu0 %v475
    %1080 = vmatprep.subr.mxu0 0.0
    %1081 = vmatpush1.msra.mxu0 %v476
    %1082 = vmatprep.subr.mxu0 0.0
    %1083 = vmatpush1.msra.mxu0 %v477
    %1084 = vmatprep.subr.mxu0 0.0
    %1085 = vmatpush1.msra.mxu0 %v478
    %1086 = vmatprep.subr.mxu0 0.0
    %1087 = vmatpush1.msra.mxu0 %v479
    %1088 = vmatprep.subr.mxu0 0.0
    %1089 = vmatpush1.msra.mxu0 %v480
    %1090 = vmatprep.subr.mxu0 0.0
    %1091 = vmatpush1.msra.mxu0 %v1076
    %1092 = vmatprep.subr.mxu0 0.0
    %1093 = vmatpush1.msra.mxu0 0.0
    %1094 = vmatprep.subr.mxu0 0.0
    %1095 = vmatpush1.msra.mxu0 0.0
    %1096 = vmatprep.subr.mxu0 0.0
    %1097 = vmatpush1.msra.mxu0 0.0
    %1098 = vmatprep.subr.mxu0 0.0
    %1099 = vmatpush1.msra.mxu0 0.0
    %1100 = vmatprep.subr.mxu0 0.0
    %1101 = vmatpush1.msra.mxu0 0.0
    %1102 = vmatprep.subr.mxu0 0.0
    %1103 = vmatpush1.msra.mxu0 0.0
    %1104 = vmatprep.subr.mxu0 0.0
    %1105 = vmatpush1.msra.mxu0 0.0
    %1106 = vmatprep.subr.mxu0 0.0
    %1107 = vmatpush1.msra.mxu0 0.0
    %1108 = vmatprep.subr.mxu0 0.0
    %1109 = vmatpush1.msra.mxu0 0.0
    %1110 = vmatprep.subr.mxu0 0.0
    %1111 = vmatpush1.msra.mxu0 0.0
    %1112 = vmatprep.subr.mxu0 0.0
    %1113 = vmatpush1.msra.mxu0 0.0
    %1114 = vmatprep.subr.mxu0 0.0
    %1115 = vmatpush1.msra.mxu0 0.0
    %1116 = vmatprep.subr.mxu0 0.0
    %1117 = vmatpush1.msra.mxu0 0.0
    %1118 = vmatprep.subr.mxu0 0.0
    %1119 = vmatpush1.msra.mxu0 0.0
    %1120 = vmatprep.subr.mxu0 0.0
    %1121 = vmatpush1.msra.mxu0 0.0
    %1122 = vmatprep.subr.mxu0 0.0
    %1123 = vmatpush1.msra.mxu0 0.0
    %1124 = vmatprep.subr.mxu0 0.0
    %1125 = vmatpush1.msra.mxu0 0.0
    %1126 = vmatprep.subr.mxu0 0.0
    %1127 = vmatpush1.msra.mxu0 0.0
    %1128 = vmatprep.subr.mxu0 0.0
    %1129 = vmatpush1.msra.mxu0 0.0
    %1130 = vmatprep.subr.mxu0 0.0
    %1131 = vmatpush1.msra.mxu0 0.0
    %1132 = vmatprep.subr.mxu0 0.0
    %1133 = vmatpush1.msra.mxu0 0.0
    %1134 = vmatprep.subr.mxu0 0.0
    %1135 = vmatpush1.msra.mxu0 0.0
    %1136 = vmatprep.subr.mxu0 0.0
    %1137 = vmatpush1.msra.mxu0 0.0
    %1138 = vmatprep.subr.mxu0 0.0
    %1139 = vmatpush1.msra.mxu0 0.0
    %1140 = vmatprep.subr.mxu0 0.0
    %1141 = vmatpush1.msra.mxu0 0.0
    %1142 = vmatprep.mubr.f32.mxu0 0.0
    %1143 = vmatmul.mubr.f32.gmra.mrb[0].mxu0 %v1070
    %v1144 = vpop.f32.mrb[0].mxu0
    %v1145 = vadd.f32 %v1067, %v1144
    %v1146 = vpop.f32.mrb[0].mxu0
    %1147 = vmatprep.mubr.f32.mxu0 0.0
    %1148 = vmatmul.mubr.f32.gmra.mrb[0].mxu0 %v1073
    %v1149 = vpop.f32.mrb[0].mxu0
    %v1150 = vadd.f32 %v1067, %v1149
    %v1151 = vpop.f32.mrb[0].mxu0
    %1152 = vdwg.mxu0
    %vm1153 = vcmask 97280
    %v1155 = vsel %vm1153, %v527, 0
    %v1158 = vsel %vm1153, %v528, 0
    %v1161 = vsel %vm709, %v1150, 0
    %1163 = vmatprep.subr.mxu0 0.0
    %1164 = vmatpush1.msra.mxu0 %v1145
    %1165 = vmatprep.subr.mxu0 0.0
    %1166 = vmatpush1.msra.mxu0 %v1161
    %1167 = vmatprep.subr.mxu0 0.0
    %1168 = vmatpush1.msra.mxu0 0.0
    %1169 = vmatprep.subr.mxu0 0.0
    %1170 = vmatpush1.msra.mxu0 0.0
    %1171 = vmatprep.subr.mxu0 0.0
    %1172 = vmatpush1.msra.mxu0 0.0
    %1173 = vmatprep.subr.mxu0 0.0
    %1174 = vmatpush1.msra.mxu0 0.0
    %1175 = vmatprep.subr.mxu0 0.0
    %1176 = vmatpush1.msra.mxu0 0.0
    %1177 = vmatprep.subr.mxu0 0.0
    %1178 = vmatpush1.msra.mxu0 0.0
    %1179 = vmatprep.subr.mxu0 0.0
    %1180 = vmatpush1.msra.mxu0 0.0
    %1181 = vmatprep.subr.mxu0 0.0
    %1182 = vmatpush1.msra.mxu0 0.0
    %1183 = vmatprep.subr.mxu0 0.0
    %1184 = vmatpush1.msra.mxu0 0.0
    %1185 = vmatprep.subr.mxu0 0.0
    %1186 = vmatpush1.msra.mxu0 0.0
    %1187 = vmatprep.subr.mxu0 0.0
    %1188 = vmatpush1.msra.mxu0 0.0
    %1189 = vmatprep.subr.mxu0 0.0
    %1190 = vmatpush1.msra.mxu0 0.0
    %1191 = vmatprep.subr.mxu0 0.0
    %1192 = vmatpush1.msra.mxu0 0.0
    %1193 = vmatprep.subr.mxu0 0.0
    %1194 = vmatpush1.msra.mxu0 0.0
    %1195 = vmatprep.subr.mxu0 0.0
    %1196 = vmatpush1.msra.mxu0 0.0
    %1197 = vmatprep.subr.mxu0 0.0
    %1198 = vmatpush1.msra.mxu0 0.0
    %1199 = vmatprep.subr.mxu0 0.0
    %1200 = vmatpush1.msra.mxu0 0.0
    %1201 = vmatprep.subr.mxu0 0.0
    %1202 = vmatpush1.msra.mxu0 0.0
    %1203 = vmatprep.subr.mxu0 0.0
    %1204 = vmatpush1.msra.mxu0 0.0
    %1205 = vmatprep.subr.mxu0 0.0
    %1206 = vmatpush1.msra.mxu0 0.0
    %1207 = vmatprep.subr.mxu0 0.0
    %1208 = vmatpush1.msra.mxu0 0.0
    %1209 = vmatprep.subr.mxu0 0.0
    %1210 = vmatpush1.msra.mxu0 0.0
    %1211 = vmatprep.subr.mxu0 0.0
    %1212 = vmatpush1.msra.mxu0 0.0
    %1213 = vmatprep.subr.mxu0 0.0
    %1214 = vmatpush1.msra.mxu0 0.0
    %1215 = vmatprep.subr.mxu0 0.0
    %1216 = vmatpush1.msra.mxu0 0.0
    %1217 = vmatprep.subr.mxu0 0.0
    %1218 = vmatpush1.msra.mxu0 0.0
    %1219 = vmatprep.subr.mxu0 0.0
    %1220 = vmatpush1.msra.mxu0 0.0
    %1221 = vmatprep.subr.mxu0 0.0
    %1222 = vmatpush1.msra.mxu0 0.0
    %1223 = vmatprep.subr.mxu0 0.0
    %1224 = vmatpush1.msra.mxu0 0.0
    %1225 = vmatprep.subr.mxu0 0.0
    %1226 = vmatpush1.msra.mxu0 0.0
    %1227 = vmatprep.mubr.f32.mxu0 0.0
    %1228 = vmatmul.mubr.f32.gmra.mrb[0].mxu0 %v1155
    %v1229 = vpop.f32.mrb[0].mxu0
    %v1230 = vadd.f32 0.0, %v1229
    %v1231 = vpop.f32.mrb[0].mxu0
    %1232 = vmatprep.mubr.f32.mxu0 0.0
    %1233 = vmatmul.mubr.f32.gmra.mrb[0].mxu0 %v1158
    %v1234 = vpop.f32.mrb[0].mxu0
    %v1235 = vadd.f32 0.0, %v1234
    %v1236 = vpop.f32.mrb[0].mxu0
    %1237 = vdwg.mxu0
    %v1239 = vsel %vm702, %v531, 0
    %v1241 = vsel %vm702, %v532, 0
    %v1244 = vsel %vm709, %v504, 0
    %1246 = vmatprep.subr.mxu0 0.0
    %1247 = vmatpush1.msra.mxu0 %v1244
    %1248 = vmatprep.subr.mxu0 0.0
    %1249 = vmatpush1.msra.mxu0 0.0
    %1250 = vmatprep.subr.mxu0 0.0
    %1251 = vmatpush1.msra.mxu0 0.0
    %1252 = vmatprep.subr.mxu0 0.0
    %1253 = vmatpush1.msra.mxu0 0.0
    %1254 = vmatprep.subr.mxu0 0.0
    %1255 = vmatpush1.msra.mxu0 0.0
    %1256 = vmatprep.subr.mxu0 0.0
    %1257 = vmatpush1.msra.mxu0 0.0
    %1258 = vmatprep.subr.mxu0 0.0
    %1259 = vmatpush1.msra.mxu0 0.0
    %1260 = vmatprep.subr.mxu0 0.0
    %1261 = vmatpush1.msra.mxu0 0.0
    %1262 = vmatprep.subr.mxu0 0.0
    %1263 = vmatpush1.msra.mxu0 0.0
    %1264 = vmatprep.subr.mxu0 0.0
    %1265 = vmatpush1.msra.mxu0 0.0
    %1266 = vmatprep.subr.mxu0 0.0
    %1267 = vmatpush1.msra.mxu0 0.0
    %1268 = vmatprep.subr.mxu0 0.0
    %1269 = vmatpush1.msra.mxu0 0.0
    %1270 = vmatprep.subr.mxu0 0.0
    %1271 = vmatpush1.msra.mxu0 0.0
    %1272 = vmatprep.subr.mxu0 0.0
    %1273 = vmatpush1.msra.mxu0 0.0
    %1274 = vmatprep.subr.mxu0 0.0
    %1275 = vmatpush1.msra.mxu0 0.0
    %1276 = vmatprep.subr.mxu0 0.0
    %1277 = vmatpush1.msra.mxu0 0.0
    %1278 = vmatprep.subr.mxu0 0.0
    %1279 = vmatpush1.msra.mxu0 0.0
    %1280 = vmatprep.subr.mxu0 0.0
    %1281 = vmatpush1.msra.mxu0 0.0
    %1282 = vmatprep.subr.mxu0 0.0
    %1283 = vmatpush1.msra.mxu0 0.0
    %1284 = vmatprep.subr.mxu0 0.0
    %1285 = vmatpush1.msra.mxu0 0.0
    %1286 = vmatprep.subr.mxu0 0.0
    %1287 = vmatpush1.msra.mxu0 0.0
    %1288 = vmatprep.subr.mxu0 0.0
    %1289 = vmatpush1.msra.mxu0 0.0
    %1290 = vmatprep.subr.mxu0 0.0
    %1291 = vmatpush1.msra.mxu0 0.0
    %1292 = vmatprep.subr.mxu0 0.0
    %1293 = vmatpush1.msra.mxu0 0.0
    %1294 = vmatprep.subr.mxu0 0.0
    %1295 = vmatpush1.msra.mxu0 0.0
    %1296 = vmatprep.subr.mxu0 0.0
    %1297 = vmatpush1.msra.mxu0 0.0
    %1298 = vmatprep.subr.mxu0 0.0
    %1299 = vmatpush1.msra.mxu0 0.0
    %1300 = vmatprep.subr.mxu0 0.0
    %1301 = vmatpush1.msra.mxu0 0.0
    %1302 = vmatprep.subr.mxu0 0.0
    %1303 = vmatpush1.msra.mxu0 0.0
    %1304 = vmatprep.subr.mxu0 0.0
    %1305 = vmatpush1.msra.mxu0 0.0
    %1306 = vmatprep.subr.mxu0 0.0
    %1307 = vmatpush1.msra.mxu0 0.0
    %1308 = vmatprep.subr.mxu0 0.0
    %1309 = vmatpush1.msra.mxu0 0.0
    %1310 = vmatprep.mubr.f32.mxu0 0.0
    %1311 = vmatmul.mubr.f32.gmra.mrb[0].mxu0 %v1239
    %v1312 = vpop.f32.mrb[0].mxu0
    %v1313 = vadd.f32 0.0, %v1312
    %v1314 = vpop.f32.mrb[0].mxu0
    %1315 = vmatprep.mubr.f32.mxu0 0.0
    %1316 = vmatmul.mubr.f32.gmra.mrb[0].mxu0 %v1241
    %v1317 = vpop.f32.mrb[0].mxu0
    %v1318 = vadd.f32 0.0, %v1317
    %v1319 = vpop.f32.mrb[0].mxu0
    %1320 = vdwg.mxu0
    %vm1321 = vcmask 48128
    %v1323 = vsel %vm1321, %v1230, 0
    %v1326 = vsel %vm1321, %v1235, 0
    %vm1328 = vcmask 1045504
    %v1330 = vsel %vm1328, %v503, 0
    %1332 = vmatprep.subr.mxu0 0.0
    %1333 = vmatpush1.msra.mxu0 %v1330
    %1334 = vmatprep.subr.mxu0 0.0
    %1335 = vmatpush1.msra.mxu0 0.0
    %1336 = vmatprep.subr.mxu0 0.0
    %1337 = vmatpush1.msra.mxu0 0.0
    %1338 = vmatprep.subr.mxu0 0.0
    %1339 = vmatpush1.msra.mxu0 0.0
    %1340 = vmatprep.subr.mxu0 0.0
    %1341 = vmatpush1.msra.mxu0 0.0
    %1342 = vmatprep.subr.mxu0 0.0
    %1343 = vmatpush1.msra.mxu0 0.0
    %1344 = vmatprep.subr.mxu0 0.0
    %1345 = vmatpush1.msra.mxu0 0.0
    %1346 = vmatprep.subr.mxu0 0.0
    %1347 = vmatpush1.msra.mxu0 0.0
    %1348 = vmatprep.subr.mxu0 0.0
    %1349 = vmatpush1.msra.mxu0 0.0
    %1350 = vmatprep.subr.mxu0 0.0
    %1351 = vmatpush1.msra.mxu0 0.0
    %1352 = vmatprep.subr.mxu0 0.0
    %1353 = vmatpush1.msra.mxu0 0.0
    %1354 = vmatprep.subr.mxu0 0.0
    %1355 = vmatpush1.msra.mxu0 0.0
    %1356 = vmatprep.subr.mxu0 0.0
    %1357 = vmatpush1.msra.mxu0 0.0
    %1358 = vmatprep.subr.mxu0 0.0
    %1359 = vmatpush1.msra.mxu0 0.0
    %1360 = vmatprep.subr.mxu0 0.0
    %1361 = vmatpush1.msra.mxu0 0.0
    %1362 = vmatprep.subr.mxu0 0.0
    %1363 = vmatpush1.msra.mxu0 0.0
    %1364 = vmatprep.subr.mxu0 0.0
    %1365 = vmatpush1.msra.mxu0 0.0
    %1366 = vmatprep.subr.mxu0 0.0
    %1367 = vmatpush1.msra.mxu0 0.0
    %1368 = vmatprep.subr.mxu0 0.0
    %1369 = vmatpush1.msra.mxu0 0.0
    %1370 = vmatprep.subr.mxu0 0.0
    %1371 = vmatpush1.msra.mxu0 0.0
    %1372 = vmatprep.subr.mxu0 0.0
    %1373 = vmatpush1.msra.mxu0 0.0
    %1374 = vmatprep.subr.mxu0 0.0
    %1375 = vmatpush1.msra.mxu0 0.0
    %1376 = vmatprep.subr.mxu0 0.0
    %1377 = vmatpush1.msra.mxu0 0.0
    %1378 = vmatprep.subr.mxu0 0.0
    %1379 = vmatpush1.msra.mxu0 0.0
    %1380 = vmatprep.subr.mxu0 0.0
    %1381 = vmatpush1.msra.mxu0 0.0
    %1382 = vmatprep.subr.mxu0 0.0
    %1383 = vmatpush1.msra.mxu0 0.0
    %1384 = vmatprep.subr.mxu0 0.0
    %1385 = vmatpush1.msra.mxu0 0.0
    %1386 = vmatprep.subr.mxu0 0.0
    %1387 = vmatpush1.msra.mxu0 0.0
    %1388 = vmatprep.subr.mxu0 0.0
    %1389 = vmatpush1.msra.mxu0 0.0
    %1390 = vmatprep.subr.mxu0 0.0
    %1391 = vmatpush1.msra.mxu0 0.0
    %1392 = vmatprep.subr.mxu0 0.0
    %1393 = vmatpush1.msra.mxu0 0.0
    %1394 = vmatprep.subr.mxu0 0.0
    %1395 = vmatpush1.msra.mxu0 0.0
    %1396 = vmatprep.mubr.f32.mxu0 0.0
    %1397 = vmatmul.mubr.f32.gmra.mrb[0].mxu0 %v1323
    %v1398 = vpop.f32.mrb[0].mxu0
    %v1399 = vadd.f32 %v1313, %v1398
    %v1400 = vpop.f32.mrb[0].mxu0
    %1401 = vmatprep.mubr.f32.mxu0 0.0
    %1402 = vmatmul.mubr.f32.gmra.mrb[0].mxu0 %v1326
    %v1403 = vpop.f32.mrb[0].mxu0
    %v1404 = vadd.f32 %v1318, %v1403
    %v1405 = vpop.f32.mrb[0].mxu0
    %1406 = vdwg.mxu0
    %v1408 = vlaneseq
    %v1409 = vshrl.u32 %v1408, 7
    %v1410 = vsub.s32 0, %v1409
    %v1411 = vrot.slane %v505, %v1410
    %v1413 = vadd.f32 %v1399, %v1411
    %v1414 = vadd.f32 %v1404, %v1411
    %v1415 = vmax.f32 %v1413, 0.0
    %v1416 = vmax.f32 %v1414, 0.0
    %v1418 = vlaneseq
    %v1419 = vshrl.u32 %v1418, 7
    %v1420 = vsub.s32 0, %v1419
    %v1421 = vrot.slane %v513, %v1420
    %v1424 = vsel %vm976, %v1415, 0
    %v1427 = vsel %vm976, %v1416, 0
    %v1430 = vsel %vm542, %v512, 0
    %1432 = vmatprep.subr.mxu0 0.0
    %1433 = vmatpush1.msra.mxu0 %v506
    %1434 = vmatprep.subr.mxu0 0.0
    %1435 = vmatpush1.msra.mxu0 %v507
    %1436 = vmatprep.subr.mxu0 0.0
    %1437 = vmatpush1.msra.mxu0 %v508
    %1438 = vmatprep.subr.mxu0 0.0
    %1439 = vmatpush1.msra.mxu0 %v509
    %1440 = vmatprep.subr.mxu0 0.0
    %1441 = vmatpush1.msra.mxu0 %v510
    %1442 = vmatprep.subr.mxu0 0.0
    %1443 = vmatpush1.msra.mxu0 %v511
    %1444 = vmatprep.subr.mxu0 0.0
    %1445 = vmatpush1.msra.mxu0 %v1430
    %1446 = vmatprep.subr.mxu0 0.0
    %1447 = vmatpush1.msra.mxu0 0.0
    %1448 = vmatprep.subr.mxu0 0.0
    %1449 = vmatpush1.msra.mxu0 0.0
    %1450 = vmatprep.subr.mxu0 0.0
    %1451 = vmatpush1.msra.mxu0 0.0
    %1452 = vmatprep.subr.mxu0 0.0
    %1453 = vmatpush1.msra.mxu0 0.0
    %1454 = vmatprep.subr.mxu0 0.0
    %1455 = vmatpush1.msra.mxu0 0.0
    %1456 = vmatprep.subr.mxu0 0.0
    %1457 = vmatpush1.msra.mxu0 0.0
    %1458 = vmatprep.subr.mxu0 0.0
    %1459 = vmatpush1.msra.mxu0 0.0
    %1460 = vmatprep.subr.mxu0 0.0
    %1461 = vmatpush1.msra.mxu0 0.0
    %1462 = vmatprep.subr.mxu0 0.0
    %1463 = vmatpush1.msra.mxu0 0.0
    %1464 = vmatprep.subr.mxu0 0.0
    %1465 = vmatpush1.msra.mxu0 0.0
    %1466 = vmatprep.subr.mxu0 0.0
    %1467 = vmatpush1.msra.mxu0 0.0
    %1468 = vmatprep.subr.mxu0 0.0
    %1469 = vmatpush1.msra.mxu0 0.0
    %1470 = vmatprep.subr.mxu0 0.0
    %1471 = vmatpush1.msra.mxu0 0.0
    %1472 = vmatprep.subr.mxu0 0.0
    %1473 = vmatpush1.msra.mxu0 0.0
    %1474 = vmatprep.subr.mxu0 0.0
    %1475 = vmatpush1.msra.mxu0 0.0
    %1476 = vmatprep.subr.mxu0 0.0
    %1477 = vmatpush1.msra.mxu0 0.0
    %1478 = vmatprep.subr.mxu0 0.0
    %1479 = vmatpush1.msra.mxu0 0.0
    %1480 = vmatprep.subr.mxu0 0.0
    %1481 = vmatpush1.msra.mxu0 0.0
    %1482 = vmatprep.subr.mxu0 0.0
    %1483 = vmatpush1.msra.mxu0 0.0
    %1484 = vmatprep.subr.mxu0 0.0
    %1485 = vmatpush1.msra.mxu0 0.0
    %1486 = vmatprep.subr.mxu0 0.0
    %1487 = vmatpush1.msra.mxu0 0.0
    %1488 = vmatprep.subr.mxu0 0.0
    %1489 = vmatpush1.msra.mxu0 0.0
    %1490 = vmatprep.subr.mxu0 0.0
    %1491 = vmatpush1.msra.mxu0 0.0
    %1492 = vmatprep.subr.mxu0 0.0
    %1493 = vmatpush1.msra.mxu0 0.0
    %1494 = vmatprep.subr.mxu0 0.0
    %1495 = vmatpush1.msra.mxu0 0.0
    %1496 = vmatprep.mubr.f32.mxu0 0.0
    %1497 = vmatmul.mubr.f32.gmra.mrb[0].mxu0 %v1424
    %v1498 = vpop.f32.mrb[0].mxu0
    %v1499 = vadd.f32 %v1421, %v1498
    %v1500 = vpop.f32.mrb[0].mxu0
    %1501 = vmatprep.mubr.f32.mxu0 0.0
    %1502 = vmatmul.mubr.f32.gmra.mrb[0].mxu0 %v1427
    %v1503 = vpop.f32.mrb[0].mxu0
    %v1504 = vadd.f32 %v1421, %v1503
    %v1505 = vpop.f32.mrb[0].mxu0
    %1506 = vdwg.mxu0
    %v1507 = vmax.f32 %v1499, 0.0
    %v1508 = vmax.f32 %v1504, 0.0
    %v1510 = vsel %vm709, %v456, 0
    %1512 = vmatprep.subr.mxu0 0.0
    %1513 = vmatpush1.msra.mxu0 %v1510
    %1514 = vmatprep.subr.mxu0 0.0
    %1515 = vmatpush1.msra.mxu0 0.0
    %1516 = vmatprep.subr.mxu0 0.0
    %1517 = vmatpush1.msra.mxu0 0.0
    %1518 = vmatprep.subr.mxu0 0.0
    %1519 = vmatpush1.msra.mxu0 0.0
    %1520 = vmatprep.subr.mxu0 0.0
    %1521 = vmatpush1.msra.mxu0 0.0
    %1522 = vmatprep.subr.mxu0 0.0
    %1523 = vmatpush1.msra.mxu0 0.0
    %1524 = vmatprep.subr.mxu0 0.0
    %1525 = vmatpush1.msra.mxu0 0.0
    %1526 = vmatprep.subr.mxu0 0.0
    %1527 = vmatpush1.msra.mxu0 0.0
    %1528 = vmatprep.subr.mxu0 0.0
    %1529 = vmatpush1.msra.mxu0 0.0
    %1530 = vmatprep.subr.mxu0 0.0
    %1531 = vmatpush1.msra.mxu0 0.0
    %1532 = vmatprep.subr.mxu0 0.0
    %1533 = vmatpush1.msra.mxu0 0.0
    %1534 = vmatprep.subr.mxu0 0.0
    %1535 = vmatpush1.msra.mxu0 0.0
    %1536 = vmatprep.subr.mxu0 0.0
    %1537 = vmatpush1.msra.mxu0 0.0
    %1538 = vmatprep.subr.mxu0 0.0
    %1539 = vmatpush1.msra.mxu0 0.0
    %1540 = vmatprep.subr.mxu0 0.0
    %1541 = vmatpush1.msra.mxu0 0.0
    %1542 = vmatprep.subr.mxu0 0.0
    %1543 = vmatpush1.msra.mxu0 0.0
    %1544 = vmatprep.subr.mxu0 0.0
    %1545 = vmatpush1.msra.mxu0 0.0
    %1546 = vmatprep.subr.mxu0 0.0
    %1547 = vmatpush1.msra.mxu0 0.0
    %1548 = vmatprep.subr.mxu0 0.0
    %1549 = vmatpush1.msra.mxu0 0.0
    %1550 = vmatprep.subr.mxu0 0.0
    %1551 = vmatpush1.msra.mxu0 0.0
    %1552 = vmatprep.subr.mxu0 0.0
    %1553 = vmatpush1.msra.mxu0 0.0
    %1554 = vmatprep.subr.mxu0 0.0
    %1555 = vmatpush1.msra.mxu0 0.0
    %1556 = vmatprep.subr.mxu0 0.0
    %1557 = vmatpush1.msra.mxu0 0.0
    %1558 = vmatprep.subr.mxu0 0.0
    %1559 = vmatpush1.msra.mxu0 0.0
    %1560 = vmatprep.subr.mxu0 0.0
    %1561 = vmatpush1.msra.mxu0 0.0
    %1562 = vmatprep.subr.mxu0 0.0
    %1563 = vmatpush1.msra.mxu0 0.0
    %1564 = vmatprep.subr.mxu0 0.0
    %1565 = vmatpush1.msra.mxu0 0.0
    %1566 = vmatprep.subr.mxu0 0.0
    %1567 = vmatpush1.msra.mxu0 0.0
    %1568 = vmatprep.subr.mxu0 0.0
    %1569 = vmatpush1.msra.mxu0 0.0
    %1570 = vmatprep.subr.mxu0 0.0
    %1571 = vmatpush1.msra.mxu0 0.0
    %1572 = vmatprep.subr.mxu0 0.0
    %1573 = vmatpush1.msra.mxu0 0.0
    %1574 = vmatprep.subr.mxu0 0.0
    %1575 = vmatpush1.msra.mxu0 0.0
    %1576 = vmatprep.mubr.f32.mxu0 0.0
    %1577 = vmatmul.mubr.f32.gmra.mrb[0].mxu0 %v704
    %v1578 = vpop.f32.mrb[0].mxu0
    %v1579 = vadd.f32 0.0, %v1578
    %v1580 = vpop.f32.mrb[0].mxu0
    %1581 = vmatprep.mubr.f32.mxu0 0.0
    %1582 = vmatmul.mubr.f32.gmra.mrb[0].mxu0 %v707
    %v1583 = vpop.f32.mrb[0].mxu0
    %v1584 = vadd.f32 0.0, %v1583
    %v1585 = vpop.f32.mrb[0].mxu0
    %1586 = vdwg.mxu0
    %v1588 = vsel %vm709, %v455, 0
    %1590 = vmatprep.subr.mxu0 0.0
    %1591 = vmatpush1.msra.mxu0 %v1588
    %1592 = vmatprep.subr.mxu0 0.0
    %1593 = vmatpush1.msra.mxu0 0.0
    %1594 = vmatprep.subr.mxu0 0.0
    %1595 = vmatpush1.msra.mxu0 0.0
    %1596 = vmatprep.subr.mxu0 0.0
    %1597 = vmatpush1.msra.mxu0 0.0
    %1598 = vmatprep.subr.mxu0 0.0
    %1599 = vmatpush1.msra.mxu0 0.0
    %1600 = vmatprep.subr.mxu0 0.0
    %1601 = vmatpush1.msra.mxu0 0.0
    %1602 = vmatprep.subr.mxu0 0.0
    %1603 = vmatpush1.msra.mxu0 0.0
    %1604 = vmatprep.subr.mxu0 0.0
    %1605 = vmatpush1.msra.mxu0 0.0
    %1606 = vmatprep.subr.mxu0 0.0
    %1607 = vmatpush1.msra.mxu0 0.0
    %1608 = vmatprep.subr.mxu0 0.0
    %1609 = vmatpush1.msra.mxu0 0.0
    %1610 = vmatprep.subr.mxu0 0.0
    %1611 = vmatpush1.msra.mxu0 0.0
    %1612 = vmatprep.subr.mxu0 0.0
    %1613 = vmatpush1.msra.mxu0 0.0
    %1614 = vmatprep.subr.mxu0 0.0
    %1615 = vmatpush1.msra.mxu0 0.0
    %1616 = vmatprep.subr.mxu0 0.0
    %1617 = vmatpush1.msra.mxu0 0.0
    %1618 = vmatprep.subr.mxu0 0.0
    %1619 = vmatpush1.msra.mxu0 0.0
    %1620 = vmatprep.subr.mxu0 0.0
    %1621 = vmatpush1.msra.mxu0 0.0
    %1622 = vmatprep.subr.mxu0 0.0
    %1623 = vmatpush1.msra.mxu0 0.0
    %1624 = vmatprep.subr.mxu0 0.0
    %1625 = vmatpush1.msra.mxu0 0.0
    %1626 = vmatprep.subr.mxu0 0.0
    %1627 = vmatpush1.msra.mxu0 0.0
    %1628 = vmatprep.subr.mxu0 0.0
    %1629 = vmatpush1.msra.mxu0 0.0
    %1630 = vmatprep.subr.mxu0 0.0
    %1631 = vmatpush1.msra.mxu0 0.0
    %1632 = vmatprep.subr.mxu0 0.0
    %1633 = vmatpush1.msra.mxu0 0.0
    %1634 = vmatprep.subr.mxu0 0.0
    %1635 = vmatpush1.msra.mxu0 0.0
    %1636 = vmatprep.subr.mxu0 0.0
    %1637 = vmatpush1.msra.mxu0 0.0
    %1638 = vmatprep.subr.mxu0 0.0
    %1639 = vmatpush1.msra.mxu0 0.0
    %1640 = vmatprep.subr.mxu0 0.0
    %1641 = vmatpush1.msra.mxu0 0.0
    %1642 = vmatprep.subr.mxu0 0.0
    %1643 = vmatpush1.msra.mxu0 0.0
    %1644 = vmatprep.subr.mxu0 0.0
    %1645 = vmatpush1.msra.mxu0 0.0
    %1646 = vmatprep.subr.mxu0 0.0
    %1647 = vmatpush1.msra.mxu0 0.0
    %1648 = vmatprep.subr.mxu0 0.0
    %1649 = vmatpush1.msra.mxu0 0.0
    %1650 = vmatprep.subr.mxu0 0.0
    %1651 = vmatpush1.msra.mxu0 0.0
    %1652 = vmatprep.subr.mxu0 0.0
    %1653 = vmatpush1.msra.mxu0 0.0
    %1654 = vmatprep.mubr.f32.mxu0 0.0
    %1655 = vmatmul.mubr.f32.gmra.mrb[0].mxu0 %v789
    %v1656 = vpop.f32.mrb[0].mxu0
    %v1657 = vadd.f32 %v1579, %v1656
    %v1658 = vpop.f32.mrb[0].mxu0
    %1659 = vmatprep.mubr.f32.mxu0 0.0
    %1660 = vmatmul.mubr.f32.gmra.mrb[0].mxu0 %v792
    %v1661 = vpop.f32.mrb[0].mxu0
    %v1662 = vadd.f32 %v1584, %v1661
    %v1663 = vpop.f32.mrb[0].mxu0
    %1664 = vdwg.mxu0
    %v1666 = vsel %vm879, %v457, 0
    %1668 = vmatprep.subr.mxu0 0.0
    %1669 = vmatpush1.msra.mxu0 %v1666
    %1670 = vmatprep.subr.mxu0 0.0
    %1671 = vmatpush1.msra.mxu0 0.0
    %1672 = vmatprep.subr.mxu0 0.0
    %1673 = vmatpush1.msra.mxu0 0.0
    %1674 = vmatprep.subr.mxu0 0.0
    %1675 = vmatpush1.msra.mxu0 0.0
    %1676 = vmatprep.subr.mxu0 0.0
    %1677 = vmatpush1.msra.mxu0 0.0
    %1678 = vmatprep.subr.mxu0 0.0
    %1679 = vmatpush1.msra.mxu0 0.0
    %1680 = vmatprep.subr.mxu0 0.0
    %1681 = vmatpush1.msra.mxu0 0.0
    %1682 = vmatprep.subr.mxu0 0.0
    %1683 = vmatpush1.msra.mxu0 0.0
    %1684 = vmatprep.subr.mxu0 0.0
    %1685 = vmatpush1.msra.mxu0 0.0
    %1686 = vmatprep.subr.mxu0 0.0
    %1687 = vmatpush1.msra.mxu0 0.0
    %1688 = vmatprep.subr.mxu0 0.0
    %1689 = vmatpush1.msra.mxu0 0.0
    %1690 = vmatprep.subr.mxu0 0.0
    %1691 = vmatpush1.msra.mxu0 0.0
    %1692 = vmatprep.subr.mxu0 0.0
    %1693 = vmatpush1.msra.mxu0 0.0
    %1694 = vmatprep.subr.mxu0 0.0
    %1695 = vmatpush1.msra.mxu0 0.0
    %1696 = vmatprep.subr.mxu0 0.0
    %1697 = vmatpush1.msra.mxu0 0.0
    %1698 = vmatprep.subr.mxu0 0.0
    %1699 = vmatpush1.msra.mxu0 0.0
    %1700 = vmatprep.subr.mxu0 0.0
    %1701 = vmatpush1.msra.mxu0 0.0
    %1702 = vmatprep.subr.mxu0 0.0
    %1703 = vmatpush1.msra.mxu0 0.0
    %1704 = vmatprep.subr.mxu0 0.0
    %1705 = vmatpush1.msra.mxu0 0.0
    %1706 = vmatprep.subr.mxu0 0.0
    %1707 = vmatpush1.msra.mxu0 0.0
    %1708 = vmatprep.subr.mxu0 0.0
    %1709 = vmatpush1.msra.mxu0 0.0
    %1710 = vmatprep.subr.mxu0 0.0
    %1711 = vmatpush1.msra.mxu0 0.0
    %1712 = vmatprep.subr.mxu0 0.0
    %1713 = vmatpush1.msra.mxu0 0.0
    %1714 = vmatprep.subr.mxu0 0.0
    %1715 = vmatpush1.msra.mxu0 0.0
    %1716 = vmatprep.subr.mxu0 0.0
    %1717 = vmatpush1.msra.mxu0 0.0
    %1718 = vmatprep.subr.mxu0 0.0
    %1719 = vmatpush1.msra.mxu0 0.0
    %1720 = vmatprep.subr.mxu0 0.0
    %1721 = vmatpush1.msra.mxu0 0.0
    %1722 = vmatprep.subr.mxu0 0.0
    %1723 = vmatpush1.msra.mxu0 0.0
    %1724 = vmatprep.subr.mxu0 0.0
    %1725 = vmatpush1.msra.mxu0 0.0
    %1726 = vmatprep.subr.mxu0 0.0
    %1727 = vmatpush1.msra.mxu0 0.0
    %1728 = vmatprep.subr.mxu0 0.0
    %1729 = vmatpush1.msra.mxu0 0.0
    %1730 = vmatprep.subr.mxu0 0.0
    %1731 = vmatpush1.msra.mxu0 0.0
    %1732 = vmatprep.mubr.f32.mxu0 0.0
    %1733 = vmatmul.mubr.f32.gmra.mrb[0].mxu0 %v874
    %v1734 = vpop.f32.mrb[0].mxu0
    %v1735 = vadd.f32 0.0, %v1734
    %v1736 = vpop.f32.mrb[0].mxu0
    %1737 = vmatprep.mubr.f32.mxu0 0.0
    %1738 = vmatmul.mubr.f32.gmra.mrb[0].mxu0 %v877
    %v1739 = vpop.f32.mrb[0].mxu0
    %v1740 = vadd.f32 0.0, %v1739
    %v1741 = vpop.f32.mrb[0].mxu0
    %1742 = vdwg.mxu0
    %v1743 = vadd.f32 %v1657, %v1735
    %v1744 = vadd.f32 %v1662, %v1740
    %v1746 = vlaneseq
    %v1747 = vshrl.u32 %v1746, 7
    %v1748 = vsub.s32 0, %v1747
    %v1749 = vrot.slane %v458, %v1748
    %v1751 = vadd.f32 %v1743, %v1749
    %v1752 = vadd.f32 %v1744, %v1749
    %v1753 = vmax.f32 %v1751, 0.0
    %v1754 = vmax.f32 %v1752, 0.0
    %v1756 = vlaneseq
    %v1757 = vshrl.u32 %v1756, 7
    %v1758 = vsub.s32 0, %v1757
    %v1759 = vrot.slane %v408, %v1758
    %v1762 = vsel %vm976, %v1753, 0
    %v1765 = vsel %vm976, %v1754, 0
    %v1768 = vsel %vm542, %v407, 0
    %1770 = vmatprep.subr.mxu0 0.0
    %1771 = vmatpush1.msra.mxu0 %v401
    %1772 = vmatprep.subr.mxu0 0.0
    %1773 = vmatpush1.msra.mxu0 %v402
    %1774 = vmatprep.subr.mxu0 0.0
    %1775 = vmatpush1.msra.mxu0 %v403
    %1776 = vmatprep.subr.mxu0 0.0
    %1777 = vmatpush1.msra.mxu0 %v404
    %1778 = vmatprep.subr.mxu0 0.0
    %1779 = vmatpush1.msra.mxu0 %v405
    %1780 = vmatprep.subr.mxu0 0.0
    %1781 = vmatpush1.msra.mxu0 %v406
    %1782 = vmatprep.subr.mxu0 0.0
    %1783 = vmatpush1.msra.mxu0 %v1768
    %1784 = vmatprep.subr.mxu0 0.0
    %1785 = vmatpush1.msra.mxu0 0.0
    %1786 = vmatprep.subr.mxu0 0.0
    %1787 = vmatpush1.msra.mxu0 0.0
    %1788 = vmatprep.subr.mxu0 0.0
    %1789 = vmatpush1.msra.mxu0 0.0
    %1790 = vmatprep.subr.mxu0 0.0
    %1791 = vmatpush1.msra.mxu0 0.0
    %1792 = vmatprep.subr.mxu0 0.0
    %1793 = vmatpush1.msra.mxu0 0.0
    %1794 = vmatprep.subr.mxu0 0.0
    %1795 = vmatpush1.msra.mxu0 0.0
    %1796 = vmatprep.subr.mxu0 0.0
    %1797 = vmatpush1.msra.mxu0 0.0
    %1798 = vmatprep.subr.mxu0 0.0
    %1799 = vmatpush1.msra.mxu0 0.0
    %1800 = vmatprep.subr.mxu0 0.0
    %1801 = vmatpush1.msra.mxu0 0.0
    %1802 = vmatprep.subr.mxu0 0.0
    %1803 = vmatpush1.msra.mxu0 0.0
    %1804 = vmatprep.subr.mxu0 0.0
    %1805 = vmatpush1.msra.mxu0 0.0
    %1806 = vmatprep.subr.mxu0 0.0
    %1807 = vmatpush1.msra.mxu0 0.0
    %1808 = vmatprep.subr.mxu0 0.0
    %1809 = vmatpush1.msra.mxu0 0.0
    %1810 = vmatprep.subr.mxu0 0.0
    %1811 = vmatpush1.msra.mxu0 0.0
    %1812 = vmatprep.subr.mxu0 0.0
    %1813 = vmatpush1.msra.mxu0 0.0
    %1814 = vmatprep.subr.mxu0 0.0
    %1815 = vmatpush1.msra.mxu0 0.0
    %1816 = vmatprep.subr.mxu0 0.0
    %1817 = vmatpush1.msra.mxu0 0.0
    %1818 = vmatprep.subr.mxu0 0.0
    %1819 = vmatpush1.msra.mxu0 0.0
    %1820 = vmatprep.subr.mxu0 0.0
    %1821 = vmatpush1.msra.mxu0 0.0
    %1822 = vmatprep.subr.mxu0 0.0
    %1823 = vmatpush1.msra.mxu0 0.0
    %1824 = vmatprep.subr.mxu0 0.0
    %1825 = vmatpush1.msra.mxu0 0.0
    %1826 = vmatprep.subr.mxu0 0.0
    %1827 = vmatpush1.msra.mxu0 0.0
    %1828 = vmatprep.subr.mxu0 0.0
    %1829 = vmatpush1.msra.mxu0 0.0
    %1830 = vmatprep.subr.mxu0 0.0
    %1831 = vmatpush1.msra.mxu0 0.0
    %1832 = vmatprep.subr.mxu0 0.0
    %1833 = vmatpush1.msra.mxu0 0.0
    %1834 = vmatprep.mubr.f32.mxu0 0.0
    %1835 = vmatmul.mubr.f32.gmra.mrb[0].mxu0 %v1762
    %v1836 = vpop.f32.mrb[0].mxu0
    %v1837 = vadd.f32 %v1759, %v1836
    %v1838 = vpop.f32.mrb[0].mxu0
    %1839 = vmatprep.mubr.f32.mxu0 0.0
    %1840 = vmatmul.mubr.f32.gmra.mrb[0].mxu0 %v1765
    %v1841 = vpop.f32.mrb[0].mxu0
    %v1842 = vadd.f32 %v1759, %v1841
    %v1843 = vpop.f32.mrb[0].mxu0
    %1844 = vdwg.mxu0
    %v1845 = vmax.f32 %v1837, 0.0
    %v1846 = vmax.f32 %v1842, 0.0
    %v1848 = vlaneseq
    %v1849 = vshrl.u32 %v1848, 7
    %v1850 = vsub.s32 0, %v1849
    %v1851 = vrot.slane %v416, %v1850
    %v1854 = vsel %vm976, %v1845, 0
    %v1857 = vsel %vm976, %v1846, 0
    %v1860 = vsel %vm542, %v415, 0
    %1862 = vmatprep.subr.mxu0 0.0
    %1863 = vmatpush1.msra.mxu0 %v409
    %1864 = vmatprep.subr.mxu0 0.0
    %1865 = vmatpush1.msra.mxu0 %v410
    %1866 = vmatprep.subr.mxu0 0.0
    %1867 = vmatpush1.msra.mxu0 %v411
    %1868 = vmatprep.subr.mxu0 0.0
    %1869 = vmatpush1.msra.mxu0 %v412
    %1870 = vmatprep.subr.mxu0 0.0
    %1871 = vmatpush1.msra.mxu0 %v413
    %1872 = vmatprep.subr.mxu0 0.0
    %1873 = vmatpush1.msra.mxu0 %v414
    %1874 = vmatprep.subr.mxu0 0.0
    %1875 = vmatpush1.msra.mxu0 %v1860
    %1876 = vmatprep.subr.mxu0 0.0
    %1877 = vmatpush1.msra.mxu0 0.0
    %1878 = vmatprep.subr.mxu0 0.0
    %1879 = vmatpush1.msra.mxu0 0.0
    %1880 = vmatprep.subr.mxu0 0.0
    %1881 = vmatpush1.msra.mxu0 0.0
    %1882 = vmatprep.subr.mxu0 0.0
    %1883 = vmatpush1.msra.mxu0 0.0
    %1884 = vmatprep.subr.mxu0 0.0
    %1885 = vmatpush1.msra.mxu0 0.0
    %1886 = vmatprep.subr.mxu0 0.0
    %1887 = vmatpush1.msra.mxu0 0.0
    %1888 = vmatprep.subr.mxu0 0.0
    %1889 = vmatpush1.msra.mxu0 0.0
    %1890 = vmatprep.subr.mxu0 0.0
    %1891 = vmatpush1.msra.mxu0 0.0
    %1892 = vmatprep.subr.mxu0 0.0
    %1893 = vmatpush1.msra.mxu0 0.0
    %1894 = vmatprep.subr.mxu0 0.0
    %1895 = vmatpush1.msra.mxu0 0.0
    %1896 = vmatprep.subr.mxu0 0.0
    %1897 = vmatpush1.msra.mxu0 0.0
    %1898 = vmatprep.subr.mxu0 0.0
    %1899 = vmatpush1.msra.mxu0 0.0
    %1900 = vmatprep.subr.mxu0 0.0
    %1901 = vmatpush1.msra.mxu0 0.0
    %1902 = vmatprep.subr.mxu0 0.0
    %1903 = vmatpush1.msra.mxu0 0.0
    %1904 = vmatprep.subr.mxu0 0.0
    %1905 = vmatpush1.msra.mxu0 0.0
    %1906 = vmatprep.subr.mxu0 0.0
    %1907 = vmatpush1.msra.mxu0 0.0
    %1908 = vmatprep.subr.mxu0 0.0
    %1909 = vmatpush1.msra.mxu0 0.0
    %1910 = vmatprep.subr.mxu0 0.0
    %1911 = vmatpush1.msra.mxu0 0.0
    %1912 = vmatprep.subr.mxu0 0.0
    %1913 = vmatpush1.msra.mxu0 0.0
    %1914 = vmatprep.subr.mxu0 0.0
    %1915 = vmatpush1.msra.mxu0 0.0
    %1916 = vmatprep.subr.mxu0 0.0
    %1917 = vmatpush1.msra.mxu0 0.0
    %1918 = vmatprep.subr.mxu0 0.0
    %1919 = vmatpush1.msra.mxu0 0.0
    %1920 = vmatprep.subr.mxu0 0.0
    %1921 = vmatpush1.msra.mxu0 0.0
    %1922 = vmatprep.subr.mxu0 0.0
    %1923 = vmatpush1.msra.mxu0 0.0
    %1924 = vmatprep.subr.mxu0 0.0
    %1925 = vmatpush1.msra.mxu0 0.0
    %1926 = vmatprep.mubr.f32.mxu0 0.0
    %1927 = vmatmul.mubr.f32.gmra.mrb[0].mxu0 %v1854
    %v1928 = vpop.f32.mrb[0].mxu0
    %v1929 = vadd.f32 %v1851, %v1928
    %v1930 = vpop.f32.mrb[0].mxu0
    %1931 = vmatprep.mubr.f32.mxu0 0.0
    %1932 = vmatmul.mubr.f32.gmra.mrb[0].mxu0 %v1857
    %v1933 = vpop.f32.mrb[0].mxu0
    %v1934 = vadd.f32 %v1851, %v1933
    %v1935 = vpop.f32.mrb[0].mxu0
    %1936 = vdwg.mxu0
    %v1938 = vsel %vm879, %v418, 0
    %1940 = vmatprep.subr.mxu0 0.0
    %1941 = vmatpush1.msra.mxu0 %v1938
    %1942 = vmatprep.subr.mxu0 0.0
    %1943 = vmatpush1.msra.mxu0 0.0
    %1944 = vmatprep.subr.mxu0 0.0
    %1945 = vmatpush1.msra.mxu0 0.0
    %1946 = vmatprep.subr.mxu0 0.0
    %1947 = vmatpush1.msra.mxu0 0.0
    %1948 = vmatprep.subr.mxu0 0.0
    %1949 = vmatpush1.msra.mxu0 0.0
    %1950 = vmatprep.subr.mxu0 0.0
    %1951 = vmatpush1.msra.mxu0 0.0
    %1952 = vmatprep.subr.mxu0 0.0
    %1953 = vmatpush1.msra.mxu0 0.0
    %1954 = vmatprep.subr.mxu0 0.0
    %1955 = vmatpush1.msra.mxu0 0.0
    %1956 = vmatprep.subr.mxu0 0.0
    %1957 = vmatpush1.msra.mxu0 0.0
    %1958 = vmatprep.subr.mxu0 0.0
    %1959 = vmatpush1.msra.mxu0 0.0
    %1960 = vmatprep.subr.mxu0 0.0
    %1961 = vmatpush1.msra.mxu0 0.0
    %1962 = vmatprep.subr.mxu0 0.0
    %1963 = vmatpush1.msra.mxu0 0.0
    %1964 = vmatprep.subr.mxu0 0.0
    %1965 = vmatpush1.msra.mxu0 0.0
    %1966 = vmatprep.subr.mxu0 0.0
    %1967 = vmatpush1.msra.mxu0 0.0
    %1968 = vmatprep.subr.mxu0 0.0
    %1969 = vmatpush1.msra.mxu0 0.0
    %1970 = vmatprep.subr.mxu0 0.0
    %1971 = vmatpush1.msra.mxu0 0.0
    %1972 = vmatprep.subr.mxu0 0.0
    %1973 = vmatpush1.msra.mxu0 0.0
    %1974 = vmatprep.subr.mxu0 0.0
    %1975 = vmatpush1.msra.mxu0 0.0
    %1976 = vmatprep.subr.mxu0 0.0
    %1977 = vmatpush1.msra.mxu0 0.0
    %1978 = vmatprep.subr.mxu0 0.0
    %1979 = vmatpush1.msra.mxu0 0.0
    %1980 = vmatprep.subr.mxu0 0.0
    %1981 = vmatpush1.msra.mxu0 0.0
    %1982 = vmatprep.subr.mxu0 0.0
    %1983 = vmatpush1.msra.mxu0 0.0
    %1984 = vmatprep.subr.mxu0 0.0
    %1985 = vmatpush1.msra.mxu0 0.0
    %1986 = vmatprep.subr.mxu0 0.0
    %1987 = vmatpush1.msra.mxu0 0.0
    %1988 = vmatprep.subr.mxu0 0.0
    %1989 = vmatpush1.msra.mxu0 0.0
    %1990 = vmatprep.subr.mxu0 0.0
    %1991 = vmatpush1.msra.mxu0 0.0
    %1992 = vmatprep.subr.mxu0 0.0
    %1993 = vmatpush1.msra.mxu0 0.0
    %1994 = vmatprep.subr.mxu0 0.0
    %1995 = vmatpush1.msra.mxu0 0.0
    %1996 = vmatprep.subr.mxu0 0.0
    %1997 = vmatpush1.msra.mxu0 0.0
    %1998 = vmatprep.subr.mxu0 0.0
    %1999 = vmatpush1.msra.mxu0 0.0
    %2000 = vmatprep.subr.mxu0 0.0
    %2001 = vmatpush1.msra.mxu0 0.0
    %2002 = vmatprep.subr.mxu0 0.0
    %2003 = vmatpush1.msra.mxu0 0.0
    %2004 = vmatprep.mubr.f32.mxu0 0.0
    %2005 = vmatmul.mubr.f32.gmra.mrb[0].mxu0 %v874
    %v2006 = vpop.f32.mrb[0].mxu0
    %v2007 = vadd.f32 0.0, %v2006
    %v2008 = vpop.f32.mrb[0].mxu0
    %2009 = vmatprep.mubr.f32.mxu0 0.0
    %2010 = vmatmul.mubr.f32.gmra.mrb[0].mxu0 %v877
    %v2011 = vpop.f32.mrb[0].mxu0
    %v2012 = vadd.f32 0.0, %v2011
    %v2013 = vpop.f32.mrb[0].mxu0
    %2014 = vdwg.mxu0
    %v2016 = vsel %vm1321, %v1929, 0
    %v2019 = vsel %vm1321, %v1934, 0
    %v2022 = vsel %vm1328, %v417, 0
    %2024 = vmatprep.subr.mxu0 0.0
    %2025 = vmatpush1.msra.mxu0 %v2022
    %2026 = vmatprep.subr.mxu0 0.0
    %2027 = vmatpush1.msra.mxu0 0.0
    %2028 = vmatprep.subr.mxu0 0.0
    %2029 = vmatpush1.msra.mxu0 0.0
    %2030 = vmatprep.subr.mxu0 0.0
    %2031 = vmatpush1.msra.mxu0 0.0
    %2032 = vmatprep.subr.mxu0 0.0
    %2033 = vmatpush1.msra.mxu0 0.0
    %2034 = vmatprep.subr.mxu0 0.0
    %2035 = vmatpush1.msra.mxu0 0.0
    %2036 = vmatprep.subr.mxu0 0.0
    %2037 = vmatpush1.msra.mxu0 0.0
    %2038 = vmatprep.subr.mxu0 0.0
    %2039 = vmatpush1.msra.mxu0 0.0
    %2040 = vmatprep.subr.mxu0 0.0
    %2041 = vmatpush1.msra.mxu0 0.0
    %2042 = vmatprep.subr.mxu0 0.0
    %2043 = vmatpush1.msra.mxu0 0.0
    %2044 = vmatprep.subr.mxu0 0.0
    %2045 = vmatpush1.msra.mxu0 0.0
    %2046 = vmatprep.subr.mxu0 0.0
    %2047 = vmatpush1.msra.mxu0 0.0
    %2048 = vmatprep.subr.mxu0 0.0
    %2049 = vmatpush1.msra.mxu0 0.0
    %2050 = vmatprep.subr.mxu0 0.0
    %2051 = vmatpush1.msra.mxu0 0.0
    %2052 = vmatprep.subr.mxu0 0.0
    %2053 = vmatpush1.msra.mxu0 0.0
    %2054 = vmatprep.subr.mxu0 0.0
    %2055 = vmatpush1.msra.mxu0 0.0
    %2056 = vmatprep.subr.mxu0 0.0
    %2057 = vmatpush1.msra.mxu0 0.0
    %2058 = vmatprep.subr.mxu0 0.0
    %2059 = vmatpush1.msra.mxu0 0.0
    %2060 = vmatprep.subr.mxu0 0.0
    %2061 = vmatpush1.msra.mxu0 0.0
    %2062 = vmatprep.subr.mxu0 0.0
    %2063 = vmatpush1.msra.mxu0 0.0
    %2064 = vmatprep.subr.mxu0 0.0
    %2065 = vmatpush1.msra.mxu0 0.0
    %2066 = vmatprep.subr.mxu0 0.0
    %2067 = vmatpush1.msra.mxu0 0.0
    %2068 = vmatprep.subr.mxu0 0.0
    %2069 = vmatpush1.msra.mxu0 0.0
    %2070 = vmatprep.subr.mxu0 0.0
    %2071 = vmatpush1.msra.mxu0 0.0
    %2072 = vmatprep.subr.mxu0 0.0
    %2073 = vmatpush1.msra.mxu0 0.0
    %2074 = vmatprep.subr.mxu0 0.0
    %2075 = vmatpush1.msra.mxu0 0.0
    %2076 = vmatprep.subr.mxu0 0.0
    %2077 = vmatpush1.msra.mxu0 0.0
    %2078 = vmatprep.subr.mxu0 0.0
    %2079 = vmatpush1.msra.mxu0 0.0
    %2080 = vmatprep.subr.mxu0 0.0
    %2081 = vmatpush1.msra.mxu0 0.0
    %2082 = vmatprep.subr.mxu0 0.0
    %2083 = vmatpush1.msra.mxu0 0.0
    %2084 = vmatprep.subr.mxu0 0.0
    %2085 = vmatpush1.msra.mxu0 0.0
    %2086 = vmatprep.subr.mxu0 0.0
    %2087 = vmatpush1.msra.mxu0 0.0
    %2088 = vmatprep.mubr.f32.mxu0 0.0
    %2089 = vmatmul.mubr.f32.gmra.mrb[0].mxu0 %v2016
    %v2090 = vpop.f32.mrb[0].mxu0
    %v2091 = vadd.f32 %v2007, %v2090
    %v2092 = vpop.f32.mrb[0].mxu0
    %2093 = vmatprep.mubr.f32.mxu0 0.0
    %2094 = vmatmul.mubr.f32.gmra.mrb[0].mxu0 %v2019
    %v2095 = vpop.f32.mrb[0].mxu0
    %v2096 = vadd.f32 %v2012, %v2095
    %v2097 = vpop.f32.mrb[0].mxu0
    %2098 = vdwg.mxu0
    %v2100 = vlaneseq
    %v2101 = vshrl.u32 %v2100, 7
    %v2102 = vsub.s32 0, %v2101
    %v2103 = vrot.slane %v419, %v2102
    %v2105 = vadd.f32 %v2091, %v2103
    %v2106 = vadd.f32 %v2096, %v2103
    %v2107 = vmax.f32 %v2105, 0.0
    %v2108 = vmax.f32 %v2106, 0.0
    %v2110 = vlaneseq
    %v2111 = vshrl.u32 %v2110, 7
    %v2112 = vsub.s32 0, %v2111
    %v2113 = vrot.slane %v427, %v2112
    %v2116 = vsel %vm976, %v2107, 0
    %v2119 = vsel %vm976, %v2108, 0
    %v2122 = vsel %vm542, %v426, 0
    %2124 = vmatprep.subr.mxu0 0.0
    %2125 = vmatpush1.msra.mxu0 %v420
    %2126 = vmatprep.subr.mxu0 0.0
    %2127 = vmatpush1.msra.mxu0 %v421
    %2128 = vmatprep.subr.mxu0 0.0
    %2129 = vmatpush1.msra.mxu0 %v422
    %2130 = vmatprep.subr.mxu0 0.0
    %2131 = vmatpush1.msra.mxu0 %v423
    %2132 = vmatprep.subr.mxu0 0.0
    %2133 = vmatpush1.msra.mxu0 %v424
    %2134 = vmatprep.subr.mxu0 0.0
    %2135 = vmatpush1.msra.mxu0 %v425
    %2136 = vmatprep.subr.mxu0 0.0
    %2137 = vmatpush1.msra.mxu0 %v2122
    %2138 = vmatprep.subr.mxu0 0.0
    %2139 = vmatpush1.msra.mxu0 0.0
    %2140 = vmatprep.subr.mxu0 0.0
    %2141 = vmatpush1.msra.mxu0 0.0
    %2142 = vmatprep.subr.mxu0 0.0
    %2143 = vmatpush1.msra.mxu0 0.0
    %2144 = vmatprep.subr.mxu0 0.0
    %2145 = vmatpush1.msra.mxu0 0.0
    %2146 = vmatprep.subr.mxu0 0.0
    %2147 = vmatpush1.msra.mxu0 0.0
    %2148 = vmatprep.subr.mxu0 0.0
    %2149 = vmatpush1.msra.mxu0 0.0
    %2150 = vmatprep.subr.mxu0 0.0
    %2151 = vmatpush1.msra.mxu0 0.0
    %2152 = vmatprep.subr.mxu0 0.0
    %2153 = vmatpush1.msra.mxu0 0.0
    %2154 = vmatprep.subr.mxu0 0.0
    %2155 = vmatpush1.msra.mxu0 0.0
    %2156 = vmatprep.subr.mxu0 0.0
    %2157 = vmatpush1.msra.mxu0 0.0
    %2158 = vmatprep.subr.mxu0 0.0
    %2159 = vmatpush1.msra.mxu0 0.0
    %2160 = vmatprep.subr.mxu0 0.0
    %2161 = vmatpush1.msra.mxu0 0.0
    %2162 = vmatprep.subr.mxu0 0.0
    %2163 = vmatpush1.msra.mxu0 0.0
    %2164 = vmatprep.subr.mxu0 0.0
    %2165 = vmatpush1.msra.mxu0 0.0
    %2166 = vmatprep.subr.mxu0 0.0
    %2167 = vmatpush1.msra.mxu0 0.0
    %2168 = vmatprep.subr.mxu0 0.0
    %2169 = vmatpush1.msra.mxu0 0.0
    %2170 = vmatprep.subr.mxu0 0.0
    %2171 = vmatpush1.msra.mxu0 0.0
    %2172 = vmatprep.subr.mxu0 0.0
    %2173 = vmatpush1.msra.mxu0 0.0
    %2174 = vmatprep.subr.mxu0 0.0
    %2175 = vmatpush1.msra.mxu0 0.0
    %2176 = vmatprep.subr.mxu0 0.0
    %2177 = vmatpush1.msra.mxu0 0.0
    %2178 = vmatprep.subr.mxu0 0.0
    %2179 = vmatpush1.msra.mxu0 0.0
    %2180 = vmatprep.subr.mxu0 0.0
    %2181 = vmatpush1.msra.mxu0 0.0
    %2182 = vmatprep.subr.mxu0 0.0
    %2183 = vmatpush1.msra.mxu0 0.0
    %2184 = vmatprep.subr.mxu0 0.0
    %2185 = vmatpush1.msra.mxu0 0.0
    %2186 = vmatprep.subr.mxu0 0.0
    %2187 = vmatpush1.msra.mxu0 0.0
    %2188 = vmatprep.mubr.f32.mxu0 0.0
    %2189 = vmatmul.mubr.f32.gmra.mrb[0].mxu0 %v2116
    %v2190 = vpop.f32.mrb[0].mxu0
    %v2191 = vadd.f32 %v2113, %v2190
    %v2192 = vpop.f32.mrb[0].mxu0
    %2193 = vmatprep.mubr.f32.mxu0 0.0
    %2194 = vmatmul.mubr.f32.gmra.mrb[0].mxu0 %v2119
    %v2195 = vpop.f32.mrb[0].mxu0
    %v2196 = vadd.f32 %v2113, %v2195
    %v2197 = vpop.f32.mrb[0].mxu0
    %2198 = vdwg.mxu0
    %v2199 = vmax.f32 %v2191, 0.0
    %v2200 = vmax.f32 %v2196, 0.0
    %v2202 = vsel %vm542, %v1508, 0
    %2204 = vmatprep.subr.mxu0 0.0
    %2205 = vmatpush1.msra.mxu0 %v1507
    %2206 = vmatprep.subr.mxu0 0.0
    %2207 = vmatpush1.msra.mxu0 %v2202
    %2208 = vmatprep.subr.mxu0 0.0
    %2209 = vmatpush1.msra.mxu0 0.0
    %2210 = vmatprep.subr.mxu0 0.0
    %2211 = vmatpush1.msra.mxu0 0.0
    %2212 = vmatprep.subr.mxu0 0.0
    %2213 = vmatpush1.msra.mxu0 0.0
    %2214 = vmatprep.subr.mxu0 0.0
    %2215 = vmatpush1.msra.mxu0 0.0
    %2216 = vmatprep.subr.mxu0 0.0
    %2217 = vmatpush1.msra.mxu0 0.0
    %2218 = vmatprep.subr.mxu0 0.0
    %2219 = vmatpush1.msra.mxu0 0.0
    %2220 = vmatprep.subr.mxu0 0.0
    %2221 = vmatpush1.msra.mxu0 0.0
    %2222 = vmatprep.subr.mxu0 0.0
    %2223 = vmatpush1.msra.mxu0 0.0
    %2224 = vmatprep.subr.mxu0 0.0
    %2225 = vmatpush1.msra.mxu0 0.0
    %2226 = vmatprep.subr.mxu0 0.0
    %2227 = vmatpush1.msra.mxu0 0.0
    %2228 = vmatprep.subr.mxu0 0.0
    %2229 = vmatpush1.msra.mxu0 0.0
    %2230 = vmatprep.subr.mxu0 0.0
    %2231 = vmatpush1.msra.mxu0 0.0
    %2232 = vmatprep.subr.mxu0 0.0
    %2233 = vmatpush1.msra.mxu0 0.0
    %2234 = vmatprep.subr.mxu0 0.0
    %2235 = vmatpush1.msra.mxu0 0.0
    %2236 = vmatprep.subr.mxu0 0.0
    %2237 = vmatpush1.msra.mxu0 0.0
    %2238 = vmatprep.subr.mxu0 0.0
    %2239 = vmatpush1.msra.mxu0 0.0
    %2240 = vmatprep.subr.mxu0 0.0
    %2241 = vmatpush1.msra.mxu0 0.0
    %2242 = vmatprep.subr.mxu0 0.0
    %2243 = vmatpush1.msra.mxu0 0.0
    %2244 = vmatprep.subr.mxu0 0.0
    %2245 = vmatpush1.msra.mxu0 0.0
    %2246 = vmatprep.subr.mxu0 0.0
    %2247 = vmatpush1.msra.mxu0 0.0
    %2248 = vmatprep.subr.mxu0 0.0
    %2249 = vmatpush1.msra.mxu0 0.0
    %2250 = vmatprep.subr.mxu0 0.0
    %2251 = vmatpush1.msra.mxu0 0.0
    %2252 = vmatprep.subr.mxu0 0.0
    %2253 = vmatpush1.msra.mxu0 0.0
    %2254 = vmatprep.subr.mxu0 0.0
    %2255 = vmatpush1.msra.mxu0 0.0
    %2256 = vmatprep.subr.mxu0 0.0
    %2257 = vmatpush1.msra.mxu0 0.0
    %2258 = vmatprep.subr.mxu0 0.0
    %2259 = vmatpush1.msra.mxu0 0.0
    %2260 = vmatprep.subr.mxu0 0.0
    %2261 = vmatpush1.msra.mxu0 0.0
    %2262 = vmatprep.subr.mxu0 0.0
    %2263 = vmatpush1.msra.mxu0 0.0
    %2264 = vmatprep.subr.mxu0 0.0
    %2265 = vmatpush1.msra.mxu0 0.0
    %2266 = vmatprep.subr.mxu0 0.0
    %2267 = vmatpush1.msra.mxu0 0.0
    %2268 = vmatprep.mubr.f32.mxu0 0.0
    %2269 = vmatmul.mubr.f32.gmra.mrb[0].mxu0 %v537
    %v2270 = vpop.f32.mrb[0].mxu0
    %v2271 = vadd.f32 0.0, %v2270
    %v2272 = vpop.f32.mrb[0].mxu0
    %2273 = vmatprep.mubr.f32.mxu0 0.0
    %2274 = vmatmul.mubr.f32.gmra.mrb[0].mxu0 %v540
    %v2275 = vpop.f32.mrb[0].mxu0
    %v2276 = vadd.f32 0.0, %v2275
    %v2277 = vpop.f32.mrb[0].mxu0
    %2278 = vdwg.mxu0
    %2279 = vmatprep.subr.mxu0 0.0
    %2280 = vmatpush1.msra.mxu0 %v1507
    %2281 = vmatprep.subr.mxu0 0.0
    %2282 = vmatpush1.msra.mxu0 %v2202
    %2283 = vmatprep.subr.mxu0 0.0
    %2284 = vmatpush1.msra.mxu0 0.0
    %2285 = vmatprep.subr.mxu0 0.0
    %2286 = vmatpush1.msra.mxu0 0.0
    %2287 = vmatprep.subr.mxu0 0.0
    %2288 = vmatpush1.msra.mxu0 0.0
    %2289 = vmatprep.subr.mxu0 0.0
    %2290 = vmatpush1.msra.mxu0 0.0
    %2291 = vmatprep.subr.mxu0 0.0
    %2292 = vmatpush1.msra.mxu0 0.0
    %2293 = vmatprep.subr.mxu0 0.0
    %2294 = vmatpush1.msra.mxu0 0.0
    %2295 = vmatprep.subr.mxu0 0.0
    %2296 = vmatpush1.msra.mxu0 0.0
    %2297 = vmatprep.subr.mxu0 0.0
    %2298 = vmatpush1.msra.mxu0 0.0
    %2299 = vmatprep.subr.mxu0 0.0
    %2300 = vmatpush1.msra.mxu0 0.0
    %2301 = vmatprep.subr.mxu0 0.0
    %2302 = vmatpush1.msra.mxu0 0.0
    %2303 = vmatprep.subr.mxu0 0.0
    %2304 = vmatpush1.msra.mxu0 0.0
    %2305 = vmatprep.subr.mxu0 0.0
    %2306 = vmatpush1.msra.mxu0 0.0
    %2307 = vmatprep.subr.mxu0 0.0
    %2308 = vmatpush1.msra.mxu0 0.0
    %2309 = vmatprep.subr.mxu0 0.0
    %2310 = vmatpush1.msra.mxu0 0.0
    %2311 = vmatprep.subr.mxu0 0.0
    %2312 = vmatpush1.msra.mxu0 0.0
    %2313 = vmatprep.subr.mxu0 0.0
    %2314 = vmatpush1.msra.mxu0 0.0
    %2315 = vmatprep.subr.mxu0 0.0
    %2316 = vmatpush1.msra.mxu0 0.0
    %2317 = vmatprep.subr.mxu0 0.0
    %2318 = vmatpush1.msra.mxu0 0.0
    %2319 = vmatprep.subr.mxu0 0.0
    %2320 = vmatpush1.msra.mxu0 0.0
    %2321 = vmatprep.subr.mxu0 0.0
    %2322 = vmatpush1.msra.mxu0 0.0
    %2323 = vmatprep.subr.mxu0 0.0
    %2324 = vmatpush1.msra.mxu0 0.0
    %2325 = vmatprep.subr.mxu0 0.0
    %2326 = vmatpush1.msra.mxu0 0.0
    %2327 = vmatprep.subr.mxu0 0.0
    %2328 = vmatpush1.msra.mxu0 0.0
    %2329 = vmatprep.subr.mxu0 0.0
    %2330 = vmatpush1.msra.mxu0 0.0
    %2331 = vmatprep.subr.mxu0 0.0
    %2332 = vmatpush1.msra.mxu0 0.0
    %2333 = vmatprep.subr.mxu0 0.0
    %2334 = vmatpush1.msra.mxu0 0.0
    %2335 = vmatprep.subr.mxu0 0.0
    %2336 = vmatpush1.msra.mxu0 0.0
    %2337 = vmatprep.subr.mxu0 0.0
    %2338 = vmatpush1.msra.mxu0 0.0
    %2339 = vmatprep.subr.mxu0 0.0
    %2340 = vmatpush1.msra.mxu0 0.0
    %2341 = vmatprep.subr.mxu0 0.0
    %2342 = vmatpush1.msra.mxu0 0.0
    %2343 = vmatprep.mubr.f32.mxu0 0.0
    %2344 = vmatmul.mubr.f32.gmra.mrb[0].mxu0 %v622
    %v2345 = vpop.f32.mrb[0].mxu0
    %v2346 = vadd.f32 0.0, %v2345
    %v2347 = vpop.f32.mrb[0].mxu0
    %2348 = vmatprep.mubr.f32.mxu0 0.0
    %2349 = vmatmul.mubr.f32.gmra.mrb[0].mxu0 %v625
    %v2350 = vpop.f32.mrb[0].mxu0
    %v2351 = vadd.f32 0.0, %v2350
    %v2352 = vpop.f32.mrb[0].mxu0
    %2353 = vdwg.mxu0
    %vm2354 = vcmask 39936
    %v2356 = vsel %vm2354, %v2346, 0
    %v2359 = vsel %vm2354, %v2351, 0
    %vm2361 = vcmask 1044480
    %v2363 = vsel %vm2361, %v484, 0
    %2365 = vmatprep.subr.mxu0 0.0
    %2366 = vmatpush1.msra.mxu0 %v2363
    %2367 = vmatprep.subr.mxu0 0.0
    %2368 = vmatpush1.msra.mxu0 0.0
    %2369 = vmatprep.subr.mxu0 0.0
    %2370 = vmatpush1.msra.mxu0 0.0
    %2371 = vmatprep.subr.mxu0 0.0
    %2372 = vmatpush1.msra.mxu0 0.0
    %2373 = vmatprep.subr.mxu0 0.0
    %2374 = vmatpush1.msra.mxu0 0.0
    %2375 = vmatprep.subr.mxu0 0.0
    %2376 = vmatpush1.msra.mxu0 0.0
    %2377 = vmatprep.subr.mxu0 0.0
    %2378 = vmatpush1.msra.mxu0 0.0
    %2379 = vmatprep.subr.mxu0 0.0
    %2380 = vmatpush1.msra.mxu0 0.0
    %2381 = vmatprep.subr.mxu0 0.0
    %2382 = vmatpush1.msra.mxu0 0.0
    %2383 = vmatprep.subr.mxu0 0.0
    %2384 = vmatpush1.msra.mxu0 0.0
    %2385 = vmatprep.subr.mxu0 0.0
    %2386 = vmatpush1.msra.mxu0 0.0
    %2387 = vmatprep.subr.mxu0 0.0
    %2388 = vmatpush1.msra.mxu0 0.0
    %2389 = vmatprep.subr.mxu0 0.0
    %2390 = vmatpush1.msra.mxu0 0.0
    %2391 = vmatprep.subr.mxu0 0.0
    %2392 = vmatpush1.msra.mxu0 0.0
    %2393 = vmatprep.subr.mxu0 0.0
    %2394 = vmatpush1.msra.mxu0 0.0
    %2395 = vmatprep.subr.mxu0 0.0
    %2396 = vmatpush1.msra.mxu0 0.0
    %2397 = vmatprep.subr.mxu0 0.0
    %2398 = vmatpush1.msra.mxu0 0.0
    %2399 = vmatprep.subr.mxu0 0.0
    %2400 = vmatpush1.msra.mxu0 0.0
    %2401 = vmatprep.subr.mxu0 0.0
    %2402 = vmatpush1.msra.mxu0 0.0
    %2403 = vmatprep.subr.mxu0 0.0
    %2404 = vmatpush1.msra.mxu0 0.0
    %2405 = vmatprep.subr.mxu0 0.0
    %2406 = vmatpush1.msra.mxu0 0.0
    %2407 = vmatprep.subr.mxu0 0.0
    %2408 = vmatpush1.msra.mxu0 0.0
    %2409 = vmatprep.subr.mxu0 0.0
    %2410 = vmatpush1.msra.mxu0 0.0
    %2411 = vmatprep.subr.mxu0 0.0
    %2412 = vmatpush1.msra.mxu0 0.0
    %2413 = vmatprep.subr.mxu0 0.0
    %2414 = vmatpush1.msra.mxu0 0.0
    %2415 = vmatprep.subr.mxu0 0.0
    %2416 = vmatpush1.msra.mxu0 0.0
    %2417 = vmatprep.subr.mxu0 0.0
    %2418 = vmatpush1.msra.mxu0 0.0
    %2419 = vmatprep.subr.mxu0 0.0
    %2420 = vmatpush1.msra.mxu0 0.0
    %2421 = vmatprep.subr.mxu0 0.0
    %2422 = vmatpush1.msra.mxu0 0.0
    %2423 = vmatprep.subr.mxu0 0.0
    %2424 = vmatpush1.msra.mxu0 0.0
    %2425 = vmatprep.subr.mxu0 0.0
    %2426 = vmatpush1.msra.mxu0 0.0
    %2427 = vmatprep.subr.mxu0 0.0
    %2428 = vmatpush1.msra.mxu0 0.0
    %2429 = vmatprep.mubr.f32.mxu0 0.0
    %2430 = vmatmul.mubr.f32.gmra.mrb[0].mxu0 %v2356
    %v2431 = vpop.f32.mrb[0].mxu0
    %v2432 = vadd.f32 0.0, %v2431
    %v2433 = vpop.f32.mrb[0].mxu0
    %2434 = vmatprep.mubr.f32.mxu0 0.0
    %2435 = vmatmul.mubr.f32.gmra.mrb[0].mxu0 %v2359
    %v2436 = vpop.f32.mrb[0].mxu0
    %v2437 = vadd.f32 0.0, %v2436
    %v2438 = vpop.f32.mrb[0].mxu0
    %2439 = vdwg.mxu0
    %v2441 = vsel %vm2354, %v2271, 0
    %v2444 = vsel %vm2354, %v2276, 0
    %v2447 = vsel %vm2361, %v483, 0
    %2449 = vmatprep.subr.mxu0 0.0
    %2450 = vmatpush1.msra.mxu0 %v2447
    %2451 = vmatprep.subr.mxu0 0.0
    %2452 = vmatpush1.msra.mxu0 0.0
    %2453 = vmatprep.subr.mxu0 0.0
    %2454 = vmatpush1.msra.mxu0 0.0
    %2455 = vmatprep.subr.mxu0 0.0
    %2456 = vmatpush1.msra.mxu0 0.0
    %2457 = vmatprep.subr.mxu0 0.0
    %2458 = vmatpush1.msra.mxu0 0.0
    %2459 = vmatprep.subr.mxu0 0.0
    %2460 = vmatpush1.msra.mxu0 0.0
    %2461 = vmatprep.subr.mxu0 0.0
    %2462 = vmatpush1.msra.mxu0 0.0
    %2463 = vmatprep.subr.mxu0 0.0
    %2464 = vmatpush1.msra.mxu0 0.0
    %2465 = vmatprep.subr.mxu0 0.0
    %2466 = vmatpush1.msra.mxu0 0.0
    %2467 = vmatprep.subr.mxu0 0.0
    %2468 = vmatpush1.msra.mxu0 0.0
    %2469 = vmatprep.subr.mxu0 0.0
    %2470 = vmatpush1.msra.mxu0 0.0
    %2471 = vmatprep.subr.mxu0 0.0
    %2472 = vmatpush1.msra.mxu0 0.0
    %2473 = vmatprep.subr.mxu0 0.0
    %2474 = vmatpush1.msra.mxu0 0.0
    %2475 = vmatprep.subr.mxu0 0.0
    %2476 = vmatpush1.msra.mxu0 0.0
    %2477 = vmatprep.subr.mxu0 0.0
    %2478 = vmatpush1.msra.mxu0 0.0
    %2479 = vmatprep.subr.mxu0 0.0
    %2480 = vmatpush1.msra.mxu0 0.0
    %2481 = vmatprep.subr.mxu0 0.0
    %2482 = vmatpush1.msra.mxu0 0.0
    %2483 = vmatprep.subr.mxu0 0.0
    %2484 = vmatpush1.msra.mxu0 0.0
    %2485 = vmatprep.subr.mxu0 0.0
    %2486 = vmatpush1.msra.mxu0 0.0
    %2487 = vmatprep.subr.mxu0 0.0
    %2488 = vmatpush1.msra.mxu0 0.0
    %2489 = vmatprep.subr.mxu0 0.0
    %2490 = vmatpush1.msra.mxu0 0.0
    %2491 = vmatprep.subr.mxu0 0.0
    %2492 = vmatpush1.msra.mxu0 0.0
    %2493 = vmatprep.subr.mxu0 0.0
    %2494 = vmatpush1.msra.mxu0 0.0
    %2495 = vmatprep.subr.mxu0 0.0
    %2496 = vmatpush1.msra.mxu0 0.0
    %2497 = vmatprep.subr.mxu0 0.0
    %2498 = vmatpush1.msra.mxu0 0.0
    %2499 = vmatprep.subr.mxu0 0.0
    %2500 = vmatpush1.msra.mxu0 0.0
    %2501 = vmatprep.subr.mxu0 0.0
    %2502 = vmatpush1.msra.mxu0 0.0
    %2503 = vmatprep.subr.mxu0 0.0
    %2504 = vmatpush1.msra.mxu0 0.0
    %2505 = vmatprep.subr.mxu0 0.0
    %2506 = vmatpush1.msra.mxu0 0.0
    %2507 = vmatprep.subr.mxu0 0.0
    %2508 = vmatpush1.msra.mxu0 0.0
    %2509 = vmatprep.subr.mxu0 0.0
    %2510 = vmatpush1.msra.mxu0 0.0
    %2511 = vmatprep.subr.mxu0 0.0
    %2512 = vmatpush1.msra.mxu0 0.0
    %2513 = vmatprep.mubr.f32.mxu0 0.0
    %2514 = vmatmul.mubr.f32.gmra.mrb[0].mxu0 %v2441
    %v2515 = vpop.f32.mrb[0].mxu0
    %v2516 = vadd.f32 %v2432, %v2515
    %v2517 = vpop.f32.mrb[0].mxu0
    %2518 = vmatprep.mubr.f32.mxu0 0.0
    %2519 = vmatmul.mubr.f32.gmra.mrb[0].mxu0 %v2444
    %v2520 = vpop.f32.mrb[0].mxu0
    %v2521 = vadd.f32 %v2437, %v2520
    %v2522 = vpop.f32.mrb[0].mxu0
    %2523 = vdwg.mxu0
    %v2525 = vsel %vm2354, %v2199, 0
    %v2528 = vsel %vm2354, %v2200, 0
    %v2531 = vsel %vm2361, %v485, 0
    %2533 = vmatprep.subr.mxu0 0.0
    %2534 = vmatpush1.msra.mxu0 %v2531
    %2535 = vmatprep.subr.mxu0 0.0
    %2536 = vmatpush1.msra.mxu0 0.0
    %2537 = vmatprep.subr.mxu0 0.0
    %2538 = vmatpush1.msra.mxu0 0.0
    %2539 = vmatprep.subr.mxu0 0.0
    %2540 = vmatpush1.msra.mxu0 0.0
    %2541 = vmatprep.subr.mxu0 0.0
    %2542 = vmatpush1.msra.mxu0 0.0
    %2543 = vmatprep.subr.mxu0 0.0
    %2544 = vmatpush1.msra.mxu0 0.0
    %2545 = vmatprep.subr.mxu0 0.0
    %2546 = vmatpush1.msra.mxu0 0.0
    %2547 = vmatprep.subr.mxu0 0.0
    %2548 = vmatpush1.msra.mxu0 0.0
    %2549 = vmatprep.subr.mxu0 0.0
    %2550 = vmatpush1.msra.mxu0 0.0
    %2551 = vmatprep.subr.mxu0 0.0
    %2552 = vmatpush1.msra.mxu0 0.0
    %2553 = vmatprep.subr.mxu0 0.0
    %2554 = vmatpush1.msra.mxu0 0.0
    %2555 = vmatprep.subr.mxu0 0.0
    %2556 = vmatpush1.msra.mxu0 0.0
    %2557 = vmatprep.subr.mxu0 0.0
    %2558 = vmatpush1.msra.mxu0 0.0
    %2559 = vmatprep.subr.mxu0 0.0
    %2560 = vmatpush1.msra.mxu0 0.0
    %2561 = vmatprep.subr.mxu0 0.0
    %2562 = vmatpush1.msra.mxu0 0.0
    %2563 = vmatprep.subr.mxu0 0.0
    %2564 = vmatpush1.msra.mxu0 0.0
    %2565 = vmatprep.subr.mxu0 0.0
    %2566 = vmatpush1.msra.mxu0 0.0
    %2567 = vmatprep.subr.mxu0 0.0
    %2568 = vmatpush1.msra.mxu0 0.0
    %2569 = vmatprep.subr.mxu0 0.0
    %2570 = vmatpush1.msra.mxu0 0.0
    %2571 = vmatprep.subr.mxu0 0.0
    %2572 = vmatpush1.msra.mxu0 0.0
    %2573 = vmatprep.subr.mxu0 0.0
    %2574 = vmatpush1.msra.mxu0 0.0
    %2575 = vmatprep.subr.mxu0 0.0
    %2576 = vmatpush1.msra.mxu0 0.0
    %2577 = vmatprep.subr.mxu0 0.0
    %2578 = vmatpush1.msra.mxu0 0.0
    %2579 = vmatprep.subr.mxu0 0.0
    %2580 = vmatpush1.msra.mxu0 0.0
    %2581 = vmatprep.subr.mxu0 0.0
    %2582 = vmatpush1.msra.mxu0 0.0
    %2583 = vmatprep.subr.mxu0 0.0
    %2584 = vmatpush1.msra.mxu0 0.0
    %2585 = vmatprep.subr.mxu0 0.0
    %2586 = vmatpush1.msra.mxu0 0.0
    %2587 = vmatprep.subr.mxu0 0.0
    %2588 = vmatpush1.msra.mxu0 0.0
    %2589 = vmatprep.subr.mxu0 0.0
    %2590 = vmatpush1.msra.mxu0 0.0
    %2591 = vmatprep.subr.mxu0 0.0
    %2592 = vmatpush1.msra.mxu0 0.0
    %2593 = vmatprep.subr.mxu0 0.0
    %2594 = vmatpush1.msra.mxu0 0.0
    %2595 = vmatprep.subr.mxu0 0.0
    %2596 = vmatpush1.msra.mxu0 0.0
    %2597 = vmatprep.mubr.f32.mxu0 0.0
    %2598 = vmatmul.mubr.f32.gmra.mrb[0].mxu0 %v2525
    %v2599 = vpop.f32.mrb[0].mxu0
    %v2600 = vadd.f32 0.0, %v2599
    %v2601 = vpop.f32.mrb[0].mxu0
    %2602 = vmatprep.mubr.f32.mxu0 0.0
    %2603 = vmatmul.mubr.f32.gmra.mrb[0].mxu0 %v2528
    %v2604 = vpop.f32.mrb[0].mxu0
    %v2605 = vadd.f32 0.0, %v2604
    %v2606 = vpop.f32.mrb[0].mxu0
    %2607 = vdwg.mxu0
    %v2608 = vadd.f32 %v2516, %v2600
    %v2609 = vadd.f32 %v2521, %v2605
    %v2611 = vlaneseq
    %v2612 = vshrl.u32 %v2611, 7
    %v2613 = vsub.s32 0, %v2612
    %v2614 = vrot.slane %v486, %v2613
    %v2616 = vadd.f32 %v2608, %v2614
    %v2617 = vadd.f32 %v2609, %v2614
    %v2618 = vmax.f32 %v2616, 0.0
    %v2619 = vmax.f32 %v2617, 0.0
    %v2621 = vlaneseq
    %v2622 = vshrl.u32 %v2621, 7
    %v2623 = vsub.s32 0, %v2622
    %v2624 = vrot.slane %v494, %v2623
    %v2627 = vsel %vm976, %v2618, 0
    %v2630 = vsel %vm976, %v2619, 0
    %v2633 = vsel %vm542, %v493, 0
    %2635 = vmatprep.subr.mxu0 0.0
    %2636 = vmatpush1.msra.mxu0 %v487
    %2637 = vmatprep.subr.mxu0 0.0
    %2638 = vmatpush1.msra.mxu0 %v488
    %2639 = vmatprep.subr.mxu0 0.0
    %2640 = vmatpush1.msra.mxu0 %v489
    %2641 = vmatprep.subr.mxu0 0.0
    %2642 = vmatpush1.msra.mxu0 %v490
    %2643 = vmatprep.subr.mxu0 0.0
    %2644 = vmatpush1.msra.mxu0 %v491
    %2645 = vmatprep.subr.mxu0 0.0
    %2646 = vmatpush1.msra.mxu0 %v492
    %2647 = vmatprep.subr.mxu0 0.0
    %2648 = vmatpush1.msra.mxu0 %v2633
    %2649 = vmatprep.subr.mxu0 0.0
    %2650 = vmatpush1.msra.mxu0 0.0
    %2651 = vmatprep.subr.mxu0 0.0
    %2652 = vmatpush1.msra.mxu0 0.0
    %2653 = vmatprep.subr.mxu0 0.0
    %2654 = vmatpush1.msra.mxu0 0.0
    %2655 = vmatprep.subr.mxu0 0.0
    %2656 = vmatpush1.msra.mxu0 0.0
    %2657 = vmatprep.subr.mxu0 0.0
    %2658 = vmatpush1.msra.mxu0 0.0
    %2659 = vmatprep.subr.mxu0 0.0
    %2660 = vmatpush1.msra.mxu0 0.0
    %2661 = vmatprep.subr.mxu0 0.0
    %2662 = vmatpush1.msra.mxu0 0.0
    %2663 = vmatprep.subr.mxu0 0.0
    %2664 = vmatpush1.msra.mxu0 0.0
    %2665 = vmatprep.subr.mxu0 0.0
    %2666 = vmatpush1.msra.mxu0 0.0
    %2667 = vmatprep.subr.mxu0 0.0
    %2668 = vmatpush1.msra.mxu0 0.0
    %2669 = vmatprep.subr.mxu0 0.0
    %2670 = vmatpush1.msra.mxu0 0.0
    %2671 = vmatprep.subr.mxu0 0.0
    %2672 = vmatpush1.msra.mxu0 0.0
    %2673 = vmatprep.subr.mxu0 0.0
    %2674 = vmatpush1.msra.mxu0 0.0
    %2675 = vmatprep.subr.mxu0 0.0
    %2676 = vmatpush1.msra.mxu0 0.0
    %2677 = vmatprep.subr.mxu0 0.0
    %2678 = vmatpush1.msra.mxu0 0.0
    %2679 = vmatprep.subr.mxu0 0.0
    %2680 = vmatpush1.msra.mxu0 0.0
    %2681 = vmatprep.subr.mxu0 0.0
    %2682 = vmatpush1.msra.mxu0 0.0
    %2683 = vmatprep.subr.mxu0 0.0
    %2684 = vmatpush1.msra.mxu0 0.0
    %2685 = vmatprep.subr.mxu0 0.0
    %2686 = vmatpush1.msra.mxu0 0.0
    %2687 = vmatprep.subr.mxu0 0.0
    %2688 = vmatpush1.msra.mxu0 0.0
    %2689 = vmatprep.subr.mxu0 0.0
    %2690 = vmatpush1.msra.mxu0 0.0
    %2691 = vmatprep.subr.mxu0 0.0
    %2692 = vmatpush1.msra.mxu0 0.0
    %2693 = vmatprep.subr.mxu0 0.0
    %2694 = vmatpush1.msra.mxu0 0.0
    %2695 = vmatprep.subr.mxu0 0.0
    %2696 = vmatpush1.msra.mxu0 0.0
    %2697 = vmatprep.subr.mxu0 0.0
    %2698 = vmatpush1.msra.mxu0 0.0
    %2699 = vmatprep.mubr.f32.mxu0 0.0
    %2700 = vmatmul.mubr.f32.gmra.mrb[0].mxu0 %v2627
    %v2701 = vpop.f32.mrb[0].mxu0
    %v2702 = vadd.f32 %v2624, %v2701
    %v2703 = vpop.f32.mrb[0].mxu0
    %2704 = vmatprep.mubr.f32.mxu0 0.0
    %2705 = vmatmul.mubr.f32.gmra.mrb[0].mxu0 %v2630
    %v2706 = vpop.f32.mrb[0].mxu0
    %v2707 = vadd.f32 %v2624, %v2706
    %v2708 = vpop.f32.mrb[0].mxu0
    %2709 = vdwg.mxu0
    %v2710 = vmax.f32 %v2702, 0.0
    %v2711 = vmax.f32 %v2707, 0.0
    %v2713 = vlaneseq
    %v2714 = vshrl.u32 %v2713, 7
    %v2715 = vsub.s32 0, %v2714
    %v2716 = vrot.slane %v502, %v2715
    %v2719 = vsel %vm976, %v2710, 0
    %v2722 = vsel %vm976, %v2711, 0
    %v2725 = vsel %vm542, %v501, 0
    %2727 = vmatprep.subr.mxu0 0.0
    %2728 = vmatpush1.msra.mxu0 %v495
    %2729 = vmatprep.subr.mxu0 0.0
    %2730 = vmatpush1.msra.mxu0 %v496
    %2731 = vmatprep.subr.mxu0 0.0
    %2732 = vmatpush1.msra.mxu0 %v497
    %2733 = vmatprep.subr.mxu0 0.0
    %2734 = vmatpush1.msra.mxu0 %v498
    %2735 = vmatprep.subr.mxu0 0.0
    %2736 = vmatpush1.msra.mxu0 %v499
    %2737 = vmatprep.subr.mxu0 0.0
    %2738 = vmatpush1.msra.mxu0 %v500
    %2739 = vmatprep.subr.mxu0 0.0
    %2740 = vmatpush1.msra.mxu0 %v2725
    %2741 = vmatprep.subr.mxu0 0.0
    %2742 = vmatpush1.msra.mxu0 0.0
    %2743 = vmatprep.subr.mxu0 0.0
    %2744 = vmatpush1.msra.mxu0 0.0
    %2745 = vmatprep.subr.mxu0 0.0
    %2746 = vmatpush1.msra.mxu0 0.0
    %2747 = vmatprep.subr.mxu0 0.0
    %2748 = vmatpush1.msra.mxu0 0.0
    %2749 = vmatprep.subr.mxu0 0.0
    %2750 = vmatpush1.msra.mxu0 0.0
    %2751 = vmatprep.subr.mxu0 0.0
    %2752 = vmatpush1.msra.mxu0 0.0
    %2753 = vmatprep.subr.mxu0 0.0
    %2754 = vmatpush1.msra.mxu0 0.0
    %2755 = vmatprep.subr.mxu0 0.0
    %2756 = vmatpush1.msra.mxu0 0.0
    %2757 = vmatprep.subr.mxu0 0.0
    %2758 = vmatpush1.msra.mxu0 0.0
    %2759 = vmatprep.subr.mxu0 0.0
    %2760 = vmatpush1.msra.mxu0 0.0
    %2761 = vmatprep.subr.mxu0 0.0
    %2762 = vmatpush1.msra.mxu0 0.0
    %2763 = vmatprep.subr.mxu0 0.0
    %2764 = vmatpush1.msra.mxu0 0.0
    %2765 = vmatprep.subr.mxu0 0.0
    %2766 = vmatpush1.msra.mxu0 0.0
    %2767 = vmatprep.subr.mxu0 0.0
    %2768 = vmatpush1.msra.mxu0 0.0
    %2769 = vmatprep.subr.mxu0 0.0
    %2770 = vmatpush1.msra.mxu0 0.0
    %2771 = vmatprep.subr.mxu0 0.0
    %2772 = vmatpush1.msra.mxu0 0.0
    %2773 = vmatprep.subr.mxu0 0.0
    %2774 = vmatpush1.msra.mxu0 0.0
    %2775 = vmatprep.subr.mxu0 0.0
    %2776 = vmatpush1.msra.mxu0 0.0
    %2777 = vmatprep.subr.mxu0 0.0
    %2778 = vmatpush1.msra.mxu0 0.0
    %2779 = vmatprep.subr.mxu0 0.0
    %2780 = vmatpush1.msra.mxu0 0.0
    %2781 = vmatprep.subr.mxu0 0.0
    %2782 = vmatpush1.msra.mxu0 0.0
    %2783 = vmatprep.subr.mxu0 0.0
    %2784 = vmatpush1.msra.mxu0 0.0
    %2785 = vmatprep.subr.mxu0 0.0
    %2786 = vmatpush1.msra.mxu0 0.0
    %2787 = vmatprep.subr.mxu0 0.0
    %2788 = vmatpush1.msra.mxu0 0.0
    %2789 = vmatprep.subr.mxu0 0.0
    %2790 = vmatpush1.msra.mxu0 0.0
    %2791 = vmatprep.mubr.f32.mxu0 0.0
    %2792 = vmatmul.mubr.f32.gmra.mrb[0].mxu0 %v2719
    %v2793 = vpop.f32.mrb[0].mxu0
    %v2794 = vadd.f32 %v2716, %v2793
    %v2795 = vpop.f32.mrb[0].mxu0
    %2796 = vmatprep.mubr.f32.mxu0 0.0
    %2797 = vmatmul.mubr.f32.gmra.mrb[0].mxu0 %v2722
    %v2798 = vpop.f32.mrb[0].mxu0
    %v2799 = vadd.f32 %v2716, %v2798
    %v2800 = vpop.f32.mrb[0].mxu0
    %2801 = vdwg.mxu0
    %v2803 = vsel %vm709, %v2799, 0
    %2805 = vmatprep.subr.mxu0 0.0
    %2806 = vmatpush1.msra.mxu0 %v2794
    %2807 = vmatprep.subr.mxu0 0.0
    %2808 = vmatpush1.msra.mxu0 %v2803
    %2809 = vmatprep.subr.mxu0 0.0
    %2810 = vmatpush1.msra.mxu0 0.0
    %2811 = vmatprep.subr.mxu0 0.0
    %2812 = vmatpush1.msra.mxu0 0.0
    %2813 = vmatprep.subr.mxu0 0.0
    %2814 = vmatpush1.msra.mxu0 0.0
    %2815 = vmatprep.subr.mxu0 0.0
    %2816 = vmatpush1.msra.mxu0 0.0
    %2817 = vmatprep.subr.mxu0 0.0
    %2818 = vmatpush1.msra.mxu0 0.0
    %2819 = vmatprep.subr.mxu0 0.0
    %2820 = vmatpush1.msra.mxu0 0.0
    %2821 = vmatprep.subr.mxu0 0.0
    %2822 = vmatpush1.msra.mxu0 0.0
    %2823 = vmatprep.subr.mxu0 0.0
    %2824 = vmatpush1.msra.mxu0 0.0
    %2825 = vmatprep.subr.mxu0 0.0
    %2826 = vmatpush1.msra.mxu0 0.0
    %2827 = vmatprep.subr.mxu0 0.0
    %2828 = vmatpush1.msra.mxu0 0.0
    %2829 = vmatprep.subr.mxu0 0.0
    %2830 = vmatpush1.msra.mxu0 0.0
    %2831 = vmatprep.subr.mxu0 0.0
    %2832 = vmatpush1.msra.mxu0 0.0
    %2833 = vmatprep.subr.mxu0 0.0
    %2834 = vmatpush1.msra.mxu0 0.0
    %2835 = vmatprep.subr.mxu0 0.0
    %2836 = vmatpush1.msra.mxu0 0.0
    %2837 = vmatprep.subr.mxu0 0.0
    %2838 = vmatpush1.msra.mxu0 0.0
    %2839 = vmatprep.subr.mxu0 0.0
    %2840 = vmatpush1.msra.mxu0 0.0
    %2841 = vmatprep.subr.mxu0 0.0
    %2842 = vmatpush1.msra.mxu0 0.0
    %2843 = vmatprep.subr.mxu0 0.0
    %2844 = vmatpush1.msra.mxu0 0.0
    %2845 = vmatprep.subr.mxu0 0.0
    %2846 = vmatpush1.msra.mxu0 0.0
    %2847 = vmatprep.subr.mxu0 0.0
    %2848 = vmatpush1.msra.mxu0 0.0
    %2849 = vmatprep.subr.mxu0 0.0
    %2850 = vmatpush1.msra.mxu0 0.0
    %2851 = vmatprep.subr.mxu0 0.0
    %2852 = vmatpush1.msra.mxu0 0.0
    %2853 = vmatprep.subr.mxu0 0.0
    %2854 = vmatpush1.msra.mxu0 0.0
    %2855 = vmatprep.subr.mxu0 0.0
    %2856 = vmatpush1.msra.mxu0 0.0
    %2857 = vmatprep.subr.mxu0 0.0
    %2858 = vmatpush1.msra.mxu0 0.0
    %2859 = vmatprep.subr.mxu0 0.0
    %2860 = vmatpush1.msra.mxu0 0.0
    %2861 = vmatprep.subr.mxu0 0.0
    %2862 = vmatpush1.msra.mxu0 0.0
    %2863 = vmatprep.subr.mxu0 0.0
    %2864 = vmatpush1.msra.mxu0 0.0
    %2865 = vmatprep.subr.mxu0 0.0
    %2866 = vmatpush1.msra.mxu0 0.0
    %2867 = vmatprep.subr.mxu0 0.0
    %2868 = vmatpush1.msra.mxu0 0.0
    %2869 = vmatprep.mubr.f32.mxu0 0.0
    %2870 = vmatmul.mubr.f32.gmra.mrb[0].mxu0 %v1155
    %v2871 = vpop.f32.mrb[0].mxu0
    %v2872 = vadd.f32 0.0, %v2871
    %v2873 = vpop.f32.mrb[0].mxu0
    %2874 = vmatprep.mubr.f32.mxu0 0.0
    %2875 = vmatmul.mubr.f32.gmra.mrb[0].mxu0 %v1158
    %v2876 = vpop.f32.mrb[0].mxu0
    %v2877 = vadd.f32 0.0, %v2876
    %v2878 = vpop.f32.mrb[0].mxu0
    %2879 = vdwg.mxu0
    %v2881 = vsel %vm709, %v515, 0
    %2883 = vmatprep.subr.mxu0 0.0
    %2884 = vmatpush1.msra.mxu0 %v2881
    %2885 = vmatprep.subr.mxu0 0.0
    %2886 = vmatpush1.msra.mxu0 0.0
    %2887 = vmatprep.subr.mxu0 0.0
    %2888 = vmatpush1.msra.mxu0 0.0
    %2889 = vmatprep.subr.mxu0 0.0
    %2890 = vmatpush1.msra.mxu0 0.0
    %2891 = vmatprep.subr.mxu0 0.0
    %2892 = vmatpush1.msra.mxu0 0.0
    %2893 = vmatprep.subr.mxu0 0.0
    %2894 = vmatpush1.msra.mxu0 0.0
    %2895 = vmatprep.subr.mxu0 0.0
    %2896 = vmatpush1.msra.mxu0 0.0
    %2897 = vmatprep.subr.mxu0 0.0
    %2898 = vmatpush1.msra.mxu0 0.0
    %2899 = vmatprep.subr.mxu0 0.0
    %2900 = vmatpush1.msra.mxu0 0.0
    %2901 = vmatprep.subr.mxu0 0.0
    %2902 = vmatpush1.msra.mxu0 0.0
    %2903 = vmatprep.subr.mxu0 0.0
    %2904 = vmatpush1.msra.mxu0 0.0
    %2905 = vmatprep.subr.mxu0 0.0
    %2906 = vmatpush1.msra.mxu0 0.0
    %2907 = vmatprep.subr.mxu0 0.0
    %2908 = vmatpush1.msra.mxu0 0.0
    %2909 = vmatprep.subr.mxu0 0.0
    %2910 = vmatpush1.msra.mxu0 0.0
    %2911 = vmatprep.subr.mxu0 0.0
    %2912 = vmatpush1.msra.mxu0 0.0
    %2913 = vmatprep.subr.mxu0 0.0
    %2914 = vmatpush1.msra.mxu0 0.0
    %2915 = vmatprep.subr.mxu0 0.0
    %2916 = vmatpush1.msra.mxu0 0.0
    %2917 = vmatprep.subr.mxu0 0.0
    %2918 = vmatpush1.msra.mxu0 0.0
    %2919 = vmatprep.subr.mxu0 0.0
    %2920 = vmatpush1.msra.mxu0 0.0
    %2921 = vmatprep.subr.mxu0 0.0
    %2922 = vmatpush1.msra.mxu0 0.0
    %2923 = vmatprep.subr.mxu0 0.0
    %2924 = vmatpush1.msra.mxu0 0.0
    %2925 = vmatprep.subr.mxu0 0.0
    %2926 = vmatpush1.msra.mxu0 0.0
    %2927 = vmatprep.subr.mxu0 0.0
    %2928 = vmatpush1.msra.mxu0 0.0
    %2929 = vmatprep.subr.mxu0 0.0
    %2930 = vmatpush1.msra.mxu0 0.0
    %2931 = vmatprep.subr.mxu0 0.0
    %2932 = vmatpush1.msra.mxu0 0.0
    %2933 = vmatprep.subr.mxu0 0.0
    %2934 = vmatpush1.msra.mxu0 0.0
    %2935 = vmatprep.subr.mxu0 0.0
    %2936 = vmatpush1.msra.mxu0 0.0
    %2937 = vmatprep.subr.mxu0 0.0
    %2938 = vmatpush1.msra.mxu0 0.0
    %2939 = vmatprep.subr.mxu0 0.0
    %2940 = vmatpush1.msra.mxu0 0.0
    %2941 = vmatprep.subr.mxu0 0.0
    %2942 = vmatpush1.msra.mxu0 0.0
    %2943 = vmatprep.subr.mxu0 0.0
    %2944 = vmatpush1.msra.mxu0 0.0
    %2945 = vmatprep.subr.mxu0 0.0
    %2946 = vmatpush1.msra.mxu0 0.0
    %2947 = vmatprep.mubr.f32.mxu0 0.0
    %2948 = vmatmul.mubr.f32.gmra.mrb[0].mxu0 %v1239
    %v2949 = vpop.f32.mrb[0].mxu0
    %v2950 = vadd.f32 0.0, %v2949
    %v2951 = vpop.f32.mrb[0].mxu0
    %2952 = vmatprep.mubr.f32.mxu0 0.0
    %2953 = vmatmul.mubr.f32.gmra.mrb[0].mxu0 %v1241
    %v2954 = vpop.f32.mrb[0].mxu0
    %v2955 = vadd.f32 0.0, %v2954
    %v2956 = vpop.f32.mrb[0].mxu0
    %2957 = vdwg.mxu0
    %v2959 = vsel %vm1321, %v2872, 0
    %v2962 = vsel %vm1321, %v2877, 0
    %v2965 = vsel %vm1328, %v514, 0
    %2967 = vmatprep.subr.mxu0 0.0
    %2968 = vmatpush1.msra.mxu0 %v2965
    %2969 = vmatprep.subr.mxu0 0.0
    %2970 = vmatpush1.msra.mxu0 0.0
    %2971 = vmatprep.subr.mxu0 0.0
    %2972 = vmatpush1.msra.mxu0 0.0
    %2973 = vmatprep.subr.mxu0 0.0
    %2974 = vmatpush1.msra.mxu0 0.0
    %2975 = vmatprep.subr.mxu0 0.0
    %2976 = vmatpush1.msra.mxu0 0.0
    %2977 = vmatprep.subr.mxu0 0.0
    %2978 = vmatpush1.msra.mxu0 0.0
    %2979 = vmatprep.subr.mxu0 0.0
    %2980 = vmatpush1.msra.mxu0 0.0
    %2981 = vmatprep.subr.mxu0 0.0
    %2982 = vmatpush1.msra.mxu0 0.0
    %2983 = vmatprep.subr.mxu0 0.0
    %2984 = vmatpush1.msra.mxu0 0.0
    %2985 = vmatprep.subr.mxu0 0.0
    %2986 = vmatpush1.msra.mxu0 0.0
    %2987 = vmatprep.subr.mxu0 0.0
    %2988 = vmatpush1.msra.mxu0 0.0
    %2989 = vmatprep.subr.mxu0 0.0
    %2990 = vmatpush1.msra.mxu0 0.0
    %2991 = vmatprep.subr.mxu0 0.0
    %2992 = vmatpush1.msra.mxu0 0.0
    %2993 = vmatprep.subr.mxu0 0.0
    %2994 = vmatpush1.msra.mxu0 0.0
    %2995 = vmatprep.subr.mxu0 0.0
    %2996 = vmatpush1.msra.mxu0 0.0
    %2997 = vmatprep.subr.mxu0 0.0
    %2998 = vmatpush1.msra.mxu0 0.0
    %2999 = vmatprep.subr.mxu0 0.0
    %3000 = vmatpush1.msra.mxu0 0.0
    %3001 = vmatprep.subr.mxu0 0.0
    %3002 = vmatpush1.msra.mxu0 0.0
    %3003 = vmatprep.subr.mxu0 0.0
    %3004 = vmatpush1.msra.mxu0 0.0
    %3005 = vmatprep.subr.mxu0 0.0
    %3006 = vmatpush1.msra.mxu0 0.0
    %3007 = vmatprep.subr.mxu0 0.0
    %3008 = vmatpush1.msra.mxu0 0.0
    %3009 = vmatprep.subr.mxu0 0.0
    %3010 = vmatpush1.msra.mxu0 0.0
    %3011 = vmatprep.subr.mxu0 0.0
    %3012 = vmatpush1.msra.mxu0 0.0
    %3013 = vmatprep.subr.mxu0 0.0
    %3014 = vmatpush1.msra.mxu0 0.0
    %3015 = vmatprep.subr.mxu0 0.0
    %3016 = vmatpush1.msra.mxu0 0.0
    %3017 = vmatprep.subr.mxu0 0.0
    %3018 = vmatpush1.msra.mxu0 0.0
    %3019 = vmatprep.subr.mxu0 0.0
    %3020 = vmatpush1.msra.mxu0 0.0
    %3021 = vmatprep.subr.mxu0 0.0
    %3022 = vmatpush1.msra.mxu0 0.0
    %3023 = vmatprep.subr.mxu0 0.0
    %3024 = vmatpush1.msra.mxu0 0.0
    %3025 = vmatprep.subr.mxu0 0.0
    %3026 = vmatpush1.msra.mxu0 0.0
    %3027 = vmatprep.subr.mxu0 0.0
    %3028 = vmatpush1.msra.mxu0 0.0
    %3029 = vmatprep.subr.mxu0 0.0
    %3030 = vmatpush1.msra.mxu0 0.0
    %3031 = vmatprep.mubr.f32.mxu0 0.0
    %3032 = vmatmul.mubr.f32.gmra.mrb[0].mxu0 %v2959
    %v3033 = vpop.f32.mrb[0].mxu0
    %v3034 = vadd.f32 %v2950, %v3033
    %v3035 = vpop.f32.mrb[0].mxu0
    %3036 = vmatprep.mubr.f32.mxu0 0.0
    %3037 = vmatmul.mubr.f32.gmra.mrb[0].mxu0 %v2962
    %v3038 = vpop.f32.mrb[0].mxu0
    %v3039 = vadd.f32 %v2955, %v3038
    %v3040 = vpop.f32.mrb[0].mxu0
    %3041 = vdwg.mxu0
    %v3043 = vlaneseq
    %v3044 = vshrl.u32 %v3043, 7
    %v3045 = vsub.s32 0, %v3044
    %v3046 = vrot.slane %v516, %v3045
    %v3048 = vadd.f32 %v3034, %v3046
    %v3049 = vadd.f32 %v3039, %v3046
    %v3050 = vmax.f32 %v3048, 0.0
    %v3051 = vmax.f32 %v3049, 0.0
    %v3053 = vlaneseq
    %v3054 = vshrl.u32 %v3053, 7
    %v3055 = vsub.s32 0, %v3054
    %v3056 = vrot.slane %v524, %v3055
    %v3059 = vsel %vm976, %v3050, 0
    %v3062 = vsel %vm976, %v3051, 0
    %v3065 = vsel %vm542, %v523, 0
    %3067 = vmatprep.subr.mxu0 0.0
    %3068 = vmatpush1.msra.mxu0 %v517
    %3069 = vmatprep.subr.mxu0 0.0
    %3070 = vmatpush1.msra.mxu0 %v518
    %3071 = vmatprep.subr.mxu0 0.0
    %3072 = vmatpush1.msra.mxu0 %v519
    %3073 = vmatprep.subr.mxu0 0.0
    %3074 = vmatpush1.msra.mxu0 %v520
    %3075 = vmatprep.subr.mxu0 0.0
    %3076 = vmatpush1.msra.mxu0 %v521
    %3077 = vmatprep.subr.mxu0 0.0
    %3078 = vmatpush1.msra.mxu0 %v522
    %3079 = vmatprep.subr.mxu0 0.0
    %3080 = vmatpush1.msra.mxu0 %v3065
    %3081 = vmatprep.subr.mxu0 0.0
    %3082 = vmatpush1.msra.mxu0 0.0
    %3083 = vmatprep.subr.mxu0 0.0
    %3084 = vmatpush1.msra.mxu0 0.0
    %3085 = vmatprep.subr.mxu0 0.0
    %3086 = vmatpush1.msra.mxu0 0.0
    %3087 = vmatprep.subr.mxu0 0.0
    %3088 = vmatpush1.msra.mxu0 0.0
    %3089 = vmatprep.subr.mxu0 0.0
    %3090 = vmatpush1.msra.mxu0 0.0
    %3091 = vmatprep.subr.mxu0 0.0
    %3092 = vmatpush1.msra.mxu0 0.0
    %3093 = vmatprep.subr.mxu0 0.0
    %3094 = vmatpush1.msra.mxu0 0.0
    %3095 = vmatprep.subr.mxu0 0.0
    %3096 = vmatpush1.msra.mxu0 0.0
    %3097 = vmatprep.subr.mxu0 0.0
    %3098 = vmatpush1.msra.mxu0 0.0
    %3099 = vmatprep.subr.mxu0 0.0
    %3100 = vmatpush1.msra.mxu0 0.0
    %3101 = vmatprep.subr.mxu0 0.0
    %3102 = vmatpush1.msra.mxu0 0.0
    %3103 = vmatprep.subr.mxu0 0.0
    %3104 = vmatpush1.msra.mxu0 0.0
    %3105 = vmatprep.subr.mxu0 0.0
    %3106 = vmatpush1.msra.mxu0 0.0
    %3107 = vmatprep.subr.mxu0 0.0
    %3108 = vmatpush1.msra.mxu0 0.0
    %3109 = vmatprep.subr.mxu0 0.0
    %3110 = vmatpush1.msra.mxu0 0.0
    %3111 = vmatprep.subr.mxu0 0.0
    %3112 = vmatpush1.msra.mxu0 0.0
    %3113 = vmatprep.subr.mxu0 0.0
    %3114 = vmatpush1.msra.mxu0 0.0
    %3115 = vmatprep.subr.mxu0 0.0
    %3116 = vmatpush1.msra.mxu0 0.0
    %3117 = vmatprep.subr.mxu0 0.0
    %3118 = vmatpush1.msra.mxu0 0.0
    %3119 = vmatprep.subr.mxu0 0.0
    %3120 = vmatpush1.msra.mxu0 0.0
    %3121 = vmatprep.subr.mxu0 0.0
    %3122 = vmatpush1.msra.mxu0 0.0
    %3123 = vmatprep.subr.mxu0 0.0
    %3124 = vmatpush1.msra.mxu0 0.0
    %3125 = vmatprep.subr.mxu0 0.0
    %3126 = vmatpush1.msra.mxu0 0.0
    %3127 = vmatprep.subr.mxu0 0.0
    %3128 = vmatpush1.msra.mxu0 0.0
    %3129 = vmatprep.subr.mxu0 0.0
    %3130 = vmatpush1.msra.mxu0 0.0
    %3131 = vmatprep.mubr.f32.mxu0 0.0
    %3132 = vmatmul.mubr.f32.gmra.mrb[0].mxu0 %v3059
    %v3133 = vpop.f32.mrb[0].mxu0
    %v3134 = vadd.f32 %v3056, %v3133
    %v3135 = vpop.f32.mrb[0].mxu0
    %3136 = vmatprep.mubr.f32.mxu0 0.0
    %3137 = vmatmul.mubr.f32.gmra.mrb[0].mxu0 %v3062
    %v3138 = vpop.f32.mrb[0].mxu0
    %v3139 = vadd.f32 %v3056, %v3138
    %v3140 = vpop.f32.mrb[0].mxu0
    %3141 = vdwg.mxu0
    %v3142 = vmax.f32 %v3134, 0.0
    %v3143 = vmax.f32 %v3139, 0.0
    %v3145 = vsel %vm2361, %v460, 0
    %3147 = vmatprep.subr.mxu0 0.0
    %3148 = vmatpush1.msra.mxu0 %v3145
    %3149 = vmatprep.subr.mxu0 0.0
    %3150 = vmatpush1.msra.mxu0 0.0
    %3151 = vmatprep.subr.mxu0 0.0
    %3152 = vmatpush1.msra.mxu0 0.0
    %3153 = vmatprep.subr.mxu0 0.0
    %3154 = vmatpush1.msra.mxu0 0.0
    %3155 = vmatprep.subr.mxu0 0.0
    %3156 = vmatpush1.msra.mxu0 0.0
    %3157 = vmatprep.subr.mxu0 0.0
    %3158 = vmatpush1.msra.mxu0 0.0
    %3159 = vmatprep.subr.mxu0 0.0
    %3160 = vmatpush1.msra.mxu0 0.0
    %3161 = vmatprep.subr.mxu0 0.0
    %3162 = vmatpush1.msra.mxu0 0.0
    %3163 = vmatprep.subr.mxu0 0.0
    %3164 = vmatpush1.msra.mxu0 0.0
    %3165 = vmatprep.subr.mxu0 0.0
    %3166 = vmatpush1.msra.mxu0 0.0
    %3167 = vmatprep.subr.mxu0 0.0
    %3168 = vmatpush1.msra.mxu0 0.0
    %3169 = vmatprep.subr.mxu0 0.0
    %3170 = vmatpush1.msra.mxu0 0.0
    %3171 = vmatprep.subr.mxu0 0.0
    %3172 = vmatpush1.msra.mxu0 0.0
    %3173 = vmatprep.subr.mxu0 0.0
    %3174 = vmatpush1.msra.mxu0 0.0
    %3175 = vmatprep.subr.mxu0 0.0
    %3176 = vmatpush1.msra.mxu0 0.0
    %3177 = vmatprep.subr.mxu0 0.0
    %3178 = vmatpush1.msra.mxu0 0.0
    %3179 = vmatprep.subr.mxu0 0.0
    %3180 = vmatpush1.msra.mxu0 0.0
    %3181 = vmatprep.subr.mxu0 0.0
    %3182 = vmatpush1.msra.mxu0 0.0
    %3183 = vmatprep.subr.mxu0 0.0
    %3184 = vmatpush1.msra.mxu0 0.0
    %3185 = vmatprep.subr.mxu0 0.0
    %3186 = vmatpush1.msra.mxu0 0.0
    %3187 = vmatprep.subr.mxu0 0.0
    %3188 = vmatpush1.msra.mxu0 0.0
    %3189 = vmatprep.subr.mxu0 0.0
    %3190 = vmatpush1.msra.mxu0 0.0
    %3191 = vmatprep.subr.mxu0 0.0
    %3192 = vmatpush1.msra.mxu0 0.0
    %3193 = vmatprep.subr.mxu0 0.0
    %3194 = vmatpush1.msra.mxu0 0.0
    %3195 = vmatprep.subr.mxu0 0.0
    %3196 = vmatpush1.msra.mxu0 0.0
    %3197 = vmatprep.subr.mxu0 0.0
    %3198 = vmatpush1.msra.mxu0 0.0
    %3199 = vmatprep.subr.mxu0 0.0
    %3200 = vmatpush1.msra.mxu0 0.0
    %3201 = vmatprep.subr.mxu0 0.0
    %3202 = vmatpush1.msra.mxu0 0.0
    %3203 = vmatprep.subr.mxu0 0.0
    %3204 = vmatpush1.msra.mxu0 0.0
    %3205 = vmatprep.subr.mxu0 0.0
    %3206 = vmatpush1.msra.mxu0 0.0
    %3207 = vmatprep.subr.mxu0 0.0
    %3208 = vmatpush1.msra.mxu0 0.0
    %3209 = vmatprep.subr.mxu0 0.0
    %3210 = vmatpush1.msra.mxu0 0.0
    %3211 = vmatprep.mubr.f32.mxu0 0.0
    %3212 = vmatmul.mubr.f32.gmra.mrb[0].mxu0 %v2356
    %v3213 = vpop.f32.mrb[0].mxu0
    %v3214 = vadd.f32 0.0, %v3213
    %v3215 = vpop.f32.mrb[0].mxu0
    %3216 = vmatprep.mubr.f32.mxu0 0.0
    %3217 = vmatmul.mubr.f32.gmra.mrb[0].mxu0 %v2359
    %v3218 = vpop.f32.mrb[0].mxu0
    %v3219 = vadd.f32 0.0, %v3218
    %v3220 = vpop.f32.mrb[0].mxu0
    %3221 = vdwg.mxu0
    %v3223 = vsel %vm2361, %v459, 0
    %3225 = vmatprep.subr.mxu0 0.0
    %3226 = vmatpush1.msra.mxu0 %v3223
    %3227 = vmatprep.subr.mxu0 0.0
    %3228 = vmatpush1.msra.mxu0 0.0
    %3229 = vmatprep.subr.mxu0 0.0
    %3230 = vmatpush1.msra.mxu0 0.0
    %3231 = vmatprep.subr.mxu0 0.0
    %3232 = vmatpush1.msra.mxu0 0.0
    %3233 = vmatprep.subr.mxu0 0.0
    %3234 = vmatpush1.msra.mxu0 0.0
    %3235 = vmatprep.subr.mxu0 0.0
    %3236 = vmatpush1.msra.mxu0 0.0
    %3237 = vmatprep.subr.mxu0 0.0
    %3238 = vmatpush1.msra.mxu0 0.0
    %3239 = vmatprep.subr.mxu0 0.0
    %3240 = vmatpush1.msra.mxu0 0.0
    %3241 = vmatprep.subr.mxu0 0.0
    %3242 = vmatpush1.msra.mxu0 0.0
    %3243 = vmatprep.subr.mxu0 0.0
    %3244 = vmatpush1.msra.mxu0 0.0
    %3245 = vmatprep.subr.mxu0 0.0
    %3246 = vmatpush1.msra.mxu0 0.0
    %3247 = vmatprep.subr.mxu0 0.0
    %3248 = vmatpush1.msra.mxu0 0.0
    %3249 = vmatprep.subr.mxu0 0.0
    %3250 = vmatpush1.msra.mxu0 0.0
    %3251 = vmatprep.subr.mxu0 0.0
    %3252 = vmatpush1.msra.mxu0 0.0
    %3253 = vmatprep.subr.mxu0 0.0
    %3254 = vmatpush1.msra.mxu0 0.0
    %3255 = vmatprep.subr.mxu0 0.0
    %3256 = vmatpush1.msra.mxu0 0.0
    %3257 = vmatprep.subr.mxu0 0.0
    %3258 = vmatpush1.msra.mxu0 0.0
    %3259 = vmatprep.subr.mxu0 0.0
    %3260 = vmatpush1.msra.mxu0 0.0
    %3261 = vmatprep.subr.mxu0 0.0
    %3262 = vmatpush1.msra.mxu0 0.0
    %3263 = vmatprep.subr.mxu0 0.0
    %3264 = vmatpush1.msra.mxu0 0.0
    %3265 = vmatprep.subr.mxu0 0.0
    %3266 = vmatpush1.msra.mxu0 0.0
    %3267 = vmatprep.subr.mxu0 0.0
    %3268 = vmatpush1.msra.mxu0 0.0
    %3269 = vmatprep.subr.mxu0 0.0
    %3270 = vmatpush1.msra.mxu0 0.0
    %3271 = vmatprep.subr.mxu0 0.0
    %3272 = vmatpush1.msra.mxu0 0.0
    %3273 = vmatprep.subr.mxu0 0.0
    %3274 = vmatpush1.msra.mxu0 0.0
    %3275 = vmatprep.subr.mxu0 0.0
    %3276 = vmatpush1.msra.mxu0 0.0
    %3277 = vmatprep.subr.mxu0 0.0
    %3278 = vmatpush1.msra.mxu0 0.0
    %3279 = vmatprep.subr.mxu0 0.0
    %3280 = vmatpush1.msra.mxu0 0.0
    %3281 = vmatprep.subr.mxu0 0.0
    %3282 = vmatpush1.msra.mxu0 0.0
    %3283 = vmatprep.subr.mxu0 0.0
    %3284 = vmatpush1.msra.mxu0 0.0
    %3285 = vmatprep.subr.mxu0 0.0
    %3286 = vmatpush1.msra.mxu0 0.0
    %3287 = vmatprep.subr.mxu0 0.0
    %3288 = vmatpush1.msra.mxu0 0.0
    %3289 = vmatprep.mubr.f32.mxu0 0.0
    %3290 = vmatmul.mubr.f32.gmra.mrb[0].mxu0 %v2441
    %v3291 = vpop.f32.mrb[0].mxu0
    %v3292 = vadd.f32 %v3214, %v3291
    %v3293 = vpop.f32.mrb[0].mxu0
    %3294 = vmatprep.mubr.f32.mxu0 0.0
    %3295 = vmatmul.mubr.f32.gmra.mrb[0].mxu0 %v2444
    %v3296 = vpop.f32.mrb[0].mxu0
    %v3297 = vadd.f32 %v3219, %v3296
    %v3298 = vpop.f32.mrb[0].mxu0
    %3299 = vdwg.mxu0
    %v3301 = vsel %vm2361, %v461, 0
    %3303 = vmatprep.subr.mxu0 0.0
    %3304 = vmatpush1.msra.mxu0 %v3301
    %3305 = vmatprep.subr.mxu0 0.0
    %3306 = vmatpush1.msra.mxu0 0.0
    %3307 = vmatprep.subr.mxu0 0.0
    %3308 = vmatpush1.msra.mxu0 0.0
    %3309 = vmatprep.subr.mxu0 0.0
    %3310 = vmatpush1.msra.mxu0 0.0
    %3311 = vmatprep.subr.mxu0 0.0
    %3312 = vmatpush1.msra.mxu0 0.0
    %3313 = vmatprep.subr.mxu0 0.0
    %3314 = vmatpush1.msra.mxu0 0.0
    %3315 = vmatprep.subr.mxu0 0.0
    %3316 = vmatpush1.msra.mxu0 0.0
    %3317 = vmatprep.subr.mxu0 0.0
    %3318 = vmatpush1.msra.mxu0 0.0
    %3319 = vmatprep.subr.mxu0 0.0
    %3320 = vmatpush1.msra.mxu0 0.0
    %3321 = vmatprep.subr.mxu0 0.0
    %3322 = vmatpush1.msra.mxu0 0.0
    %3323 = vmatprep.subr.mxu0 0.0
    %3324 = vmatpush1.msra.mxu0 0.0
    %3325 = vmatprep.subr.mxu0 0.0
    %3326 = vmatpush1.msra.mxu0 0.0
    %3327 = vmatprep.subr.mxu0 0.0
    %3328 = vmatpush1.msra.mxu0 0.0
    %3329 = vmatprep.subr.mxu0 0.0
    %3330 = vmatpush1.msra.mxu0 0.0
    %3331 = vmatprep.subr.mxu0 0.0
    %3332 = vmatpush1.msra.mxu0 0.0
    %3333 = vmatprep.subr.mxu0 0.0
    %3334 = vmatpush1.msra.mxu0 0.0
    %3335 = vmatprep.subr.mxu0 0.0
    %3336 = vmatpush1.msra.mxu0 0.0
    %3337 = vmatprep.subr.mxu0 0.0
    %3338 = vmatpush1.msra.mxu0 0.0
    %3339 = vmatprep.subr.mxu0 0.0
    %3340 = vmatpush1.msra.mxu0 0.0
    %3341 = vmatprep.subr.mxu0 0.0
    %3342 = vmatpush1.msra.mxu0 0.0
    %3343 = vmatprep.subr.mxu0 0.0
    %3344 = vmatpush1.msra.mxu0 0.0
    %3345 = vmatprep.subr.mxu0 0.0
    %3346 = vmatpush1.msra.mxu0 0.0
    %3347 = vmatprep.subr.mxu0 0.0
    %3348 = vmatpush1.msra.mxu0 0.0
    %3349 = vmatprep.subr.mxu0 0.0
    %3350 = vmatpush1.msra.mxu0 0.0
    %3351 = vmatprep.subr.mxu0 0.0
    %3352 = vmatpush1.msra.mxu0 0.0
    %3353 = vmatprep.subr.mxu0 0.0
    %3354 = vmatpush1.msra.mxu0 0.0
    %3355 = vmatprep.subr.mxu0 0.0
    %3356 = vmatpush1.msra.mxu0 0.0
    %3357 = vmatprep.subr.mxu0 0.0
    %3358 = vmatpush1.msra.mxu0 0.0
    %3359 = vmatprep.subr.mxu0 0.0
    %3360 = vmatpush1.msra.mxu0 0.0
    %3361 = vmatprep.subr.mxu0 0.0
    %3362 = vmatpush1.msra.mxu0 0.0
    %3363 = vmatprep.subr.mxu0 0.0
    %3364 = vmatpush1.msra.mxu0 0.0
    %3365 = vmatprep.subr.mxu0 0.0
    %3366 = vmatpush1.msra.mxu0 0.0
    %3367 = vmatprep.mubr.f32.mxu0 0.0
    %3368 = vmatmul.mubr.f32.gmra.mrb[0].mxu0 %v2525
    %v3369 = vpop.f32.mrb[0].mxu0
    %v3370 = vadd.f32 0.0, %v3369
    %v3371 = vpop.f32.mrb[0].mxu0
    %3372 = vmatprep.mubr.f32.mxu0 0.0
    %3373 = vmatmul.mubr.f32.gmra.mrb[0].mxu0 %v2528
    %v3374 = vpop.f32.mrb[0].mxu0
    %v3375 = vadd.f32 0.0, %v3374
    %v3376 = vpop.f32.mrb[0].mxu0
    %3377 = vdwg.mxu0
    %v3378 = vadd.f32 %v3292, %v3370
    %v3379 = vadd.f32 %v3297, %v3375
    %v3381 = vlaneseq
    %v3382 = vshrl.u32 %v3381, 7
    %v3383 = vsub.s32 0, %v3382
    %v3384 = vrot.slane %v462, %v3383
    %v3386 = vadd.f32 %v3378, %v3384
    %v3387 = vadd.f32 %v3379, %v3384
    %v3388 = vmax.f32 %v3386, 0.0
    %v3389 = vmax.f32 %v3387, 0.0
    %v3391 = vlaneseq
    %v3392 = vshrl.u32 %v3391, 7
    %v3393 = vsub.s32 0, %v3392
    %v3394 = vrot.slane %v435, %v3393
    %v3397 = vsel %vm976, %v3388, 0
    %v3400 = vsel %vm976, %v3389, 0
    %v3403 = vsel %vm542, %v434, 0
    %3405 = vmatprep.subr.mxu0 0.0
    %3406 = vmatpush1.msra.mxu0 %v428
    %3407 = vmatprep.subr.mxu0 0.0
    %3408 = vmatpush1.msra.mxu0 %v429
    %3409 = vmatprep.subr.mxu0 0.0
    %3410 = vmatpush1.msra.mxu0 %v430
    %3411 = vmatprep.subr.mxu0 0.0
    %3412 = vmatpush1.msra.mxu0 %v431
    %3413 = vmatprep.subr.mxu0 0.0
    %3414 = vmatpush1.msra.mxu0 %v432
    %3415 = vmatprep.subr.mxu0 0.0
    %3416 = vmatpush1.msra.mxu0 %v433
    %3417 = vmatprep.subr.mxu0 0.0
    %3418 = vmatpush1.msra.mxu0 %v3403
    %3419 = vmatprep.subr.mxu0 0.0
    %3420 = vmatpush1.msra.mxu0 0.0
    %3421 = vmatprep.subr.mxu0 0.0
    %3422 = vmatpush1.msra.mxu0 0.0
    %3423 = vmatprep.subr.mxu0 0.0
    %3424 = vmatpush1.msra.mxu0 0.0
    %3425 = vmatprep.subr.mxu0 0.0
    %3426 = vmatpush1.msra.mxu0 0.0
    %3427 = vmatprep.subr.mxu0 0.0
    %3428 = vmatpush1.msra.mxu0 0.0
    %3429 = vmatprep.subr.mxu0 0.0
    %3430 = vmatpush1.msra.mxu0 0.0
    %3431 = vmatprep.subr.mxu0 0.0
    %3432 = vmatpush1.msra.mxu0 0.0
    %3433 = vmatprep.subr.mxu0 0.0
    %3434 = vmatpush1.msra.mxu0 0.0
    %3435 = vmatprep.subr.mxu0 0.0
    %3436 = vmatpush1.msra.mxu0 0.0
    %3437 = vmatprep.subr.mxu0 0.0
    %3438 = vmatpush1.msra.mxu0 0.0
    %3439 = vmatprep.subr.mxu0 0.0
    %3440 = vmatpush1.msra.mxu0 0.0
    %3441 = vmatprep.subr.mxu0 0.0
    %3442 = vmatpush1.msra.mxu0 0.0
    %3443 = vmatprep.subr.mxu0 0.0
    %3444 = vmatpush1.msra.mxu0 0.0
    %3445 = vmatprep.subr.mxu0 0.0
    %3446 = vmatpush1.msra.mxu0 0.0
    %3447 = vmatprep.subr.mxu0 0.0
    %3448 = vmatpush1.msra.mxu0 0.0
    %3449 = vmatprep.subr.mxu0 0.0
    %3450 = vmatpush1.msra.mxu0 0.0
    %3451 = vmatprep.subr.mxu0 0.0
    %3452 = vmatpush1.msra.mxu0 0.0
    %3453 = vmatprep.subr.mxu0 0.0
    %3454 = vmatpush1.msra.mxu0 0.0
    %3455 = vmatprep.subr.mxu0 0.0
    %3456 = vmatpush1.msra.mxu0 0.0
    %3457 = vmatprep.subr.mxu0 0.0
    %3458 = vmatpush1.msra.mxu0 0.0
    %3459 = vmatprep.subr.mxu0 0.0
    %3460 = vmatpush1.msra.mxu0 0.0
    %3461 = vmatprep.subr.mxu0 0.0
    %3462 = vmatpush1.msra.mxu0 0.0
    %3463 = vmatprep.subr.mxu0 0.0
    %3464 = vmatpush1.msra.mxu0 0.0
    %3465 = vmatprep.subr.mxu0 0.0
    %3466 = vmatpush1.msra.mxu0 0.0
    %3467 = vmatprep.subr.mxu0 0.0
    %3468 = vmatpush1.msra.mxu0 0.0
    %3469 = vmatprep.mubr.f32.mxu0 0.0
    %3470 = vmatmul.mubr.f32.gmra.mrb[0].mxu0 %v3397
    %v3471 = vpop.f32.mrb[0].mxu0
    %v3472 = vadd.f32 %v3394, %v3471
    %v3473 = vpop.f32.mrb[0].mxu0
    %3474 = vmatprep.mubr.f32.mxu0 0.0
    %3475 = vmatmul.mubr.f32.gmra.mrb[0].mxu0 %v3400
    %v3476 = vpop.f32.mrb[0].mxu0
    %v3477 = vadd.f32 %v3394, %v3476
    %v3478 = vpop.f32.mrb[0].mxu0
    %3479 = vdwg.mxu0
    %v3480 = vmax.f32 %v3472, 0.0
    %v3481 = vmax.f32 %v3477, 0.0
    %v3483 = vlaneseq
    %v3484 = vshrl.u32 %v3483, 7
    %v3485 = vsub.s32 0, %v3484
    %v3486 = vrot.slane %v443, %v3485
    %v3489 = vsel %vm976, %v3480, 0
    %v3492 = vsel %vm976, %v3481, 0
    %v3495 = vsel %vm542, %v442, 0
    %3497 = vmatprep.subr.mxu0 0.0
    %3498 = vmatpush1.msra.mxu0 %v436
    %3499 = vmatprep.subr.mxu0 0.0
    %3500 = vmatpush1.msra.mxu0 %v437
    %3501 = vmatprep.subr.mxu0 0.0
    %3502 = vmatpush1.msra.mxu0 %v438
    %3503 = vmatprep.subr.mxu0 0.0
    %3504 = vmatpush1.msra.mxu0 %v439
    %3505 = vmatprep.subr.mxu0 0.0
    %3506 = vmatpush1.msra.mxu0 %v440
    %3507 = vmatprep.subr.mxu0 0.0
    %3508 = vmatpush1.msra.mxu0 %v441
    %3509 = vmatprep.subr.mxu0 0.0
    %3510 = vmatpush1.msra.mxu0 %v3495
    %3511 = vmatprep.subr.mxu0 0.0
    %3512 = vmatpush1.msra.mxu0 0.0
    %3513 = vmatprep.subr.mxu0 0.0
    %3514 = vmatpush1.msra.mxu0 0.0
    %3515 = vmatprep.subr.mxu0 0.0
    %3516 = vmatpush1.msra.mxu0 0.0
    %3517 = vmatprep.subr.mxu0 0.0
    %3518 = vmatpush1.msra.mxu0 0.0
    %3519 = vmatprep.subr.mxu0 0.0
    %3520 = vmatpush1.msra.mxu0 0.0
    %3521 = vmatprep.subr.mxu0 0.0
    %3522 = vmatpush1.msra.mxu0 0.0
    %3523 = vmatprep.subr.mxu0 0.0
    %3524 = vmatpush1.msra.mxu0 0.0
    %3525 = vmatprep.subr.mxu0 0.0
    %3526 = vmatpush1.msra.mxu0 0.0
    %3527 = vmatprep.subr.mxu0 0.0
    %3528 = vmatpush1.msra.mxu0 0.0
    %3529 = vmatprep.subr.mxu0 0.0
    %3530 = vmatpush1.msra.mxu0 0.0
    %3531 = vmatprep.subr.mxu0 0.0
    %3532 = vmatpush1.msra.mxu0 0.0
    %3533 = vmatprep.subr.mxu0 0.0
    %3534 = vmatpush1.msra.mxu0 0.0
    %3535 = vmatprep.subr.mxu0 0.0
    %3536 = vmatpush1.msra.mxu0 0.0
    %3537 = vmatprep.subr.mxu0 0.0
    %3538 = vmatpush1.msra.mxu0 0.0
    %3539 = vmatprep.subr.mxu0 0.0
    %3540 = vmatpush1.msra.mxu0 0.0
    %3541 = vmatprep.subr.mxu0 0.0
    %3542 = vmatpush1.msra.mxu0 0.0
    %3543 = vmatprep.subr.mxu0 0.0
    %3544 = vmatpush1.msra.mxu0 0.0
    %3545 = vmatprep.subr.mxu0 0.0
    %3546 = vmatpush1.msra.mxu0 0.0
    %3547 = vmatprep.subr.mxu0 0.0
    %3548 = vmatpush1.msra.mxu0 0.0
    %3549 = vmatprep.subr.mxu0 0.0
    %3550 = vmatpush1.msra.mxu0 0.0
    %3551 = vmatprep.subr.mxu0 0.0
    %3552 = vmatpush1.msra.mxu0 0.0
    %3553 = vmatprep.subr.mxu0 0.0
    %3554 = vmatpush1.msra.mxu0 0.0
    %3555 = vmatprep.subr.mxu0 0.0
    %3556 = vmatpush1.msra.mxu0 0.0
    %3557 = vmatprep.subr.mxu0 0.0
    %3558 = vmatpush1.msra.mxu0 0.0
    %3559 = vmatprep.subr.mxu0 0.0
    %3560 = vmatpush1.msra.mxu0 0.0
    %3561 = vmatprep.mubr.f32.mxu0 0.0
    %3562 = vmatmul.mubr.f32.gmra.mrb[0].mxu0 %v3489
    %v3563 = vpop.f32.mrb[0].mxu0
    %v3564 = vadd.f32 %v3486, %v3563
    %v3565 = vpop.f32.mrb[0].mxu0
    %3566 = vmatprep.mubr.f32.mxu0 0.0
    %3567 = vmatmul.mubr.f32.gmra.mrb[0].mxu0 %v3492
    %v3568 = vpop.f32.mrb[0].mxu0
    %v3569 = vadd.f32 %v3486, %v3568
    %v3570 = vpop.f32.mrb[0].mxu0
    %3571 = vdwg.mxu0
    %v3573 = vsel %vm879, %v445, 0
    %3575 = vmatprep.subr.mxu0 0.0
    %3576 = vmatpush1.msra.mxu0 %v3573
    %3577 = vmatprep.subr.mxu0 0.0
    %3578 = vmatpush1.msra.mxu0 0.0
    %3579 = vmatprep.subr.mxu0 0.0
    %3580 = vmatpush1.msra.mxu0 0.0
    %3581 = vmatprep.subr.mxu0 0.0
    %3582 = vmatpush1.msra.mxu0 0.0
    %3583 = vmatprep.subr.mxu0 0.0
    %3584 = vmatpush1.msra.mxu0 0.0
    %3585 = vmatprep.subr.mxu0 0.0
    %3586 = vmatpush1.msra.mxu0 0.0
    %3587 = vmatprep.subr.mxu0 0.0
    %3588 = vmatpush1.msra.mxu0 0.0
    %3589 = vmatprep.subr.mxu0 0.0
    %3590 = vmatpush1.msra.mxu0 0.0
    %3591 = vmatprep.subr.mxu0 0.0
    %3592 = vmatpush1.msra.mxu0 0.0
    %3593 = vmatprep.subr.mxu0 0.0
    %3594 = vmatpush1.msra.mxu0 0.0
    %3595 = vmatprep.subr.mxu0 0.0
    %3596 = vmatpush1.msra.mxu0 0.0
    %3597 = vmatprep.subr.mxu0 0.0
    %3598 = vmatpush1.msra.mxu0 0.0
    %3599 = vmatprep.subr.mxu0 0.0
    %3600 = vmatpush1.msra.mxu0 0.0
    %3601 = vmatprep.subr.mxu0 0.0
    %3602 = vmatpush1.msra.mxu0 0.0
    %3603 = vmatprep.subr.mxu0 0.0
    %3604 = vmatpush1.msra.mxu0 0.0
    %3605 = vmatprep.subr.mxu0 0.0
    %3606 = vmatpush1.msra.mxu0 0.0
    %3607 = vmatprep.subr.mxu0 0.0
    %3608 = vmatpush1.msra.mxu0 0.0
    %3609 = vmatprep.subr.mxu0 0.0
    %3610 = vmatpush1.msra.mxu0 0.0
    %3611 = vmatprep.subr.mxu0 0.0
    %3612 = vmatpush1.msra.mxu0 0.0
    %3613 = vmatprep.subr.mxu0 0.0
    %3614 = vmatpush1.msra.mxu0 0.0
    %3615 = vmatprep.subr.mxu0 0.0
    %3616 = vmatpush1.msra.mxu0 0.0
    %3617 = vmatprep.subr.mxu0 0.0
    %3618 = vmatpush1.msra.mxu0 0.0
    %3619 = vmatprep.subr.mxu0 0.0
    %3620 = vmatpush1.msra.mxu0 0.0
    %3621 = vmatprep.subr.mxu0 0.0
    %3622 = vmatpush1.msra.mxu0 0.0
    %3623 = vmatprep.subr.mxu0 0.0
    %3624 = vmatpush1.msra.mxu0 0.0
    %3625 = vmatprep.subr.mxu0 0.0
    %3626 = vmatpush1.msra.mxu0 0.0
    %3627 = vmatprep.subr.mxu0 0.0
    %3628 = vmatpush1.msra.mxu0 0.0
    %3629 = vmatprep.subr.mxu0 0.0
    %3630 = vmatpush1.msra.mxu0 0.0
    %3631 = vmatprep.subr.mxu0 0.0
    %3632 = vmatpush1.msra.mxu0 0.0
    %3633 = vmatprep.subr.mxu0 0.0
    %3634 = vmatpush1.msra.mxu0 0.0
    %3635 = vmatprep.subr.mxu0 0.0
    %3636 = vmatpush1.msra.mxu0 0.0
    %3637 = vmatprep.subr.mxu0 0.0
    %3638 = vmatpush1.msra.mxu0 0.0
    %3639 = vmatprep.mubr.f32.mxu0 0.0
    %3640 = vmatmul.mubr.f32.gmra.mrb[0].mxu0 %v874
    %v3641 = vpop.f32.mrb[0].mxu0
    %v3642 = vadd.f32 0.0, %v3641
    %v3643 = vpop.f32.mrb[0].mxu0
    %3644 = vmatprep.mubr.f32.mxu0 0.0
    %3645 = vmatmul.mubr.f32.gmra.mrb[0].mxu0 %v877
    %v3646 = vpop.f32.mrb[0].mxu0
    %v3647 = vadd.f32 0.0, %v3646
    %v3648 = vpop.f32.mrb[0].mxu0
    %3649 = vdwg.mxu0
    %v3651 = vsel %vm1321, %v3564, 0
    %v3654 = vsel %vm1321, %v3569, 0
    %v3657 = vsel %vm1328, %v444, 0
    %3659 = vmatprep.subr.mxu0 0.0
    %3660 = vmatpush1.msra.mxu0 %v3657
    %3661 = vmatprep.subr.mxu0 0.0
    %3662 = vmatpush1.msra.mxu0 0.0
    %3663 = vmatprep.subr.mxu0 0.0
    %3664 = vmatpush1.msra.mxu0 0.0
    %3665 = vmatprep.subr.mxu0 0.0
    %3666 = vmatpush1.msra.mxu0 0.0
    %3667 = vmatprep.subr.mxu0 0.0
    %3668 = vmatpush1.msra.mxu0 0.0
    %3669 = vmatprep.subr.mxu0 0.0
    %3670 = vmatpush1.msra.mxu0 0.0
    %3671 = vmatprep.subr.mxu0 0.0
    %3672 = vmatpush1.msra.mxu0 0.0
    %3673 = vmatprep.subr.mxu0 0.0
    %3674 = vmatpush1.msra.mxu0 0.0
    %3675 = vmatprep.subr.mxu0 0.0
    %3676 = vmatpush1.msra.mxu0 0.0
    %3677 = vmatprep.subr.mxu0 0.0
    %3678 = vmatpush1.msra.mxu0 0.0
    %3679 = vmatprep.subr.mxu0 0.0
    %3680 = vmatpush1.msra.mxu0 0.0
    %3681 = vmatprep.subr.mxu0 0.0
    %3682 = vmatpush1.msra.mxu0 0.0
    %3683 = vmatprep.subr.mxu0 0.0
    %3684 = vmatpush1.msra.mxu0 0.0
    %3685 = vmatprep.subr.mxu0 0.0
    %3686 = vmatpush1.msra.mxu0 0.0
    %3687 = vmatprep.subr.mxu0 0.0
    %3688 = vmatpush1.msra.mxu0 0.0
    %3689 = vmatprep.subr.mxu0 0.0
    %3690 = vmatpush1.msra.mxu0 0.0
    %3691 = vmatprep.subr.mxu0 0.0
    %3692 = vmatpush1.msra.mxu0 0.0
    %3693 = vmatprep.subr.mxu0 0.0
    %3694 = vmatpush1.msra.mxu0 0.0
    %3695 = vmatprep.subr.mxu0 0.0
    %3696 = vmatpush1.msra.mxu0 0.0
    %3697 = vmatprep.subr.mxu0 0.0
    %3698 = vmatpush1.msra.mxu0 0.0
    %3699 = vmatprep.subr.mxu0 0.0
    %3700 = vmatpush1.msra.mxu0 0.0
    %3701 = vmatprep.subr.mxu0 0.0
    %3702 = vmatpush1.msra.mxu0 0.0
    %3703 = vmatprep.subr.mxu0 0.0
    %3704 = vmatpush1.msra.mxu0 0.0
    %3705 = vmatprep.subr.mxu0 0.0
    %3706 = vmatpush1.msra.mxu0 0.0
    %3707 = vmatprep.subr.mxu0 0.0
    %3708 = vmatpush1.msra.mxu0 0.0
    %3709 = vmatprep.subr.mxu0 0.0
    %3710 = vmatpush1.msra.mxu0 0.0
    %3711 = vmatprep.subr.mxu0 0.0
    %3712 = vmatpush1.msra.mxu0 0.0
    %3713 = vmatprep.subr.mxu0 0.0
    %3714 = vmatpush1.msra.mxu0 0.0
    %3715 = vmatprep.subr.mxu0 0.0
    %3716 = vmatpush1.msra.mxu0 0.0
    %3717 = vmatprep.subr.mxu0 0.0
    %3718 = vmatpush1.msra.mxu0 0.0
    %3719 = vmatprep.subr.mxu0 0.0
    %3720 = vmatpush1.msra.mxu0 0.0
    %3721 = vmatprep.subr.mxu0 0.0
    %3722 = vmatpush1.msra.mxu0 0.0
    %3723 = vmatprep.mubr.f32.mxu0 0.0
    %3724 = vmatmul.mubr.f32.gmra.mrb[0].mxu0 %v3651
    %v3725 = vpop.f32.mrb[0].mxu0
    %v3726 = vadd.f32 %v3642, %v3725
    %v3727 = vpop.f32.mrb[0].mxu0
    %3728 = vmatprep.mubr.f32.mxu0 0.0
    %3729 = vmatmul.mubr.f32.gmra.mrb[0].mxu0 %v3654
    %v3730 = vpop.f32.mrb[0].mxu0
    %v3731 = vadd.f32 %v3647, %v3730
    %v3732 = vpop.f32.mrb[0].mxu0
    %3733 = vdwg.mxu0
    %v3735 = vlaneseq
    %v3736 = vshrl.u32 %v3735, 7
    %v3737 = vsub.s32 0, %v3736
    %v3738 = vrot.slane %v446, %v3737
    %v3740 = vadd.f32 %v3726, %v3738
    %v3741 = vadd.f32 %v3731, %v3738
    %v3742 = vmax.f32 %v3740, 0.0
    %v3743 = vmax.f32 %v3741, 0.0
    %v3745 = vlaneseq
    %v3746 = vshrl.u32 %v3745, 7
    %v3747 = vsub.s32 0, %v3746
    %v3748 = vrot.slane %v454, %v3747
    %v3751 = vsel %vm976, %v3742, 0
    %v3754 = vsel %vm976, %v3743, 0
    %v3757 = vsel %vm542, %v453, 0
    %3759 = vmatprep.subr.mxu0 0.0
    %3760 = vmatpush1.msra.mxu0 %v447
    %3761 = vmatprep.subr.mxu0 0.0
    %3762 = vmatpush1.msra.mxu0 %v448
    %3763 = vmatprep.subr.mxu0 0.0
    %3764 = vmatpush1.msra.mxu0 %v449
    %3765 = vmatprep.subr.mxu0 0.0
    %3766 = vmatpush1.msra.mxu0 %v450
    %3767 = vmatprep.subr.mxu0 0.0
    %3768 = vmatpush1.msra.mxu0 %v451
    %3769 = vmatprep.subr.mxu0 0.0
    %3770 = vmatpush1.msra.mxu0 %v452
    %3771 = vmatprep.subr.mxu0 0.0
    %3772 = vmatpush1.msra.mxu0 %v3757
    %3773 = vmatprep.subr.mxu0 0.0
    %3774 = vmatpush1.msra.mxu0 0.0
    %3775 = vmatprep.subr.mxu0 0.0
    %3776 = vmatpush1.msra.mxu0 0.0
    %3777 = vmatprep.subr.mxu0 0.0
    %3778 = vmatpush1.msra.mxu0 0.0
    %3779 = vmatprep.subr.mxu0 0.0
    %3780 = vmatpush1.msra.mxu0 0.0
    %3781 = vmatprep.subr.mxu0 0.0
    %3782 = vmatpush1.msra.mxu0 0.0
    %3783 = vmatprep.subr.mxu0 0.0
    %3784 = vmatpush1.msra.mxu0 0.0
    %3785 = vmatprep.subr.mxu0 0.0
    %3786 = vmatpush1.msra.mxu0 0.0
    %3787 = vmatprep.subr.mxu0 0.0
    %3788 = vmatpush1.msra.mxu0 0.0
    %3789 = vmatprep.subr.mxu0 0.0
    %3790 = vmatpush1.msra.mxu0 0.0
    %3791 = vmatprep.subr.mxu0 0.0
    %3792 = vmatpush1.msra.mxu0 0.0
    %3793 = vmatprep.subr.mxu0 0.0
    %3794 = vmatpush1.msra.mxu0 0.0
    %3795 = vmatprep.subr.mxu0 0.0
    %3796 = vmatpush1.msra.mxu0 0.0
    %3797 = vmatprep.subr.mxu0 0.0
    %3798 = vmatpush1.msra.mxu0 0.0
    %3799 = vmatprep.subr.mxu0 0.0
    %3800 = vmatpush1.msra.mxu0 0.0
    %3801 = vmatprep.subr.mxu0 0.0
    %3802 = vmatpush1.msra.mxu0 0.0
    %3803 = vmatprep.subr.mxu0 0.0
    %3804 = vmatpush1.msra.mxu0 0.0
    %3805 = vmatprep.subr.mxu0 0.0
    %3806 = vmatpush1.msra.mxu0 0.0
    %3807 = vmatprep.subr.mxu0 0.0
    %3808 = vmatpush1.msra.mxu0 0.0
    %3809 = vmatprep.subr.mxu0 0.0
    %3810 = vmatpush1.msra.mxu0 0.0
    %3811 = vmatprep.subr.mxu0 0.0
    %3812 = vmatpush1.msra.mxu0 0.0
    %3813 = vmatprep.subr.mxu0 0.0
    %3814 = vmatpush1.msra.mxu0 0.0
    %3815 = vmatprep.subr.mxu0 0.0
    %3816 = vmatpush1.msra.mxu0 0.0
    %3817 = vmatprep.subr.mxu0 0.0
    %3818 = vmatpush1.msra.mxu0 0.0
    %3819 = vmatprep.subr.mxu0 0.0
    %3820 = vmatpush1.msra.mxu0 0.0
    %3821 = vmatprep.subr.mxu0 0.0
    %3822 = vmatpush1.msra.mxu0 0.0
    %3823 = vmatprep.mubr.f32.mxu0 0.0
    %3824 = vmatmul.mubr.f32.gmra.mrb[0].mxu0 %v3751
    %v3825 = vpop.f32.mrb[0].mxu0
    %v3826 = vadd.f32 %v3748, %v3825
    %v3827 = vpop.f32.mrb[0].mxu0
    %3828 = vmatprep.mubr.f32.mxu0 0.0
    %3829 = vmatmul.mubr.f32.gmra.mrb[0].mxu0 %v3754
    %v3830 = vpop.f32.mrb[0].mxu0
    %v3831 = vadd.f32 %v3748, %v3830
    %v3832 = vpop.f32.mrb[0].mxu0
    %3833 = vdwg.mxu0
    %v3834 = vsel %vm872, %v3826, -inf
    %3835 = vmax.xlane.f32.xlu0 %v3834
    %v3836 = vpop.xlane.xlu0 %3835
    %vm3837 = vcmask 19456
    %v3838 = vsel %vm3837, %v3831, -inf
    %3839 = vmax.xlane.f32.xlu0 %v3838
    %v3840 = vpop.xlane.xlu0 %3839
    %v3841 = vsub.f32 %v3826, %v3836
    %v3842 = vsub.f32 %v3831, %v3840
    %v3843 = vmul.f32 %v3841, 1.442695
    %v3844 = vpow.pop %v3843
    %v3845 = vmul.f32 %v3842, 1.442695
    %v3846 = vpow.pop %v3845
    %v3847 = vsel %vm872, %v3844, 0.0
    %3848 = vadd.xlane.f32.xlu0 %v3847
    %v3849 = vpop.xlane.xlu0 %3848
    %v3850 = vsel %vm3837, %v3846, 0.0
    %3851 = vadd.xlane.f32.xlu0 %v3850
    %v3852 = vpop.xlane.xlu0 %3851
    %v3853 = vrcp.pop %v3849
    %v3854 = vrcp.pop %v3852
    %v3855 = vmul.f32 %v3844, %v3853
    %v3856 = vmul.f32 %v3846, %v3854
    %vm3857 = vcmask 64512
    %3858 = vst.msk [vmem:[%s115] sm:$0xff] %vm3857, %v3142
    %vm3859 = vcmask 58368
    %3860 = vst.msk [vmem:[%s115 + $0x8] sm:$0x3] %vm3859, %v3143
    %3861 = vst.msk [vmem:[%s117] sm:$0xff] %vm872, %v3855
    %3862 = vst.msk [vmem:[%s117 + $0x8] sm:$0xf] %vm3837, %v3856
    %3863 = vst.msk [vmem:[%s119] sm:$0xff] %vm872, %v3826
    %3864 = vst.msk [vmem:[%s119 + $0x8] sm:$0xf] %vm3837, %v3831
    // Predicated region
    $region286: #{inecn_forward.2} parent=1 // pred_check
      _
    $region287: #{inecn_forward.2} parent=1 // pred_check_branch
      %3866 = sbr.rel (0) target = $region289
    $region288: #{inecn_forward.2} parent=1 // pred_region
      _
    $region289: #{inecn_forward.2} parent=1 // pred_fallthru
      _
    // Predicated region
    $region290: #{inecn_forward.2} parent=1 // pred_check
      _
    $region291: #{inecn_forward.2} parent=1 // pred_check_branch
      %3868 = sbr.rel (0) target = $region293
    $region292: #{inecn_forward.2} parent=1 // pred_region
      _
    $region293: #{inecn_forward.2} parent=1 // pred_fallthru
      _
    // Predicated region
    $region294: #{inecn_forward.2} parent=1 // pred_check
      _
    $region295: #{inecn_forward.2} parent=1 // pred_check_branch
      %3870 = sbr.rel (0) target = $region297
    $region296: #{inecn_forward.2} parent=1 // pred_region
      _
    $region297: #{inecn_forward.2} parent=1 // pred_fallthru
      _
    // Predicated region
    $region298: #{inecn_forward.2} parent=1 // pred_check
      _
    $region299: #{inecn_forward.2} parent=1 // pred_check_branch
      %3872 = sbr.rel (0) target = $region301
    $region300: #{inecn_forward.2} parent=1 // pred_region
      _
    $region301: #{inecn_forward.2} parent=1 // pred_fallthru
      _
    // Predicated region
    $region302: #{inecn_forward.2} parent=1 // pred_check
      _
    $region303: #{inecn_forward.2} parent=1 // pred_check_branch
      %3874 = sbr.rel (0) target = $region305
    $region304: #{inecn_forward.2} parent=1 // pred_region
      _
    $region305: #{inecn_forward.2} parent=1 // pred_fallthru
      _
    // Predicated region
    $region306: #{inecn_forward.2} parent=1 // pred_check
      _
    $region307: #{inecn_forward.2} parent=1 // pred_check_branch
      %3876 = sbr.rel (0) target = $region309
    $region308: #{inecn_forward.2} parent=1 // pred_region
      _
    $region309: #{inecn_forward.2} parent=1 // pred_fallthru
      _
    %3877 = vsyncpa [#allocation3], 1
    %3878 = vsyncpa [#allocation5], 1
    %3879 = vsyncpa [#allocation8], 1
    %3880 = vsyncpa [#allocation11], 1
    %3881 = vsyncpa [#allocation14], 1
    %3882 = vsyncpa [#allocation17], 1
    %3883 = vsyncpa [#allocation20], 1
    %3884 = vsyncpa [#allocation23], 1

</llo_original>
